<compile_context>
chip_gen: v7x
topology: tpu7x:2x2x1
jax: 0.10.0
libtpu: 0.0.40
codegen_flags: <defaults>
</compile_context>

<pallas_src>
import math
import functools

import jax
import jax.numpy as jnp
from jax.experimental import pallas as pl
from jax.experimental.pallas import tpu as pltpu

NEG = -1e9          # finite "-inf" for additive attention masks
LN_EPS = 1e-5       # PyTorch LayerNorm default eps
GEN_ROW_TILE = 512  # generator row tile (review: 512 rows ~85% of roofline on v6e)
GEN_COL_TILE = 1024 # generator vocab tile (multiple of 128 -> lane-dense stores)


def _round_up(x, m):
    return (x + m - 1) // m * m


# --------------------------- in-kernel helpers ---------------------------

def _ln(z, g, b):
    mu = jnp.mean(z, axis=-1, keepdims=True)
    var = jnp.mean(jnp.square(z - mu), axis=-1, keepdims=True)
    return (z - mu) * jax.lax.rsqrt(var + LN_EPS) * g + b


def _mm(x, w_ref, b_ref):
    # bf16 MXU matmul with fp32 accumulation; bias add in fp32.
    return jnp.dot(x.astype(jnp.bfloat16), w_ref[...],
                   preferred_element_type=jnp.float32) + b_ref[...]


def _mha(q, k, v, attn_mask, key_bias, nhead, scale):
    """Multi-head attention for one batch element, entirely in VMEM/vregs.

    q: (Lq, E); k, v: (Lk, E); attn_mask: (Lq, Lk) additive fp32 or None;
    key_bias: (1, Lk) additive fp32 (key-padding).  Heads are split with static lane
    slices (review item: in-kernel head split), output is lane-dense (Lq, E) fp32.
    """
    E = q.shape[-1]
    dh = E // nhead
    outs = []
    for h in range(nhead):
        sl = slice(h * dh, (h + 1) * dh)
        qh = q[:, sl].astype(jnp.bfloat16)
        kh = k[:, sl].astype(jnp.bfloat16)
        vh = v[:, sl].astype(jnp.bfloat16)
        s = jax.lax.dot_general(qh, kh, (((1,), (1,)), ((), ())),
                                preferred_element_type=jnp.float32) * scale
        s = s + key_bias
        if attn_mask is not None:
            s = s + attn_mask
        s = s - jnp.max(s, axis=-1, keepdims=True)
        p = jnp.exp(s)
        p = p * pl.reciprocal(jnp.sum(p, axis=-1, keepdims=True), approx=True)
        outs.append(jnp.dot(p.astype(jnp.bfloat16), vh,
                            preferred_element_type=jnp.float32))
    return jnp.concatenate(outs, axis=-1)                  # (Lq, E) lane-dense


# ----------------------------- Pallas kernels -----------------------------

def _embed_pos_kernel(tok_ref, pos_ref, o_ref, *, scale):
    # o = tok_emb * sqrt(E) + pos_emb   (pos broadcast over batch via index_map)
    o_ref[...] = (tok_ref[...] * scale + pos_ref[...]).astype(o_ref.dtype)


def embed_pos(tok, pos):
    # tok: (B, L, E) fp32, pos: (1, L, E) fp32 -> (B, L, E) fp32
    B, L, E = tok.shape
    return pl.pallas_call(
        functools.partial(_embed_pos_kernel, scale=math.sqrt(E)),
        grid=(B,),
        in_specs=[pl.BlockSpec((1, L, E), lambda b: (b, 0, 0)),
                  pl.BlockSpec((1, L, E), lambda b: (0, 0, 0))],
        out_specs=pl.BlockSpec((1, L, E), lambda b: (b, 0, 0)),
        out_shape=jax.ShapeDtypeStruct((B, L, E), jnp.float32),
        compiler_params=pltpu.CompilerParams(dimension_semantics=("parallel",)),
    )(tok, pos)


def _encoder_layer_kernel(x_ref, am_ref, kb_ref,
                          wqkv_ref, bqkv_ref, wo_ref, bo_ref, g1_ref, be1_ref,
                          w1_ref, b1_ref, w2_ref, b2_ref, g2_ref, be2_ref,
                          o_ref, *, nhead, scale):
    # One full post-norm TransformerEncoderLayer for one batch element.
    x = x_ref[0]                                           # (S, E) fp32
    E = x.shape[-1]
    qkv = _mm(x, wqkv_ref, bqkv_ref)                       # (S, 3E) fused QKV projection
    a = _mha(qkv[:, :E], qkv[:, E:2 * E], qkv[:, 2 * E:],
             am_ref[...], kb_ref[0], nhead, scale)         # (S, E) lane-dense
    x = _ln(x + _mm(a, wo_ref, bo_ref), g1_ref[...], be1_ref[...])
    h = jnp.maximum(_mm(x, w1_ref, b1_ref), 0.0)           # relu FFN
    x = _ln(x + _mm(h, w2_ref, b2_ref), g2_ref[...], be2_ref[...])
    o_ref[0] = x.astype(o_ref.dtype)


def encoder_layer(x, attn_mask, key_bias, p, nhead):
    # x: (B, S, E) fp32; attn_mask: (S, S) fp32; key_bias: (B, 1, S) fp32
    B, S, E = x.shape
    sa = p['self_attn']
    F = p['w1'].shape[1]
    scale = 1.0 / math.sqrt(E // nhead)
    full = lambda shape: pl.BlockSpec(shape, lambda b: (0,) * len(shape))
    return pl.pallas_call(
        functools.partial(_encoder_layer_kernel, nhead=nhead, scale=scale),
        grid=(B,),
        in_specs=[
            pl.BlockSpec((1, S, E), lambda b: (b, 0, 0)),   # x (per batch)
            full((S, S)),                                   # additive attn mask (shared)
            pl.BlockSpec((1, 1, S), lambda b: (b, 0, 0)),   # key-padding bias (per batch)
            full((E, 3 * E)), full((1, 3 * E)),             # fused QKV proj
            full((E, E)), full((1, E)),                     # output proj
            full((1, E)), full((1, E)),                     # ln1
            full((E, F)), full((1, F)),                     # ffn w1
            full((F, E)), full((1, E)),                     # ffn w2
            full((1, E)), full((1, E)),                     # ln2
        ],
        out_specs=pl.BlockSpec((1, S, E), lambda b: (b, 0, 0)),
        out_shape=jax.ShapeDtypeStruct((B, S, E), jnp.float32),
        compiler_params=pltpu.CompilerParams(dimension_semantics=("parallel",)),
    )(x, attn_mask, key_bias,
      sa['w_qkv'], sa['b_qkv'], sa['wo'], sa['bo'], p['ln1_g'], p['ln1_b'],
      p['w1'], p['b1'], p['w2'], p['b2'], p['ln2_g'], p['ln2_b'])


def _decoder_layer_kernel(x_ref, mem_ref, am_ref, tkb_ref, mkb_ref,
                          wqkv_ref, bqkv_ref, wo1_ref, bo1_ref, g1_ref, be1_ref,
                          wq_ref, bq_ref, wkv_ref, bkv_ref, wo2_ref, bo2_ref,
                          g2_ref, be2_ref,
                          w1_ref, b1_ref, w2_ref, b2_ref, g3_ref, be3_ref,
                          o_ref, *, nhead, scale):
    # One full post-norm TransformerDecoderLayer for one batch element.
    x = x_ref[0]                                           # (T, E) fp32
    mem = mem_ref[0]                                       # (S, E) bf16 encoder memory
    E = x.shape[-1]
    # masked self-attention
    qkv = _mm(x, wqkv_ref, bqkv_ref)                       # (T, 3E)
    a = _mha(qkv[:, :E], qkv[:, E:2 * E], qkv[:, 2 * E:],
             am_ref[...], tkb_ref[0], nhead, scale)
    x = _ln(x + _mm(a, wo1_ref, bo1_ref), g1_ref[...], be1_ref[...])
    # cross-attention over encoder memory (memory_mask is None in the reference forward)
    q = _mm(x, wq_ref, bq_ref)                             # (T, E)
    kv = _mm(mem, wkv_ref, bkv_ref)                        # (S, 2E) fused KV projection
    c = _mha(q, kv[:, :E], kv[:, E:], None, mkb_ref[0], nhead, scale)
    x = _ln(x + _mm(c, wo2_ref, bo2_ref), g2_ref[...], be2_ref[...])
    # feed-forward
    h = jnp.maximum(_mm(x, w1_ref, b1_ref), 0.0)
    x = _ln(x + _mm(h, w2_ref, b2_ref), g3_ref[...], be3_ref[...])
    o_ref[0] = x.astype(o_ref.dtype)


def decoder_layer(x, memory, tgt_attn_mask, tgt_key_bias, mem_key_bias, p, nhead):
    # x: (B, T, E) fp32; memory: (B, S, E) bf16; masks as in encoder_layer.
    B, T, E = x.shape
    S = memory.shape[1]
    sa, ca = p['self_attn'], p['cross_attn']
    F = p['w1'].shape[1]
    scale = 1.0 / math.sqrt(E // nhead)
    full = lambda shape: pl.BlockSpec(shape, lambda b: (0,) * len(shape))
    return pl.pallas_call(
        functools.partial(_decoder_layer_kernel, nhead=nhead, scale=scale),
        grid=(B,),
        in_specs=[
            pl.BlockSpec((1, T, E), lambda b: (b, 0, 0)),   # x
            pl.BlockSpec((1, S, E), lambda b: (b, 0, 0)),   # encoder memory (bf16)
            full((T, T)),                                   # causal / attn mask (shared)
            pl.BlockSpec((1, 1, T), lambda b: (b, 0, 0)),   # tgt key-padding bias
            pl.BlockSpec((1, 1, S), lambda b: (b, 0, 0)),   # memory key-padding bias
            full((E, 3 * E)), full((1, 3 * E)),             # self-attn fused QKV
            full((E, E)), full((1, E)),                     # self-attn out proj
            full((1, E)), full((1, E)),                     # ln1
            full((E, E)), full((1, E)),                     # cross-attn q proj
            full((E, 2 * E)), full((1, 2 * E)),             # cross-attn fused KV
            full((E, E)), full((1, E)),                     # cross-attn out proj
            full((1, E)), full((1, E)),                     # ln2
            full((E, F)), full((1, F)),                     # ffn w1
            full((F, E)), full((1, E)),                     # ffn w2
            full((1, E)), full((1, E)),                     # ln3
        ],
        out_specs=pl.BlockSpec((1, T, E), lambda b: (b, 0, 0)),
        out_shape=jax.ShapeDtypeStruct((B, T, E), jnp.float32),
        compiler_params=pltpu.CompilerParams(dimension_semantics=("parallel",)),
    )(x, memory, tgt_attn_mask, tgt_key_bias, mem_key_bias,
      sa['w_qkv'], sa['b_qkv'], sa['wo'], sa['bo'], p['ln1_g'], p['ln1_b'],
      ca['wq'], ca['bq'], ca['w_kv'], ca['b_kv'], ca['wo'], ca['bo'],
      p['ln2_g'], p['ln2_b'],
      p['w1'], p['b1'], p['w2'], p['b2'], p['ln3_g'], p['ln3_b'])


def _linear_kernel(x_ref, w_ref, b_ref, o_ref):
    o_ref[...] = (jnp.dot(x_ref[...].astype(jnp.bfloat16), w_ref[...],
                          preferred_element_type=jnp.float32)
                  + b_ref[...]).astype(o_ref.dtype)


def generator_linear(x, w, b):
    # Final vocab projection.  x: (M, E) fp32, w: (E, Vp) bf16 with Vp a multiple of 128,
    # b: (1, Vp) fp32.  Returns 128-padded logits (padded weight columns are zero, so the
    # padded logits are exactly 0 -- no post-hoc slice inside the hot path).
    M, E = x.shape
    Vp = w.shape[1]
    bm = min(M, GEN_ROW_TILE)
    bn = min(Vp, GEN_COL_TILE)
    return pl.pallas_call(
        _linear_kernel,
        grid=(pl.cdiv(M, bm), pl.cdiv(Vp, bn)),
        in_specs=[pl.BlockSpec((bm, E), lambda i, j: (i, 0)),
                  pl.BlockSpec((E, bn), lambda i, j: (0, j)),
                  pl.BlockSpec((1, bn), lambda i, j: (0, j))],
        out_specs=pl.BlockSpec((bm, bn), lambda i, j: (i, j)),
        out_shape=jax.ShapeDtypeStruct((M, Vp), jnp.float32),
        compiler_params=pltpu.CompilerParams(
            dimension_semantics=("parallel", "parallel")),
    )(x, w, b)


# --------------------------- model glue (plain JAX) ---------------------------

def seq2seq_transformer_forward(params, src, tgt, src_mask, tgt_mask,
                                src_padding_mask, tgt_padding_mask,
                                memory_key_padding_mask, *, nhead,
                                return_padded_logits=False):
    E = params['pos_emb'].shape[-1]
    tgt_vocab = params['tgt_emb'].shape[0]
    S, B = src.shape
    T = tgt.shape[0]

    # TokenEmbedding gather (XLA) in batch-major (B, L, E) layout, then
    # scale-by-sqrt(E) + positional encoding in a small per-batch Pallas kernel.
    src_tok = jnp.take(params['src_emb'], src.T, axis=0)        # (B, S, E)
    tgt_tok = jnp.take(params['tgt_emb'], tgt.T, axis=0)        # (B, T, E)
    src_x = embed_pos(src_tok, params['pos_emb'][:S][None])
    tgt_x = embed_pos(tgt_tok, params['pos_emb'][:T][None])
    # TODO(synk): dropout (p=0.1) omitted -- forward matches eval() semantics.

    # Additive key-padding biases, built ONCE and hoisted out of the layer loops.
    # No (B, Lq, Lk) mask tensor is ever materialized in HBM.
    src_kb = jnp.where(src_padding_mask, NEG, 0.0).astype(jnp.float32)[:, None, :]
    tgt_kb = jnp.where(tgt_padding_mask, NEG, 0.0).astype(jnp.float32)[:, None, :]
    mem_kb = jnp.where(memory_key_padding_mask, NEG, 0.0).astype(jnp.float32)[:, None, :]
    src_am = src_mask.astype(jnp.float32)
    tgt_am = tgt_mask.astype(jnp.float32)

    mem = src_x
    for p in params['enc_layers']:
        mem = encoder_layer(mem, src_am, src_kb, p, nhead)
    # Memory is only ever consumed by bf16 MXU matmuls in the decoder -> store it bf16
    # (halves the per-decoder-layer HBM read); residual/LN paths stay fp32 in-kernel.
    mem = mem.astype(jnp.bfloat16)

    out = tgt_x
    for p in params['dec_layers']:
        out = decoder_layer(out, mem, tgt_am, tgt_kb, mem_kb, p, nhead)

    # (B, T, E) -> (T, B, E) on the small pre-logits tensor, then vocab projection.
    out_tbe = jnp.transpose(out, (1, 0, 2)).reshape(T * B, E)
    logits = generator_linear(out_tbe, params['gen_w'], params['gen_b'])
    logits = logits.reshape(T, B, -1)
    if return_padded_logits:
        return logits                      # (T, B, round_up(V,128)); padded cols are 0
    return logits[..., :tgt_vocab]


# ----------------------------- parameter init -----------------------------

def make_pos_embedding(emb_size, maxlen=64):
    den = jnp.exp(-jnp.arange(0, emb_size, 2, dtype=jnp.float32)
                  * math.log(10000.0) / emb_size)
    pos = jnp.arange(0, maxlen, dtype=jnp.float32).reshape(maxlen, 1)
    pe = jnp.zeros((maxlen, emb_size), jnp.float32)
    pe = pe.at[:, 0::2].set(jnp.sin(pos * den))
    pe = pe.at[:, 1::2].set(jnp.cos(pos * den))
    return pe                                              # (maxlen, E)


def _init_self_attn(key, E, scale=0.05):
    ks = jax.random.split(key, 4)
    wq, wk, wv, wo = (scale * jax.random.normal(k, (E, E), jnp.float32) for k in ks)
    return {
        'w_qkv': jnp.concatenate([wq, wk, wv], axis=1).astype(jnp.bfloat16),
        'b_qkv': jnp.zeros((1, 3 * E), jnp.float32),
        'wo': wo.astype(jnp.bfloat16),
        'bo': jnp.zeros((1, E), jnp.float32),
    }


def _init_cross_attn(key, E, scale=0.05):
    ks = jax.random.split(key, 4)
    wq, wk, wv, wo = (scale * jax.random.normal(k, (E, E), jnp.float32) for k in ks)
    return {
        'wq': wq.astype(jnp.bfloat16),
        'bq': jnp.zeros((1, E), jnp.float32),
        'w_kv': jnp.concatenate([wk, wv], axis=1).astype(jnp.bfloat16),
        'b_kv': jnp.zeros((1, 2 * E), jnp.float32),
        'wo': wo.astype(jnp.bfloat16),
        'bo': jnp.zeros((1, E), jnp.float32),
    }


def _init_enc_layer(key, E, F, scale=0.05):
    k0, k1, k2 = jax.random.split(key, 3)
    return {
        'self_attn': _init_self_attn(k0, E),
        'w1': (scale * jax.random.normal(k1, (E, F), jnp.float32)).astype(jnp.bfloat16),
        'b1': jnp.zeros((1, F), jnp.float32),
        'w2': (scale * jax.random.normal(k2, (F, E), jnp.float32)).astype(jnp.bfloat16),
        'b2': jnp.zeros((1, E), jnp.float32),
        'ln1_g': jnp.ones((1, E), jnp.float32), 'ln1_b': jnp.zeros((1, E), jnp.float32),
        'ln2_g': jnp.ones((1, E), jnp.float32), 'ln2_b': jnp.zeros((1, E), jnp.float32),
    }


def _init_dec_layer(key, E, F, scale=0.05):
    k0, k1, k2, k3 = jax.random.split(key, 4)
    return {
        'self_attn': _init_self_attn(k0, E),
        'cross_attn': _init_cross_attn(k1, E),
        'w1': (scale * jax.random.normal(k2, (E, F), jnp.float32)).astype(jnp.bfloat16),
        'b1': jnp.zeros((1, F), jnp.float32),
        'w2': (scale * jax.random.normal(k3, (F, E), jnp.float32)).astype(jnp.bfloat16),
        'b2': jnp.zeros((1, E), jnp.float32),
        'ln1_g': jnp.ones((1, E), jnp.float32), 'ln1_b': jnp.zeros((1, E), jnp.float32),
        'ln2_g': jnp.ones((1, E), jnp.float32), 'ln2_b': jnp.zeros((1, E), jnp.float32),
        'ln3_g': jnp.ones((1, E), jnp.float32), 'ln3_b': jnp.zeros((1, E), jnp.float32),
    }


def init_params(key, *, num_enc, num_dec, emb_size, src_vocab, tgt_vocab,
                dim_ff, maxlen=64, scale=0.05):
    keys = jax.random.split(key, num_enc + num_dec + 3)
    enc = [_init_enc_layer(keys[i], emb_size, dim_ff) for i in range(num_enc)]
    dec = [_init_dec_layer(keys[num_enc + i], emb_size, dim_ff) for i in range(num_dec)]
    k_se, k_te, k_g = keys[-3], keys[-2], keys[-1]
    vt_pad = _round_up(tgt_vocab, 128)
    gen_w = scale * jax.random.normal(k_g, (emb_size, tgt_vocab), jnp.float32)
    gen_w = jnp.pad(gen_w, ((0, 0), (0, vt_pad - tgt_vocab))).astype(jnp.bfloat16)
    return {
        'src_emb': scale * jax.random.normal(k_se, (src_vocab, emb_size), jnp.float32),
        'tgt_emb': scale * jax.random.normal(k_te, (tgt_vocab, emb_size), jnp.float32),
        'pos_emb': make_pos_embedding(emb_size, maxlen),
        'enc_layers': enc,
        'dec_layers': dec,
        'gen_w': gen_w,                                  # (E, VT_pad) bf16
        'gen_b': jnp.zeros((1, vt_pad), jnp.float32),    # (1, VT_pad)
    }


# --------------------------------- main ---------------------------------

if __name__ == "__main__":
    S, T, B = 8, 8, 2
    E, H, F = 32, 4, 64
    VS, VT = 50, 60
    NUM_ENC, NUM_DEC = 2, 2

    root = jax.random.PRNGKey(0)
    k_par, k_src, k_tgt = jax.random.split(root, 3)

    params = init_params(k_par, num_enc=NUM_ENC, num_dec=NUM_DEC, emb_size=E,
                         src_vocab=VS, tgt_vocab=VT, dim_ff=F)

    src = jax.random.randint(k_src, (S, B), 0, VS, dtype=jnp.int32)
    tgt = jax.random.randint(k_tgt, (T, B), 0, VT, dtype=jnp.int32)

    src_mask = jnp.zeros((S, S), jnp.float32)
    tgt_mask = jnp.where(jnp.triu(jnp.ones((T, T), bool), k=1), NEG, 0.0).astype(jnp.float32)
    src_padding_mask = jnp.zeros((B, S), bool).at[1, -2:].set(True)
    tgt_padding_mask = jnp.zeros((B, T), bool).at[1, -1].set(True)
    memory_key_padding_mask = src_padding_mask

    # Hot path returns 128-padded logits (review: no in-graph vocab slice); the consumer
    # slices / ignores the padded columns (done here, outside the jitted path).
    fwd = jax.jit(functools.partial(seq2seq_transformer_forward, nhead=H,
                                    return_padded_logits=True))
    logits_padded = fwd(params, src, tgt, src_mask, tgt_mask,
                        src_padding_mask, tgt_padding_mask, memory_key_padding_mask)
    jax.block_until_ready(logits_padded)

    logits = logits_padded[:, :, :VT]
    assert logits.shape == (T, B, VT), logits.shape
    assert bool(jnp.all(jnp.isfinite(logits)))
    print("KERNEL_OK")
</pallas_src>

<mosaic_0001>
module attributes {stable_mosaic.version = 11 : i64} {
  func.func @_embed_pos_kernel(%arg0: i32, %arg1: memref<1x8x32xf32, #tpu.memory_space<vmem>>, %arg2: memref<1x8x32xf32, #tpu.memory_space<vmem>>, %arg3: memref<1x8x32xf32, #tpu.memory_space<vmem>>) attributes {dimension_semantics = [#tpu.dimension_semantics<parallel>], iteration_bounds = array<i64: 2>, scalar_prefetch = 0 : i64, scratch_operands = 0 : i64, tpu.core_type = #tpu.core_type<tc>, window_params = [{transform_indices = @transform_0, window_bounds = array<i64: 1, 8, 32>}, {pipeline_mode = #tpu.pipeline_mode<synchronous>, transform_indices = @transform_1, window_bounds = array<i64: 1, 8, 32>}, {transform_indices = @transform_2, window_bounds = array<i64: 1, 8, 32>}]} {
    %c0 = arith.constant 0 : index
    %c0_0 = arith.constant 0 : index
    %c0_1 = arith.constant 0 : index
    %0 = vector.load %arg1[%c0, %c0_0, %c0_1] : memref<1x8x32xf32, #tpu.memory_space<vmem>>, vector<1x8x32xf32>
    %cst = arith.constant 5.65685415 : f32
    %1 = vector.broadcast %cst : f32 to vector<1x8x32xf32>
    %2 = arith.mulf %0, %1 : vector<1x8x32xf32>
    %c0_2 = arith.constant 0 : index
    %c0_3 = arith.constant 0 : index
    %c0_4 = arith.constant 0 : index
    %3 = vector.load %arg2[%c0_2, %c0_3, %c0_4] : memref<1x8x32xf32, #tpu.memory_space<vmem>>, vector<1x8x32xf32>
    %4 = arith.addf %2, %3 : vector<1x8x32xf32>
    %c0_5 = arith.constant 0 : index
    %c0_6 = arith.constant 0 : index
    %c0_7 = arith.constant 0 : index
    %5 = vector.load %arg3[%c0_5, %c0_6, %c0_7] : memref<1x8x32xf32, #tpu.memory_space<vmem>>, vector<1x8x32xf32>
    tpu.vector_store %arg3[%c0_5, %c0_6, %c0_7], %4 {strides = array<i32>} : memref<1x8x32xf32, #tpu.memory_space<vmem>>, vector<1x8x32xf32>,
    return
  }
  func.func @transform_0(%arg0: i32) -> (i32, i32, i32) {
    %c0_i32 = arith.constant 0 : i32
    %c0_i32_0 = arith.constant 0 : i32
    %c0_i32_1 = arith.constant 0 : i32
    return %arg0, %c0_i32, %c0_i32_0 : i32, i32, i32
  }
  func.func @transform_1(%arg0: i32) -> (i32, i32, i32) {
    %c0_i32 = arith.constant 0 : i32
    %c0_i32_0 = arith.constant 0 : i32
    %c0_i32_1 = arith.constant 0 : i32
    %c0_i32_2 = arith.constant 0 : i32
    return %c0_i32, %c0_i32_0, %c0_i32_1 : i32, i32, i32
  }
  func.func @transform_2(%arg0: i32) -> (i32, i32, i32) {
    %c0_i32 = arith.constant 0 : i32
    %c0_i32_0 = arith.constant 0 : i32
    %c0_i32_1 = arith.constant 0 : i32
    return %arg0, %c0_i32, %c0_i32_0 : i32, i32, i32
  }
}

module attributes {stable_mosaic.version = 11 : i64} {
  func.func @_encoder_layer_kernel(%arg0: i32, %arg1: memref<1x8x32xf32, #tpu.memory_space<vmem>>, %arg2: memref<8x8xf32, #tpu.memory_space<vmem>>, %arg3: memref<1x1x8xf32, #tpu.memory_space<vmem>>, %arg4: memref<32x96xbf16, #tpu.memory_space<vmem>>, %arg5: memref<1x96xf32, #tpu.memory_space<vmem>>, %arg6: memref<32x32xbf16, #tpu.memory_space<vmem>>, %arg7: memref<1x32xf32, #tpu.memory_space<vmem>>, %arg8: memref<1x32xf32, #tpu.memory_space<vmem>>, %arg9: memref<1x32xf32, #tpu.memory_space<vmem>>, %arg10: memref<32x64xbf16, #tpu.memory_space<vmem>>, %arg11: memref<1x64xf32, #tpu.memory_space<vmem>>, %arg12: memref<64x32xbf16, #tpu.memory_space<vmem>>, %arg13: memref<1x32xf32, #tpu.memory_space<vmem>>, %arg14: memref<1x32xf32, #tpu.memory_space<vmem>>, %arg15: memref<1x32xf32, #tpu.memory_space<vmem>>, %arg16: memref<1x8x32xf32, #tpu.memory_space<vmem>>) attributes {dimension_semantics = [#tpu.dimension_semantics<parallel>], iteration_bounds = array<i64: 2>, scalar_prefetch = 0 : i64, scratch_operands = 0 : i64, tpu.core_type = #tpu.core_type<tc>, window_params = [{transform_indices = @transform_0, window_bounds = array<i64: 1, 8, 32>}, {pipeline_mode = #tpu.pipeline_mode<synchronous>, transform_indices = @transform_1, window_bounds = array<i64: 8, 8>}, {transform_indices = @transform_2, window_bounds = array<i64: 1, 1, 8>}, {pipeline_mode = #tpu.pipeline_mode<synchronous>, transform_indices = @transform_3, window_bounds = array<i64: 32, 96>}, {pipeline_mode = #tpu.pipeline_mode<synchronous>, transform_indices = @transform_4, window_bounds = array<i64: 1, 96>}, {pipeline_mode = #tpu.pipeline_mode<synchronous>, transform_indices = @transform_5, window_bounds = array<i64: 32, 32>}, {pipeline_mode = #tpu.pipeline_mode<synchronous>, transform_indices = @transform_6, window_bounds = array<i64: 1, 32>}, {pipeline_mode = #tpu.pipeline_mode<synchronous>, transform_indices = @transform_7, window_bounds = array<i64: 1, 32>}, {pipeline_mode = #tpu.pipeline_mode<synchronous>, transform_indices = @transform_8, window_bounds = array<i64: 1, 32>}, {pipeline_mode = #tpu.pipeline_mode<synchronous>, transform_indices = @transform_9, window_bounds = array<i64: 32, 64>}, {pipeline_mode = #tpu.pipeline_mode<synchronous>, transform_indices = @transform_10, window_bounds = array<i64: 1, 64>}, {pipeline_mode = #tpu.pipeline_mode<synchronous>, transform_indices = @transform_11, window_bounds = array<i64: 64, 32>}, {pipeline_mode = #tpu.pipeline_mode<synchronous>, transform_indices = @transform_12, window_bounds = array<i64: 1, 32>}, {pipeline_mode = #tpu.pipeline_mode<synchronous>, transform_indices = @transform_13, window_bounds = array<i64: 1, 32>}, {pipeline_mode = #tpu.pipeline_mode<synchronous>, transform_indices = @transform_14, window_bounds = array<i64: 1, 32>}, {transform_indices = @transform_15, window_bounds = array<i64: 1, 8, 32>}]} {
    %c0 = arith.constant 0 : index
    %c0_0 = arith.constant 0 : index
    %c0_1 = arith.constant 0 : index
    %0 = vector.load %arg1[%c0, %c0_0, %c0_1] : memref<1x8x32xf32, #tpu.memory_space<vmem>>, vector<1x8x32xf32>
    %1 = vector.shape_cast %0 : vector<1x8x32xf32> to vector<8x32xf32>
    %2 = arith.truncf %1 : vector<8x32xf32> to vector<8x32xbf16>
    %c0_2 = arith.constant 0 : index
    %c0_3 = arith.constant 0 : index
    %3 = vector.load %arg4[%c0_2, %c0_3] : memref<32x96xbf16, #tpu.memory_space<vmem>>, vector<32x96xbf16>
    %cst = arith.constant dense<0.000000e+00> : vector<8x96xf32>
    %4 = tpu.matmul %2, %3, %cst {dimension_numbers = #tpu.dot_dimension_numbers<[1], [0], [0], [1], [0, 0, 1, 1], [], []>} : vector<8x32xbf16>, vector<32x96xbf16>, vector<8x96xf32> -> vector<8x96xf32>
    %c0_4 = arith.constant 0 : index
    %c0_5 = arith.constant 0 : index
    %5 = vector.load %arg5[%c0_4, %c0_5] : memref<1x96xf32, #tpu.memory_space<vmem>>, vector<1x96xf32>
    %6 = vector.broadcast %5 : vector<1x96xf32> to vector<8x96xf32>
    %7 = arith.addf %4, %6 : vector<8x96xf32>
    %8 = vector.extract_strided_slice %7 {offsets = [0, 0], sizes = [8, 32], strides = [1, 1]} : vector<8x96xf32> to vector<8x32xf32>
    %9 = vector.extract_strided_slice %7 {offsets = [0, 32], sizes = [8, 32], strides = [1, 1]} : vector<8x96xf32> to vector<8x32xf32>
    %10 = vector.extract_strided_slice %7 {offsets = [0, 64], sizes = [8, 32], strides = [1, 1]} : vector<8x96xf32> to vector<8x32xf32>
    %c0_6 = arith.constant 0 : index
    %c0_7 = arith.constant 0 : index
    %11 = vector.load %arg2[%c0_6, %c0_7] : memref<8x8xf32, #tpu.memory_space<vmem>>, vector<8x8xf32>
    %c0_8 = arith.constant 0 : index
    %c0_9 = arith.constant 0 : index
    %c0_10 = arith.constant 0 : index
    %12 = vector.load %arg3[%c0_8, %c0_9, %c0_10] : memref<1x1x8xf32, #tpu.memory_space<vmem>>, vector<1x1x8xf32>
    %13 = vector.shape_cast %12 : vector<1x1x8xf32> to vector<1x8xf32>
    %14 = vector.extract_strided_slice %8 {offsets = [0, 0], sizes = [8, 8], strides = [1, 1]} : vector<8x32xf32> to vector<8x8xf32>
    %15 = arith.truncf %14 : vector<8x8xf32> to vector<8x8xbf16>
    %16 = vector.extract_strided_slice %9 {offsets = [0, 0], sizes = [8, 8], strides = [1, 1]} : vector<8x32xf32> to vector<8x8xf32>
    %17 = arith.truncf %16 : vector<8x8xf32> to vector<8x8xbf16>
    %18 = vector.extract_strided_slice %10 {offsets = [0, 0], sizes = [8, 8], strides = [1, 1]} : vector<8x32xf32> to vector<8x8xf32>
    %19 = arith.truncf %18 : vector<8x8xf32> to vector<8x8xbf16>
    %cst_11 = arith.constant dense<0.000000e+00> : vector<8x8xf32>
    %20 = tpu.matmul %15, %17, %cst_11 {dimension_numbers = #tpu.dot_dimension_numbers<[1], [1], [0], [0], [0, 0, 1, 0], [], []>} : vector<8x8xbf16>, vector<8x8xbf16>, vector<8x8xf32> -> vector<8x8xf32>
    %cst_12 = arith.constant 0.353553385 : f32
    %21 = vector.broadcast %cst_12 : f32 to vector<8x8xf32>
    %22 = arith.mulf %20, %21 : vector<8x8xf32>
    %23 = vector.broadcast %13 : vector<1x8xf32> to vector<8x8xf32>
    %24 = arith.addf %22, %23 : vector<8x8xf32>
    %25 = arith.addf %24, %11 : vector<8x8xf32>
    %cst_13 = arith.constant dense<0xFF800000> : vector<8xf32>
    %26 = vector.multi_reduction <maximumf>, %25, %cst_13 [1] : vector<8x8xf32> to vector<8xf32>
    %27 = vector.shape_cast %26 : vector<8xf32> to vector<8x1xf32>
    %28 = vector.broadcast %27 : vector<8x1xf32> to vector<8x8xf32>
    %29 = arith.subf %25, %28 : vector<8x8xf32>
    %30 = math.exp %29 : vector<8x8xf32>
    %cst_14 = arith.constant dense<0.000000e+00> : vector<8xf32>
    %31 = vector.multi_reduction <add>, %30, %cst_14 [1] : vector<8x8xf32> to vector<8xf32>
    %32 = vector.shape_cast %31 : vector<8xf32> to vector<8x1xf32>
    %33 = tpu.reciprocal %32 {approx = true} : vector<8x1xf32> -> vector<8x1xf32>
    %34 = vector.broadcast %33 : vector<8x1xf32> to vector<8x8xf32>
    %35 = arith.mulf %30, %34 : vector<8x8xf32>
    %36 = arith.truncf %35 : vector<8x8xf32> to vector<8x8xbf16>
    %cst_15 = arith.constant dense<0.000000e+00> : vector<8x8xf32>
    %37 = tpu.matmul %36, %19, %cst_15 {dimension_numbers = #tpu.dot_dimension_numbers<[1], [0], [0], [1], [0, 0, 1, 1], [], []>} : vector<8x8xbf16>, vector<8x8xbf16>, vector<8x8xf32> -> vector<8x8xf32>
    %38 = vector.extract_strided_slice %8 {offsets = [0, 8], sizes = [8, 8], strides = [1, 1]} : vector<8x32xf32> to vector<8x8xf32>
    %39 = arith.truncf %38 : vector<8x8xf32> to vector<8x8xbf16>
    %40 = vector.extract_strided_slice %9 {offsets = [0, 8], sizes = [8, 8], strides = [1, 1]} : vector<8x32xf32> to vector<8x8xf32>
    %41 = arith.truncf %40 : vector<8x8xf32> to vector<8x8xbf16>
    %42 = vector.extract_strided_slice %10 {offsets = [0, 8], sizes = [8, 8], strides = [1, 1]} : vector<8x32xf32> to vector<8x8xf32>
    %43 = arith.truncf %42 : vector<8x8xf32> to vector<8x8xbf16>
    %cst_16 = arith.constant dense<0.000000e+00> : vector<8x8xf32>
    %44 = tpu.matmul %39, %41, %cst_16 {dimension_numbers = #tpu.dot_dimension_numbers<[1], [1], [0], [0], [0, 0, 1, 0], [], []>} : vector<8x8xbf16>, vector<8x8xbf16>, vector<8x8xf32> -> vector<8x8xf32>
    %cst_17 = arith.constant 0.353553385 : f32
    %45 = vector.broadcast %cst_17 : f32 to vector<8x8xf32>
    %46 = arith.mulf %44, %45 : vector<8x8xf32>
    %47 = vector.broadcast %13 : vector<1x8xf32> to vector<8x8xf32>
    %48 = arith.addf %46, %47 : vector<8x8xf32>
    %49 = arith.addf %48, %11 : vector<8x8xf32>
    %cst_18 = arith.constant dense<0xFF800000> : vector<8xf32>
    %50 = vector.multi_reduction <maximumf>, %49, %cst_18 [1] : vector<8x8xf32> to vector<8xf32>
    %51 = vector.shape_cast %50 : vector<8xf32> to vector<8x1xf32>
    %52 = vector.broadcast %51 : vector<8x1xf32> to vector<8x8xf32>
    %53 = arith.subf %49, %52 : vector<8x8xf32>
    %54 = math.exp %53 : vector<8x8xf32>
    %cst_19 = arith.constant dense<0.000000e+00> : vector<8xf32>
    %55 = vector.multi_reduction <add>, %54, %cst_19 [1] : vector<8x8xf32> to vector<8xf32>
    %56 = vector.shape_cast %55 : vector<8xf32> to vector<8x1xf32>
    %57 = tpu.reciprocal %56 {approx = true} : vector<8x1xf32> -> vector<8x1xf32>
    %58 = vector.broadcast %57 : vector<8x1xf32> to vector<8x8xf32>
    %59 = arith.mulf %54, %58 : vector<8x8xf32>
    %60 = arith.truncf %59 : vector<8x8xf32> to vector<8x8xbf16>
    %cst_20 = arith.constant dense<0.000000e+00> : vector<8x8xf32>
    %61 = tpu.matmul %60, %43, %cst_20 {dimension_numbers = #tpu.dot_dimension_numbers<[1], [0], [0], [1], [0, 0, 1, 1], [], []>} : vector<8x8xbf16>, vector<8x8xbf16>, vector<8x8xf32> -> vector<8x8xf32>
    %62 = vector.extract_strided_slice %8 {offsets = [0, 16], sizes = [8, 8], strides = [1, 1]} : vector<8x32xf32> to vector<8x8xf32>
    %63 = arith.truncf %62 : vector<8x8xf32> to vector<8x8xbf16>
    %64 = vector.extract_strided_slice %9 {offsets = [0, 16], sizes = [8, 8], strides = [1, 1]} : vector<8x32xf32> to vector<8x8xf32>
    %65 = arith.truncf %64 : vector<8x8xf32> to vector<8x8xbf16>
    %66 = vector.extract_strided_slice %10 {offsets = [0, 16], sizes = [8, 8], strides = [1, 1]} : vector<8x32xf32> to vector<8x8xf32>
    %67 = arith.truncf %66 : vector<8x8xf32> to vector<8x8xbf16>
    %cst_21 = arith.constant dense<0.000000e+00> : vector<8x8xf32>
    %68 = tpu.matmul %63, %65, %cst_21 {dimension_numbers = #tpu.dot_dimension_numbers<[1], [1], [0], [0], [0, 0, 1, 0], [], []>} : vector<8x8xbf16>, vector<8x8xbf16>, vector<8x8xf32> -> vector<8x8xf32>
    %cst_22 = arith.constant 0.353553385 : f32
    %69 = vector.broadcast %cst_22 : f32 to vector<8x8xf32>
    %70 = arith.mulf %68, %69 : vector<8x8xf32>
    %71 = vector.broadcast %13 : vector<1x8xf32> to vector<8x8xf32>
    %72 = arith.addf %70, %71 : vector<8x8xf32>
    %73 = arith.addf %72, %11 : vector<8x8xf32>
    %cst_23 = arith.constant dense<0xFF800000> : vector<8xf32>
    %74 = vector.multi_reduction <maximumf>, %73, %cst_23 [1] : vector<8x8xf32> to vector<8xf32>
    %75 = vector.shape_cast %74 : vector<8xf32> to vector<8x1xf32>
    %76 = vector.broadcast %75 : vector<8x1xf32> to vector<8x8xf32>
    %77 = arith.subf %73, %76 : vector<8x8xf32>
    %78 = math.exp %77 : vector<8x8xf32>
    %cst_24 = arith.constant dense<0.000000e+00> : vector<8xf32>
    %79 = vector.multi_reduction <add>, %78, %cst_24 [1] : vector<8x8xf32> to vector<8xf32>
    %80 = vector.shape_cast %79 : vector<8xf32> to vector<8x1xf32>
    %81 = tpu.reciprocal %80 {approx = true} : vector<8x1xf32> -> vector<8x1xf32>
    %82 = vector.broadcast %81 : vector<8x1xf32> to vector<8x8xf32>
    %83 = arith.mulf %78, %82 : vector<8x8xf32>
    %84 = arith.truncf %83 : vector<8x8xf32> to vector<8x8xbf16>
    %cst_25 = arith.constant dense<0.000000e+00> : vector<8x8xf32>
    %85 = tpu.matmul %84, %67, %cst_25 {dimension_numbers = #tpu.dot_dimension_numbers<[1], [0], [0], [1], [0, 0, 1, 1], [], []>} : vector<8x8xbf16>, vector<8x8xbf16>, vector<8x8xf32> -> vector<8x8xf32>
    %86 = vector.extract_strided_slice %8 {offsets = [0, 24], sizes = [8, 8], strides = [1, 1]} : vector<8x32xf32> to vector<8x8xf32>
    %87 = arith.truncf %86 : vector<8x8xf32> to vector<8x8xbf16>
    %88 = vector.extract_strided_slice %9 {offsets = [0, 24], sizes = [8, 8], strides = [1, 1]} : vector<8x32xf32> to vector<8x8xf32>
    %89 = arith.truncf %88 : vector<8x8xf32> to vector<8x8xbf16>
    %90 = vector.extract_strided_slice %10 {offsets = [0, 24], sizes = [8, 8], strides = [1, 1]} : vector<8x32xf32> to vector<8x8xf32>
    %91 = arith.truncf %90 : vector<8x8xf32> to vector<8x8xbf16>
    %cst_26 = arith.constant dense<0.000000e+00> : vector<8x8xf32>
    %92 = tpu.matmul %87, %89, %cst_26 {dimension_numbers = #tpu.dot_dimension_numbers<[1], [1], [0], [0], [0, 0, 1, 0], [], []>} : vector<8x8xbf16>, vector<8x8xbf16>, vector<8x8xf32> -> vector<8x8xf32>
    %cst_27 = arith.constant 0.353553385 : f32
    %93 = vector.broadcast %cst_27 : f32 to vector<8x8xf32>
    %94 = arith.mulf %92, %93 : vector<8x8xf32>
    %95 = vector.broadcast %13 : vector<1x8xf32> to vector<8x8xf32>
    %96 = arith.addf %94, %95 : vector<8x8xf32>
    %97 = arith.addf %96, %11 : vector<8x8xf32>
    %cst_28 = arith.constant dense<0xFF800000> : vector<8xf32>
    %98 = vector.multi_reduction <maximumf>, %97, %cst_28 [1] : vector<8x8xf32> to vector<8xf32>
    %99 = vector.shape_cast %98 : vector<8xf32> to vector<8x1xf32>
    %100 = vector.broadcast %99 : vector<8x1xf32> to vector<8x8xf32>
    %101 = arith.subf %97, %100 : vector<8x8xf32>
    %102 = math.exp %101 : vector<8x8xf32>
    %cst_29 = arith.constant dense<0.000000e+00> : vector<8xf32>
    %103 = vector.multi_reduction <add>, %102, %cst_29 [1] : vector<8x8xf32> to vector<8xf32>
    %104 = vector.shape_cast %103 : vector<8xf32> to vector<8x1xf32>
    %105 = tpu.reciprocal %104 {approx = true} : vector<8x1xf32> -> vector<8x1xf32>
    %106 = vector.broadcast %105 : vector<8x1xf32> to vector<8x8xf32>
    %107 = arith.mulf %102, %106 : vector<8x8xf32>
    %108 = arith.truncf %107 : vector<8x8xf32> to vector<8x8xbf16>
    %cst_30 = arith.constant dense<0.000000e+00> : vector<8x8xf32>
    %109 = tpu.matmul %108, %91, %cst_30 {dimension_numbers = #tpu.dot_dimension_numbers<[1], [0], [0], [1], [0, 0, 1, 1], [], []>} : vector<8x8xbf16>, vector<8x8xbf16>, vector<8x8xf32> -> vector<8x8xf32>
    %110 = tpu.concatenate %37, %61, %85, %109 in 1 : vector<8x8xf32>, vector<8x8xf32>, vector<8x8xf32>, vector<8x8xf32> -> vector<8x32xf32>
    %111 = arith.truncf %110 : vector<8x32xf32> to vector<8x32xbf16>
    %c0_31 = arith.constant 0 : index
    %c0_32 = arith.constant 0 : index
    %112 = vector.load %arg6[%c0_31, %c0_32] : memref<32x32xbf16, #tpu.memory_space<vmem>>, vector<32x32xbf16>
    %cst_33 = arith.constant dense<0.000000e+00> : vector<8x32xf32>
    %113 = tpu.matmul %111, %112, %cst_33 {dimension_numbers = #tpu.dot_dimension_numbers<[1], [0], [0], [1], [0, 0, 1, 1], [], []>} : vector<8x32xbf16>, vector<32x32xbf16>, vector<8x32xf32> -> vector<8x32xf32>
    %c0_34 = arith.constant 0 : index
    %c0_35 = arith.constant 0 : index
    %114 = vector.load %arg7[%c0_34, %c0_35] : memref<1x32xf32, #tpu.memory_space<vmem>>, vector<1x32xf32>
    %115 = vector.broadcast %114 : vector<1x32xf32> to vector<8x32xf32>
    %116 = arith.addf %113, %115 : vector<8x32xf32>
    %117 = arith.addf %1, %116 : vector<8x32xf32>
    %c0_36 = arith.constant 0 : index
    %c0_37 = arith.constant 0 : index
    %118 = vector.load %arg8[%c0_36, %c0_37] : memref<1x32xf32, #tpu.memory_space<vmem>>, vector<1x32xf32>
    %c0_38 = arith.constant 0 : index
    %c0_39 = arith.constant 0 : index
    %119 = vector.load %arg9[%c0_38, %c0_39] : memref<1x32xf32, #tpu.memory_space<vmem>>, vector<1x32xf32>
    %cst_40 = arith.constant dense<0.000000e+00> : vector<8xf32>
    %120 = vector.multi_reduction <add>, %117, %cst_40 [1] : vector<8x32xf32> to vector<8xf32>
    %121 = vector.shape_cast %120 : vector<8xf32> to vector<8x1xf32>
    %cst_41 = arith.constant 3.200000e+01 : f32
    %122 = vector.broadcast %cst_41 : f32 to vector<8x1xf32>
    %123 = arith.divf %121, %122 : vector<8x1xf32>
    %124 = vector.broadcast %123 : vector<8x1xf32> to vector<8x32xf32>
    %125 = arith.subf %117, %124 : vector<8x32xf32>
    %126 = arith.mulf %125, %125 : vector<8x32xf32>
    %cst_42 = arith.constant dense<0.000000e+00> : vector<8xf32>
    %127 = vector.multi_reduction <add>, %126, %cst_42 [1] : vector<8x32xf32> to vector<8xf32>
    %128 = vector.shape_cast %127 : vector<8xf32> to vector<8x1xf32>
    %cst_43 = arith.constant 3.200000e+01 : f32
    %129 = vector.broadcast %cst_43 : f32 to vector<8x1xf32>
    %130 = arith.divf %128, %129 : vector<8x1xf32>
    %131 = vector.broadcast %123 : vector<8x1xf32> to vector<8x32xf32>
    %132 = arith.subf %117, %131 : vector<8x32xf32>
    %cst_44 = arith.constant 9.99999974E-6 : f32
    %133 = vector.broadcast %cst_44 : f32 to vector<8x1xf32>
    %134 = arith.addf %130, %133 : vector<8x1xf32>
    %135 = math.rsqrt %134 : vector<8x1xf32>
    %136 = vector.broadcast %135 : vector<8x1xf32> to vector<8x32xf32>
    %137 = arith.mulf %132, %136 : vector<8x32xf32>
    %138 = vector.broadcast %118 : vector<1x32xf32> to vector<8x32xf32>
    %139 = arith.mulf %137, %138 : vector<8x32xf32>
    %140 = vector.broadcast %119 : vector<1x32xf32> to vector<8x32xf32>
    %141 = arith.addf %139, %140 : vector<8x32xf32>
    %142 = arith.truncf %141 : vector<8x32xf32> to vector<8x32xbf16>
    %c0_45 = arith.constant 0 : index
    %c0_46 = arith.constant 0 : index
    %143 = vector.load %arg10[%c0_45, %c0_46] : memref<32x64xbf16, #tpu.memory_space<vmem>>, vector<32x64xbf16>
    %cst_47 = arith.constant dense<0.000000e+00> : vector<8x64xf32>
    %144 = tpu.matmul %142, %143, %cst_47 {dimension_numbers = #tpu.dot_dimension_numbers<[1], [0], [0], [1], [0, 0, 1, 1], [], []>} : vector<8x32xbf16>, vector<32x64xbf16>, vector<8x64xf32> -> vector<8x64xf32>
    %c0_48 = arith.constant 0 : index
    %c0_49 = arith.constant 0 : index
    %145 = vector.load %arg11[%c0_48, %c0_49] : memref<1x64xf32, #tpu.memory_space<vmem>>, vector<1x64xf32>
    %146 = vector.broadcast %145 : vector<1x64xf32> to vector<8x64xf32>
    %147 = arith.addf %144, %146 : vector<8x64xf32>
    %cst_50 = arith.constant 0.000000e+00 : f32
    %148 = vector.broadcast %cst_50 : f32 to vector<8x64xf32>
    %149 = arith.maximumf %147, %148 : vector<8x64xf32>
    %150 = arith.truncf %149 : vector<8x64xf32> to vector<8x64xbf16>
    %c0_51 = arith.constant 0 : index
    %c0_52 = arith.constant 0 : index
    %151 = vector.load %arg12[%c0_51, %c0_52] : memref<64x32xbf16, #tpu.memory_space<vmem>>, vector<64x32xbf16>
    %cst_53 = arith.constant dense<0.000000e+00> : vector<8x32xf32>
    %152 = tpu.matmul %150, %151, %cst_53 {dimension_numbers = #tpu.dot_dimension_numbers<[1], [0], [0], [1], [0, 0, 1, 1], [], []>} : vector<8x64xbf16>, vector<64x32xbf16>, vector<8x32xf32> -> vector<8x32xf32>
    %c0_54 = arith.constant 0 : index
    %c0_55 = arith.constant 0 : index
    %153 = vector.load %arg13[%c0_54, %c0_55] : memref<1x32xf32, #tpu.memory_space<vmem>>, vector<1x32xf32>
    %154 = vector.broadcast %153 : vector<1x32xf32> to vector<8x32xf32>
    %155 = arith.addf %152, %154 : vector<8x32xf32>
    %156 = arith.addf %141, %155 : vector<8x32xf32>
    %c0_56 = arith.constant 0 : index
    %c0_57 = arith.constant 0 : index
    %157 = vector.load %arg14[%c0_56, %c0_57] : memref<1x32xf32, #tpu.memory_space<vmem>>, vector<1x32xf32>
    %c0_58 = arith.constant 0 : index
    %c0_59 = arith.constant 0 : index
    %158 = vector.load %arg15[%c0_58, %c0_59] : memref<1x32xf32, #tpu.memory_space<vmem>>, vector<1x32xf32>
    %cst_60 = arith.constant dense<0.000000e+00> : vector<8xf32>
    %159 = vector.multi_reduction <add>, %156, %cst_60 [1] : vector<8x32xf32> to vector<8xf32>
    %160 = vector.shape_cast %159 : vector<8xf32> to vector<8x1xf32>
    %cst_61 = arith.constant 3.200000e+01 : f32
    %161 = vector.broadcast %cst_61 : f32 to vector<8x1xf32>
    %162 = arith.divf %160, %161 : vector<8x1xf32>
    %163 = vector.broadcast %162 : vector<8x1xf32> to vector<8x32xf32>
    %164 = arith.subf %156, %163 : vector<8x32xf32>
    %165 = arith.mulf %164, %164 : vector<8x32xf32>
    %cst_62 = arith.constant dense<0.000000e+00> : vector<8xf32>
    %166 = vector.multi_reduction <add>, %165, %cst_62 [1] : vector<8x32xf32> to vector<8xf32>
    %167 = vector.shape_cast %166 : vector<8xf32> to vector<8x1xf32>
    %cst_63 = arith.constant 3.200000e+01 : f32
    %168 = vector.broadcast %cst_63 : f32 to vector<8x1xf32>
    %169 = arith.divf %167, %168 : vector<8x1xf32>
    %170 = vector.broadcast %162 : vector<8x1xf32> to vector<8x32xf32>
    %171 = arith.subf %156, %170 : vector<8x32xf32>
    %cst_64 = arith.constant 9.99999974E-6 : f32
    %172 = vector.broadcast %cst_64 : f32 to vector<8x1xf32>
    %173 = arith.addf %169, %172 : vector<8x1xf32>
    %174 = math.rsqrt %173 : vector<8x1xf32>
    %175 = vector.broadcast %174 : vector<8x1xf32> to vector<8x32xf32>
    %176 = arith.mulf %171, %175 : vector<8x32xf32>
    %177 = vector.broadcast %157 : vector<1x32xf32> to vector<8x32xf32>
    %178 = arith.mulf %176, %177 : vector<8x32xf32>
    %179 = vector.broadcast %158 : vector<1x32xf32> to vector<8x32xf32>
    %180 = arith.addf %178, %179 : vector<8x32xf32>
    %c0_65 = arith.constant 0 : index
    %c0_66 = arith.constant 0 : index
    %c0_67 = arith.constant 0 : index
    %181 = vector.load %arg16[%c0_65, %c0_66, %c0_67] : memref<1x8x32xf32, #tpu.memory_space<vmem>>, vector<1x8x32xf32>
    %182 = vector.shape_cast %181 : vector<1x8x32xf32> to vector<8x32xf32>
    %183 = vector.shape_cast %180 : vector<8x32xf32> to vector<1x8x32xf32>
    tpu.vector_store %arg16[%c0_65, %c0_66, %c0_67], %183 {strides = array<i32>} : memref<1x8x32xf32, #tpu.memory_space<vmem>>, vector<1x8x32xf32>,
    return
  }
  func.func @transform_0(%arg0: i32) -> (i32, i32, i32) {
    %c0_i32 = arith.constant 0 : i32
    %c0_i32_0 = arith.constant 0 : i32
    %c0_i32_1 = arith.constant 0 : i32
    return %arg0, %c0_i32, %c0_i32_0 : i32, i32, i32
  }
  func.func @transform_1(%arg0: i32) -> (i32, i32) {
    %c0_i32 = arith.constant 0 : i32
    %c0_i32_0 = arith.constant 0 : i32
    %c0_i32_1 = arith.constant 0 : i32
    return %c0_i32, %c0_i32_0 : i32, i32
  }
  func.func @transform_2(%arg0: i32) -> (i32, i32, i32) {
    %c0_i32 = arith.constant 0 : i32
    %c0_i32_0 = arith.constant 0 : i32
    %c0_i32_1 = arith.constant 0 : i32
    return %arg0, %c0_i32, %c0_i32_0 : i32, i32, i32
  }
  func.func @transform_3(%arg0: i32) -> (i32, i32) {
    %c0_i32 = arith.constant 0 : i32
    %c0_i32_0 = arith.constant 0 : i32
    %c0_i32_1 = arith.constant 0 : i32
    return %c0_i32, %c0_i32_0 : i32, i32
  }
  func.func @transform_4(%arg0: i32) -> (i32, i32) {
    %c0_i32 = arith.constant 0 : i32
    %c0_i32_0 = arith.constant 0 : i32
    %c0_i32_1 = arith.constant 0 : i32
    return %c0_i32, %c0_i32_0 : i32, i32
  }
  func.func @transform_5(%arg0: i32) -> (i32, i32) {
    %c0_i32 = arith.constant 0 : i32
    %c0_i32_0 = arith.constant 0 : i32
    %c0_i32_1 = arith.constant 0 : i32
    return %c0_i32, %c0_i32_0 : i32, i32
  }
  func.func @transform_6(%arg0: i32) -> (i32, i32) {
    %c0_i32 = arith.constant 0 : i32
    %c0_i32_0 = arith.constant 0 : i32
    %c0_i32_1 = arith.constant 0 : i32
    return %c0_i32, %c0_i32_0 : i32, i32
  }
  func.func @transform_7(%arg0: i32) -> (i32, i32) {
    %c0_i32 = arith.constant 0 : i32
    %c0_i32_0 = arith.constant 0 : i32
    %c0_i32_1 = arith.constant 0 : i32
    return %c0_i32, %c0_i32_0 : i32, i32
  }
  func.func @transform_8(%arg0: i32) -> (i32, i32) {
    %c0_i32 = arith.constant 0 : i32
    %c0_i32_0 = arith.constant 0 : i32
    %c0_i32_1 = arith.constant 0 : i32
    return %c0_i32, %c0_i32_0 : i32, i32
  }
  func.func @transform_9(%arg0: i32) -> (i32, i32) {
    %c0_i32 = arith.constant 0 : i32
    %c0_i32_0 = arith.constant 0 : i32
    %c0_i32_1 = arith.constant 0 : i32
    return %c0_i32, %c0_i32_0 : i32, i32
  }
  func.func @transform_10(%arg0: i32) -> (i32, i32) {
    %c0_i32 = arith.constant 0 : i32
    %c0_i32_0 = arith.constant 0 : i32
    %c0_i32_1 = arith.constant 0 : i32
    return %c0_i32, %c0_i32_0 : i32, i32
  }
  func.func @transform_11(%arg0: i32) -> (i32, i32) {
    %c0_i32 = arith.constant 0 : i32
    %c0_i32_0 = arith.constant 0 : i32
    %c0_i32_1 = arith.constant 0 : i32
    return %c0_i32, %c0_i32_0 : i32, i32
  }
  func.func @transform_12(%arg0: i32) -> (i32, i32) {
    %c0_i32 = arith.constant 0 : i32
    %c0_i32_0 = arith.constant 0 : i32
    %c0_i32_1 = arith.constant 0 : i32
    return %c0_i32, %c0_i32_0 : i32, i32
  }
  func.func @transform_13(%arg0: i32) -> (i32, i32) {
    %c0_i32 = arith.constant 0 : i32
    %c0_i32_0 = arith.constant 0 : i32
    %c0_i32_1 = arith.constant 0 : i32
    return %c0_i32, %c0_i32_0 : i32, i32
  }
  func.func @transform_14(%arg0: i32) -> (i32, i32) {
    %c0_i32 = arith.constant 0 : i32
    %c0_i32_0 = arith.constant 0 : i32
    %c0_i32_1 = arith.constant 0 : i32
    return %c0_i32, %c0_i32_0 : i32, i32
  }
  func.func @transform_15(%arg0: i32) -> (i32, i32, i32) {
    %c0_i32 = arith.constant 0 : i32
    %c0_i32_0 = arith.constant 0 : i32
    %c0_i32_1 = arith.constant 0 : i32
    return %arg0, %c0_i32, %c0_i32_0 : i32, i32, i32
  }
}

module attributes {stable_mosaic.version = 11 : i64} {
  func.func @_decoder_layer_kernel(%arg0: i32, %arg1: memref<1x8x32xf32, #tpu.memory_space<vmem>>, %arg2: memref<1x8x32xbf16, #tpu.memory_space<vmem>>, %arg3: memref<8x8xf32, #tpu.memory_space<vmem>>, %arg4: memref<1x1x8xf32, #tpu.memory_space<vmem>>, %arg5: memref<1x1x8xf32, #tpu.memory_space<vmem>>, %arg6: memref<32x96xbf16, #tpu.memory_space<vmem>>, %arg7: memref<1x96xf32, #tpu.memory_space<vmem>>, %arg8: memref<32x32xbf16, #tpu.memory_space<vmem>>, %arg9: memref<1x32xf32, #tpu.memory_space<vmem>>, %arg10: memref<1x32xf32, #tpu.memory_space<vmem>>, %arg11: memref<1x32xf32, #tpu.memory_space<vmem>>, %arg12: memref<32x32xbf16, #tpu.memory_space<vmem>>, %arg13: memref<1x32xf32, #tpu.memory_space<vmem>>, %arg14: memref<32x64xbf16, #tpu.memory_space<vmem>>, %arg15: memref<1x64xf32, #tpu.memory_space<vmem>>, %arg16: memref<32x32xbf16, #tpu.memory_space<vmem>>, %arg17: memref<1x32xf32, #tpu.memory_space<vmem>>, %arg18: memref<1x32xf32, #tpu.memory_space<vmem>>, %arg19: memref<1x32xf32, #tpu.memory_space<vmem>>, %arg20: memref<32x64xbf16, #tpu.memory_space<vmem>>, %arg21: memref<1x64xf32, #tpu.memory_space<vmem>>, %arg22: memref<64x32xbf16, #tpu.memory_space<vmem>>, %arg23: memref<1x32xf32, #tpu.memory_space<vmem>>, %arg24: memref<1x32xf32, #tpu.memory_space<vmem>>, %arg25: memref<1x32xf32, #tpu.memory_space<vmem>>, %arg26: memref<1x8x32xf32, #tpu.memory_space<vmem>>) attributes {dimension_semantics = [#tpu.dimension_semantics<parallel>], iteration_bounds = array<i64: 2>, scalar_prefetch = 0 : i64, scratch_operands = 0 : i64, tpu.core_type = #tpu.core_type<tc>, window_params = [{transform_indices = @transform_0, window_bounds = array<i64: 1, 8, 32>}, {transform_indices = @transform_1, window_bounds = array<i64: 1, 8, 32>}, {pipeline_mode = #tpu.pipeline_mode<synchronous>, transform_indices = @transform_2, window_bounds = array<i64: 8, 8>}, {transform_indices = @transform_3, window_bounds = array<i64: 1, 1, 8>}, {transform_indices = @transform_4, window_bounds = array<i64: 1, 1, 8>}, {pipeline_mode = #tpu.pipeline_mode<synchronous>, transform_indices = @transform_5, window_bounds = array<i64: 32, 96>}, {pipeline_mode = #tpu.pipeline_mode<synchronous>, transform_indices = @transform_6, window_bounds = array<i64: 1, 96>}, {pipeline_mode = #tpu.pipeline_mode<synchronous>, transform_indices = @transform_7, window_bounds = array<i64: 32, 32>}, {pipeline_mode = #tpu.pipeline_mode<synchronous>, transform_indices = @transform_8, window_bounds = array<i64: 1, 32>}, {pipeline_mode = #tpu.pipeline_mode<synchronous>, transform_indices = @transform_9, window_bounds = array<i64: 1, 32>}, {pipeline_mode = #tpu.pipeline_mode<synchronous>, transform_indices = @transform_10, window_bounds = array<i64: 1, 32>}, {pipeline_mode = #tpu.pipeline_mode<synchronous>, transform_indices = @transform_11, window_bounds = array<i64: 32, 32>}, {pipeline_mode = #tpu.pipeline_mode<synchronous>, transform_indices = @transform_12, window_bounds = array<i64: 1, 32>}, {pipeline_mode = #tpu.pipeline_mode<synchronous>, transform_indices = @transform_13, window_bounds = array<i64: 32, 64>}, {pipeline_mode = #tpu.pipeline_mode<synchronous>, transform_indices = @transform_14, window_bounds = array<i64: 1, 64>}, {pipeline_mode = #tpu.pipeline_mode<synchronous>, transform_indices = @transform_15, window_bounds = array<i64: 32, 32>}, {pipeline_mode = #tpu.pipeline_mode<synchronous>, transform_indices = @transform_16, window_bounds = array<i64: 1, 32>}, {pipeline_mode = #tpu.pipeline_mode<synchronous>, transform_indices = @transform_17, window_bounds = array<i64: 1, 32>}, {pipeline_mode = #tpu.pipeline_mode<synchronous>, transform_indices = @transform_18, window_bounds = array<i64: 1, 32>}, {pipeline_mode = #tpu.pipeline_mode<synchronous>, transform_indices = @transform_19, window_bounds = array<i64: 32, 64>}, {pipeline_mode = #tpu.pipeline_mode<synchronous>, transform_indices = @transform_20, window_bounds = array<i64: 1, 64>}, {pipeline_mode = #tpu.pipeline_mode<synchronous>, transform_indices = @transform_21, window_bounds = array<i64: 64, 32>}, {pipeline_mode = #tpu.pipeline_mode<synchronous>, transform_indices = @transform_22, window_bounds = array<i64: 1, 32>}, {pipeline_mode = #tpu.pipeline_mode<synchronous>, transform_indices = @transform_23, window_bounds = array<i64: 1, 32>}, {pipeline_mode = #tpu.pipeline_mode<synchronous>, transform_indices = @transform_24, window_bounds = array<i64: 1, 32>}, {transform_indices = @transform_25, window_bounds = array<i64: 1, 8, 32>}]} {
    %c0 = arith.constant 0 : index
    %c0_0 = arith.constant 0 : index
    %c0_1 = arith.constant 0 : index
    %0 = vector.load %arg1[%c0, %c0_0, %c0_1] : memref<1x8x32xf32, #tpu.memory_space<vmem>>, vector<1x8x32xf32>
    %1 = vector.shape_cast %0 : vector<1x8x32xf32> to vector<8x32xf32>
    %c0_2 = arith.constant 0 : index
    %c0_3 = arith.constant 0 : index
    %c0_4 = arith.constant 0 : index
    %2 = vector.load %arg2[%c0_2, %c0_3, %c0_4] : memref<1x8x32xbf16, #tpu.memory_space<vmem>>, vector<1x8x32xbf16>
    %3 = vector.shape_cast %2 : vector<1x8x32xbf16> to vector<8x32xbf16>
    %4 = arith.truncf %1 : vector<8x32xf32> to vector<8x32xbf16>
    %c0_5 = arith.constant 0 : index
    %c0_6 = arith.constant 0 : index
    %5 = vector.load %arg6[%c0_5, %c0_6] : memref<32x96xbf16, #tpu.memory_space<vmem>>, vector<32x96xbf16>
    %cst = arith.constant dense<0.000000e+00> : vector<8x96xf32>
    %6 = tpu.matmul %4, %5, %cst {dimension_numbers = #tpu.dot_dimension_numbers<[1], [0], [0], [1], [0, 0, 1, 1], [], []>} : vector<8x32xbf16>, vector<32x96xbf16>, vector<8x96xf32> -> vector<8x96xf32>
    %c0_7 = arith.constant 0 : index
    %c0_8 = arith.constant 0 : index
    %7 = vector.load %arg7[%c0_7, %c0_8] : memref<1x96xf32, #tpu.memory_space<vmem>>, vector<1x96xf32>
    %8 = vector.broadcast %7 : vector<1x96xf32> to vector<8x96xf32>
    %9 = arith.addf %6, %8 : vector<8x96xf32>
    %10 = vector.extract_strided_slice %9 {offsets = [0, 0], sizes = [8, 32], strides = [1, 1]} : vector<8x96xf32> to vector<8x32xf32>
    %11 = vector.extract_strided_slice %9 {offsets = [0, 32], sizes = [8, 32], strides = [1, 1]} : vector<8x96xf32> to vector<8x32xf32>
    %12 = vector.extract_strided_slice %9 {offsets = [0, 64], sizes = [8, 32], strides = [1, 1]} : vector<8x96xf32> to vector<8x32xf32>
    %c0_9 = arith.constant 0 : index
    %c0_10 = arith.constant 0 : index
    %13 = vector.load %arg3[%c0_9, %c0_10] : memref<8x8xf32, #tpu.memory_space<vmem>>, vector<8x8xf32>
    %c0_11 = arith.constant 0 : index
    %c0_12 = arith.constant 0 : index
    %c0_13 = arith.constant 0 : index
    %14 = vector.load %arg4[%c0_11, %c0_12, %c0_13] : memref<1x1x8xf32, #tpu.memory_space<vmem>>, vector<1x1x8xf32>
    %15 = vector.shape_cast %14 : vector<1x1x8xf32> to vector<1x8xf32>
    %16 = vector.extract_strided_slice %10 {offsets = [0, 0], sizes = [8, 8], strides = [1, 1]} : vector<8x32xf32> to vector<8x8xf32>
    %17 = arith.truncf %16 : vector<8x8xf32> to vector<8x8xbf16>
    %18 = vector.extract_strided_slice %11 {offsets = [0, 0], sizes = [8, 8], strides = [1, 1]} : vector<8x32xf32> to vector<8x8xf32>
    %19 = arith.truncf %18 : vector<8x8xf32> to vector<8x8xbf16>
    %20 = vector.extract_strided_slice %12 {offsets = [0, 0], sizes = [8, 8], strides = [1, 1]} : vector<8x32xf32> to vector<8x8xf32>
    %21 = arith.truncf %20 : vector<8x8xf32> to vector<8x8xbf16>
    %cst_14 = arith.constant dense<0.000000e+00> : vector<8x8xf32>
    %22 = tpu.matmul %17, %19, %cst_14 {dimension_numbers = #tpu.dot_dimension_numbers<[1], [1], [0], [0], [0, 0, 1, 0], [], []>} : vector<8x8xbf16>, vector<8x8xbf16>, vector<8x8xf32> -> vector<8x8xf32>
    %cst_15 = arith.constant 0.353553385 : f32
    %23 = vector.broadcast %cst_15 : f32 to vector<8x8xf32>
    %24 = arith.mulf %22, %23 : vector<8x8xf32>
    %25 = vector.broadcast %15 : vector<1x8xf32> to vector<8x8xf32>
    %26 = arith.addf %24, %25 : vector<8x8xf32>
    %27 = arith.addf %26, %13 : vector<8x8xf32>
    %cst_16 = arith.constant dense<0xFF800000> : vector<8xf32>
    %28 = vector.multi_reduction <maximumf>, %27, %cst_16 [1] : vector<8x8xf32> to vector<8xf32>
    %29 = vector.shape_cast %28 : vector<8xf32> to vector<8x1xf32>
    %30 = vector.broadcast %29 : vector<8x1xf32> to vector<8x8xf32>
    %31 = arith.subf %27, %30 : vector<8x8xf32>
    %32 = math.exp %31 : vector<8x8xf32>
    %cst_17 = arith.constant dense<0.000000e+00> : vector<8xf32>
    %33 = vector.multi_reduction <add>, %32, %cst_17 [1] : vector<8x8xf32> to vector<8xf32>
    %34 = vector.shape_cast %33 : vector<8xf32> to vector<8x1xf32>
    %35 = tpu.reciprocal %34 {approx = true} : vector<8x1xf32> -> vector<8x1xf32>
    %36 = vector.broadcast %35 : vector<8x1xf32> to vector<8x8xf32>
    %37 = arith.mulf %32, %36 : vector<8x8xf32>
    %38 = arith.truncf %37 : vector<8x8xf32> to vector<8x8xbf16>
    %cst_18 = arith.constant dense<0.000000e+00> : vector<8x8xf32>
    %39 = tpu.matmul %38, %21, %cst_18 {dimension_numbers = #tpu.dot_dimension_numbers<[1], [0], [0], [1], [0, 0, 1, 1], [], []>} : vector<8x8xbf16>, vector<8x8xbf16>, vector<8x8xf32> -> vector<8x8xf32>
    %40 = vector.extract_strided_slice %10 {offsets = [0, 8], sizes = [8, 8], strides = [1, 1]} : vector<8x32xf32> to vector<8x8xf32>
    %41 = arith.truncf %40 : vector<8x8xf32> to vector<8x8xbf16>
    %42 = vector.extract_strided_slice %11 {offsets = [0, 8], sizes = [8, 8], strides = [1, 1]} : vector<8x32xf32> to vector<8x8xf32>
    %43 = arith.truncf %42 : vector<8x8xf32> to vector<8x8xbf16>
    %44 = vector.extract_strided_slice %12 {offsets = [0, 8], sizes = [8, 8], strides = [1, 1]} : vector<8x32xf32> to vector<8x8xf32>
    %45 = arith.truncf %44 : vector<8x8xf32> to vector<8x8xbf16>
    %cst_19 = arith.constant dense<0.000000e+00> : vector<8x8xf32>
    %46 = tpu.matmul %41, %43, %cst_19 {dimension_numbers = #tpu.dot_dimension_numbers<[1], [1], [0], [0], [0, 0, 1, 0], [], []>} : vector<8x8xbf16>, vector<8x8xbf16>, vector<8x8xf32> -> vector<8x8xf32>
    %cst_20 = arith.constant 0.353553385 : f32
    %47 = vector.broadcast %cst_20 : f32 to vector<8x8xf32>
    %48 = arith.mulf %46, %47 : vector<8x8xf32>
    %49 = vector.broadcast %15 : vector<1x8xf32> to vector<8x8xf32>
    %50 = arith.addf %48, %49 : vector<8x8xf32>
    %51 = arith.addf %50, %13 : vector<8x8xf32>
    %cst_21 = arith.constant dense<0xFF800000> : vector<8xf32>
    %52 = vector.multi_reduction <maximumf>, %51, %cst_21 [1] : vector<8x8xf32> to vector<8xf32>
    %53 = vector.shape_cast %52 : vector<8xf32> to vector<8x1xf32>
    %54 = vector.broadcast %53 : vector<8x1xf32> to vector<8x8xf32>
    %55 = arith.subf %51, %54 : vector<8x8xf32>
    %56 = math.exp %55 : vector<8x8xf32>
    %cst_22 = arith.constant dense<0.000000e+00> : vector<8xf32>
    %57 = vector.multi_reduction <add>, %56, %cst_22 [1] : vector<8x8xf32> to vector<8xf32>
    %58 = vector.shape_cast %57 : vector<8xf32> to vector<8x1xf32>
    %59 = tpu.reciprocal %58 {approx = true} : vector<8x1xf32> -> vector<8x1xf32>
    %60 = vector.broadcast %59 : vector<8x1xf32> to vector<8x8xf32>
    %61 = arith.mulf %56, %60 : vector<8x8xf32>
    %62 = arith.truncf %61 : vector<8x8xf32> to vector<8x8xbf16>
    %cst_23 = arith.constant dense<0.000000e+00> : vector<8x8xf32>
    %63 = tpu.matmul %62, %45, %cst_23 {dimension_numbers = #tpu.dot_dimension_numbers<[1], [0], [0], [1], [0, 0, 1, 1], [], []>} : vector<8x8xbf16>, vector<8x8xbf16>, vector<8x8xf32> -> vector<8x8xf32>
    %64 = vector.extract_strided_slice %10 {offsets = [0, 16], sizes = [8, 8], strides = [1, 1]} : vector<8x32xf32> to vector<8x8xf32>
    %65 = arith.truncf %64 : vector<8x8xf32> to vector<8x8xbf16>
    %66 = vector.extract_strided_slice %11 {offsets = [0, 16], sizes = [8, 8], strides = [1, 1]} : vector<8x32xf32> to vector<8x8xf32>
    %67 = arith.truncf %66 : vector<8x8xf32> to vector<8x8xbf16>
    %68 = vector.extract_strided_slice %12 {offsets = [0, 16], sizes = [8, 8], strides = [1, 1]} : vector<8x32xf32> to vector<8x8xf32>
    %69 = arith.truncf %68 : vector<8x8xf32> to vector<8x8xbf16>
    %cst_24 = arith.constant dense<0.000000e+00> : vector<8x8xf32>
    %70 = tpu.matmul %65, %67, %cst_24 {dimension_numbers = #tpu.dot_dimension_numbers<[1], [1], [0], [0], [0, 0, 1, 0], [], []>} : vector<8x8xbf16>, vector<8x8xbf16>, vector<8x8xf32> -> vector<8x8xf32>
    %cst_25 = arith.constant 0.353553385 : f32
    %71 = vector.broadcast %cst_25 : f32 to vector<8x8xf32>
    %72 = arith.mulf %70, %71 : vector<8x8xf32>
    %73 = vector.broadcast %15 : vector<1x8xf32> to vector<8x8xf32>
    %74 = arith.addf %72, %73 : vector<8x8xf32>
    %75 = arith.addf %74, %13 : vector<8x8xf32>
    %cst_26 = arith.constant dense<0xFF800000> : vector<8xf32>
    %76 = vector.multi_reduction <maximumf>, %75, %cst_26 [1] : vector<8x8xf32> to vector<8xf32>
    %77 = vector.shape_cast %76 : vector<8xf32> to vector<8x1xf32>
    %78 = vector.broadcast %77 : vector<8x1xf32> to vector<8x8xf32>
    %79 = arith.subf %75, %78 : vector<8x8xf32>
    %80 = math.exp %79 : vector<8x8xf32>
    %cst_27 = arith.constant dense<0.000000e+00> : vector<8xf32>
    %81 = vector.multi_reduction <add>, %80, %cst_27 [1] : vector<8x8xf32> to vector<8xf32>
    %82 = vector.shape_cast %81 : vector<8xf32> to vector<8x1xf32>
    %83 = tpu.reciprocal %82 {approx = true} : vector<8x1xf32> -> vector<8x1xf32>
    %84 = vector.broadcast %83 : vector<8x1xf32> to vector<8x8xf32>
    %85 = arith.mulf %80, %84 : vector<8x8xf32>
    %86 = arith.truncf %85 : vector<8x8xf32> to vector<8x8xbf16>
    %cst_28 = arith.constant dense<0.000000e+00> : vector<8x8xf32>
    %87 = tpu.matmul %86, %69, %cst_28 {dimension_numbers = #tpu.dot_dimension_numbers<[1], [0], [0], [1], [0, 0, 1, 1], [], []>} : vector<8x8xbf16>, vector<8x8xbf16>, vector<8x8xf32> -> vector<8x8xf32>
    %88 = vector.extract_strided_slice %10 {offsets = [0, 24], sizes = [8, 8], strides = [1, 1]} : vector<8x32xf32> to vector<8x8xf32>
    %89 = arith.truncf %88 : vector<8x8xf32> to vector<8x8xbf16>
    %90 = vector.extract_strided_slice %11 {offsets = [0, 24], sizes = [8, 8], strides = [1, 1]} : vector<8x32xf32> to vector<8x8xf32>
    %91 = arith.truncf %90 : vector<8x8xf32> to vector<8x8xbf16>
    %92 = vector.extract_strided_slice %12 {offsets = [0, 24], sizes = [8, 8], strides = [1, 1]} : vector<8x32xf32> to vector<8x8xf32>
    %93 = arith.truncf %92 : vector<8x8xf32> to vector<8x8xbf16>
    %cst_29 = arith.constant dense<0.000000e+00> : vector<8x8xf32>
    %94 = tpu.matmul %89, %91, %cst_29 {dimension_numbers = #tpu.dot_dimension_numbers<[1], [1], [0], [0], [0, 0, 1, 0], [], []>} : vector<8x8xbf16>, vector<8x8xbf16>, vector<8x8xf32> -> vector<8x8xf32>
    %cst_30 = arith.constant 0.353553385 : f32
    %95 = vector.broadcast %cst_30 : f32 to vector<8x8xf32>
    %96 = arith.mulf %94, %95 : vector<8x8xf32>
    %97 = vector.broadcast %15 : vector<1x8xf32> to vector<8x8xf32>
    %98 = arith.addf %96, %97 : vector<8x8xf32>
    %99 = arith.addf %98, %13 : vector<8x8xf32>
    %cst_31 = arith.constant dense<0xFF800000> : vector<8xf32>
    %100 = vector.multi_reduction <maximumf>, %99, %cst_31 [1] : vector<8x8xf32> to vector<8xf32>
    %101 = vector.shape_cast %100 : vector<8xf32> to vector<8x1xf32>
    %102 = vector.broadcast %101 : vector<8x1xf32> to vector<8x8xf32>
    %103 = arith.subf %99, %102 : vector<8x8xf32>
    %104 = math.exp %103 : vector<8x8xf32>
    %cst_32 = arith.constant dense<0.000000e+00> : vector<8xf32>
    %105 = vector.multi_reduction <add>, %104, %cst_32 [1] : vector<8x8xf32> to vector<8xf32>
    %106 = vector.shape_cast %105 : vector<8xf32> to vector<8x1xf32>
    %107 = tpu.reciprocal %106 {approx = true} : vector<8x1xf32> -> vector<8x1xf32>
    %108 = vector.broadcast %107 : vector<8x1xf32> to vector<8x8xf32>
    %109 = arith.mulf %104, %108 : vector<8x8xf32>
    %110 = arith.truncf %109 : vector<8x8xf32> to vector<8x8xbf16>
    %cst_33 = arith.constant dense<0.000000e+00> : vector<8x8xf32>
    %111 = tpu.matmul %110, %93, %cst_33 {dimension_numbers = #tpu.dot_dimension_numbers<[1], [0], [0], [1], [0, 0, 1, 1], [], []>} : vector<8x8xbf16>, vector<8x8xbf16>, vector<8x8xf32> -> vector<8x8xf32>
    %112 = tpu.concatenate %39, %63, %87, %111 in 1 : vector<8x8xf32>, vector<8x8xf32>, vector<8x8xf32>, vector<8x8xf32> -> vector<8x32xf32>
    %113 = arith.truncf %112 : vector<8x32xf32> to vector<8x32xbf16>
    %c0_34 = arith.constant 0 : index
    %c0_35 = arith.constant 0 : index
    %114 = vector.load %arg8[%c0_34, %c0_35] : memref<32x32xbf16, #tpu.memory_space<vmem>>, vector<32x32xbf16>
    %cst_36 = arith.constant dense<0.000000e+00> : vector<8x32xf32>
    %115 = tpu.matmul %113, %114, %cst_36 {dimension_numbers = #tpu.dot_dimension_numbers<[1], [0], [0], [1], [0, 0, 1, 1], [], []>} : vector<8x32xbf16>, vector<32x32xbf16>, vector<8x32xf32> -> vector<8x32xf32>
    %c0_37 = arith.constant 0 : index
    %c0_38 = arith.constant 0 : index
    %116 = vector.load %arg9[%c0_37, %c0_38] : memref<1x32xf32, #tpu.memory_space<vmem>>, vector<1x32xf32>
    %117 = vector.broadcast %116 : vector<1x32xf32> to vector<8x32xf32>
    %118 = arith.addf %115, %117 : vector<8x32xf32>
    %119 = arith.addf %1, %118 : vector<8x32xf32>
    %c0_39 = arith.constant 0 : index
    %c0_40 = arith.constant 0 : index
    %120 = vector.load %arg10[%c0_39, %c0_40] : memref<1x32xf32, #tpu.memory_space<vmem>>, vector<1x32xf32>
    %c0_41 = arith.constant 0 : index
    %c0_42 = arith.constant 0 : index
    %121 = vector.load %arg11[%c0_41, %c0_42] : memref<1x32xf32, #tpu.memory_space<vmem>>, vector<1x32xf32>
    %cst_43 = arith.constant dense<0.000000e+00> : vector<8xf32>
    %122 = vector.multi_reduction <add>, %119, %cst_43 [1] : vector<8x32xf32> to vector<8xf32>
    %123 = vector.shape_cast %122 : vector<8xf32> to vector<8x1xf32>
    %cst_44 = arith.constant 3.200000e+01 : f32
    %124 = vector.broadcast %cst_44 : f32 to vector<8x1xf32>
    %125 = arith.divf %123, %124 : vector<8x1xf32>
    %126 = vector.broadcast %125 : vector<8x1xf32> to vector<8x32xf32>
    %127 = arith.subf %119, %126 : vector<8x32xf32>
    %128 = arith.mulf %127, %127 : vector<8x32xf32>
    %cst_45 = arith.constant dense<0.000000e+00> : vector<8xf32>
    %129 = vector.multi_reduction <add>, %128, %cst_45 [1] : vector<8x32xf32> to vector<8xf32>
    %130 = vector.shape_cast %129 : vector<8xf32> to vector<8x1xf32>
    %cst_46 = arith.constant 3.200000e+01 : f32
    %131 = vector.broadcast %cst_46 : f32 to vector<8x1xf32>
    %132 = arith.divf %130, %131 : vector<8x1xf32>
    %133 = vector.broadcast %125 : vector<8x1xf32> to vector<8x32xf32>
    %134 = arith.subf %119, %133 : vector<8x32xf32>
    %cst_47 = arith.constant 9.99999974E-6 : f32
    %135 = vector.broadcast %cst_47 : f32 to vector<8x1xf32>
    %136 = arith.addf %132, %135 : vector<8x1xf32>
    %137 = math.rsqrt %136 : vector<8x1xf32>
    %138 = vector.broadcast %137 : vector<8x1xf32> to vector<8x32xf32>
    %139 = arith.mulf %134, %138 : vector<8x32xf32>
    %140 = vector.broadcast %120 : vector<1x32xf32> to vector<8x32xf32>
    %141 = arith.mulf %139, %140 : vector<8x32xf32>
    %142 = vector.broadcast %121 : vector<1x32xf32> to vector<8x32xf32>
    %143 = arith.addf %141, %142 : vector<8x32xf32>
    %144 = arith.truncf %143 : vector<8x32xf32> to vector<8x32xbf16>
    %c0_48 = arith.constant 0 : index
    %c0_49 = arith.constant 0 : index
    %145 = vector.load %arg12[%c0_48, %c0_49] : memref<32x32xbf16, #tpu.memory_space<vmem>>, vector<32x32xbf16>
    %cst_50 = arith.constant dense<0.000000e+00> : vector<8x32xf32>
    %146 = tpu.matmul %144, %145, %cst_50 {dimension_numbers = #tpu.dot_dimension_numbers<[1], [0], [0], [1], [0, 0, 1, 1], [], []>} : vector<8x32xbf16>, vector<32x32xbf16>, vector<8x32xf32> -> vector<8x32xf32>
    %c0_51 = arith.constant 0 : index
    %c0_52 = arith.constant 0 : index
    %147 = vector.load %arg13[%c0_51, %c0_52] : memref<1x32xf32, #tpu.memory_space<vmem>>, vector<1x32xf32>
    %148 = vector.broadcast %147 : vector<1x32xf32> to vector<8x32xf32>
    %149 = arith.addf %146, %148 : vector<8x32xf32>
    %c0_53 = arith.constant 0 : index
    %c0_54 = arith.constant 0 : index
    %150 = vector.load %arg14[%c0_53, %c0_54] : memref<32x64xbf16, #tpu.memory_space<vmem>>, vector<32x64xbf16>
    %cst_55 = arith.constant dense<0.000000e+00> : vector<8x64xf32>
    %151 = tpu.matmul %3, %150, %cst_55 {dimension_numbers = #tpu.dot_dimension_numbers<[1], [0], [0], [1], [0, 0, 1, 1], [], []>} : vector<8x32xbf16>, vector<32x64xbf16>, vector<8x64xf32> -> vector<8x64xf32>
    %c0_56 = arith.constant 0 : index
    %c0_57 = arith.constant 0 : index
    %152 = vector.load %arg15[%c0_56, %c0_57] : memref<1x64xf32, #tpu.memory_space<vmem>>, vector<1x64xf32>
    %153 = vector.broadcast %152 : vector<1x64xf32> to vector<8x64xf32>
    %154 = arith.addf %151, %153 : vector<8x64xf32>
    %155 = vector.extract_strided_slice %154 {offsets = [0, 0], sizes = [8, 32], strides = [1, 1]} : vector<8x64xf32> to vector<8x32xf32>
    %156 = vector.extract_strided_slice %154 {offsets = [0, 32], sizes = [8, 32], strides = [1, 1]} : vector<8x64xf32> to vector<8x32xf32>
    %c0_58 = arith.constant 0 : index
    %c0_59 = arith.constant 0 : index
    %c0_60 = arith.constant 0 : index
    %157 = vector.load %arg5[%c0_58, %c0_59, %c0_60] : memref<1x1x8xf32, #tpu.memory_space<vmem>>, vector<1x1x8xf32>
    %158 = vector.shape_cast %157 : vector<1x1x8xf32> to vector<1x8xf32>
    %159 = vector.extract_strided_slice %149 {offsets = [0, 0], sizes = [8, 8], strides = [1, 1]} : vector<8x32xf32> to vector<8x8xf32>
    %160 = arith.truncf %159 : vector<8x8xf32> to vector<8x8xbf16>
    %161 = vector.extract_strided_slice %155 {offsets = [0, 0], sizes = [8, 8], strides = [1, 1]} : vector<8x32xf32> to vector<8x8xf32>
    %162 = arith.truncf %161 : vector<8x8xf32> to vector<8x8xbf16>
    %163 = vector.extract_strided_slice %156 {offsets = [0, 0], sizes = [8, 8], strides = [1, 1]} : vector<8x32xf32> to vector<8x8xf32>
    %164 = arith.truncf %163 : vector<8x8xf32> to vector<8x8xbf16>
    %cst_61 = arith.constant dense<0.000000e+00> : vector<8x8xf32>
    %165 = tpu.matmul %160, %162, %cst_61 {dimension_numbers = #tpu.dot_dimension_numbers<[1], [1], [0], [0], [0, 0, 1, 0], [], []>} : vector<8x8xbf16>, vector<8x8xbf16>, vector<8x8xf32> -> vector<8x8xf32>
    %cst_62 = arith.constant 0.353553385 : f32
    %166 = vector.broadcast %cst_62 : f32 to vector<8x8xf32>
    %167 = arith.mulf %165, %166 : vector<8x8xf32>
    %168 = vector.broadcast %158 : vector<1x8xf32> to vector<8x8xf32>
    %169 = arith.addf %167, %168 : vector<8x8xf32>
    %cst_63 = arith.constant dense<0xFF800000> : vector<8xf32>
    %170 = vector.multi_reduction <maximumf>, %169, %cst_63 [1] : vector<8x8xf32> to vector<8xf32>
    %171 = vector.shape_cast %170 : vector<8xf32> to vector<8x1xf32>
    %172 = vector.broadcast %171 : vector<8x1xf32> to vector<8x8xf32>
    %173 = arith.subf %169, %172 : vector<8x8xf32>
    %174 = math.exp %173 : vector<8x8xf32>
    %cst_64 = arith.constant dense<0.000000e+00> : vector<8xf32>
    %175 = vector.multi_reduction <add>, %174, %cst_64 [1] : vector<8x8xf32> to vector<8xf32>
    %176 = vector.shape_cast %175 : vector<8xf32> to vector<8x1xf32>
    %177 = tpu.reciprocal %176 {approx = true} : vector<8x1xf32> -> vector<8x1xf32>
    %178 = vector.broadcast %177 : vector<8x1xf32> to vector<8x8xf32>
    %179 = arith.mulf %174, %178 : vector<8x8xf32>
    %180 = arith.truncf %179 : vector<8x8xf32> to vector<8x8xbf16>
    %cst_65 = arith.constant dense<0.000000e+00> : vector<8x8xf32>
    %181 = tpu.matmul %180, %164, %cst_65 {dimension_numbers = #tpu.dot_dimension_numbers<[1], [0], [0], [1], [0, 0, 1, 1], [], []>} : vector<8x8xbf16>, vector<8x8xbf16>, vector<8x8xf32> -> vector<8x8xf32>
    %182 = vector.extract_strided_slice %149 {offsets = [0, 8], sizes = [8, 8], strides = [1, 1]} : vector<8x32xf32> to vector<8x8xf32>
    %183 = arith.truncf %182 : vector<8x8xf32> to vector<8x8xbf16>
    %184 = vector.extract_strided_slice %155 {offsets = [0, 8], sizes = [8, 8], strides = [1, 1]} : vector<8x32xf32> to vector<8x8xf32>
    %185 = arith.truncf %184 : vector<8x8xf32> to vector<8x8xbf16>
    %186 = vector.extract_strided_slice %156 {offsets = [0, 8], sizes = [8, 8], strides = [1, 1]} : vector<8x32xf32> to vector<8x8xf32>
    %187 = arith.truncf %186 : vector<8x8xf32> to vector<8x8xbf16>
    %cst_66 = arith.constant dense<0.000000e+00> : vector<8x8xf32>
    %188 = tpu.matmul %183, %185, %cst_66 {dimension_numbers = #tpu.dot_dimension_numbers<[1], [1], [0], [0], [0, 0, 1, 0], [], []>} : vector<8x8xbf16>, vector<8x8xbf16>, vector<8x8xf32> -> vector<8x8xf32>
    %cst_67 = arith.constant 0.353553385 : f32
    %189 = vector.broadcast %cst_67 : f32 to vector<8x8xf32>
    %190 = arith.mulf %188, %189 : vector<8x8xf32>
    %191 = vector.broadcast %158 : vector<1x8xf32> to vector<8x8xf32>
    %192 = arith.addf %190, %191 : vector<8x8xf32>
    %cst_68 = arith.constant dense<0xFF800000> : vector<8xf32>
    %193 = vector.multi_reduction <maximumf>, %192, %cst_68 [1] : vector<8x8xf32> to vector<8xf32>
    %194 = vector.shape_cast %193 : vector<8xf32> to vector<8x1xf32>
    %195 = vector.broadcast %194 : vector<8x1xf32> to vector<8x8xf32>
    %196 = arith.subf %192, %195 : vector<8x8xf32>
    %197 = math.exp %196 : vector<8x8xf32>
    %cst_69 = arith.constant dense<0.000000e+00> : vector<8xf32>
    %198 = vector.multi_reduction <add>, %197, %cst_69 [1] : vector<8x8xf32> to vector<8xf32>
    %199 = vector.shape_cast %198 : vector<8xf32> to vector<8x1xf32>
    %200 = tpu.reciprocal %199 {approx = true} : vector<8x1xf32> -> vector<8x1xf32>
    %201 = vector.broadcast %200 : vector<8x1xf32> to vector<8x8xf32>
    %202 = arith.mulf %197, %201 : vector<8x8xf32>
    %203 = arith.truncf %202 : vector<8x8xf32> to vector<8x8xbf16>
    %cst_70 = arith.constant dense<0.000000e+00> : vector<8x8xf32>
    %204 = tpu.matmul %203, %187, %cst_70 {dimension_numbers = #tpu.dot_dimension_numbers<[1], [0], [0], [1], [0, 0, 1, 1], [], []>} : vector<8x8xbf16>, vector<8x8xbf16>, vector<8x8xf32> -> vector<8x8xf32>
    %205 = vector.extract_strided_slice %149 {offsets = [0, 16], sizes = [8, 8], strides = [1, 1]} : vector<8x32xf32> to vector<8x8xf32>
    %206 = arith.truncf %205 : vector<8x8xf32> to vector<8x8xbf16>
    %207 = vector.extract_strided_slice %155 {offsets = [0, 16], sizes = [8, 8], strides = [1, 1]} : vector<8x32xf32> to vector<8x8xf32>
    %208 = arith.truncf %207 : vector<8x8xf32> to vector<8x8xbf16>
    %209 = vector.extract_strided_slice %156 {offsets = [0, 16], sizes = [8, 8], strides = [1, 1]} : vector<8x32xf32> to vector<8x8xf32>
    %210 = arith.truncf %209 : vector<8x8xf32> to vector<8x8xbf16>
    %cst_71 = arith.constant dense<0.000000e+00> : vector<8x8xf32>
    %211 = tpu.matmul %206, %208, %cst_71 {dimension_numbers = #tpu.dot_dimension_numbers<[1], [1], [0], [0], [0, 0, 1, 0], [], []>} : vector<8x8xbf16>, vector<8x8xbf16>, vector<8x8xf32> -> vector<8x8xf32>
    %cst_72 = arith.constant 0.353553385 : f32
    %212 = vector.broadcast %cst_72 : f32 to vector<8x8xf32>
    %213 = arith.mulf %211, %212 : vector<8x8xf32>
    %214 = vector.broadcast %158 : vector<1x8xf32> to vector<8x8xf32>
    %215 = arith.addf %213, %214 : vector<8x8xf32>
    %cst_73 = arith.constant dense<0xFF800000> : vector<8xf32>
    %216 = vector.multi_reduction <maximumf>, %215, %cst_73 [1] : vector<8x8xf32> to vector<8xf32>
    %217 = vector.shape_cast %216 : vector<8xf32> to vector<8x1xf32>
    %218 = vector.broadcast %217 : vector<8x1xf32> to vector<8x8xf32>
    %219 = arith.subf %215, %218 : vector<8x8xf32>
    %220 = math.exp %219 : vector<8x8xf32>
    %cst_74 = arith.constant dense<0.000000e+00> : vector<8xf32>
    %221 = vector.multi_reduction <add>, %220, %cst_74 [1] : vector<8x8xf32> to vector<8xf32>
    %222 = vector.shape_cast %221 : vector<8xf32> to vector<8x1xf32>
    %223 = tpu.reciprocal %222 {approx = true} : vector<8x1xf32> -> vector<8x1xf32>
    %224 = vector.broadcast %223 : vector<8x1xf32> to vector<8x8xf32>
    %225 = arith.mulf %220, %224 : vector<8x8xf32>
    %226 = arith.truncf %225 : vector<8x8xf32> to vector<8x8xbf16>
    %cst_75 = arith.constant dense<0.000000e+00> : vector<8x8xf32>
    %227 = tpu.matmul %226, %210, %cst_75 {dimension_numbers = #tpu.dot_dimension_numbers<[1], [0], [0], [1], [0, 0, 1, 1], [], []>} : vector<8x8xbf16>, vector<8x8xbf16>, vector<8x8xf32> -> vector<8x8xf32>
    %228 = vector.extract_strided_slice %149 {offsets = [0, 24], sizes = [8, 8], strides = [1, 1]} : vector<8x32xf32> to vector<8x8xf32>
    %229 = arith.truncf %228 : vector<8x8xf32> to vector<8x8xbf16>
    %230 = vector.extract_strided_slice %155 {offsets = [0, 24], sizes = [8, 8], strides = [1, 1]} : vector<8x32xf32> to vector<8x8xf32>
    %231 = arith.truncf %230 : vector<8x8xf32> to vector<8x8xbf16>
    %232 = vector.extract_strided_slice %156 {offsets = [0, 24], sizes = [8, 8], strides = [1, 1]} : vector<8x32xf32> to vector<8x8xf32>
    %233 = arith.truncf %232 : vector<8x8xf32> to vector<8x8xbf16>
    %cst_76 = arith.constant dense<0.000000e+00> : vector<8x8xf32>
    %234 = tpu.matmul %229, %231, %cst_76 {dimension_numbers = #tpu.dot_dimension_numbers<[1], [1], [0], [0], [0, 0, 1, 0], [], []>} : vector<8x8xbf16>, vector<8x8xbf16>, vector<8x8xf32> -> vector<8x8xf32>
    %cst_77 = arith.constant 0.353553385 : f32
    %235 = vector.broadcast %cst_77 : f32 to vector<8x8xf32>
    %236 = arith.mulf %234, %235 : vector<8x8xf32>
    %237 = vector.broadcast %158 : vector<1x8xf32> to vector<8x8xf32>
    %238 = arith.addf %236, %237 : vector<8x8xf32>
    %cst_78 = arith.constant dense<0xFF800000> : vector<8xf32>
    %239 = vector.multi_reduction <maximumf>, %238, %cst_78 [1] : vector<8x8xf32> to vector<8xf32>
    %240 = vector.shape_cast %239 : vector<8xf32> to vector<8x1xf32>
    %241 = vector.broadcast %240 : vector<8x1xf32> to vector<8x8xf32>
    %242 = arith.subf %238, %241 : vector<8x8xf32>
    %243 = math.exp %242 : vector<8x8xf32>
    %cst_79 = arith.constant dense<0.000000e+00> : vector<8xf32>
    %244 = vector.multi_reduction <add>, %243, %cst_79 [1] : vector<8x8xf32> to vector<8xf32>
    %245 = vector.shape_cast %244 : vector<8xf32> to vector<8x1xf32>
    %246 = tpu.reciprocal %245 {approx = true} : vector<8x1xf32> -> vector<8x1xf32>
    %247 = vector.broadcast %246 : vector<8x1xf32> to vector<8x8xf32>
    %248 = arith.mulf %243, %247 : vector<8x8xf32>
    %249 = arith.truncf %248 : vector<8x8xf32> to vector<8x8xbf16>
    %cst_80 = arith.constant dense<0.000000e+00> : vector<8x8xf32>
    %250 = tpu.matmul %249, %233, %cst_80 {dimension_numbers = #tpu.dot_dimension_numbers<[1], [0], [0], [1], [0, 0, 1, 1], [], []>} : vector<8x8xbf16>, vector<8x8xbf16>, vector<8x8xf32> -> vector<8x8xf32>
    %251 = tpu.concatenate %181, %204, %227, %250 in 1 : vector<8x8xf32>, vector<8x8xf32>, vector<8x8xf32>, vector<8x8xf32> -> vector<8x32xf32>
    %252 = arith.truncf %251 : vector<8x32xf32> to vector<8x32xbf16>
    %c0_81 = arith.constant 0 : index
    %c0_82 = arith.constant 0 : index
    %253 = vector.load %arg16[%c0_81, %c0_82] : memref<32x32xbf16, #tpu.memory_space<vmem>>, vector<32x32xbf16>
    %cst_83 = arith.constant dense<0.000000e+00> : vector<8x32xf32>
    %254 = tpu.matmul %252, %253, %cst_83 {dimension_numbers = #tpu.dot_dimension_numbers<[1], [0], [0], [1], [0, 0, 1, 1], [], []>} : vector<8x32xbf16>, vector<32x32xbf16>, vector<8x32xf32> -> vector<8x32xf32>
    %c0_84 = arith.constant 0 : index
    %c0_85 = arith.constant 0 : index
    %255 = vector.load %arg17[%c0_84, %c0_85] : memref<1x32xf32, #tpu.memory_space<vmem>>, vector<1x32xf32>
    %256 = vector.broadcast %255 : vector<1x32xf32> to vector<8x32xf32>
    %257 = arith.addf %254, %256 : vector<8x32xf32>
    %258 = arith.addf %143, %257 : vector<8x32xf32>
    %c0_86 = arith.constant 0 : index
    %c0_87 = arith.constant 0 : index
    %259 = vector.load %arg18[%c0_86, %c0_87] : memref<1x32xf32, #tpu.memory_space<vmem>>, vector<1x32xf32>
    %c0_88 = arith.constant 0 : index
    %c0_89 = arith.constant 0 : index
    %260 = vector.load %arg19[%c0_88, %c0_89] : memref<1x32xf32, #tpu.memory_space<vmem>>, vector<1x32xf32>
    %cst_90 = arith.constant dense<0.000000e+00> : vector<8xf32>
    %261 = vector.multi_reduction <add>, %258, %cst_90 [1] : vector<8x32xf32> to vector<8xf32>
    %262 = vector.shape_cast %261 : vector<8xf32> to vector<8x1xf32>
    %cst_91 = arith.constant 3.200000e+01 : f32
    %263 = vector.broadcast %cst_91 : f32 to vector<8x1xf32>
    %264 = arith.divf %262, %263 : vector<8x1xf32>
    %265 = vector.broadcast %264 : vector<8x1xf32> to vector<8x32xf32>
    %266 = arith.subf %258, %265 : vector<8x32xf32>
    %267 = arith.mulf %266, %266 : vector<8x32xf32>
    %cst_92 = arith.constant dense<0.000000e+00> : vector<8xf32>
    %268 = vector.multi_reduction <add>, %267, %cst_92 [1] : vector<8x32xf32> to vector<8xf32>
    %269 = vector.shape_cast %268 : vector<8xf32> to vector<8x1xf32>
    %cst_93 = arith.constant 3.200000e+01 : f32
    %270 = vector.broadcast %cst_93 : f32 to vector<8x1xf32>
    %271 = arith.divf %269, %270 : vector<8x1xf32>
    %272 = vector.broadcast %264 : vector<8x1xf32> to vector<8x32xf32>
    %273 = arith.subf %258, %272 : vector<8x32xf32>
    %cst_94 = arith.constant 9.99999974E-6 : f32
    %274 = vector.broadcast %cst_94 : f32 to vector<8x1xf32>
    %275 = arith.addf %271, %274 : vector<8x1xf32>
    %276 = math.rsqrt %275 : vector<8x1xf32>
    %277 = vector.broadcast %276 : vector<8x1xf32> to vector<8x32xf32>
    %278 = arith.mulf %273, %277 : vector<8x32xf32>
    %279 = vector.broadcast %259 : vector<1x32xf32> to vector<8x32xf32>
    %280 = arith.mulf %278, %279 : vector<8x32xf32>
    %281 = vector.broadcast %260 : vector<1x32xf32> to vector<8x32xf32>
    %282 = arith.addf %280, %281 : vector<8x32xf32>
    %283 = arith.truncf %282 : vector<8x32xf32> to vector<8x32xbf16>
    %c0_95 = arith.constant 0 : index
    %c0_96 = arith.constant 0 : index
    %284 = vector.load %arg20[%c0_95, %c0_96] : memref<32x64xbf16, #tpu.memory_space<vmem>>, vector<32x64xbf16>
    %cst_97 = arith.constant dense<0.000000e+00> : vector<8x64xf32>
    %285 = tpu.matmul %283, %284, %cst_97 {dimension_numbers = #tpu.dot_dimension_numbers<[1], [0], [0], [1], [0, 0, 1, 1], [], []>} : vector<8x32xbf16>, vector<32x64xbf16>, vector<8x64xf32> -> vector<8x64xf32>
    %c0_98 = arith.constant 0 : index
    %c0_99 = arith.constant 0 : index
    %286 = vector.load %arg21[%c0_98, %c0_99] : memref<1x64xf32, #tpu.memory_space<vmem>>, vector<1x64xf32>
    %287 = vector.broadcast %286 : vector<1x64xf32> to vector<8x64xf32>
    %288 = arith.addf %285, %287 : vector<8x64xf32>
    %cst_100 = arith.constant 0.000000e+00 : f32
    %289 = vector.broadcast %cst_100 : f32 to vector<8x64xf32>
    %290 = arith.maximumf %288, %289 : vector<8x64xf32>
    %291 = arith.truncf %290 : vector<8x64xf32> to vector<8x64xbf16>
    %c0_101 = arith.constant 0 : index
    %c0_102 = arith.constant 0 : index
    %292 = vector.load %arg22[%c0_101, %c0_102] : memref<64x32xbf16, #tpu.memory_space<vmem>>, vector<64x32xbf16>
    %cst_103 = arith.constant dense<0.000000e+00> : vector<8x32xf32>
    %293 = tpu.matmul %291, %292, %cst_103 {dimension_numbers = #tpu.dot_dimension_numbers<[1], [0], [0], [1], [0, 0, 1, 1], [], []>} : vector<8x64xbf16>, vector<64x32xbf16>, vector<8x32xf32> -> vector<8x32xf32>
    %c0_104 = arith.constant 0 : index
    %c0_105 = arith.constant 0 : index
    %294 = vector.load %arg23[%c0_104, %c0_105] : memref<1x32xf32, #tpu.memory_space<vmem>>, vector<1x32xf32>
    %295 = vector.broadcast %294 : vector<1x32xf32> to vector<8x32xf32>
    %296 = arith.addf %293, %295 : vector<8x32xf32>
    %297 = arith.addf %282, %296 : vector<8x32xf32>
    %c0_106 = arith.constant 0 : index
    %c0_107 = arith.constant 0 : index
    %298 = vector.load %arg24[%c0_106, %c0_107] : memref<1x32xf32, #tpu.memory_space<vmem>>, vector<1x32xf32>
    %c0_108 = arith.constant 0 : index
    %c0_109 = arith.constant 0 : index
    %299 = vector.load %arg25[%c0_108, %c0_109] : memref<1x32xf32, #tpu.memory_space<vmem>>, vector<1x32xf32>
    %cst_110 = arith.constant dense<0.000000e+00> : vector<8xf32>
    %300 = vector.multi_reduction <add>, %297, %cst_110 [1] : vector<8x32xf32> to vector<8xf32>
    %301 = vector.shape_cast %300 : vector<8xf32> to vector<8x1xf32>
    %cst_111 = arith.constant 3.200000e+01 : f32
    %302 = vector.broadcast %cst_111 : f32 to vector<8x1xf32>
    %303 = arith.divf %301, %302 : vector<8x1xf32>
    %304 = vector.broadcast %303 : vector<8x1xf32> to vector<8x32xf32>
    %305 = arith.subf %297, %304 : vector<8x32xf32>
    %306 = arith.mulf %305, %305 : vector<8x32xf32>
    %cst_112 = arith.constant dense<0.000000e+00> : vector<8xf32>
    %307 = vector.multi_reduction <add>, %306, %cst_112 [1] : vector<8x32xf32> to vector<8xf32>
    %308 = vector.shape_cast %307 : vector<8xf32> to vector<8x1xf32>
    %cst_113 = arith.constant 3.200000e+01 : f32
    %309 = vector.broadcast %cst_113 : f32 to vector<8x1xf32>
    %310 = arith.divf %308, %309 : vector<8x1xf32>
    %311 = vector.broadcast %303 : vector<8x1xf32> to vector<8x32xf32>
    %312 = arith.subf %297, %311 : vector<8x32xf32>
    %cst_114 = arith.constant 9.99999974E-6 : f32
    %313 = vector.broadcast %cst_114 : f32 to vector<8x1xf32>
    %314 = arith.addf %310, %313 : vector<8x1xf32>
    %315 = math.rsqrt %314 : vector<8x1xf32>
    %316 = vector.broadcast %315 : vector<8x1xf32> to vector<8x32xf32>
    %317 = arith.mulf %312, %316 : vector<8x32xf32>
    %318 = vector.broadcast %298 : vector<1x32xf32> to vector<8x32xf32>
    %319 = arith.mulf %317, %318 : vector<8x32xf32>
    %320 = vector.broadcast %299 : vector<1x32xf32> to vector<8x32xf32>
    %321 = arith.addf %319, %320 : vector<8x32xf32>
    %c0_115 = arith.constant 0 : index
    %c0_116 = arith.constant 0 : index
    %c0_117 = arith.constant 0 : index
    %322 = vector.load %arg26[%c0_115, %c0_116, %c0_117] : memref<1x8x32xf32, #tpu.memory_space<vmem>>, vector<1x8x32xf32>
    %323 = vector.shape_cast %322 : vector<1x8x32xf32> to vector<8x32xf32>
    %324 = vector.shape_cast %321 : vector<8x32xf32> to vector<1x8x32xf32>
    tpu.vector_store %arg26[%c0_115, %c0_116, %c0_117], %324 {strides = array<i32>} : memref<1x8x32xf32, #tpu.memory_space<vmem>>, vector<1x8x32xf32>,
    return
  }
  func.func @transform_0(%arg0: i32) -> (i32, i32, i32) {
    %c0_i32 = arith.constant 0 : i32
    %c0_i32_0 = arith.constant 0 : i32
    %c0_i32_1 = arith.constant 0 : i32
    return %arg0, %c0_i32, %c0_i32_0 : i32, i32, i32
  }
  func.func @transform_1(%arg0: i32) -> (i32, i32, i32) {
    %c0_i32 = arith.constant 0 : i32
    %c0_i32_0 = arith.constant 0 : i32
    %c0_i32_1 = arith.constant 0 : i32
    return %arg0, %c0_i32, %c0_i32_0 : i32, i32, i32
  }
  func.func @transform_2(%arg0: i32) -> (i32, i32) {
    %c0_i32 = arith.constant 0 : i32
    %c0_i32_0 = arith.constant 0 : i32
    %c0_i32_1 = arith.constant 0 : i32
    return %c0_i32, %c0_i32_0 : i32, i32
  }
  func.func @transform_3(%arg0: i32) -> (i32, i32, i32) {
    %c0_i32 = arith.constant 0 : i32
    %c0_i32_0 = arith.constant 0 : i32
    %c0_i32_1 = arith.constant 0 : i32
    return %arg0, %c0_i32, %c0_i32_0 : i32, i32, i32
  }
  func.func @transform_4(%arg0: i32) -> (i32, i32, i32) {
    %c0_i32 = arith.constant 0 : i32
    %c0_i32_0 = arith.constant 0 : i32
    %c0_i32_1 = arith.constant 0 : i32
    return %arg0, %c0_i32, %c0_i32_0 : i32, i32, i32
  }
  func.func @transform_5(%arg0: i32) -> (i32, i32) {
    %c0_i32 = arith.constant 0 : i32
    %c0_i32_0 = arith.constant 0 : i32
    %c0_i32_1 = arith.constant 0 : i32
    return %c0_i32, %c0_i32_0 : i32, i32
  }
  func.func @transform_6(%arg0: i32) -> (i32, i32) {
    %c0_i32 = arith.constant 0 : i32
    %c0_i32_0 = arith.constant 0 : i32
    %c0_i32_1 = arith.constant 0 : i32
    return %c0_i32, %c0_i32_0 : i32, i32
  }
  func.func @transform_7(%arg0: i32) -> (i32, i32) {
    %c0_i32 = arith.constant 0 : i32
    %c0_i32_0 = arith.constant 0 : i32
    %c0_i32_1 = arith.constant 0 : i32
    return %c0_i32, %c0_i32_0 : i32, i32
  }
  func.func @transform_8(%arg0: i32) -> (i32, i32) {
    %c0_i32 = arith.constant 0 : i32
    %c0_i32_0 = arith.constant 0 : i32
    %c0_i32_1 = arith.constant 0 : i32
    return %c0_i32, %c0_i32_0 : i32, i32
  }
  func.func @transform_9(%arg0: i32) -> (i32, i32) {
    %c0_i32 = arith.constant 0 : i32
    %c0_i32_0 = arith.constant 0 : i32
    %c0_i32_1 = arith.constant 0 : i32
    return %c0_i32, %c0_i32_0 : i32, i32
  }
  func.func @transform_10(%arg0: i32) -> (i32, i32) {
    %c0_i32 = arith.constant 0 : i32
    %c0_i32_0 = arith.constant 0 : i32
    %c0_i32_1 = arith.constant 0 : i32
    return %c0_i32, %c0_i32_0 : i32, i32
  }
  func.func @transform_11(%arg0: i32) -> (i32, i32) {
    %c0_i32 = arith.constant 0 : i32
    %c0_i32_0 = arith.constant 0 : i32
    %c0_i32_1 = arith.constant 0 : i32
    return %c0_i32, %c0_i32_0 : i32, i32
  }
  func.func @transform_12(%arg0: i32) -> (i32, i32) {
    %c0_i32 = arith.constant 0 : i32
    %c0_i32_0 = arith.constant 0 : i32
    %c0_i32_1 = arith.constant 0 : i32
    return %c0_i32, %c0_i32_0 : i32, i32
  }
  func.func @transform_13(%arg0: i32) -> (i32, i32) {
    %c0_i32 = arith.constant 0 : i32
    %c0_i32_0 = arith.constant 0 : i32
    %c0_i32_1 = arith.constant 0 : i32
    return %c0_i32, %c0_i32_0 : i32, i32
  }
  func.func @transform_14(%arg0: i32) -> (i32, i32) {
    %c0_i32 = arith.constant 0 : i32
    %c0_i32_0 = arith.constant 0 : i32
    %c0_i32_1 = arith.constant 0 : i32
    return %c0_i32, %c0_i32_0 : i32, i32
  }
  func.func @transform_15(%arg0: i32) -> (i32, i32) {
    %c0_i32 = arith.constant 0 : i32
    %c0_i32_0 = arith.constant 0 : i32
    %c0_i32_1 = arith.constant 0 : i32
    return %c0_i32, %c0_i32_0 : i32, i32
  }
  func.func @transform_16(%arg0: i32) -> (i32, i32) {
    %c0_i32 = arith.constant 0 : i32
    %c0_i32_0 = arith.constant 0 : i32
    %c0_i32_1 = arith.constant 0 : i32
    return %c0_i32, %c0_i32_0 : i32, i32
  }
  func.func @transform_17(%arg0: i32) -> (i32, i32) {
    %c0_i32 = arith.constant 0 : i32
    %c0_i32_0 = arith.constant 0 : i32
    %c0_i32_1 = arith.constant 0 : i32
    return %c0_i32, %c0_i32_0 : i32, i32
  }
  func.func @transform_18(%arg0: i32) -> (i32, i32) {
    %c0_i32 = arith.constant 0 : i32
    %c0_i32_0 = arith.constant 0 : i32
    %c0_i32_1 = arith.constant 0 : i32
    return %c0_i32, %c0_i32_0 : i32, i32
  }
  func.func @transform_19(%arg0: i32) -> (i32, i32) {
    %c0_i32 = arith.constant 0 : i32
    %c0_i32_0 = arith.constant 0 : i32
    %c0_i32_1 = arith.constant 0 : i32
    return %c0_i32, %c0_i32_0 : i32, i32
  }
  func.func @transform_20(%arg0: i32) -> (i32, i32) {
    %c0_i32 = arith.constant 0 : i32
    %c0_i32_0 = arith.constant 0 : i32
    %c0_i32_1 = arith.constant 0 : i32
    return %c0_i32, %c0_i32_0 : i32, i32
  }
  func.func @transform_21(%arg0: i32) -> (i32, i32) {
    %c0_i32 = arith.constant 0 : i32
    %c0_i32_0 = arith.constant 0 : i32
    %c0_i32_1 = arith.constant 0 : i32
    return %c0_i32, %c0_i32_0 : i32, i32
  }
  func.func @transform_22(%arg0: i32) -> (i32, i32) {
    %c0_i32 = arith.constant 0 : i32
    %c0_i32_0 = arith.constant 0 : i32
    %c0_i32_1 = arith.constant 0 : i32
    return %c0_i32, %c0_i32_0 : i32, i32
  }
  func.func @transform_23(%arg0: i32) -> (i32, i32) {
    %c0_i32 = arith.constant 0 : i32
    %c0_i32_0 = arith.constant 0 : i32
    %c0_i32_1 = arith.constant 0 : i32
    return %c0_i32, %c0_i32_0 : i32, i32
  }
  func.func @transform_24(%arg0: i32) -> (i32, i32) {
    %c0_i32 = arith.constant 0 : i32
    %c0_i32_0 = arith.constant 0 : i32
    %c0_i32_1 = arith.constant 0 : i32
    return %c0_i32, %c0_i32_0 : i32, i32
  }
  func.func @transform_25(%arg0: i32) -> (i32, i32, i32) {
    %c0_i32 = arith.constant 0 : i32
    %c0_i32_0 = arith.constant 0 : i32
    %c0_i32_1 = arith.constant 0 : i32
    return %arg0, %c0_i32, %c0_i32_0 : i32, i32, i32
  }
}

module attributes {stable_mosaic.version = 11 : i64} {
  func.func @_decoder_layer_kernel(%arg0: i32, %arg1: memref<1x8x32xf32, #tpu.memory_space<vmem>>, %arg2: memref<1x8x32xbf16, #tpu.memory_space<vmem>>, %arg3: memref<8x8xf32, #tpu.memory_space<vmem>>, %arg4: memref<1x1x8xf32, #tpu.memory_space<vmem>>, %arg5: memref<1x1x8xf32, #tpu.memory_space<vmem>>, %arg6: memref<32x96xbf16, #tpu.memory_space<vmem>>, %arg7: memref<1x96xf32, #tpu.memory_space<vmem>>, %arg8: memref<32x32xbf16, #tpu.memory_space<vmem>>, %arg9: memref<1x32xf32, #tpu.memory_space<vmem>>, %arg10: memref<1x32xf32, #tpu.memory_space<vmem>>, %arg11: memref<1x32xf32, #tpu.memory_space<vmem>>, %arg12: memref<32x32xbf16, #tpu.memory_space<vmem>>, %arg13: memref<1x32xf32, #tpu.memory_space<vmem>>, %arg14: memref<32x64xbf16, #tpu.memory_space<vmem>>, %arg15: memref<1x64xf32, #tpu.memory_space<vmem>>, %arg16: memref<32x32xbf16, #tpu.memory_space<vmem>>, %arg17: memref<1x32xf32, #tpu.memory_space<vmem>>, %arg18: memref<1x32xf32, #tpu.memory_space<vmem>>, %arg19: memref<1x32xf32, #tpu.memory_space<vmem>>, %arg20: memref<32x64xbf16, #tpu.memory_space<vmem>>, %arg21: memref<1x64xf32, #tpu.memory_space<vmem>>, %arg22: memref<64x32xbf16, #tpu.memory_space<vmem>>, %arg23: memref<1x32xf32, #tpu.memory_space<vmem>>, %arg24: memref<1x32xf32, #tpu.memory_space<vmem>>, %arg25: memref<1x32xf32, #tpu.memory_space<vmem>>, %arg26: memref<1x8x32xf32, #tpu.memory_space<vmem>>) attributes {dimension_semantics = [#tpu.dimension_semantics<parallel>], iteration_bounds = array<i64: 2>, scalar_prefetch = 0 : i64, scratch_operands = 0 : i64, tpu.core_type = #tpu.core_type<tc>, window_params = [{transform_indices = @transform_0, window_bounds = array<i64: 1, 8, 32>}, {transform_indices = @transform_1, window_bounds = array<i64: 1, 8, 32>}, {pipeline_mode = #tpu.pipeline_mode<synchronous>, transform_indices = @transform_2, window_bounds = array<i64: 8, 8>}, {transform_indices = @transform_3, window_bounds = array<i64: 1, 1, 8>}, {transform_indices = @transform_4, window_bounds = array<i64: 1, 1, 8>}, {pipeline_mode = #tpu.pipeline_mode<synchronous>, transform_indices = @transform_5, window_bounds = array<i64: 32, 96>}, {pipeline_mode = #tpu.pipeline_mode<synchronous>, transform_indices = @transform_6, window_bounds = array<i64: 1, 96>}, {pipeline_mode = #tpu.pipeline_mode<synchronous>, transform_indices = @transform_7, window_bounds = array<i64: 32, 32>}, {pipeline_mode = #tpu.pipeline_mode<synchronous>, transform_indices = @transform_8, window_bounds = array<i64: 1, 32>}, {pipeline_mode = #tpu.pipeline_mode<synchronous>, transform_indices = @transform_9, window_bounds = array<i64: 1, 32>}, {pipeline_mode = #tpu.pipeline_mode<synchronous>, transform_indices = @transform_10, window_bounds = array<i64: 1, 32>}, {pipeline_mode = #tpu.pipeline_mode<synchronous>, transform_indices = @transform_11, window_bounds = array<i64: 32, 32>}, {pipeline_mode = #tpu.pipeline_mode<synchronous>, transform_indices = @transform_12, window_bounds = array<i64: 1, 32>}, {pipeline_mode = #tpu.pipeline_mode<synchronous>, transform_indices = @transform_13, window_bounds = array<i64: 32, 64>}, {pipeline_mode = #tpu.pipeline_mode<synchronous>, transform_indices = @transform_14, window_bounds = array<i64: 1, 64>}, {pipeline_mode = #tpu.pipeline_mode<synchronous>, transform_indices = @transform_15, window_bounds = array<i64: 32, 32>}, {pipeline_mode = #tpu.pipeline_mode<synchronous>, transform_indices = @transform_16, window_bounds = array<i64: 1, 32>}, {pipeline_mode = #tpu.pipeline_mode<synchronous>, transform_indices = @transform_17, window_bounds = array<i64: 1, 32>}, {pipeline_mode = #tpu.pipeline_mode<synchronous>, transform_indices = @transform_18, window_bounds = array<i64: 1, 32>}, {pipeline_mode = #tpu.pipeline_mode<synchronous>, transform_indices = @transform_19, window_bounds = array<i64: 32, 64>}, {pipeline_mode = #tpu.pipeline_mode<synchronous>, transform_indices = @transform_20, window_bounds = array<i64: 1, 64>}, {pipeline_mode = #tpu.pipeline_mode<synchronous>, transform_indices = @transform_21, window_bounds = array<i64: 64, 32>}, {pipeline_mode = #tpu.pipeline_mode<synchronous>, transform_indices = @transform_22, window_bounds = array<i64: 1, 32>}, {pipeline_mode = #tpu.pipeline_mode<synchronous>, transform_indices = @transform_23, window_bounds = array<i64: 1, 32>}, {pipeline_mode = #tpu.pipeline_mode<synchronous>, transform_indices = @transform_24, window_bounds = array<i64: 1, 32>}, {transform_indices = @transform_25, window_bounds = array<i64: 1, 8, 32>}]} {
    %c0 = arith.constant 0 : index
    %c0_0 = arith.constant 0 : index
    %c0_1 = arith.constant 0 : index
    %0 = vector.load %arg1[%c0, %c0_0, %c0_1] : memref<1x8x32xf32, #tpu.memory_space<vmem>>, vector<1x8x32xf32>
    %1 = vector.shape_cast %0 : vector<1x8x32xf32> to vector<8x32xf32>
    %c0_2 = arith.constant 0 : index
    %c0_3 = arith.constant 0 : index
    %c0_4 = arith.constant 0 : index
    %2 = vector.load %arg2[%c0_2, %c0_3, %c0_4] : memref<1x8x32xbf16, #tpu.memory_space<vmem>>, vector<1x8x32xbf16>
    %3 = vector.shape_cast %2 : vector<1x8x32xbf16> to vector<8x32xbf16>
    %4 = arith.truncf %1 : vector<8x32xf32> to vector<8x32xbf16>
    %c0_5 = arith.constant 0 : index
    %c0_6 = arith.constant 0 : index
    %5 = vector.load %arg6[%c0_5, %c0_6] : memref<32x96xbf16, #tpu.memory_space<vmem>>, vector<32x96xbf16>
    %cst = arith.constant dense<0.000000e+00> : vector<8x96xf32>
    %6 = tpu.matmul %4, %5, %cst {dimension_numbers = #tpu.dot_dimension_numbers<[1], [0], [0], [1], [0, 0, 1, 1], [], []>} : vector<8x32xbf16>, vector<32x96xbf16>, vector<8x96xf32> -> vector<8x96xf32>
    %c0_7 = arith.constant 0 : index
    %c0_8 = arith.constant 0 : index
    %7 = vector.load %arg7[%c0_7, %c0_8] : memref<1x96xf32, #tpu.memory_space<vmem>>, vector<1x96xf32>
    %8 = vector.broadcast %7 : vector<1x96xf32> to vector<8x96xf32>
    %9 = arith.addf %6, %8 : vector<8x96xf32>
    %10 = vector.extract_strided_slice %9 {offsets = [0, 0], sizes = [8, 32], strides = [1, 1]} : vector<8x96xf32> to vector<8x32xf32>
    %11 = vector.extract_strided_slice %9 {offsets = [0, 32], sizes = [8, 32], strides = [1, 1]} : vector<8x96xf32> to vector<8x32xf32>
    %12 = vector.extract_strided_slice %9 {offsets = [0, 64], sizes = [8, 32], strides = [1, 1]} : vector<8x96xf32> to vector<8x32xf32>
    %c0_9 = arith.constant 0 : index
    %c0_10 = arith.constant 0 : index
    %13 = vector.load %arg3[%c0_9, %c0_10] : memref<8x8xf32, #tpu.memory_space<vmem>>, vector<8x8xf32>
    %c0_11 = arith.constant 0 : index
    %c0_12 = arith.constant 0 : index
    %c0_13 = arith.constant 0 : index
    %14 = vector.load %arg4[%c0_11, %c0_12, %c0_13] : memref<1x1x8xf32, #tpu.memory_space<vmem>>, vector<1x1x8xf32>
    %15 = vector.shape_cast %14 : vector<1x1x8xf32> to vector<1x8xf32>
    %16 = vector.extract_strided_slice %10 {offsets = [0, 0], sizes = [8, 8], strides = [1, 1]} : vector<8x32xf32> to vector<8x8xf32>
    %17 = arith.truncf %16 : vector<8x8xf32> to vector<8x8xbf16>
    %18 = vector.extract_strided_slice %11 {offsets = [0, 0], sizes = [8, 8], strides = [1, 1]} : vector<8x32xf32> to vector<8x8xf32>
    %19 = arith.truncf %18 : vector<8x8xf32> to vector<8x8xbf16>
    %20 = vector.extract_strided_slice %12 {offsets = [0, 0], sizes = [8, 8], strides = [1, 1]} : vector<8x32xf32> to vector<8x8xf32>
    %21 = arith.truncf %20 : vector<8x8xf32> to vector<8x8xbf16>
    %cst_14 = arith.constant dense<0.000000e+00> : vector<8x8xf32>
    %22 = tpu.matmul %17, %19, %cst_14 {dimension_numbers = #tpu.dot_dimension_numbers<[1], [1], [0], [0], [0, 0, 1, 0], [], []>} : vector<8x8xbf16>, vector<8x8xbf16>, vector<8x8xf32> -> vector<8x8xf32>
    %cst_15 = arith.constant 0.353553385 : f32
    %23 = vector.broadcast %cst_15 : f32 to vector<8x8xf32>
    %24 = arith.mulf %22, %23 : vector<8x8xf32>
    %25 = vector.broadcast %15 : vector<1x8xf32> to vector<8x8xf32>
    %26 = arith.addf %24, %25 : vector<8x8xf32>
    %27 = arith.addf %26, %13 : vector<8x8xf32>
    %cst_16 = arith.constant dense<0xFF800000> : vector<8xf32>
    %28 = vector.multi_reduction <maximumf>, %27, %cst_16 [1] : vector<8x8xf32> to vector<8xf32>
    %29 = vector.shape_cast %28 : vector<8xf32> to vector<8x1xf32>
    %30 = vector.broadcast %29 : vector<8x1xf32> to vector<8x8xf32>
    %31 = arith.subf %27, %30 : vector<8x8xf32>
    %32 = math.exp %31 : vector<8x8xf32>
    %cst_17 = arith.constant dense<0.000000e+00> : vector<8xf32>
    %33 = vector.multi_reduction <add>, %32, %cst_17 [1] : vector<8x8xf32> to vector<8xf32>
    %34 = vector.shape_cast %33 : vector<8xf32> to vector<8x1xf32>
    %35 = tpu.reciprocal %34 {approx = true} : vector<8x1xf32> -> vector<8x1xf32>
    %36 = vector.broadcast %35 : vector<8x1xf32> to vector<8x8xf32>
    %37 = arith.mulf %32, %36 : vector<8x8xf32>
    %38 = arith.truncf %37 : vector<8x8xf32> to vector<8x8xbf16>
    %cst_18 = arith.constant dense<0.000000e+00> : vector<8x8xf32>
    %39 = tpu.matmul %38, %21, %cst_18 {dimension_numbers = #tpu.dot_dimension_numbers<[1], [0], [0], [1], [0, 0, 1, 1], [], []>} : vector<8x8xbf16>, vector<8x8xbf16>, vector<8x8xf32> -> vector<8x8xf32>
    %40 = vector.extract_strided_slice %10 {offsets = [0, 8], sizes = [8, 8], strides = [1, 1]} : vector<8x32xf32> to vector<8x8xf32>
    %41 = arith.truncf %40 : vector<8x8xf32> to vector<8x8xbf16>
    %42 = vector.extract_strided_slice %11 {offsets = [0, 8], sizes = [8, 8], strides = [1, 1]} : vector<8x32xf32> to vector<8x8xf32>
    %43 = arith.truncf %42 : vector<8x8xf32> to vector<8x8xbf16>
    %44 = vector.extract_strided_slice %12 {offsets = [0, 8], sizes = [8, 8], strides = [1, 1]} : vector<8x32xf32> to vector<8x8xf32>
    %45 = arith.truncf %44 : vector<8x8xf32> to vector<8x8xbf16>
    %cst_19 = arith.constant dense<0.000000e+00> : vector<8x8xf32>
    %46 = tpu.matmul %41, %43, %cst_19 {dimension_numbers = #tpu.dot_dimension_numbers<[1], [1], [0], [0], [0, 0, 1, 0], [], []>} : vector<8x8xbf16>, vector<8x8xbf16>, vector<8x8xf32> -> vector<8x8xf32>
    %cst_20 = arith.constant 0.353553385 : f32
    %47 = vector.broadcast %cst_20 : f32 to vector<8x8xf32>
    %48 = arith.mulf %46, %47 : vector<8x8xf32>
    %49 = vector.broadcast %15 : vector<1x8xf32> to vector<8x8xf32>
    %50 = arith.addf %48, %49 : vector<8x8xf32>
    %51 = arith.addf %50, %13 : vector<8x8xf32>
    %cst_21 = arith.constant dense<0xFF800000> : vector<8xf32>
    %52 = vector.multi_reduction <maximumf>, %51, %cst_21 [1] : vector<8x8xf32> to vector<8xf32>
    %53 = vector.shape_cast %52 : vector<8xf32> to vector<8x1xf32>
    %54 = vector.broadcast %53 : vector<8x1xf32> to vector<8x8xf32>
    %55 = arith.subf %51, %54 : vector<8x8xf32>
    %56 = math.exp %55 : vector<8x8xf32>
    %cst_22 = arith.constant dense<0.000000e+00> : vector<8xf32>
    %57 = vector.multi_reduction <add>, %56, %cst_22 [1] : vector<8x8xf32> to vector<8xf32>
    %58 = vector.shape_cast %57 : vector<8xf32> to vector<8x1xf32>
    %59 = tpu.reciprocal %58 {approx = true} : vector<8x1xf32> -> vector<8x1xf32>
    %60 = vector.broadcast %59 : vector<8x1xf32> to vector<8x8xf32>
    %61 = arith.mulf %56, %60 : vector<8x8xf32>
    %62 = arith.truncf %61 : vector<8x8xf32> to vector<8x8xbf16>
    %cst_23 = arith.constant dense<0.000000e+00> : vector<8x8xf32>
    %63 = tpu.matmul %62, %45, %cst_23 {dimension_numbers = #tpu.dot_dimension_numbers<[1], [0], [0], [1], [0, 0, 1, 1], [], []>} : vector<8x8xbf16>, vector<8x8xbf16>, vector<8x8xf32> -> vector<8x8xf32>
    %64 = vector.extract_strided_slice %10 {offsets = [0, 16], sizes = [8, 8], strides = [1, 1]} : vector<8x32xf32> to vector<8x8xf32>
    %65 = arith.truncf %64 : vector<8x8xf32> to vector<8x8xbf16>
    %66 = vector.extract_strided_slice %11 {offsets = [0, 16], sizes = [8, 8], strides = [1, 1]} : vector<8x32xf32> to vector<8x8xf32>
    %67 = arith.truncf %66 : vector<8x8xf32> to vector<8x8xbf16>
    %68 = vector.extract_strided_slice %12 {offsets = [0, 16], sizes = [8, 8], strides = [1, 1]} : vector<8x32xf32> to vector<8x8xf32>
    %69 = arith.truncf %68 : vector<8x8xf32> to vector<8x8xbf16>
    %cst_24 = arith.constant dense<0.000000e+00> : vector<8x8xf32>
    %70 = tpu.matmul %65, %67, %cst_24 {dimension_numbers = #tpu.dot_dimension_numbers<[1], [1], [0], [0], [0, 0, 1, 0], [], []>} : vector<8x8xbf16>, vector<8x8xbf16>, vector<8x8xf32> -> vector<8x8xf32>
    %cst_25 = arith.constant 0.353553385 : f32
    %71 = vector.broadcast %cst_25 : f32 to vector<8x8xf32>
    %72 = arith.mulf %70, %71 : vector<8x8xf32>
    %73 = vector.broadcast %15 : vector<1x8xf32> to vector<8x8xf32>
    %74 = arith.addf %72, %73 : vector<8x8xf32>
    %75 = arith.addf %74, %13 : vector<8x8xf32>
    %cst_26 = arith.constant dense<0xFF800000> : vector<8xf32>
    %76 = vector.multi_reduction <maximumf>, %75, %cst_26 [1] : vector<8x8xf32> to vector<8xf32>
    %77 = vector.shape_cast %76 : vector<8xf32> to vector<8x1xf32>
    %78 = vector.broadcast %77 : vector<8x1xf32> to vector<8x8xf32>
    %79 = arith.subf %75, %78 : vector<8x8xf32>
    %80 = math.exp %79 : vector<8x8xf32>
    %cst_27 = arith.constant dense<0.000000e+00> : vector<8xf32>
    %81 = vector.multi_reduction <add>, %80, %cst_27 [1] : vector<8x8xf32> to vector<8xf32>
    %82 = vector.shape_cast %81 : vector<8xf32> to vector<8x1xf32>
    %83 = tpu.reciprocal %82 {approx = true} : vector<8x1xf32> -> vector<8x1xf32>
    %84 = vector.broadcast %83 : vector<8x1xf32> to vector<8x8xf32>
    %85 = arith.mulf %80, %84 : vector<8x8xf32>
    %86 = arith.truncf %85 : vector<8x8xf32> to vector<8x8xbf16>
    %cst_28 = arith.constant dense<0.000000e+00> : vector<8x8xf32>
    %87 = tpu.matmul %86, %69, %cst_28 {dimension_numbers = #tpu.dot_dimension_numbers<[1], [0], [0], [1], [0, 0, 1, 1], [], []>} : vector<8x8xbf16>, vector<8x8xbf16>, vector<8x8xf32> -> vector<8x8xf32>
    %88 = vector.extract_strided_slice %10 {offsets = [0, 24], sizes = [8, 8], strides = [1, 1]} : vector<8x32xf32> to vector<8x8xf32>
    %89 = arith.truncf %88 : vector<8x8xf32> to vector<8x8xbf16>
    %90 = vector.extract_strided_slice %11 {offsets = [0, 24], sizes = [8, 8], strides = [1, 1]} : vector<8x32xf32> to vector<8x8xf32>
    %91 = arith.truncf %90 : vector<8x8xf32> to vector<8x8xbf16>
    %92 = vector.extract_strided_slice %12 {offsets = [0, 24], sizes = [8, 8], strides = [1, 1]} : vector<8x32xf32> to vector<8x8xf32>
    %93 = arith.truncf %92 : vector<8x8xf32> to vector<8x8xbf16>
    %cst_29 = arith.constant dense<0.000000e+00> : vector<8x8xf32>
    %94 = tpu.matmul %89, %91, %cst_29 {dimension_numbers = #tpu.dot_dimension_numbers<[1], [1], [0], [0], [0, 0, 1, 0], [], []>} : vector<8x8xbf16>, vector<8x8xbf16>, vector<8x8xf32> -> vector<8x8xf32>
    %cst_30 = arith.constant 0.353553385 : f32
    %95 = vector.broadcast %cst_30 : f32 to vector<8x8xf32>
    %96 = arith.mulf %94, %95 : vector<8x8xf32>
    %97 = vector.broadcast %15 : vector<1x8xf32> to vector<8x8xf32>
    %98 = arith.addf %96, %97 : vector<8x8xf32>
    %99 = arith.addf %98, %13 : vector<8x8xf32>
    %cst_31 = arith.constant dense<0xFF800000> : vector<8xf32>
    %100 = vector.multi_reduction <maximumf>, %99, %cst_31 [1] : vector<8x8xf32> to vector<8xf32>
    %101 = vector.shape_cast %100 : vector<8xf32> to vector<8x1xf32>
    %102 = vector.broadcast %101 : vector<8x1xf32> to vector<8x8xf32>
    %103 = arith.subf %99, %102 : vector<8x8xf32>
    %104 = math.exp %103 : vector<8x8xf32>
    %cst_32 = arith.constant dense<0.000000e+00> : vector<8xf32>
    %105 = vector.multi_reduction <add>, %104, %cst_32 [1] : vector<8x8xf32> to vector<8xf32>
    %106 = vector.shape_cast %105 : vector<8xf32> to vector<8x1xf32>
    %107 = tpu.reciprocal %106 {approx = true} : vector<8x1xf32> -> vector<8x1xf32>
    %108 = vector.broadcast %107 : vector<8x1xf32> to vector<8x8xf32>
    %109 = arith.mulf %104, %108 : vector<8x8xf32>
    %110 = arith.truncf %109 : vector<8x8xf32> to vector<8x8xbf16>
    %cst_33 = arith.constant dense<0.000000e+00> : vector<8x8xf32>
    %111 = tpu.matmul %110, %93, %cst_33 {dimension_numbers = #tpu.dot_dimension_numbers<[1], [0], [0], [1], [0, 0, 1, 1], [], []>} : vector<8x8xbf16>, vector<8x8xbf16>, vector<8x8xf32> -> vector<8x8xf32>
    %112 = tpu.concatenate %39, %63, %87, %111 in 1 : vector<8x8xf32>, vector<8x8xf32>, vector<8x8xf32>, vector<8x8xf32> -> vector<8x32xf32>
    %113 = arith.truncf %112 : vector<8x32xf32> to vector<8x32xbf16>
    %c0_34 = arith.constant 0 : index
    %c0_35 = arith.constant 0 : index
    %114 = vector.load %arg8[%c0_34, %c0_35] : memref<32x32xbf16, #tpu.memory_space<vmem>>, vector<32x32xbf16>
    %cst_36 = arith.constant dense<0.000000e+00> : vector<8x32xf32>
    %115 = tpu.matmul %113, %114, %cst_36 {dimension_numbers = #tpu.dot_dimension_numbers<[1], [0], [0], [1], [0, 0, 1, 1], [], []>} : vector<8x32xbf16>, vector<32x32xbf16>, vector<8x32xf32> -> vector<8x32xf32>
    %c0_37 = arith.constant 0 : index
    %c0_38 = arith.constant 0 : index
    %116 = vector.load %arg9[%c0_37, %c0_38] : memref<1x32xf32, #tpu.memory_space<vmem>>, vector<1x32xf32>
    %117 = vector.broadcast %116 : vector<1x32xf32> to vector<8x32xf32>
    %118 = arith.addf %115, %117 : vector<8x32xf32>
    %119 = arith.addf %1, %118 : vector<8x32xf32>
    %c0_39 = arith.constant 0 : index
    %c0_40 = arith.constant 0 : index
    %120 = vector.load %arg10[%c0_39, %c0_40] : memref<1x32xf32, #tpu.memory_space<vmem>>, vector<1x32xf32>
    %c0_41 = arith.constant 0 : index
    %c0_42 = arith.constant 0 : index
    %121 = vector.load %arg11[%c0_41, %c0_42] : memref<1x32xf32, #tpu.memory_space<vmem>>, vector<1x32xf32>
    %cst_43 = arith.constant dense<0.000000e+00> : vector<8xf32>
    %122 = vector.multi_reduction <add>, %119, %cst_43 [1] : vector<8x32xf32> to vector<8xf32>
    %123 = vector.shape_cast %122 : vector<8xf32> to vector<8x1xf32>
    %cst_44 = arith.constant 3.200000e+01 : f32
    %124 = vector.broadcast %cst_44 : f32 to vector<8x1xf32>
    %125 = arith.divf %123, %124 : vector<8x1xf32>
    %126 = vector.broadcast %125 : vector<8x1xf32> to vector<8x32xf32>
    %127 = arith.subf %119, %126 : vector<8x32xf32>
    %128 = arith.mulf %127, %127 : vector<8x32xf32>
    %cst_45 = arith.constant dense<0.000000e+00> : vector<8xf32>
    %129 = vector.multi_reduction <add>, %128, %cst_45 [1] : vector<8x32xf32> to vector<8xf32>
    %130 = vector.shape_cast %129 : vector<8xf32> to vector<8x1xf32>
    %cst_46 = arith.constant 3.200000e+01 : f32
    %131 = vector.broadcast %cst_46 : f32 to vector<8x1xf32>
    %132 = arith.divf %130, %131 : vector<8x1xf32>
    %133 = vector.broadcast %125 : vector<8x1xf32> to vector<8x32xf32>
    %134 = arith.subf %119, %133 : vector<8x32xf32>
    %cst_47 = arith.constant 9.99999974E-6 : f32
    %135 = vector.broadcast %cst_47 : f32 to vector<8x1xf32>
    %136 = arith.addf %132, %135 : vector<8x1xf32>
    %137 = math.rsqrt %136 : vector<8x1xf32>
    %138 = vector.broadcast %137 : vector<8x1xf32> to vector<8x32xf32>
    %139 = arith.mulf %134, %138 : vector<8x32xf32>
    %140 = vector.broadcast %120 : vector<1x32xf32> to vector<8x32xf32>
    %141 = arith.mulf %139, %140 : vector<8x32xf32>
    %142 = vector.broadcast %121 : vector<1x32xf32> to vector<8x32xf32>
    %143 = arith.addf %141, %142 : vector<8x32xf32>
    %144 = arith.truncf %143 : vector<8x32xf32> to vector<8x32xbf16>
    %c0_48 = arith.constant 0 : index
    %c0_49 = arith.constant 0 : index
    %145 = vector.load %arg12[%c0_48, %c0_49] : memref<32x32xbf16, #tpu.memory_space<vmem>>, vector<32x32xbf16>
    %cst_50 = arith.constant dense<0.000000e+00> : vector<8x32xf32>
    %146 = tpu.matmul %144, %145, %cst_50 {dimension_numbers = #tpu.dot_dimension_numbers<[1], [0], [0], [1], [0, 0, 1, 1], [], []>} : vector<8x32xbf16>, vector<32x32xbf16>, vector<8x32xf32> -> vector<8x32xf32>
    %c0_51 = arith.constant 0 : index
    %c0_52 = arith.constant 0 : index
    %147 = vector.load %arg13[%c0_51, %c0_52] : memref<1x32xf32, #tpu.memory_space<vmem>>, vector<1x32xf32>
    %148 = vector.broadcast %147 : vector<1x32xf32> to vector<8x32xf32>
    %149 = arith.addf %146, %148 : vector<8x32xf32>
    %c0_53 = arith.constant 0 : index
    %c0_54 = arith.constant 0 : index
    %150 = vector.load %arg14[%c0_53, %c0_54] : memref<32x64xbf16, #tpu.memory_space<vmem>>, vector<32x64xbf16>
    %cst_55 = arith.constant dense<0.000000e+00> : vector<8x64xf32>
    %151 = tpu.matmul %3, %150, %cst_55 {dimension_numbers = #tpu.dot_dimension_numbers<[1], [0], [0], [1], [0, 0, 1, 1], [], []>} : vector<8x32xbf16>, vector<32x64xbf16>, vector<8x64xf32> -> vector<8x64xf32>
    %c0_56 = arith.constant 0 : index
    %c0_57 = arith.constant 0 : index
    %152 = vector.load %arg15[%c0_56, %c0_57] : memref<1x64xf32, #tpu.memory_space<vmem>>, vector<1x64xf32>
    %153 = vector.broadcast %152 : vector<1x64xf32> to vector<8x64xf32>
    %154 = arith.addf %151, %153 : vector<8x64xf32>
    %155 = vector.extract_strided_slice %154 {offsets = [0, 0], sizes = [8, 32], strides = [1, 1]} : vector<8x64xf32> to vector<8x32xf32>
    %156 = vector.extract_strided_slice %154 {offsets = [0, 32], sizes = [8, 32], strides = [1, 1]} : vector<8x64xf32> to vector<8x32xf32>
    %c0_58 = arith.constant 0 : index
    %c0_59 = arith.constant 0 : index
    %c0_60 = arith.constant 0 : index
    %157 = vector.load %arg5[%c0_58, %c0_59, %c0_60] : memref<1x1x8xf32, #tpu.memory_space<vmem>>, vector<1x1x8xf32>
    %158 = vector.shape_cast %157 : vector<1x1x8xf32> to vector<1x8xf32>
    %159 = vector.extract_strided_slice %149 {offsets = [0, 0], sizes = [8, 8], strides = [1, 1]} : vector<8x32xf32> to vector<8x8xf32>
    %160 = arith.truncf %159 : vector<8x8xf32> to vector<8x8xbf16>
    %161 = vector.extract_strided_slice %155 {offsets = [0, 0], sizes = [8, 8], strides = [1, 1]} : vector<8x32xf32> to vector<8x8xf32>
    %162 = arith.truncf %161 : vector<8x8xf32> to vector<8x8xbf16>
    %163 = vector.extract_strided_slice %156 {offsets = [0, 0], sizes = [8, 8], strides = [1, 1]} : vector<8x32xf32> to vector<8x8xf32>
    %164 = arith.truncf %163 : vector<8x8xf32> to vector<8x8xbf16>
    %cst_61 = arith.constant dense<0.000000e+00> : vector<8x8xf32>
    %165 = tpu.matmul %160, %162, %cst_61 {dimension_numbers = #tpu.dot_dimension_numbers<[1], [1], [0], [0], [0, 0, 1, 0], [], []>} : vector<8x8xbf16>, vector<8x8xbf16>, vector<8x8xf32> -> vector<8x8xf32>
    %cst_62 = arith.constant 0.353553385 : f32
    %166 = vector.broadcast %cst_62 : f32 to vector<8x8xf32>
    %167 = arith.mulf %165, %166 : vector<8x8xf32>
    %168 = vector.broadcast %158 : vector<1x8xf32> to vector<8x8xf32>
    %169 = arith.addf %167, %168 : vector<8x8xf32>
    %cst_63 = arith.constant dense<0xFF800000> : vector<8xf32>
    %170 = vector.multi_reduction <maximumf>, %169, %cst_63 [1] : vector<8x8xf32> to vector<8xf32>
    %171 = vector.shape_cast %170 : vector<8xf32> to vector<8x1xf32>
    %172 = vector.broadcast %171 : vector<8x1xf32> to vector<8x8xf32>
    %173 = arith.subf %169, %172 : vector<8x8xf32>
    %174 = math.exp %173 : vector<8x8xf32>
    %cst_64 = arith.constant dense<0.000000e+00> : vector<8xf32>
    %175 = vector.multi_reduction <add>, %174, %cst_64 [1] : vector<8x8xf32> to vector<8xf32>
    %176 = vector.shape_cast %175 : vector<8xf32> to vector<8x1xf32>
    %177 = tpu.reciprocal %176 {approx = true} : vector<8x1xf32> -> vector<8x1xf32>
    %178 = vector.broadcast %177 : vector<8x1xf32> to vector<8x8xf32>
    %179 = arith.mulf %174, %178 : vector<8x8xf32>
    %180 = arith.truncf %179 : vector<8x8xf32> to vector<8x8xbf16>
    %cst_65 = arith.constant dense<0.000000e+00> : vector<8x8xf32>
    %181 = tpu.matmul %180, %164, %cst_65 {dimension_numbers = #tpu.dot_dimension_numbers<[1], [0], [0], [1], [0, 0, 1, 1], [], []>} : vector<8x8xbf16>, vector<8x8xbf16>, vector<8x8xf32> -> vector<8x8xf32>
    %182 = vector.extract_strided_slice %149 {offsets = [0, 8], sizes = [8, 8], strides = [1, 1]} : vector<8x32xf32> to vector<8x8xf32>
    %183 = arith.truncf %182 : vector<8x8xf32> to vector<8x8xbf16>
    %184 = vector.extract_strided_slice %155 {offsets = [0, 8], sizes = [8, 8], strides = [1, 1]} : vector<8x32xf32> to vector<8x8xf32>
    %185 = arith.truncf %184 : vector<8x8xf32> to vector<8x8xbf16>
    %186 = vector.extract_strided_slice %156 {offsets = [0, 8], sizes = [8, 8], strides = [1, 1]} : vector<8x32xf32> to vector<8x8xf32>
    %187 = arith.truncf %186 : vector<8x8xf32> to vector<8x8xbf16>
    %cst_66 = arith.constant dense<0.000000e+00> : vector<8x8xf32>
    %188 = tpu.matmul %183, %185, %cst_66 {dimension_numbers = #tpu.dot_dimension_numbers<[1], [1], [0], [0], [0, 0, 1, 0], [], []>} : vector<8x8xbf16>, vector<8x8xbf16>, vector<8x8xf32> -> vector<8x8xf32>
    %cst_67 = arith.constant 0.353553385 : f32
    %189 = vector.broadcast %cst_67 : f32 to vector<8x8xf32>
    %190 = arith.mulf %188, %189 : vector<8x8xf32>
    %191 = vector.broadcast %158 : vector<1x8xf32> to vector<8x8xf32>
    %192 = arith.addf %190, %191 : vector<8x8xf32>
    %cst_68 = arith.constant dense<0xFF800000> : vector<8xf32>
    %193 = vector.multi_reduction <maximumf>, %192, %cst_68 [1] : vector<8x8xf32> to vector<8xf32>
    %194 = vector.shape_cast %193 : vector<8xf32> to vector<8x1xf32>
    %195 = vector.broadcast %194 : vector<8x1xf32> to vector<8x8xf32>
    %196 = arith.subf %192, %195 : vector<8x8xf32>
    %197 = math.exp %196 : vector<8x8xf32>
    %cst_69 = arith.constant dense<0.000000e+00> : vector<8xf32>
    %198 = vector.multi_reduction <add>, %197, %cst_69 [1] : vector<8x8xf32> to vector<8xf32>
    %199 = vector.shape_cast %198 : vector<8xf32> to vector<8x1xf32>
    %200 = tpu.reciprocal %199 {approx = true} : vector<8x1xf32> -> vector<8x1xf32>
    %201 = vector.broadcast %200 : vector<8x1xf32> to vector<8x8xf32>
    %202 = arith.mulf %197, %201 : vector<8x8xf32>
    %203 = arith.truncf %202 : vector<8x8xf32> to vector<8x8xbf16>
    %cst_70 = arith.constant dense<0.000000e+00> : vector<8x8xf32>
    %204 = tpu.matmul %203, %187, %cst_70 {dimension_numbers = #tpu.dot_dimension_numbers<[1], [0], [0], [1], [0, 0, 1, 1], [], []>} : vector<8x8xbf16>, vector<8x8xbf16>, vector<8x8xf32> -> vector<8x8xf32>
    %205 = vector.extract_strided_slice %149 {offsets = [0, 16], sizes = [8, 8], strides = [1, 1]} : vector<8x32xf32> to vector<8x8xf32>
    %206 = arith.truncf %205 : vector<8x8xf32> to vector<8x8xbf16>
    %207 = vector.extract_strided_slice %155 {offsets = [0, 16], sizes = [8, 8], strides = [1, 1]} : vector<8x32xf32> to vector<8x8xf32>
    %208 = arith.truncf %207 : vector<8x8xf32> to vector<8x8xbf16>
    %209 = vector.extract_strided_slice %156 {offsets = [0, 16], sizes = [8, 8], strides = [1, 1]} : vector<8x32xf32> to vector<8x8xf32>
    %210 = arith.truncf %209 : vector<8x8xf32> to vector<8x8xbf16>
    %cst_71 = arith.constant dense<0.000000e+00> : vector<8x8xf32>
    %211 = tpu.matmul %206, %208, %cst_71 {dimension_numbers = #tpu.dot_dimension_numbers<[1], [1], [0], [0], [0, 0, 1, 0], [], []>} : vector<8x8xbf16>, vector<8x8xbf16>, vector<8x8xf32> -> vector<8x8xf32>
    %cst_72 = arith.constant 0.353553385 : f32
    %212 = vector.broadcast %cst_72 : f32 to vector<8x8xf32>
    %213 = arith.mulf %211, %212 : vector<8x8xf32>
    %214 = vector.broadcast %158 : vector<1x8xf32> to vector<8x8xf32>
    %215 = arith.addf %213, %214 : vector<8x8xf32>
    %cst_73 = arith.constant dense<0xFF800000> : vector<8xf32>
    %216 = vector.multi_reduction <maximumf>, %215, %cst_73 [1] : vector<8x8xf32> to vector<8xf32>
    %217 = vector.shape_cast %216 : vector<8xf32> to vector<8x1xf32>
    %218 = vector.broadcast %217 : vector<8x1xf32> to vector<8x8xf32>
    %219 = arith.subf %215, %218 : vector<8x8xf32>
    %220 = math.exp %219 : vector<8x8xf32>
    %cst_74 = arith.constant dense<0.000000e+00> : vector<8xf32>
    %221 = vector.multi_reduction <add>, %220, %cst_74 [1] : vector<8x8xf32> to vector<8xf32>
    %222 = vector.shape_cast %221 : vector<8xf32> to vector<8x1xf32>
    %223 = tpu.reciprocal %222 {approx = true} : vector<8x1xf32> -> vector<8x1xf32>
    %224 = vector.broadcast %223 : vector<8x1xf32> to vector<8x8xf32>
    %225 = arith.mulf %220, %224 : vector<8x8xf32>
    %226 = arith.truncf %225 : vector<8x8xf32> to vector<8x8xbf16>
    %cst_75 = arith.constant dense<0.000000e+00> : vector<8x8xf32>
    %227 = tpu.matmul %226, %210, %cst_75 {dimension_numbers = #tpu.dot_dimension_numbers<[1], [0], [0], [1], [0, 0, 1, 1], [], []>} : vector<8x8xbf16>, vector<8x8xbf16>, vector<8x8xf32> -> vector<8x8xf32>
    %228 = vector.extract_strided_slice %149 {offsets = [0, 24], sizes = [8, 8], strides = [1, 1]} : vector<8x32xf32> to vector<8x8xf32>
    %229 = arith.truncf %228 : vector<8x8xf32> to vector<8x8xbf16>
    %230 = vector.extract_strided_slice %155 {offsets = [0, 24], sizes = [8, 8], strides = [1, 1]} : vector<8x32xf32> to vector<8x8xf32>
    %231 = arith.truncf %230 : vector<8x8xf32> to vector<8x8xbf16>
    %232 = vector.extract_strided_slice %156 {offsets = [0, 24], sizes = [8, 8], strides = [1, 1]} : vector<8x32xf32> to vector<8x8xf32>
    %233 = arith.truncf %232 : vector<8x8xf32> to vector<8x8xbf16>
    %cst_76 = arith.constant dense<0.000000e+00> : vector<8x8xf32>
    %234 = tpu.matmul %229, %231, %cst_76 {dimension_numbers = #tpu.dot_dimension_numbers<[1], [1], [0], [0], [0, 0, 1, 0], [], []>} : vector<8x8xbf16>, vector<8x8xbf16>, vector<8x8xf32> -> vector<8x8xf32>
    %cst_77 = arith.constant 0.353553385 : f32
    %235 = vector.broadcast %cst_77 : f32 to vector<8x8xf32>
    %236 = arith.mulf %234, %235 : vector<8x8xf32>
    %237 = vector.broadcast %158 : vector<1x8xf32> to vector<8x8xf32>
    %238 = arith.addf %236, %237 : vector<8x8xf32>
    %cst_78 = arith.constant dense<0xFF800000> : vector<8xf32>
    %239 = vector.multi_reduction <maximumf>, %238, %cst_78 [1] : vector<8x8xf32> to vector<8xf32>
    %240 = vector.shape_cast %239 : vector<8xf32> to vector<8x1xf32>
    %241 = vector.broadcast %240 : vector<8x1xf32> to vector<8x8xf32>
    %242 = arith.subf %238, %241 : vector<8x8xf32>
    %243 = math.exp %242 : vector<8x8xf32>
    %cst_79 = arith.constant dense<0.000000e+00> : vector<8xf32>
    %244 = vector.multi_reduction <add>, %243, %cst_79 [1] : vector<8x8xf32> to vector<8xf32>
    %245 = vector.shape_cast %244 : vector<8xf32> to vector<8x1xf32>
    %246 = tpu.reciprocal %245 {approx = true} : vector<8x1xf32> -> vector<8x1xf32>
    %247 = vector.broadcast %246 : vector<8x1xf32> to vector<8x8xf32>
    %248 = arith.mulf %243, %247 : vector<8x8xf32>
    %249 = arith.truncf %248 : vector<8x8xf32> to vector<8x8xbf16>
    %cst_80 = arith.constant dense<0.000000e+00> : vector<8x8xf32>
    %250 = tpu.matmul %249, %233, %cst_80 {dimension_numbers = #tpu.dot_dimension_numbers<[1], [0], [0], [1], [0, 0, 1, 1], [], []>} : vector<8x8xbf16>, vector<8x8xbf16>, vector<8x8xf32> -> vector<8x8xf32>
    %251 = tpu.concatenate %181, %204, %227, %250 in 1 : vector<8x8xf32>, vector<8x8xf32>, vector<8x8xf32>, vector<8x8xf32> -> vector<8x32xf32>
    %252 = arith.truncf %251 : vector<8x32xf32> to vector<8x32xbf16>
    %c0_81 = arith.constant 0 : index
    %c0_82 = arith.constant 0 : index
    %253 = vector.load %arg16[%c0_81, %c0_82] : memref<32x32xbf16, #tpu.memory_space<vmem>>, vector<32x32xbf16>
    %cst_83 = arith.constant dense<0.000000e+00> : vector<8x32xf32>
    %254 = tpu.matmul %252, %253, %cst_83 {dimension_numbers = #tpu.dot_dimension_numbers<[1], [0], [0], [1], [0, 0, 1, 1], [], []>} : vector<8x32xbf16>, vector<32x32xbf16>, vector<8x32xf32> -> vector<8x32xf32>
    %c0_84 = arith.constant 0 : index
    %c0_85 = arith.constant 0 : index
    %255 = vector.load %arg17[%c0_84, %c0_85] : memref<1x32xf32, #tpu.memory_space<vmem>>, vector<1x32xf32>
    %256 = vector.broadcast %255 : vector<1x32xf32> to vector<8x32xf32>
    %257 = arith.addf %254, %256 : vector<8x32xf32>
    %258 = arith.addf %143, %257 : vector<8x32xf32>
    %c0_86 = arith.constant 0 : index
    %c0_87 = arith.constant 0 : index
    %259 = vector.load %arg18[%c0_86, %c0_87] : memref<1x32xf32, #tpu.memory_space<vmem>>, vector<1x32xf32>
    %c0_88 = arith.constant 0 : index
    %c0_89 = arith.constant 0 : index
    %260 = vector.load %arg19[%c0_88, %c0_89] : memref<1x32xf32, #tpu.memory_space<vmem>>, vector<1x32xf32>
    %cst_90 = arith.constant dense<0.000000e+00> : vector<8xf32>
    %261 = vector.multi_reduction <add>, %258, %cst_90 [1] : vector<8x32xf32> to vector<8xf32>
    %262 = vector.shape_cast %261 : vector<8xf32> to vector<8x1xf32>
    %cst_91 = arith.constant 3.200000e+01 : f32
    %263 = vector.broadcast %cst_91 : f32 to vector<8x1xf32>
    %264 = arith.divf %262, %263 : vector<8x1xf32>
    %265 = vector.broadcast %264 : vector<8x1xf32> to vector<8x32xf32>
    %266 = arith.subf %258, %265 : vector<8x32xf32>
    %267 = arith.mulf %266, %266 : vector<8x32xf32>
    %cst_92 = arith.constant dense<0.000000e+00> : vector<8xf32>
    %268 = vector.multi_reduction <add>, %267, %cst_92 [1] : vector<8x32xf32> to vector<8xf32>
    %269 = vector.shape_cast %268 : vector<8xf32> to vector<8x1xf32>
    %cst_93 = arith.constant 3.200000e+01 : f32
    %270 = vector.broadcast %cst_93 : f32 to vector<8x1xf32>
    %271 = arith.divf %269, %270 : vector<8x1xf32>
    %272 = vector.broadcast %264 : vector<8x1xf32> to vector<8x32xf32>
    %273 = arith.subf %258, %272 : vector<8x32xf32>
    %cst_94 = arith.constant 9.99999974E-6 : f32
    %274 = vector.broadcast %cst_94 : f32 to vector<8x1xf32>
    %275 = arith.addf %271, %274 : vector<8x1xf32>
    %276 = math.rsqrt %275 : vector<8x1xf32>
    %277 = vector.broadcast %276 : vector<8x1xf32> to vector<8x32xf32>
    %278 = arith.mulf %273, %277 : vector<8x32xf32>
    %279 = vector.broadcast %259 : vector<1x32xf32> to vector<8x32xf32>
    %280 = arith.mulf %278, %279 : vector<8x32xf32>
    %281 = vector.broadcast %260 : vector<1x32xf32> to vector<8x32xf32>
    %282 = arith.addf %280, %281 : vector<8x32xf32>
    %283 = arith.truncf %282 : vector<8x32xf32> to vector<8x32xbf16>
    %c0_95 = arith.constant 0 : index
    %c0_96 = arith.constant 0 : index
    %284 = vector.load %arg20[%c0_95, %c0_96] : memref<32x64xbf16, #tpu.memory_space<vmem>>, vector<32x64xbf16>
    %cst_97 = arith.constant dense<0.000000e+00> : vector<8x64xf32>
    %285 = tpu.matmul %283, %284, %cst_97 {dimension_numbers = #tpu.dot_dimension_numbers<[1], [0], [0], [1], [0, 0, 1, 1], [], []>} : vector<8x32xbf16>, vector<32x64xbf16>, vector<8x64xf32> -> vector<8x64xf32>
    %c0_98 = arith.constant 0 : index
    %c0_99 = arith.constant 0 : index
    %286 = vector.load %arg21[%c0_98, %c0_99] : memref<1x64xf32, #tpu.memory_space<vmem>>, vector<1x64xf32>
    %287 = vector.broadcast %286 : vector<1x64xf32> to vector<8x64xf32>
    %288 = arith.addf %285, %287 : vector<8x64xf32>
    %cst_100 = arith.constant 0.000000e+00 : f32
    %289 = vector.broadcast %cst_100 : f32 to vector<8x64xf32>
    %290 = arith.maximumf %288, %289 : vector<8x64xf32>
    %291 = arith.truncf %290 : vector<8x64xf32> to vector<8x64xbf16>
    %c0_101 = arith.constant 0 : index
    %c0_102 = arith.constant 0 : index
    %292 = vector.load %arg22[%c0_101, %c0_102] : memref<64x32xbf16, #tpu.memory_space<vmem>>, vector<64x32xbf16>
    %cst_103 = arith.constant dense<0.000000e+00> : vector<8x32xf32>
    %293 = tpu.matmul %291, %292, %cst_103 {dimension_numbers = #tpu.dot_dimension_numbers<[1], [0], [0], [1], [0, 0, 1, 1], [], []>} : vector<8x64xbf16>, vector<64x32xbf16>, vector<8x32xf32> -> vector<8x32xf32>
    %c0_104 = arith.constant 0 : index
    %c0_105 = arith.constant 0 : index
    %294 = vector.load %arg23[%c0_104, %c0_105] : memref<1x32xf32, #tpu.memory_space<vmem>>, vector<1x32xf32>
    %295 = vector.broadcast %294 : vector<1x32xf32> to vector<8x32xf32>
    %296 = arith.addf %293, %295 : vector<8x32xf32>
    %297 = arith.addf %282, %296 : vector<8x32xf32>
    %c0_106 = arith.constant 0 : index
    %c0_107 = arith.constant 0 : index
    %298 = vector.load %arg24[%c0_106, %c0_107] : memref<1x32xf32, #tpu.memory_space<vmem>>, vector<1x32xf32>
    %c0_108 = arith.constant 0 : index
    %c0_109 = arith.constant 0 : index
    %299 = vector.load %arg25[%c0_108, %c0_109] : memref<1x32xf32, #tpu.memory_space<vmem>>, vector<1x32xf32>
    %cst_110 = arith.constant dense<0.000000e+00> : vector<8xf32>
    %300 = vector.multi_reduction <add>, %297, %cst_110 [1] : vector<8x32xf32> to vector<8xf32>
    %301 = vector.shape_cast %300 : vector<8xf32> to vector<8x1xf32>
    %cst_111 = arith.constant 3.200000e+01 : f32
    %302 = vector.broadcast %cst_111 : f32 to vector<8x1xf32>
    %303 = arith.divf %301, %302 : vector<8x1xf32>
    %304 = vector.broadcast %303 : vector<8x1xf32> to vector<8x32xf32>
    %305 = arith.subf %297, %304 : vector<8x32xf32>
    %306 = arith.mulf %305, %305 : vector<8x32xf32>
    %cst_112 = arith.constant dense<0.000000e+00> : vector<8xf32>
    %307 = vector.multi_reduction <add>, %306, %cst_112 [1] : vector<8x32xf32> to vector<8xf32>
    %308 = vector.shape_cast %307 : vector<8xf32> to vector<8x1xf32>
    %cst_113 = arith.constant 3.200000e+01 : f32
    %309 = vector.broadcast %cst_113 : f32 to vector<8x1xf32>
    %310 = arith.divf %308, %309 : vector<8x1xf32>
    %311 = vector.broadcast %303 : vector<8x1xf32> to vector<8x32xf32>
    %312 = arith.subf %297, %311 : vector<8x32xf32>
    %cst_114 = arith.constant 9.99999974E-6 : f32
    %313 = vector.broadcast %cst_114 : f32 to vector<8x1xf32>
    %314 = arith.addf %310, %313 : vector<8x1xf32>
    %315 = math.rsqrt %314 : vector<8x1xf32>
    %316 = vector.broadcast %315 : vector<8x1xf32> to vector<8x32xf32>
    %317 = arith.mulf %312, %316 : vector<8x32xf32>
    %318 = vector.broadcast %298 : vector<1x32xf32> to vector<8x32xf32>
    %319 = arith.mulf %317, %318 : vector<8x32xf32>
    %320 = vector.broadcast %299 : vector<1x32xf32> to vector<8x32xf32>
    %321 = arith.addf %319, %320 : vector<8x32xf32>
    %c0_115 = arith.constant 0 : index
    %c0_116 = arith.constant 0 : index
    %c0_117 = arith.constant 0 : index
    %322 = vector.load %arg26[%c0_115, %c0_116, %c0_117] : memref<1x8x32xf32, #tpu.memory_space<vmem>>, vector<1x8x32xf32>
    %323 = vector.shape_cast %322 : vector<1x8x32xf32> to vector<8x32xf32>
    %324 = vector.shape_cast %321 : vector<8x32xf32> to vector<1x8x32xf32>
    tpu.vector_store %arg26[%c0_115, %c0_116, %c0_117], %324 {strides = array<i32>} : memref<1x8x32xf32, #tpu.memory_space<vmem>>, vector<1x8x32xf32>,
    return
  }
  func.func @transform_0(%arg0: i32) -> (i32, i32, i32) {
    %c0_i32 = arith.constant 0 : i32
    %c0_i32_0 = arith.constant 0 : i32
    %c0_i32_1 = arith.constant 0 : i32
    return %arg0, %c0_i32, %c0_i32_0 : i32, i32, i32
  }
  func.func @transform_1(%arg0: i32) -> (i32, i32, i32) {
    %c0_i32 = arith.constant 0 : i32
    %c0_i32_0 = arith.constant 0 : i32
    %c0_i32_1 = arith.constant 0 : i32
    return %arg0, %c0_i32, %c0_i32_0 : i32, i32, i32
  }
  func.func @transform_2(%arg0: i32) -> (i32, i32) {
    %c0_i32 = arith.constant 0 : i32
    %c0_i32_0 = arith.constant 0 : i32
    %c0_i32_1 = arith.constant 0 : i32
    return %c0_i32, %c0_i32_0 : i32, i32
  }
  func.func @transform_3(%arg0: i32) -> (i32, i32, i32) {
    %c0_i32 = arith.constant 0 : i32
    %c0_i32_0 = arith.constant 0 : i32
    %c0_i32_1 = arith.constant 0 : i32
    return %arg0, %c0_i32, %c0_i32_0 : i32, i32, i32
  }
  func.func @transform_4(%arg0: i32) -> (i32, i32, i32) {
    %c0_i32 = arith.constant 0 : i32
    %c0_i32_0 = arith.constant 0 : i32
    %c0_i32_1 = arith.constant 0 : i32
    return %arg0, %c0_i32, %c0_i32_0 : i32, i32, i32
  }
  func.func @transform_5(%arg0: i32) -> (i32, i32) {
    %c0_i32 = arith.constant 0 : i32
    %c0_i32_0 = arith.constant 0 : i32
    %c0_i32_1 = arith.constant 0 : i32
    return %c0_i32, %c0_i32_0 : i32, i32
  }
  func.func @transform_6(%arg0: i32) -> (i32, i32) {
    %c0_i32 = arith.constant 0 : i32
    %c0_i32_0 = arith.constant 0 : i32
    %c0_i32_1 = arith.constant 0 : i32
    return %c0_i32, %c0_i32_0 : i32, i32
  }
  func.func @transform_7(%arg0: i32) -> (i32, i32) {
    %c0_i32 = arith.constant 0 : i32
    %c0_i32_0 = arith.constant 0 : i32
    %c0_i32_1 = arith.constant 0 : i32
    return %c0_i32, %c0_i32_0 : i32, i32
  }
  func.func @transform_8(%arg0: i32) -> (i32, i32) {
    %c0_i32 = arith.constant 0 : i32
    %c0_i32_0 = arith.constant 0 : i32
    %c0_i32_1 = arith.constant 0 : i32
    return %c0_i32, %c0_i32_0 : i32, i32
  }
  func.func @transform_9(%arg0: i32) -> (i32, i32) {
    %c0_i32 = arith.constant 0 : i32
    %c0_i32_0 = arith.constant 0 : i32
    %c0_i32_1 = arith.constant 0 : i32
    return %c0_i32, %c0_i32_0 : i32, i32
  }
  func.func @transform_10(%arg0: i32) -> (i32, i32) {
    %c0_i32 = arith.constant 0 : i32
    %c0_i32_0 = arith.constant 0 : i32
    %c0_i32_1 = arith.constant 0 : i32
    return %c0_i32, %c0_i32_0 : i32, i32
  }
  func.func @transform_11(%arg0: i32) -> (i32, i32) {
    %c0_i32 = arith.constant 0 : i32
    %c0_i32_0 = arith.constant 0 : i32
    %c0_i32_1 = arith.constant 0 : i32
    return %c0_i32, %c0_i32_0 : i32, i32
  }
  func.func @transform_12(%arg0: i32) -> (i32, i32) {
    %c0_i32 = arith.constant 0 : i32
    %c0_i32_0 = arith.constant 0 : i32
    %c0_i32_1 = arith.constant 0 : i32
    return %c0_i32, %c0_i32_0 : i32, i32
  }
  func.func @transform_13(%arg0: i32) -> (i32, i32) {
    %c0_i32 = arith.constant 0 : i32
    %c0_i32_0 = arith.constant 0 : i32
    %c0_i32_1 = arith.constant 0 : i32
    return %c0_i32, %c0_i32_0 : i32, i32
  }
  func.func @transform_14(%arg0: i32) -> (i32, i32) {
    %c0_i32 = arith.constant 0 : i32
    %c0_i32_0 = arith.constant 0 : i32
    %c0_i32_1 = arith.constant 0 : i32
    return %c0_i32, %c0_i32_0 : i32, i32
  }
  func.func @transform_15(%arg0: i32) -> (i32, i32) {
    %c0_i32 = arith.constant 0 : i32
    %c0_i32_0 = arith.constant 0 : i32
    %c0_i32_1 = arith.constant 0 : i32
    return %c0_i32, %c0_i32_0 : i32, i32
  }
  func.func @transform_16(%arg0: i32) -> (i32, i32) {
    %c0_i32 = arith.constant 0 : i32
    %c0_i32_0 = arith.constant 0 : i32
    %c0_i32_1 = arith.constant 0 : i32
    return %c0_i32, %c0_i32_0 : i32, i32
  }
  func.func @transform_17(%arg0: i32) -> (i32, i32) {
    %c0_i32 = arith.constant 0 : i32
    %c0_i32_0 = arith.constant 0 : i32
    %c0_i32_1 = arith.constant 0 : i32
    return %c0_i32, %c0_i32_0 : i32, i32
  }
  func.func @transform_18(%arg0: i32) -> (i32, i32) {
    %c0_i32 = arith.constant 0 : i32
    %c0_i32_0 = arith.constant 0 : i32
    %c0_i32_1 = arith.constant 0 : i32
    return %c0_i32, %c0_i32_0 : i32, i32
  }
  func.func @transform_19(%arg0: i32) -> (i32, i32) {
    %c0_i32 = arith.constant 0 : i32
    %c0_i32_0 = arith.constant 0 : i32
    %c0_i32_1 = arith.constant 0 : i32
    return %c0_i32, %c0_i32_0 : i32, i32
  }
  func.func @transform_20(%arg0: i32) -> (i32, i32) {
    %c0_i32 = arith.constant 0 : i32
    %c0_i32_0 = arith.constant 0 : i32
    %c0_i32_1 = arith.constant 0 : i32
    return %c0_i32, %c0_i32_0 : i32, i32
  }
  func.func @transform_21(%arg0: i32) -> (i32, i32) {
    %c0_i32 = arith.constant 0 : i32
    %c0_i32_0 = arith.constant 0 : i32
    %c0_i32_1 = arith.constant 0 : i32
    return %c0_i32, %c0_i32_0 : i32, i32
  }
  func.func @transform_22(%arg0: i32) -> (i32, i32) {
    %c0_i32 = arith.constant 0 : i32
    %c0_i32_0 = arith.constant 0 : i32
    %c0_i32_1 = arith.constant 0 : i32
    return %c0_i32, %c0_i32_0 : i32, i32
  }
  func.func @transform_23(%arg0: i32) -> (i32, i32) {
    %c0_i32 = arith.constant 0 : i32
    %c0_i32_0 = arith.constant 0 : i32
    %c0_i32_1 = arith.constant 0 : i32
    return %c0_i32, %c0_i32_0 : i32, i32
  }
  func.func @transform_24(%arg0: i32) -> (i32, i32) {
    %c0_i32 = arith.constant 0 : i32
    %c0_i32_0 = arith.constant 0 : i32
    %c0_i32_1 = arith.constant 0 : i32
    return %c0_i32, %c0_i32_0 : i32, i32
  }
  func.func @transform_25(%arg0: i32) -> (i32, i32, i32) {
    %c0_i32 = arith.constant 0 : i32
    %c0_i32_0 = arith.constant 0 : i32
    %c0_i32_1 = arith.constant 0 : i32
    return %arg0, %c0_i32, %c0_i32_0 : i32, i32, i32
  }
}

module attributes {stable_mosaic.version = 11 : i64} {
  func.func @_linear_kernel(%arg0: i32, %arg1: i32, %arg2: memref<16x32xf32, #tpu.memory_space<vmem>>, %arg3: memref<32x128xbf16, #tpu.memory_space<vmem>>, %arg4: memref<1x128xf32, #tpu.memory_space<vmem>>, %arg5: memref<16x128xf32, #tpu.memory_space<vmem>>) attributes {dimension_semantics = [#tpu.dimension_semantics<parallel>, #tpu.dimension_semantics<parallel>], iteration_bounds = array<i64: 1, 1>, scalar_prefetch = 0 : i64, scratch_operands = 0 : i64, tpu.core_type = #tpu.core_type<tc>, window_params = [{transform_indices = @transform_0, window_bounds = array<i64: 16, 32>}, {transform_indices = @transform_1, window_bounds = array<i64: 32, 128>}, {transform_indices = @transform_2, window_bounds = array<i64: 1, 128>}, {transform_indices = @transform_3, window_bounds = array<i64: 16, 128>}]} {
    %c0 = arith.constant 0 : index
    %c0_0 = arith.constant 0 : index
    %0 = vector.load %arg2[%c0, %c0_0] : memref<16x32xf32, #tpu.memory_space<vmem>>, vector<16x32xf32>
    %1 = arith.truncf %0 : vector<16x32xf32> to vector<16x32xbf16>
    %c0_1 = arith.constant 0 : index
    %c0_2 = arith.constant 0 : index
    %2 = vector.load %arg3[%c0_1, %c0_2] : memref<32x128xbf16, #tpu.memory_space<vmem>>, vector<32x128xbf16>
    %cst = arith.constant dense<0.000000e+00> : vector<16x128xf32>
    %3 = tpu.matmul %1, %2, %cst {dimension_numbers = #tpu.dot_dimension_numbers<[1], [0], [0], [1], [0, 0, 1, 1], [], []>} : vector<16x32xbf16>, vector<32x128xbf16>, vector<16x128xf32> -> vector<16x128xf32>
    %c0_3 = arith.constant 0 : index
    %c0_4 = arith.constant 0 : index
    %4 = vector.load %arg4[%c0_3, %c0_4] : memref<1x128xf32, #tpu.memory_space<vmem>>, vector<1x128xf32>
    %5 = vector.broadcast %4 : vector<1x128xf32> to vector<16x128xf32>
    %6 = arith.addf %3, %5 : vector<16x128xf32>
    %c0_5 = arith.constant 0 : index
    %c0_6 = arith.constant 0 : index
    %7 = vector.load %arg5[%c0_5, %c0_6] : memref<16x128xf32, #tpu.memory_space<vmem>>, vector<16x128xf32>
    tpu.vector_store %arg5[%c0_5, %c0_6], %6 {strides = array<i32>} : memref<16x128xf32, #tpu.memory_space<vmem>>, vector<16x128xf32>,
    return
  }
  func.func @transform_0(%arg0: i32, %arg1: i32) -> (i32, i32) {
    %c0_i32 = arith.constant 0 : i32
    %c0_i32_0 = arith.constant 0 : i32
    return %arg0, %c0_i32 : i32, i32
  }
  func.func @transform_1(%arg0: i32, %arg1: i32) -> (i32, i32) {
    %c0_i32 = arith.constant 0 : i32
    %c0_i32_0 = arith.constant 0 : i32
    return %c0_i32, %arg1 : i32, i32
  }
  func.func @transform_2(%arg0: i32, %arg1: i32) -> (i32, i32) {
    %c0_i32 = arith.constant 0 : i32
    %c0_i32_0 = arith.constant 0 : i32
    return %c0_i32, %arg1 : i32, i32
  }
  func.func @transform_3(%arg0: i32, %arg1: i32) -> (i32, i32) {
    %c0_i32 = arith.constant 0 : i32
    return %arg0, %arg1 : i32, i32
  }
}

</mosaic_0001>

<llo_original>
// kernel: seq2seq_transformer_forward.7
$region0: #{seq2seq_transformer_forward.7}
  #allocation0 [shape = 'u32[]', space=smem, size = 0x4, offset = 0x4, fixed_abs, tag = 'smem constant byte address 0x4 - core index']
  #allocation1 [shape = 'u32[144,128]{1,0:T(1,128)}', space=vmem, size = 0x12000, scoped, tag = 'internal scratch']
  %s0 = inlined_call_operand.vmem [shape: f32[2,8,32], index: 0, kind: input, shape index: {}]
  %s1 = inlined_call_operand.vmem [shape: f32[1,8,32], index: 1, kind: input, shape index: {}]
  %s2 = inlined_call_operand.vmem [shape: f32[2,8,32], index: 2, kind: output, shape index: {}]
  %s3 = sld [smem:[#allocation0]]
  $region41: #{seq2seq_transformer_forward.7} parent=0
    _
  %s5 = ssub.s32 1, %s3
  %s6 = scalar_select 0, %s5, %s3
  loop: start=0, step=1, limit=4
  $region2: #{seq2seq_transformer_forward.7} parent=0 // loop_pre_header
    _
  $region3: #{seq2seq_transformer_forward.7} parent=0 // loop_header
    %s8 = sphi 0, %s12
    %p9 = scmp.ge.s32.totalorder %s8, 4
    %s18 = sphi 0, %s20
    %s21 = sphi 0, %s18
    %s22 = sphi 0, %s21
    %s38 = sphi 0, %s22
    %s42 = sphi 0, %s42
    %s44 = sphi 0, %s42
    %s45 = sphi 0, %s44
    %s59 = sphi 0, %s45
    %s65 = sphi 0, %s67
    %s68 = sphi 0, %s65
    %s69 = sphi 0, %s68
    %s85 = sphi 0, %s69
  $region4: #{seq2seq_transformer_forward.7} parent=0 // loop_header_branch
    %11 = sbr.rel (%p9) target = $region8
  $region5: #{seq2seq_transformer_forward.7} parent=0 // loop_body
    %s13 = ssub.s32 %s8, 1
    %s14 = ssub.s32 %s8, 2
    %s15 = sadd.s32 %s8, 1
    %s16 = ssub.s32 %s8, %s15
    %p17 = scmp.eq.s32.totalorder %s16, 0
    %s19 = sadd.s32 %s18, 1
    %s20 = scalar_select %p17, %s18, %s19
    %p23 = pneg %p17
    %p24 = scmp.eq.s32.totalorder %s8, 1
    %p25 = por %p23, %p24
    %p26 = scmp.ne.s32.totalorder %s18, %s21
    %p27 = scmp.eq.s32.totalorder %s8, 0
    %p28 = por %p26, %p27
    %p29 = scmp.ne.s32.totalorder %s18, %s21
    %p30 = scmp.eq.s32.totalorder %s13, 1
    %p31 = por %p29, %p30
    %p32 = scmp.ne.s32.totalorder %s21, %s22
    %p33 = scmp.eq.s32.totalorder %s13, 0
    %p34 = por %p32, %p33
    %p35 = scmp.ne.s32.totalorder %s21, %s22
    %p36 = scmp.eq.s32.totalorder %s14, 1
    %p37 = por %p35, %p36
    %p39 = scmp.ne.s32.totalorder %s22, %s38
    %p40 = scmp.eq.s32.totalorder %s14, 0
    %p41 = por %p39, %p40
    %s43 = sadd.s32 %s42, 1
    %p46 = scmp.eq.s32.totalorder %s8, 1
    %p47 = scmp.ne.s32.totalorder %s42, %s44
    %p48 = scmp.eq.s32.totalorder %s8, 0
    %p49 = por %p47, %p48
    %p50 = scmp.ne.s32.totalorder %s42, %s44
    %p51 = scmp.eq.s32.totalorder %s13, 1
    %p52 = por %p50, %p51
    %p53 = scmp.ne.s32.totalorder %s44, %s45
    %p54 = scmp.eq.s32.totalorder %s13, 0
    %p55 = por %p53, %p54
    %p56 = scmp.ne.s32.totalorder %s44, %s45
    %p57 = scmp.eq.s32.totalorder %s14, 1
    %p58 = por %p56, %p57
    %p60 = scmp.ne.s32.totalorder %s45, %s59
    %p61 = scmp.eq.s32.totalorder %s14, 0
    %p62 = por %p60, %p61
    %s63 = ssub.s32 %s8, %s15
    %p64 = scmp.eq.s32.totalorder %s63, 0
    %s66 = sadd.s32 %s65, 1
    %s67 = scalar_select %p64, %s65, %s66
    %p70 = pneg %p64
    %p71 = scmp.eq.s32.totalorder %s8, 1
    %p72 = por %p70, %p71
    %p73 = scmp.ne.s32.totalorder %s65, %s68
    %p74 = scmp.eq.s32.totalorder %s8, 0
    %p75 = por %p73, %p74
    %p76 = scmp.ne.s32.totalorder %s65, %s68
    %p77 = scmp.eq.s32.totalorder %s13, 1
    %p78 = por %p76, %p77
    %p79 = scmp.ne.s32.totalorder %s68, %s69
    %p80 = scmp.eq.s32.totalorder %s13, 0
    %p81 = por %p79, %p80
    %p82 = scmp.ne.s32.totalorder %s68, %s69
    %p83 = scmp.eq.s32.totalorder %s14, 1
    %p84 = por %p82, %p83
    %p86 = scmp.ne.s32.totalorder %s69, %s85
    %p87 = scmp.eq.s32.totalorder %s14, 0
    %p88 = por %p86, %p87
    %p89 = scmp.le.s32.totalorder 1, %s8
    %p90 = scmp.lt.s32.totalorder %s8, 3
    %p91 = pnand %p89, %p90
    %p92 = pneg %p91
    // Predicated region
    $region9: #{seq2seq_transformer_forward.7} parent=5 // pred_check
      _
    $region10: #{seq2seq_transformer_forward.7} parent=5 // pred_check_branch
      %94 = sbr.rel (%p91) target = $region12
    $region11: #{seq2seq_transformer_forward.7} parent=5 // pred_region
      %s95 = ssub.s32 %s8, 1
      // Predicated region
      $region13: #{seq2seq_transformer_forward.7} parent=11 // pred_check
        %p96 = pneg %p55
      $region14: #{seq2seq_transformer_forward.7} parent=11 // pred_check_branch
        %98 = sbr.rel (%p96) target = $region16
      $region15: #{seq2seq_transformer_forward.7} parent=11 // pred_region
        _
      $region16: #{seq2seq_transformer_forward.7} parent=11 // pred_fallthru
        _
    $region12: #{seq2seq_transformer_forward.7} parent=5 // pred_fallthru
      _
    %p99 = scmp.lt.s32.totalorder %s8, 2
    // Predicated region
    $region17: #{seq2seq_transformer_forward.7} parent=5 // pred_check
      %p100 = pneg %p99
    $region18: #{seq2seq_transformer_forward.7} parent=5 // pred_check_branch
      %102 = sbr.rel (%p100) target = $region20
    $region19: #{seq2seq_transformer_forward.7} parent=5 // pred_region
      // Predicated region
      $region21: #{seq2seq_transformer_forward.7} parent=19 // pred_check
        %p103 = pneg %p28
      $region22: #{seq2seq_transformer_forward.7} parent=19 // pred_check_branch
        %105 = sbr.rel (%p103) target = $region24
      $region23: #{seq2seq_transformer_forward.7} parent=19 // pred_region
        %p106 = scmp.lt.s32.totalorder %s8, 1
        %s107 = scalar_select %p106, %s8, 1
        %s108 = smul.addr %s107, 8
        %s109 = scalar_lea.vmem %s0, %s108
      $region24: #{seq2seq_transformer_forward.7} parent=19 // pred_fallthru
        _
    $region20: #{seq2seq_transformer_forward.7} parent=5 // pred_fallthru
      _
    %p110 = scmp.le.s32.totalorder 1, %s8
    %p111 = scmp.lt.s32.totalorder %s8, 3
    %p112 = pnand %p110, %p111
    %p113 = pneg %p112
    // Predicated region
    $region25: #{seq2seq_transformer_forward.7} parent=5 // pred_check
      _
    $region26: #{seq2seq_transformer_forward.7} parent=5 // pred_check_branch
      %115 = sbr.rel (%p112) target = $region28
    $region27: #{seq2seq_transformer_forward.7} parent=5 // pred_region
      %s116 = ssub.s32 %s8, 1
      %p117 = scmp.lt.s32.totalorder %s13, 1
      %s118 = scalar_select %p117, %s13, 1
      %s119 = smul.addr %s118, 8
      %s120 = scalar_lea.vmem %s0, %s119
      %p121 = pneg %p34
      %p122 = pneg %p31
      %p123 = pneg %p55
      %p124 = pneg %p52
      %p125 = pneg %p81
      %p126 = pneg %p78
      %p127 = scmp.lt.s32.totalorder %s13, 1
      %s128 = scalar_select %p127, %s13, 1
      %s129 = smul.addr %s128, 8
      %s130 = scalar_lea.vmem %s2, %s129
      %p131 = scmp.lt.s32.totalorder %s13, 1
      %s132 = scalar_select %p131, %s13, 1
      %s133 = smul.addr %s132, 8
      %s134 = scalar_lea.vmem %s0, %s133
      %p135 = scmp.lt.s32.totalorder %s13, 1
      %s136 = scalar_select %p135, %s13, 1
      %s137 = smul.addr %s136, 8
      %s138 = scalar_lea.vmem %s2, %s137
      %v139 = vld [vmem:[%s134] sm:$0xff]
      %v140 = vmul.f32 %v139, 5.656854
      %v141 = vld [vmem:[%s1] sm:$0xff]
      %v142 = vadd.f32 %v140, %v141
      %vm143 = vcmask 261120
      %144 = vst.msk [vmem:[%s138] sm:$0xff] %vm143, %v142
      %p145 = scmp.lt.s32.totalorder %s13, 1
      %s146 = scalar_select %p145, %s13, 1
      %s147 = smul.addr %s146, 8
      %s148 = scalar_lea.vmem %s2, %s147
      // Predicated region
      $region29: #{seq2seq_transformer_forward.7} parent=27 // pred_check
        %p149 = pneg %p78
      $region30: #{seq2seq_transformer_forward.7} parent=27 // pred_check_branch
        %151 = sbr.rel (%p149) target = $region32
      $region31: #{seq2seq_transformer_forward.7} parent=27 // pred_region
        _
      $region32: #{seq2seq_transformer_forward.7} parent=27 // pred_fallthru
        _
    $region28: #{seq2seq_transformer_forward.7} parent=5 // pred_fallthru
      _
    %p152 = scmp.le.s32.totalorder 2, %s8
    // Predicated region
    $region33: #{seq2seq_transformer_forward.7} parent=5 // pred_check
      %p153 = pneg %p152
    $region34: #{seq2seq_transformer_forward.7} parent=5 // pred_check_branch
      %155 = sbr.rel (%p153) target = $region36
    $region35: #{seq2seq_transformer_forward.7} parent=5 // pred_region
      %s156 = ssub.s32 %s8, 2
      // Predicated region
      $region37: #{seq2seq_transformer_forward.7} parent=35 // pred_check
        %p157 = pneg %p84
      $region38: #{seq2seq_transformer_forward.7} parent=35 // pred_check_branch
        %159 = sbr.rel (%p157) target = $region40
      $region39: #{seq2seq_transformer_forward.7} parent=35 // pred_region
        %p160 = scmp.lt.s32.totalorder %s14, 1
        %s161 = scalar_select %p160, %s14, 1
        %s162 = smul.addr %s161, 8
        %s163 = scalar_lea.vmem %s2, %s162
      $region40: #{seq2seq_transformer_forward.7} parent=35 // pred_fallthru
        _
    $region36: #{seq2seq_transformer_forward.7} parent=5 // pred_fallthru
      _
  $region6: #{seq2seq_transformer_forward.7} parent=0 // loop_footer
    %s12 = sadd.s32 1, %s8
  $region7: #{seq2seq_transformer_forward.7} parent=0 // loop_footer_branch
    %7 = sbr.rel target = $region3
  $region8: #{seq2seq_transformer_forward.7} parent=0 // loop_exit
    _

// kernel: seq2seq_transformer_forward.9
$region0: #{seq2seq_transformer_forward.9}
  #allocation0 [shape = 'u32[]', space=smem, size = 0x4, offset = 0x4, fixed_abs, tag = 'smem constant byte address 0x4 - core index']
  #allocation1 [shape = 'u32[144,128]{1,0:T(1,128)}', space=vmem, size = 0x12000, scoped, tag = 'internal scratch']
  %s0 = inlined_call_operand.vmem [shape: f32[2,8,32], index: 0, kind: input, shape index: {}]
  %s1 = inlined_call_operand.vmem [shape: f32[8,8], index: 1, kind: input, shape index: {}]
  %s2 = inlined_call_operand.vmem [shape: f32[2,1,8], index: 2, kind: input, shape index: {}]
  %s3 = inlined_call_operand.vmem [shape: bf16[32,96], index: 3, kind: input, shape index: {}]
  %s4 = inlined_call_operand.vmem [shape: f32[1,96], index: 4, kind: input, shape index: {}]
  %s5 = inlined_call_operand.vmem [shape: bf16[32,32], index: 5, kind: input, shape index: {}]
  %s6 = inlined_call_operand.vmem [shape: f32[1,32], index: 6, kind: input, shape index: {}]
  %s7 = inlined_call_operand.vmem [shape: f32[1,32], index: 7, kind: input, shape index: {}]
  %s8 = inlined_call_operand.vmem [shape: f32[1,32], index: 8, kind: input, shape index: {}]
  %s9 = inlined_call_operand.vmem [shape: bf16[32,64], index: 9, kind: input, shape index: {}]
  %s10 = inlined_call_operand.vmem [shape: f32[1,64], index: 10, kind: input, shape index: {}]
  %s11 = inlined_call_operand.vmem [shape: bf16[64,32], index: 11, kind: input, shape index: {}]
  %s12 = inlined_call_operand.vmem [shape: f32[1,32], index: 12, kind: input, shape index: {}]
  %s13 = inlined_call_operand.vmem [shape: f32[1,32], index: 13, kind: input, shape index: {}]
  %s14 = inlined_call_operand.vmem [shape: f32[1,32], index: 14, kind: input, shape index: {}]
  %s15 = inlined_call_operand.vmem [shape: f32[2,8,32], index: 15, kind: output, shape index: {}]
  %s16 = sld [smem:[#allocation0]]
  $region93: #{seq2seq_transformer_forward.9} parent=0
    _
  %s18 = ssub.s32 1, %s16
  %s19 = scalar_select 0, %s18, %s16
  loop: start=0, step=1, limit=4
  $region2: #{seq2seq_transformer_forward.9} parent=0 // loop_pre_header
    _
  $region3: #{seq2seq_transformer_forward.9} parent=0 // loop_header
    %s21 = sphi 0, %s25
    %p22 = scmp.ge.s32.totalorder %s21, 4
    %s31 = sphi 0, %s33
    %s34 = sphi 0, %s31
    %s35 = sphi 0, %s34
    %s51 = sphi 0, %s35
    %s55 = sphi 0, %s55
    %s57 = sphi 0, %s55
    %s58 = sphi 0, %s57
    %s72 = sphi 0, %s58
    %s78 = sphi 0, %s80
    %s81 = sphi 0, %s78
    %s82 = sphi 0, %s81
    %s98 = sphi 0, %s82
    %s102 = sphi 0, %s102
    %s104 = sphi 0, %s102
    %s105 = sphi 0, %s104
    %s119 = sphi 0, %s105
    %s123 = sphi 0, %s123
    %s125 = sphi 0, %s123
    %s126 = sphi 0, %s125
    %s140 = sphi 0, %s126
    %s144 = sphi 0, %s144
    %s146 = sphi 0, %s144
    %s147 = sphi 0, %s146
    %s161 = sphi 0, %s147
    %s165 = sphi 0, %s165
    %s167 = sphi 0, %s165
    %s168 = sphi 0, %s167
    %s182 = sphi 0, %s168
    %s186 = sphi 0, %s186
    %s188 = sphi 0, %s186
    %s189 = sphi 0, %s188
    %s203 = sphi 0, %s189
    %s207 = sphi 0, %s207
    %s209 = sphi 0, %s207
    %s210 = sphi 0, %s209
    %s224 = sphi 0, %s210
    %s228 = sphi 0, %s228
    %s230 = sphi 0, %s228
    %s231 = sphi 0, %s230
    %s245 = sphi 0, %s231
    %s249 = sphi 0, %s249
    %s251 = sphi 0, %s249
    %s252 = sphi 0, %s251
    %s266 = sphi 0, %s252
    %s270 = sphi 0, %s270
    %s272 = sphi 0, %s270
    %s273 = sphi 0, %s272
    %s287 = sphi 0, %s273
    %s291 = sphi 0, %s291
    %s293 = sphi 0, %s291
    %s294 = sphi 0, %s293
    %s308 = sphi 0, %s294
    %s312 = sphi 0, %s312
    %s314 = sphi 0, %s312
    %s315 = sphi 0, %s314
    %s329 = sphi 0, %s315
    %s333 = sphi 0, %s333
    %s335 = sphi 0, %s333
    %s336 = sphi 0, %s335
    %s350 = sphi 0, %s336
    %s356 = sphi 0, %s358
    %s359 = sphi 0, %s356
    %s360 = sphi 0, %s359
    %s376 = sphi 0, %s360
  $region4: #{seq2seq_transformer_forward.9} parent=0 // loop_header_branch
    %24 = sbr.rel (%p22) target = $region8
  $region5: #{seq2seq_transformer_forward.9} parent=0 // loop_body
    %s26 = ssub.s32 %s21, 1
    %s27 = ssub.s32 %s21, 2
    %s28 = sadd.s32 %s21, 1
    %s29 = ssub.s32 %s21, %s28
    %p30 = scmp.eq.s32.totalorder %s29, 0
    %s32 = sadd.s32 %s31, 1
    %s33 = scalar_select %p30, %s31, %s32
    %p36 = pneg %p30
    %p37 = scmp.eq.s32.totalorder %s21, 1
    %p38 = por %p36, %p37
    %p39 = scmp.ne.s32.totalorder %s31, %s34
    %p40 = scmp.eq.s32.totalorder %s21, 0
    %p41 = por %p39, %p40
    %p42 = scmp.ne.s32.totalorder %s31, %s34
    %p43 = scmp.eq.s32.totalorder %s26, 1
    %p44 = por %p42, %p43
    %p45 = scmp.ne.s32.totalorder %s34, %s35
    %p46 = scmp.eq.s32.totalorder %s26, 0
    %p47 = por %p45, %p46
    %p48 = scmp.ne.s32.totalorder %s34, %s35
    %p49 = scmp.eq.s32.totalorder %s27, 1
    %p50 = por %p48, %p49
    %p52 = scmp.ne.s32.totalorder %s35, %s51
    %p53 = scmp.eq.s32.totalorder %s27, 0
    %p54 = por %p52, %p53
    %s56 = sadd.s32 %s55, 1
    %p59 = scmp.eq.s32.totalorder %s21, 1
    %p60 = scmp.ne.s32.totalorder %s55, %s57
    %p61 = scmp.eq.s32.totalorder %s21, 0
    %p62 = por %p60, %p61
    %p63 = scmp.ne.s32.totalorder %s55, %s57
    %p64 = scmp.eq.s32.totalorder %s26, 1
    %p65 = por %p63, %p64
    %p66 = scmp.ne.s32.totalorder %s57, %s58
    %p67 = scmp.eq.s32.totalorder %s26, 0
    %p68 = por %p66, %p67
    %p69 = scmp.ne.s32.totalorder %s57, %s58
    %p70 = scmp.eq.s32.totalorder %s27, 1
    %p71 = por %p69, %p70
    %p73 = scmp.ne.s32.totalorder %s58, %s72
    %p74 = scmp.eq.s32.totalorder %s27, 0
    %p75 = por %p73, %p74
    %s76 = ssub.s32 %s21, %s28
    %p77 = scmp.eq.s32.totalorder %s76, 0
    %s79 = sadd.s32 %s78, 1
    %s80 = scalar_select %p77, %s78, %s79
    %p83 = pneg %p77
    %p84 = scmp.eq.s32.totalorder %s21, 1
    %p85 = por %p83, %p84
    %p86 = scmp.ne.s32.totalorder %s78, %s81
    %p87 = scmp.eq.s32.totalorder %s21, 0
    %p88 = por %p86, %p87
    %p89 = scmp.ne.s32.totalorder %s78, %s81
    %p90 = scmp.eq.s32.totalorder %s26, 1
    %p91 = por %p89, %p90
    %p92 = scmp.ne.s32.totalorder %s81, %s82
    %p93 = scmp.eq.s32.totalorder %s26, 0
    %p94 = por %p92, %p93
    %p95 = scmp.ne.s32.totalorder %s81, %s82
    %p96 = scmp.eq.s32.totalorder %s27, 1
    %p97 = por %p95, %p96
    %p99 = scmp.ne.s32.totalorder %s82, %s98
    %p100 = scmp.eq.s32.totalorder %s27, 0
    %p101 = por %p99, %p100
    %s103 = sadd.s32 %s102, 1
    %p106 = scmp.eq.s32.totalorder %s21, 1
    %p107 = scmp.ne.s32.totalorder %s102, %s104
    %p108 = scmp.eq.s32.totalorder %s21, 0
    %p109 = por %p107, %p108
    %p110 = scmp.ne.s32.totalorder %s102, %s104
    %p111 = scmp.eq.s32.totalorder %s26, 1
    %p112 = por %p110, %p111
    %p113 = scmp.ne.s32.totalorder %s104, %s105
    %p114 = scmp.eq.s32.totalorder %s26, 0
    %p115 = por %p113, %p114
    %p116 = scmp.ne.s32.totalorder %s104, %s105
    %p117 = scmp.eq.s32.totalorder %s27, 1
    %p118 = por %p116, %p117
    %p120 = scmp.ne.s32.totalorder %s105, %s119
    %p121 = scmp.eq.s32.totalorder %s27, 0
    %p122 = por %p120, %p121
    %s124 = sadd.s32 %s123, 1
    %p127 = scmp.eq.s32.totalorder %s21, 1
    %p128 = scmp.ne.s32.totalorder %s123, %s125
    %p129 = scmp.eq.s32.totalorder %s21, 0
    %p130 = por %p128, %p129
    %p131 = scmp.ne.s32.totalorder %s123, %s125
    %p132 = scmp.eq.s32.totalorder %s26, 1
    %p133 = por %p131, %p132
    %p134 = scmp.ne.s32.totalorder %s125, %s126
    %p135 = scmp.eq.s32.totalorder %s26, 0
    %p136 = por %p134, %p135
    %p137 = scmp.ne.s32.totalorder %s125, %s126
    %p138 = scmp.eq.s32.totalorder %s27, 1
    %p139 = por %p137, %p138
    %p141 = scmp.ne.s32.totalorder %s126, %s140
    %p142 = scmp.eq.s32.totalorder %s27, 0
    %p143 = por %p141, %p142
    %s145 = sadd.s32 %s144, 1
    %p148 = scmp.eq.s32.totalorder %s21, 1
    %p149 = scmp.ne.s32.totalorder %s144, %s146
    %p150 = scmp.eq.s32.totalorder %s21, 0
    %p151 = por %p149, %p150
    %p152 = scmp.ne.s32.totalorder %s144, %s146
    %p153 = scmp.eq.s32.totalorder %s26, 1
    %p154 = por %p152, %p153
    %p155 = scmp.ne.s32.totalorder %s146, %s147
    %p156 = scmp.eq.s32.totalorder %s26, 0
    %p157 = por %p155, %p156
    %p158 = scmp.ne.s32.totalorder %s146, %s147
    %p159 = scmp.eq.s32.totalorder %s27, 1
    %p160 = por %p158, %p159
    %p162 = scmp.ne.s32.totalorder %s147, %s161
    %p163 = scmp.eq.s32.totalorder %s27, 0
    %p164 = por %p162, %p163
    %s166 = sadd.s32 %s165, 1
    %p169 = scmp.eq.s32.totalorder %s21, 1
    %p170 = scmp.ne.s32.totalorder %s165, %s167
    %p171 = scmp.eq.s32.totalorder %s21, 0
    %p172 = por %p170, %p171
    %p173 = scmp.ne.s32.totalorder %s165, %s167
    %p174 = scmp.eq.s32.totalorder %s26, 1
    %p175 = por %p173, %p174
    %p176 = scmp.ne.s32.totalorder %s167, %s168
    %p177 = scmp.eq.s32.totalorder %s26, 0
    %p178 = por %p176, %p177
    %p179 = scmp.ne.s32.totalorder %s167, %s168
    %p180 = scmp.eq.s32.totalorder %s27, 1
    %p181 = por %p179, %p180
    %p183 = scmp.ne.s32.totalorder %s168, %s182
    %p184 = scmp.eq.s32.totalorder %s27, 0
    %p185 = por %p183, %p184
    %s187 = sadd.s32 %s186, 1
    %p190 = scmp.eq.s32.totalorder %s21, 1
    %p191 = scmp.ne.s32.totalorder %s186, %s188
    %p192 = scmp.eq.s32.totalorder %s21, 0
    %p193 = por %p191, %p192
    %p194 = scmp.ne.s32.totalorder %s186, %s188
    %p195 = scmp.eq.s32.totalorder %s26, 1
    %p196 = por %p194, %p195
    %p197 = scmp.ne.s32.totalorder %s188, %s189
    %p198 = scmp.eq.s32.totalorder %s26, 0
    %p199 = por %p197, %p198
    %p200 = scmp.ne.s32.totalorder %s188, %s189
    %p201 = scmp.eq.s32.totalorder %s27, 1
    %p202 = por %p200, %p201
    %p204 = scmp.ne.s32.totalorder %s189, %s203
    %p205 = scmp.eq.s32.totalorder %s27, 0
    %p206 = por %p204, %p205
    %s208 = sadd.s32 %s207, 1
    %p211 = scmp.eq.s32.totalorder %s21, 1
    %p212 = scmp.ne.s32.totalorder %s207, %s209
    %p213 = scmp.eq.s32.totalorder %s21, 0
    %p214 = por %p212, %p213
    %p215 = scmp.ne.s32.totalorder %s207, %s209
    %p216 = scmp.eq.s32.totalorder %s26, 1
    %p217 = por %p215, %p216
    %p218 = scmp.ne.s32.totalorder %s209, %s210
    %p219 = scmp.eq.s32.totalorder %s26, 0
    %p220 = por %p218, %p219
    %p221 = scmp.ne.s32.totalorder %s209, %s210
    %p222 = scmp.eq.s32.totalorder %s27, 1
    %p223 = por %p221, %p222
    %p225 = scmp.ne.s32.totalorder %s210, %s224
    %p226 = scmp.eq.s32.totalorder %s27, 0
    %p227 = por %p225, %p226
    %s229 = sadd.s32 %s228, 1
    %p232 = scmp.eq.s32.totalorder %s21, 1
    %p233 = scmp.ne.s32.totalorder %s228, %s230
    %p234 = scmp.eq.s32.totalorder %s21, 0
    %p235 = por %p233, %p234
    %p236 = scmp.ne.s32.totalorder %s228, %s230
    %p237 = scmp.eq.s32.totalorder %s26, 1
    %p238 = por %p236, %p237
    %p239 = scmp.ne.s32.totalorder %s230, %s231
    %p240 = scmp.eq.s32.totalorder %s26, 0
    %p241 = por %p239, %p240
    %p242 = scmp.ne.s32.totalorder %s230, %s231
    %p243 = scmp.eq.s32.totalorder %s27, 1
    %p244 = por %p242, %p243
    %p246 = scmp.ne.s32.totalorder %s231, %s245
    %p247 = scmp.eq.s32.totalorder %s27, 0
    %p248 = por %p246, %p247
    %s250 = sadd.s32 %s249, 1
    %p253 = scmp.eq.s32.totalorder %s21, 1
    %p254 = scmp.ne.s32.totalorder %s249, %s251
    %p255 = scmp.eq.s32.totalorder %s21, 0
    %p256 = por %p254, %p255
    %p257 = scmp.ne.s32.totalorder %s249, %s251
    %p258 = scmp.eq.s32.totalorder %s26, 1
    %p259 = por %p257, %p258
    %p260 = scmp.ne.s32.totalorder %s251, %s252
    %p261 = scmp.eq.s32.totalorder %s26, 0
    %p262 = por %p260, %p261
    %p263 = scmp.ne.s32.totalorder %s251, %s252
    %p264 = scmp.eq.s32.totalorder %s27, 1
    %p265 = por %p263, %p264
    %p267 = scmp.ne.s32.totalorder %s252, %s266
    %p268 = scmp.eq.s32.totalorder %s27, 0
    %p269 = por %p267, %p268
    %s271 = sadd.s32 %s270, 1
    %p274 = scmp.eq.s32.totalorder %s21, 1
    %p275 = scmp.ne.s32.totalorder %s270, %s272
    %p276 = scmp.eq.s32.totalorder %s21, 0
    %p277 = por %p275, %p276
    %p278 = scmp.ne.s32.totalorder %s270, %s272
    %p279 = scmp.eq.s32.totalorder %s26, 1
    %p280 = por %p278, %p279
    %p281 = scmp.ne.s32.totalorder %s272, %s273
    %p282 = scmp.eq.s32.totalorder %s26, 0
    %p283 = por %p281, %p282
    %p284 = scmp.ne.s32.totalorder %s272, %s273
    %p285 = scmp.eq.s32.totalorder %s27, 1
    %p286 = por %p284, %p285
    %p288 = scmp.ne.s32.totalorder %s273, %s287
    %p289 = scmp.eq.s32.totalorder %s27, 0
    %p290 = por %p288, %p289
    %s292 = sadd.s32 %s291, 1
    %p295 = scmp.eq.s32.totalorder %s21, 1
    %p296 = scmp.ne.s32.totalorder %s291, %s293
    %p297 = scmp.eq.s32.totalorder %s21, 0
    %p298 = por %p296, %p297
    %p299 = scmp.ne.s32.totalorder %s291, %s293
    %p300 = scmp.eq.s32.totalorder %s26, 1
    %p301 = por %p299, %p300
    %p302 = scmp.ne.s32.totalorder %s293, %s294
    %p303 = scmp.eq.s32.totalorder %s26, 0
    %p304 = por %p302, %p303
    %p305 = scmp.ne.s32.totalorder %s293, %s294
    %p306 = scmp.eq.s32.totalorder %s27, 1
    %p307 = por %p305, %p306
    %p309 = scmp.ne.s32.totalorder %s294, %s308
    %p310 = scmp.eq.s32.totalorder %s27, 0
    %p311 = por %p309, %p310
    %s313 = sadd.s32 %s312, 1
    %p316 = scmp.eq.s32.totalorder %s21, 1
    %p317 = scmp.ne.s32.totalorder %s312, %s314
    %p318 = scmp.eq.s32.totalorder %s21, 0
    %p319 = por %p317, %p318
    %p320 = scmp.ne.s32.totalorder %s312, %s314
    %p321 = scmp.eq.s32.totalorder %s26, 1
    %p322 = por %p320, %p321
    %p323 = scmp.ne.s32.totalorder %s314, %s315
    %p324 = scmp.eq.s32.totalorder %s26, 0
    %p325 = por %p323, %p324
    %p326 = scmp.ne.s32.totalorder %s314, %s315
    %p327 = scmp.eq.s32.totalorder %s27, 1
    %p328 = por %p326, %p327
    %p330 = scmp.ne.s32.totalorder %s315, %s329
    %p331 = scmp.eq.s32.totalorder %s27, 0
    %p332 = por %p330, %p331
    %s334 = sadd.s32 %s333, 1
    %p337 = scmp.eq.s32.totalorder %s21, 1
    %p338 = scmp.ne.s32.totalorder %s333, %s335
    %p339 = scmp.eq.s32.totalorder %s21, 0
    %p340 = por %p338, %p339
    %p341 = scmp.ne.s32.totalorder %s333, %s335
    %p342 = scmp.eq.s32.totalorder %s26, 1
    %p343 = por %p341, %p342
    %p344 = scmp.ne.s32.totalorder %s335, %s336
    %p345 = scmp.eq.s32.totalorder %s26, 0
    %p346 = por %p344, %p345
    %p347 = scmp.ne.s32.totalorder %s335, %s336
    %p348 = scmp.eq.s32.totalorder %s27, 1
    %p349 = por %p347, %p348
    %p351 = scmp.ne.s32.totalorder %s336, %s350
    %p352 = scmp.eq.s32.totalorder %s27, 0
    %p353 = por %p351, %p352
    %s354 = ssub.s32 %s21, %s28
    %p355 = scmp.eq.s32.totalorder %s354, 0
    %s357 = sadd.s32 %s356, 1
    %s358 = scalar_select %p355, %s356, %s357
    %p361 = pneg %p355
    %p362 = scmp.eq.s32.totalorder %s21, 1
    %p363 = por %p361, %p362
    %p364 = scmp.ne.s32.totalorder %s356, %s359
    %p365 = scmp.eq.s32.totalorder %s21, 0
    %p366 = por %p364, %p365
    %p367 = scmp.ne.s32.totalorder %s356, %s359
    %p368 = scmp.eq.s32.totalorder %s26, 1
    %p369 = por %p367, %p368
    %p370 = scmp.ne.s32.totalorder %s359, %s360
    %p371 = scmp.eq.s32.totalorder %s26, 0
    %p372 = por %p370, %p371
    %p373 = scmp.ne.s32.totalorder %s359, %s360
    %p374 = scmp.eq.s32.totalorder %s27, 1
    %p375 = por %p373, %p374
    %p377 = scmp.ne.s32.totalorder %s360, %s376
    %p378 = scmp.eq.s32.totalorder %s27, 0
    %p379 = por %p377, %p378
    %p380 = scmp.le.s32.totalorder 1, %s21
    %p381 = scmp.lt.s32.totalorder %s21, 3
    %p382 = pnand %p380, %p381
    %p383 = pneg %p382
    // Predicated region
    $region9: #{seq2seq_transformer_forward.9} parent=5 // pred_check
      _
    $region10: #{seq2seq_transformer_forward.9} parent=5 // pred_check_branch
      %385 = sbr.rel (%p382) target = $region12
    $region11: #{seq2seq_transformer_forward.9} parent=5 // pred_region
      %s386 = ssub.s32 %s21, 1
      // Predicated region
      $region13: #{seq2seq_transformer_forward.9} parent=11 // pred_check
        %p387 = pneg %p68
      $region14: #{seq2seq_transformer_forward.9} parent=11 // pred_check_branch
        %389 = sbr.rel (%p387) target = $region16
      $region15: #{seq2seq_transformer_forward.9} parent=11 // pred_region
        _
      $region16: #{seq2seq_transformer_forward.9} parent=11 // pred_fallthru
        _
      // Predicated region
      $region17: #{seq2seq_transformer_forward.9} parent=11 // pred_check
        %p390 = pneg %p115
      $region18: #{seq2seq_transformer_forward.9} parent=11 // pred_check_branch
        %392 = sbr.rel (%p390) target = $region20
      $region19: #{seq2seq_transformer_forward.9} parent=11 // pred_region
        _
      $region20: #{seq2seq_transformer_forward.9} parent=11 // pred_fallthru
        _
      // Predicated region
      $region21: #{seq2seq_transformer_forward.9} parent=11 // pred_check
        %p393 = pneg %p136
      $region22: #{seq2seq_transformer_forward.9} parent=11 // pred_check_branch
        %395 = sbr.rel (%p393) target = $region24
      $region23: #{seq2seq_transformer_forward.9} parent=11 // pred_region
        _
      $region24: #{seq2seq_transformer_forward.9} parent=11 // pred_fallthru
        _
      // Predicated region
      $region25: #{seq2seq_transformer_forward.9} parent=11 // pred_check
        %p396 = pneg %p157
      $region26: #{seq2seq_transformer_forward.9} parent=11 // pred_check_branch
        %398 = sbr.rel (%p396) target = $region28
      $region27: #{seq2seq_transformer_forward.9} parent=11 // pred_region
        _
      $region28: #{seq2seq_transformer_forward.9} parent=11 // pred_fallthru
        _
      // Predicated region
      $region29: #{seq2seq_transformer_forward.9} parent=11 // pred_check
        %p399 = pneg %p178
      $region30: #{seq2seq_transformer_forward.9} parent=11 // pred_check_branch
        %401 = sbr.rel (%p399) target = $region32
      $region31: #{seq2seq_transformer_forward.9} parent=11 // pred_region
        _
      $region32: #{seq2seq_transformer_forward.9} parent=11 // pred_fallthru
        _
      // Predicated region
      $region33: #{seq2seq_transformer_forward.9} parent=11 // pred_check
        %p402 = pneg %p199
      $region34: #{seq2seq_transformer_forward.9} parent=11 // pred_check_branch
        %404 = sbr.rel (%p402) target = $region36
      $region35: #{seq2seq_transformer_forward.9} parent=11 // pred_region
        _
      $region36: #{seq2seq_transformer_forward.9} parent=11 // pred_fallthru
        _
      // Predicated region
      $region37: #{seq2seq_transformer_forward.9} parent=11 // pred_check
        %p405 = pneg %p220
      $region38: #{seq2seq_transformer_forward.9} parent=11 // pred_check_branch
        %407 = sbr.rel (%p405) target = $region40
      $region39: #{seq2seq_transformer_forward.9} parent=11 // pred_region
        _
      $region40: #{seq2seq_transformer_forward.9} parent=11 // pred_fallthru
        _
      // Predicated region
      $region41: #{seq2seq_transformer_forward.9} parent=11 // pred_check
        %p408 = pneg %p241
      $region42: #{seq2seq_transformer_forward.9} parent=11 // pred_check_branch
        %410 = sbr.rel (%p408) target = $region44
      $region43: #{seq2seq_transformer_forward.9} parent=11 // pred_region
        _
      $region44: #{seq2seq_transformer_forward.9} parent=11 // pred_fallthru
        _
      // Predicated region
      $region45: #{seq2seq_transformer_forward.9} parent=11 // pred_check
        %p411 = pneg %p262
      $region46: #{seq2seq_transformer_forward.9} parent=11 // pred_check_branch
        %413 = sbr.rel (%p411) target = $region48
      $region47: #{seq2seq_transformer_forward.9} parent=11 // pred_region
        _
      $region48: #{seq2seq_transformer_forward.9} parent=11 // pred_fallthru
        _
      // Predicated region
      $region49: #{seq2seq_transformer_forward.9} parent=11 // pred_check
        %p414 = pneg %p283
      $region50: #{seq2seq_transformer_forward.9} parent=11 // pred_check_branch
        %416 = sbr.rel (%p414) target = $region52
      $region51: #{seq2seq_transformer_forward.9} parent=11 // pred_region
        _
      $region52: #{seq2seq_transformer_forward.9} parent=11 // pred_fallthru
        _
      // Predicated region
      $region53: #{seq2seq_transformer_forward.9} parent=11 // pred_check
        %p417 = pneg %p304
      $region54: #{seq2seq_transformer_forward.9} parent=11 // pred_check_branch
        %419 = sbr.rel (%p417) target = $region56
      $region55: #{seq2seq_transformer_forward.9} parent=11 // pred_region
        _
      $region56: #{seq2seq_transformer_forward.9} parent=11 // pred_fallthru
        _
      // Predicated region
      $region57: #{seq2seq_transformer_forward.9} parent=11 // pred_check
        %p420 = pneg %p325
      $region58: #{seq2seq_transformer_forward.9} parent=11 // pred_check_branch
        %422 = sbr.rel (%p420) target = $region60
      $region59: #{seq2seq_transformer_forward.9} parent=11 // pred_region
        _
      $region60: #{seq2seq_transformer_forward.9} parent=11 // pred_fallthru
        _
      // Predicated region
      $region61: #{seq2seq_transformer_forward.9} parent=11 // pred_check
        %p423 = pneg %p346
      $region62: #{seq2seq_transformer_forward.9} parent=11 // pred_check_branch
        %425 = sbr.rel (%p423) target = $region64
      $region63: #{seq2seq_transformer_forward.9} parent=11 // pred_region
        _
      $region64: #{seq2seq_transformer_forward.9} parent=11 // pred_fallthru
        _
    $region12: #{seq2seq_transformer_forward.9} parent=5 // pred_fallthru
      _
    %p426 = scmp.lt.s32.totalorder %s21, 2
    // Predicated region
    $region65: #{seq2seq_transformer_forward.9} parent=5 // pred_check
      %p427 = pneg %p426
    $region66: #{seq2seq_transformer_forward.9} parent=5 // pred_check_branch
      %429 = sbr.rel (%p427) target = $region68
    $region67: #{seq2seq_transformer_forward.9} parent=5 // pred_region
      // Predicated region
      $region69: #{seq2seq_transformer_forward.9} parent=67 // pred_check
        %p430 = pneg %p41
      $region70: #{seq2seq_transformer_forward.9} parent=67 // pred_check_branch
        %432 = sbr.rel (%p430) target = $region72
      $region71: #{seq2seq_transformer_forward.9} parent=67 // pred_region
        %p433 = scmp.lt.s32.totalorder %s21, 1
        %s434 = scalar_select %p433, %s21, 1
        %s435 = smul.addr %s434, 8
        %s436 = scalar_lea.vmem %s0, %s435
      $region72: #{seq2seq_transformer_forward.9} parent=67 // pred_fallthru
        _
      // Predicated region
      $region73: #{seq2seq_transformer_forward.9} parent=67 // pred_check
        %p437 = pneg %p88
      $region74: #{seq2seq_transformer_forward.9} parent=67 // pred_check_branch
        %439 = sbr.rel (%p437) target = $region76
      $region75: #{seq2seq_transformer_forward.9} parent=67 // pred_region
        %p440 = scmp.lt.s32.totalorder %s21, 1
        %s441 = scalar_select %p440, %s21, 1
        %s442 = scalar_lea.vmem %s2, %s441
      $region76: #{seq2seq_transformer_forward.9} parent=67 // pred_fallthru
        _
    $region68: #{seq2seq_transformer_forward.9} parent=5 // pred_fallthru
      _
    %p443 = scmp.le.s32.totalorder 1, %s21
    %p444 = scmp.lt.s32.totalorder %s21, 3
    %p445 = pnand %p443, %p444
    %p446 = pneg %p445
    // Predicated region
    $region77: #{seq2seq_transformer_forward.9} parent=5 // pred_check
      _
    $region78: #{seq2seq_transformer_forward.9} parent=5 // pred_check_branch
      %448 = sbr.rel (%p445) target = $region80
    $region79: #{seq2seq_transformer_forward.9} parent=5 // pred_region
      %s449 = ssub.s32 %s21, 1
      %p450 = scmp.lt.s32.totalorder %s26, 1
      %s451 = scalar_select %p450, %s26, 1
      %s452 = smul.addr %s451, 8
      %s453 = scalar_lea.vmem %s0, %s452
      %p454 = pneg %p47
      %p455 = pneg %p44
      %p456 = pneg %p68
      %p457 = pneg %p65
      %p458 = scmp.lt.s32.totalorder %s26, 1
      %s459 = scalar_select %p458, %s26, 1
      %s460 = scalar_lea.vmem %s2, %s459
      %p461 = pneg %p94
      %p462 = pneg %p91
      %p463 = pneg %p115
      %p464 = pneg %p112
      %p465 = pneg %p136
      %p466 = pneg %p133
      %p467 = pneg %p157
      %p468 = pneg %p154
      %p469 = pneg %p178
      %p470 = pneg %p175
      %p471 = pneg %p199
      %p472 = pneg %p196
      %p473 = pneg %p220
      %p474 = pneg %p217
      %p475 = pneg %p241
      %p476 = pneg %p238
      %p477 = pneg %p262
      %p478 = pneg %p259
      %p479 = pneg %p283
      %p480 = pneg %p280
      %p481 = pneg %p304
      %p482 = pneg %p301
      %p483 = pneg %p325
      %p484 = pneg %p322
      %p485 = pneg %p346
      %p486 = pneg %p343
      %p487 = pneg %p372
      %p488 = pneg %p369
      %p489 = scmp.lt.s32.totalorder %s26, 1
      %s490 = scalar_select %p489, %s26, 1
      %s491 = smul.addr %s490, 8
      %s492 = scalar_lea.vmem %s15, %s491
      %p493 = scmp.lt.s32.totalorder %s26, 1
      %s494 = scalar_select %p493, %s26, 1
      %s495 = smul.addr %s494, 8
      %s496 = scalar_lea.vmem %s0, %s495
      %p497 = scmp.lt.s32.totalorder %s26, 1
      %s498 = scalar_select %p497, %s26, 1
      %s499 = scalar_lea.vmem %s2, %s498
      %p500 = scmp.lt.s32.totalorder %s26, 1
      %s501 = scalar_select %p500, %s26, 1
      %s502 = smul.addr %s501, 8
      %s503 = scalar_lea.vmem %s15, %s502
      %v505 = vld [vmem:[%s496] sm:$0xff]
      %v506 = vpack.c.bf16 %v505, %v505
      %v507 = vld [vmem:[%s3] sm:$0xf]
      %v508 = vld [vmem:[%s3 + $0x4] sm:$0xf]
      %v509 = vld [vmem:[%s3 + $0x8] sm:$0xf]
      %v510 = vld [vmem:[%s3 + $0xc] sm:$0xf]
      %v511 = vld [vmem:[%s4] sm:$0x1]
      %v513 = vlaneseq
      %v514 = vshrl.u32 %v513, 7
      %v515 = vsub.s32 0, %v514
      %v516 = vrot.slane %v511, %v515
      %v522 = vunpack.c.l.b16 %v507
      %v523 = vunpack.c.l.b16 %v508
      %v524 = vunpack.c.l.b16 %v509
      %v525 = vunpack.c.l.b16 %v510
      %v526 = vpack.c.b16 %v523, %v522
      %v527 = vpack.c.b16 %v525, %v524
      %vm530 = vcmask 261120
      %v532 = vsel %vm530, %v506, 0
      %534 = vmatprep.subr.bf16.mxu0 0
      %535 = vmatpush1.bf16.msra.mxu0 %v526
      %536 = vmatprep.subr.bf16.mxu0 0
      %537 = vmatpush1.bf16.msra.mxu0 %v527
      %538 = vmatprep.subr.bf16.mxu0 0
      %539 = vmatpush1.bf16.msra.mxu0 0
      %540 = vmatprep.subr.bf16.mxu0 0
      %541 = vmatpush1.bf16.msra.mxu0 0
      %542 = vmatprep.subr.bf16.mxu0 0
      %543 = vmatpush1.bf16.msra.mxu0 0
      %544 = vmatprep.subr.bf16.mxu0 0
      %545 = vmatpush1.bf16.msra.mxu0 0
      %546 = vmatprep.subr.bf16.mxu0 0
      %547 = vmatpush1.bf16.msra.mxu0 0
      %548 = vmatprep.subr.bf16.mxu0 0
      %549 = vmatpush1.bf16.msra.mxu0 0
      %550 = vmatprep.subr.bf16.mxu0 0
      %551 = vmatpush1.bf16.msra.mxu0 0
      %552 = vmatprep.subr.bf16.mxu0 0
      %553 = vmatpush1.bf16.msra.mxu0 0
      %554 = vmatprep.subr.bf16.mxu0 0
      %555 = vmatpush1.bf16.msra.mxu0 0
      %556 = vmatprep.subr.bf16.mxu0 0
      %557 = vmatpush1.bf16.msra.mxu0 0
      %558 = vmatprep.subr.bf16.mxu0 0
      %559 = vmatpush1.bf16.msra.mxu0 0
      %560 = vmatprep.subr.bf16.mxu0 0
      %561 = vmatpush1.bf16.msra.mxu0 0
      %562 = vmatprep.subr.bf16.mxu0 0
      %563 = vmatpush1.bf16.msra.mxu0 0
      %564 = vmatprep.subr.bf16.mxu0 0
      %565 = vmatpush1.bf16.msra.mxu0 0
      %566 = vmatprep.mubr.bf16.mxu0 0
      %567 = vmatmul.mubr.bf16.gmra.mrb[0].mxu0 %v532
      %v568 = vpop.f32.mrb[0].mxu0
      %v569 = vadd.f32 %v516, %v568
      %v570 = vpop.f32.mrb[0].mxu0
      %v571 = vpop.f32.mrb[0].mxu0
      %v572 = vpop.f32.mrb[0].mxu0
      %573 = vdwg.mxu0
      %v574 = vld [vmem:[%s1] sm:$0xff]
      %v575 = vld [vmem:[%s499] sm:$0x1]
      %v576 = vpack.c.bf16 %v569, %v569
      %578 = vrot.lane.b32.xlu0 %v576, 96
      %v579 = vpop.permute.xlu0 %578
      %vm580 = vcmask 64512
      %v582 = vsel %vm580, %v576, 0
      %v585 = vsel %vm580, %v579, 0
      %587 = vmatprep.subr.bf16.mxu0 0
      %588 = vmatpush1.bf16.xpose.msra.mxu0 %v585
      %589 = vmatprep.subr.bf16.mxu0 0
      %590 = vmatpush1.bf16.xpose.msra.mxu0 0
      %591 = vmatprep.subr.bf16.mxu0 0
      %592 = vmatpush1.bf16.xpose.msra.mxu0 0
      %593 = vmatprep.subr.bf16.mxu0 0
      %594 = vmatpush1.bf16.xpose.msra.mxu0 0
      %595 = vmatprep.subr.bf16.mxu0 0
      %596 = vmatpush1.bf16.xpose.msra.mxu0 0
      %597 = vmatprep.subr.bf16.mxu0 0
      %598 = vmatpush1.bf16.xpose.msra.mxu0 0
      %599 = vmatprep.subr.bf16.mxu0 0
      %600 = vmatpush1.bf16.xpose.msra.mxu0 0
      %601 = vmatprep.subr.bf16.mxu0 0
      %602 = vmatpush1.bf16.xpose.msra.mxu0 0
      %603 = vmatprep.subr.bf16.mxu0 0
      %604 = vmatpush1.bf16.xpose.msra.mxu0 0
      %605 = vmatprep.subr.bf16.mxu0 0
      %606 = vmatpush1.bf16.xpose.msra.mxu0 0
      %607 = vmatprep.subr.bf16.mxu0 0
      %608 = vmatpush1.bf16.xpose.msra.mxu0 0
      %609 = vmatprep.subr.bf16.mxu0 0
      %610 = vmatpush1.bf16.xpose.msra.mxu0 0
      %611 = vmatprep.subr.bf16.mxu0 0
      %612 = vmatpush1.bf16.xpose.msra.mxu0 0
      %613 = vmatprep.subr.bf16.mxu0 0
      %614 = vmatpush1.bf16.xpose.msra.mxu0 0
      %615 = vmatprep.subr.bf16.mxu0 0
      %616 = vmatpush1.bf16.xpose.msra.mxu0 0
      %617 = vmatprep.subr.bf16.mxu0 0
      %618 = vmatpush1.bf16.xpose.msra.mxu0 0
      %619 = vmatprep.mubr.bf16.mxu0 0
      %620 = vmatmul.mubr.bf16.gmra.mrb[0].mxu0 %v582
      %v621 = vpop.f32.mrb[0].mxu0
      %v622 = vadd.f32 0.0, %v621
      %v623 = vpop.f32.mrb[0].mxu0
      %v624 = vpop.f32.mrb[0].mxu0
      %v625 = vpop.f32.mrb[0].mxu0
      %626 = vdwg.mxu0
      %v627 = vmul.f32 %v622, 0.35355338
      %v629 = vlaneseq
      %v630 = vshrl.u32 %v629, 7
      %v631 = vsub.s32 0, %v630
      %v632 = vrot.slane %v575, %v631
      %v634 = vadd.f32 %v627, %v632
      %v635 = vadd.f32 %v634, %v574
      %v636 = vsel %vm580, %v635, -inf
      %637 = vmax.xlane.f32.xlu0 %v636
      %v638 = vpop.xlane.xlu0 %637
      %v639 = vsub.f32 %v635, %v638
      %v640 = vmul.f32 %v639, 1.442695
      %v641 = vpow.pop %v640
      %v642 = vsel %vm580, %v641, 0.0
      %643 = vadd.xlane.f32.xlu0 %v642
      %v644 = vpop.xlane.xlu0 %643
      %v645 = vrcp.pop %v644
      %v646 = vmul.f32 %v641, %v645
      %v647 = vpack.c.bf16 %v646, %v646
      %648 = vrot.lane.b32.xlu0 %v576, 64
      %v649 = vpop.permute.xlu0 %648
      %v651 = vsel %vm580, %v647, 0
      %vm653 = vcmask 1043456
      %v655 = vsel %vm653, %v649, 0
      %657 = vmatprep.subr.bf16.mxu0 0
      %658 = vmatpush1.bf16.msra.mxu0 %v655
      %659 = vmatprep.subr.bf16.mxu0 0
      %660 = vmatpush1.bf16.msra.mxu0 0
      %661 = vmatprep.subr.bf16.mxu0 0
      %662 = vmatpush1.bf16.msra.mxu0 0
      %663 = vmatprep.subr.bf16.mxu0 0
      %664 = vmatpush1.bf16.msra.mxu0 0
      %665 = vmatprep.subr.bf16.mxu0 0
      %666 = vmatpush1.bf16.msra.mxu0 0
      %667 = vmatprep.subr.bf16.mxu0 0
      %668 = vmatpush1.bf16.msra.mxu0 0
      %669 = vmatprep.subr.bf16.mxu0 0
      %670 = vmatpush1.bf16.msra.mxu0 0
      %671 = vmatprep.subr.bf16.mxu0 0
      %672 = vmatpush1.bf16.msra.mxu0 0
      %673 = vmatprep.subr.bf16.mxu0 0
      %674 = vmatpush1.bf16.msra.mxu0 0
      %675 = vmatprep.subr.bf16.mxu0 0
      %676 = vmatpush1.bf16.msra.mxu0 0
      %677 = vmatprep.subr.bf16.mxu0 0
      %678 = vmatpush1.bf16.msra.mxu0 0
      %679 = vmatprep.subr.bf16.mxu0 0
      %680 = vmatpush1.bf16.msra.mxu0 0
      %681 = vmatprep.subr.bf16.mxu0 0
      %682 = vmatpush1.bf16.msra.mxu0 0
      %683 = vmatprep.subr.bf16.mxu0 0
      %684 = vmatpush1.bf16.msra.mxu0 0
      %685 = vmatprep.subr.bf16.mxu0 0
      %686 = vmatpush1.bf16.msra.mxu0 0
      %687 = vmatprep.subr.bf16.mxu0 0
      %688 = vmatpush1.bf16.msra.mxu0 0
      %689 = vmatprep.mubr.bf16.mxu0 0
      %690 = vmatmul.mubr.bf16.gmra.mrb[0].mxu0 %v651
      %v691 = vpop.f32.mrb[0].mxu0
      %v692 = vadd.f32 0.0, %v691
      %v693 = vpop.f32.mrb[0].mxu0
      %v694 = vpop.f32.mrb[0].mxu0
      %v695 = vpop.f32.mrb[0].mxu0
      %696 = vdwg.mxu0
      %697 = vrot.lane.b32.xlu0 %v576, 120
      %v698 = vpop.permute.xlu0 %697
      %699 = vrot.lane.b32.xlu0 %v576, 88
      %v700 = vpop.permute.xlu0 %699
      %v702 = vsel %vm580, %v698, 0
      %v705 = vsel %vm580, %v700, 0
      %707 = vmatprep.subr.bf16.mxu0 0
      %708 = vmatpush1.bf16.xpose.msra.mxu0 %v705
      %709 = vmatprep.subr.bf16.mxu0 0
      %710 = vmatpush1.bf16.xpose.msra.mxu0 0
      %711 = vmatprep.subr.bf16.mxu0 0
      %712 = vmatpush1.bf16.xpose.msra.mxu0 0
      %713 = vmatprep.subr.bf16.mxu0 0
      %714 = vmatpush1.bf16.xpose.msra.mxu0 0
      %715 = vmatprep.subr.bf16.mxu0 0
      %716 = vmatpush1.bf16.xpose.msra.mxu0 0
      %717 = vmatprep.subr.bf16.mxu0 0
      %718 = vmatpush1.bf16.xpose.msra.mxu0 0
      %719 = vmatprep.subr.bf16.mxu0 0
      %720 = vmatpush1.bf16.xpose.msra.mxu0 0
      %721 = vmatprep.subr.bf16.mxu0 0
      %722 = vmatpush1.bf16.xpose.msra.mxu0 0
      %723 = vmatprep.subr.bf16.mxu0 0
      %724 = vmatpush1.bf16.xpose.msra.mxu0 0
      %725 = vmatprep.subr.bf16.mxu0 0
      %726 = vmatpush1.bf16.xpose.msra.mxu0 0
      %727 = vmatprep.subr.bf16.mxu0 0
      %728 = vmatpush1.bf16.xpose.msra.mxu0 0
      %729 = vmatprep.subr.bf16.mxu0 0
      %730 = vmatpush1.bf16.xpose.msra.mxu0 0
      %731 = vmatprep.subr.bf16.mxu0 0
      %732 = vmatpush1.bf16.xpose.msra.mxu0 0
      %733 = vmatprep.subr.bf16.mxu0 0
      %734 = vmatpush1.bf16.xpose.msra.mxu0 0
      %735 = vmatprep.subr.bf16.mxu0 0
      %736 = vmatpush1.bf16.xpose.msra.mxu0 0
      %737 = vmatprep.subr.bf16.mxu0 0
      %738 = vmatpush1.bf16.xpose.msra.mxu0 0
      %739 = vmatprep.mubr.bf16.mxu0 0
      %740 = vmatmul.mubr.bf16.gmra.mrb[0].mxu0 %v702
      %v741 = vpop.f32.mrb[0].mxu0
      %v742 = vadd.f32 0.0, %v741
      %v743 = vpop.f32.mrb[0].mxu0
      %v744 = vpop.f32.mrb[0].mxu0
      %v745 = vpop.f32.mrb[0].mxu0
      %746 = vdwg.mxu0
      %v747 = vmul.f32 %v742, 0.35355338
      %v748 = vadd.f32 %v747, %v632
      %v749 = vadd.f32 %v748, %v574
      %v750 = vsel %vm580, %v749, -inf
      %751 = vmax.xlane.f32.xlu0 %v750
      %v752 = vpop.xlane.xlu0 %751
      %v753 = vsub.f32 %v749, %v752
      %v754 = vmul.f32 %v753, 1.442695
      %v755 = vpow.pop %v754
      %v756 = vsel %vm580, %v755, 0.0
      %757 = vadd.xlane.f32.xlu0 %v756
      %v758 = vpop.xlane.xlu0 %757
      %v759 = vrcp.pop %v758
      %v760 = vmul.f32 %v755, %v759
      %v761 = vpack.c.bf16 %v760, %v760
      %762 = vrot.lane.b32.xlu0 %v576, 56
      %v763 = vpop.permute.xlu0 %762
      %v765 = vsel %vm580, %v761, 0
      %v768 = vsel %vm653, %v763, 0
      %770 = vmatprep.subr.bf16.mxu0 0
      %771 = vmatpush1.bf16.msra.mxu0 %v768
      %772 = vmatprep.subr.bf16.mxu0 0
      %773 = vmatpush1.bf16.msra.mxu0 0
      %774 = vmatprep.subr.bf16.mxu0 0
      %775 = vmatpush1.bf16.msra.mxu0 0
      %776 = vmatprep.subr.bf16.mxu0 0
      %777 = vmatpush1.bf16.msra.mxu0 0
      %778 = vmatprep.subr.bf16.mxu0 0
      %779 = vmatpush1.bf16.msra.mxu0 0
      %780 = vmatprep.subr.bf16.mxu0 0
      %781 = vmatpush1.bf16.msra.mxu0 0
      %782 = vmatprep.subr.bf16.mxu0 0
      %783 = vmatpush1.bf16.msra.mxu0 0
      %784 = vmatprep.subr.bf16.mxu0 0
      %785 = vmatpush1.bf16.msra.mxu0 0
      %786 = vmatprep.subr.bf16.mxu0 0
      %787 = vmatpush1.bf16.msra.mxu0 0
      %788 = vmatprep.subr.bf16.mxu0 0
      %789 = vmatpush1.bf16.msra.mxu0 0
      %790 = vmatprep.subr.bf16.mxu0 0
      %791 = vmatpush1.bf16.msra.mxu0 0
      %792 = vmatprep.subr.bf16.mxu0 0
      %793 = vmatpush1.bf16.msra.mxu0 0
      %794 = vmatprep.subr.bf16.mxu0 0
      %795 = vmatpush1.bf16.msra.mxu0 0
      %796 = vmatprep.subr.bf16.mxu0 0
      %797 = vmatpush1.bf16.msra.mxu0 0
      %798 = vmatprep.subr.bf16.mxu0 0
      %799 = vmatpush1.bf16.msra.mxu0 0
      %800 = vmatprep.subr.bf16.mxu0 0
      %801 = vmatpush1.bf16.msra.mxu0 0
      %802 = vmatprep.mubr.bf16.mxu0 0
      %803 = vmatmul.mubr.bf16.gmra.mrb[0].mxu0 %v765
      %v804 = vpop.f32.mrb[0].mxu0
      %v805 = vadd.f32 0.0, %v804
      %v806 = vpop.f32.mrb[0].mxu0
      %v807 = vpop.f32.mrb[0].mxu0
      %v808 = vpop.f32.mrb[0].mxu0
      %809 = vdwg.mxu0
      %810 = vrot.lane.b32.xlu0 %v576, 112
      %v811 = vpop.permute.xlu0 %810
      %812 = vrot.lane.b32.xlu0 %v576, 80
      %v813 = vpop.permute.xlu0 %812
      %v815 = vsel %vm580, %v811, 0
      %v818 = vsel %vm580, %v813, 0
      %820 = vmatprep.subr.bf16.mxu0 0
      %821 = vmatpush1.bf16.xpose.msra.mxu0 %v818
      %822 = vmatprep.subr.bf16.mxu0 0
      %823 = vmatpush1.bf16.xpose.msra.mxu0 0
      %824 = vmatprep.subr.bf16.mxu0 0
      %825 = vmatpush1.bf16.xpose.msra.mxu0 0
      %826 = vmatprep.subr.bf16.mxu0 0
      %827 = vmatpush1.bf16.xpose.msra.mxu0 0
      %828 = vmatprep.subr.bf16.mxu0 0
      %829 = vmatpush1.bf16.xpose.msra.mxu0 0
      %830 = vmatprep.subr.bf16.mxu0 0
      %831 = vmatpush1.bf16.xpose.msra.mxu0 0
      %832 = vmatprep.subr.bf16.mxu0 0
      %833 = vmatpush1.bf16.xpose.msra.mxu0 0
      %834 = vmatprep.subr.bf16.mxu0 0
      %835 = vmatpush1.bf16.xpose.msra.mxu0 0
      %836 = vmatprep.subr.bf16.mxu0 0
      %837 = vmatpush1.bf16.xpose.msra.mxu0 0
      %838 = vmatprep.subr.bf16.mxu0 0
      %839 = vmatpush1.bf16.xpose.msra.mxu0 0
      %840 = vmatprep.subr.bf16.mxu0 0
      %841 = vmatpush1.bf16.xpose.msra.mxu0 0
      %842 = vmatprep.subr.bf16.mxu0 0
      %843 = vmatpush1.bf16.xpose.msra.mxu0 0
      %844 = vmatprep.subr.bf16.mxu0 0
      %845 = vmatpush1.bf16.xpose.msra.mxu0 0
      %846 = vmatprep.subr.bf16.mxu0 0
      %847 = vmatpush1.bf16.xpose.msra.mxu0 0
      %848 = vmatprep.subr.bf16.mxu0 0
      %849 = vmatpush1.bf16.xpose.msra.mxu0 0
      %850 = vmatprep.subr.bf16.mxu0 0
      %851 = vmatpush1.bf16.xpose.msra.mxu0 0
      %852 = vmatprep.mubr.bf16.mxu0 0
      %853 = vmatmul.mubr.bf16.gmra.mrb[0].mxu0 %v815
      %v854 = vpop.f32.mrb[0].mxu0
      %v855 = vadd.f32 0.0, %v854
      %v856 = vpop.f32.mrb[0].mxu0
      %v857 = vpop.f32.mrb[0].mxu0
      %v858 = vpop.f32.mrb[0].mxu0
      %859 = vdwg.mxu0
      %v860 = vmul.f32 %v855, 0.35355338
      %v861 = vadd.f32 %v860, %v632
      %v862 = vadd.f32 %v861, %v574
      %v863 = vsel %vm580, %v862, -inf
      %864 = vmax.xlane.f32.xlu0 %v863
      %v865 = vpop.xlane.xlu0 %864
      %v866 = vsub.f32 %v862, %v865
      %v867 = vmul.f32 %v866, 1.442695
      %v868 = vpow.pop %v867
      %v869 = vsel %vm580, %v868, 0.0
      %870 = vadd.xlane.f32.xlu0 %v869
      %v871 = vpop.xlane.xlu0 %870
      %v872 = vrcp.pop %v871
      %v873 = vmul.f32 %v868, %v872
      %v874 = vpack.c.bf16 %v873, %v873
      %875 = vrot.lane.b32.xlu0 %v576, 48
      %v876 = vpop.permute.xlu0 %875
      %v878 = vsel %vm580, %v874, 0
      %v881 = vsel %vm653, %v876, 0
      %883 = vmatprep.subr.bf16.mxu0 0
      %884 = vmatpush1.bf16.msra.mxu0 %v881
      %885 = vmatprep.subr.bf16.mxu0 0
      %886 = vmatpush1.bf16.msra.mxu0 0
      %887 = vmatprep.subr.bf16.mxu0 0
      %888 = vmatpush1.bf16.msra.mxu0 0
      %889 = vmatprep.subr.bf16.mxu0 0
      %890 = vmatpush1.bf16.msra.mxu0 0
      %891 = vmatprep.subr.bf16.mxu0 0
      %892 = vmatpush1.bf16.msra.mxu0 0
      %893 = vmatprep.subr.bf16.mxu0 0
      %894 = vmatpush1.bf16.msra.mxu0 0
      %895 = vmatprep.subr.bf16.mxu0 0
      %896 = vmatpush1.bf16.msra.mxu0 0
      %897 = vmatprep.subr.bf16.mxu0 0
      %898 = vmatpush1.bf16.msra.mxu0 0
      %899 = vmatprep.subr.bf16.mxu0 0
      %900 = vmatpush1.bf16.msra.mxu0 0
      %901 = vmatprep.subr.bf16.mxu0 0
      %902 = vmatpush1.bf16.msra.mxu0 0
      %903 = vmatprep.subr.bf16.mxu0 0
      %904 = vmatpush1.bf16.msra.mxu0 0
      %905 = vmatprep.subr.bf16.mxu0 0
      %906 = vmatpush1.bf16.msra.mxu0 0
      %907 = vmatprep.subr.bf16.mxu0 0
      %908 = vmatpush1.bf16.msra.mxu0 0
      %909 = vmatprep.subr.bf16.mxu0 0
      %910 = vmatpush1.bf16.msra.mxu0 0
      %911 = vmatprep.subr.bf16.mxu0 0
      %912 = vmatpush1.bf16.msra.mxu0 0
      %913 = vmatprep.subr.bf16.mxu0 0
      %914 = vmatpush1.bf16.msra.mxu0 0
      %915 = vmatprep.mubr.bf16.mxu0 0
      %916 = vmatmul.mubr.bf16.gmra.mrb[0].mxu0 %v878
      %v917 = vpop.f32.mrb[0].mxu0
      %v918 = vadd.f32 0.0, %v917
      %v919 = vpop.f32.mrb[0].mxu0
      %v920 = vpop.f32.mrb[0].mxu0
      %v921 = vpop.f32.mrb[0].mxu0
      %922 = vdwg.mxu0
      %923 = vrot.lane.b32.xlu0 %v576, 104
      %v924 = vpop.permute.xlu0 %923
      %925 = vrot.lane.b32.xlu0 %v576, 72
      %v926 = vpop.permute.xlu0 %925
      %v928 = vsel %vm580, %v924, 0
      %v931 = vsel %vm580, %v926, 0
      %933 = vmatprep.subr.bf16.mxu0 0
      %934 = vmatpush1.bf16.xpose.msra.mxu0 %v931
      %935 = vmatprep.subr.bf16.mxu0 0
      %936 = vmatpush1.bf16.xpose.msra.mxu0 0
      %937 = vmatprep.subr.bf16.mxu0 0
      %938 = vmatpush1.bf16.xpose.msra.mxu0 0
      %939 = vmatprep.subr.bf16.mxu0 0
      %940 = vmatpush1.bf16.xpose.msra.mxu0 0
      %941 = vmatprep.subr.bf16.mxu0 0
      %942 = vmatpush1.bf16.xpose.msra.mxu0 0
      %943 = vmatprep.subr.bf16.mxu0 0
      %944 = vmatpush1.bf16.xpose.msra.mxu0 0
      %945 = vmatprep.subr.bf16.mxu0 0
      %946 = vmatpush1.bf16.xpose.msra.mxu0 0
      %947 = vmatprep.subr.bf16.mxu0 0
      %948 = vmatpush1.bf16.xpose.msra.mxu0 0
      %949 = vmatprep.subr.bf16.mxu0 0
      %950 = vmatpush1.bf16.xpose.msra.mxu0 0
      %951 = vmatprep.subr.bf16.mxu0 0
      %952 = vmatpush1.bf16.xpose.msra.mxu0 0
      %953 = vmatprep.subr.bf16.mxu0 0
      %954 = vmatpush1.bf16.xpose.msra.mxu0 0
      %955 = vmatprep.subr.bf16.mxu0 0
      %956 = vmatpush1.bf16.xpose.msra.mxu0 0
      %957 = vmatprep.subr.bf16.mxu0 0
      %958 = vmatpush1.bf16.xpose.msra.mxu0 0
      %959 = vmatprep.subr.bf16.mxu0 0
      %960 = vmatpush1.bf16.xpose.msra.mxu0 0
      %961 = vmatprep.subr.bf16.mxu0 0
      %962 = vmatpush1.bf16.xpose.msra.mxu0 0
      %963 = vmatprep.subr.bf16.mxu0 0
      %964 = vmatpush1.bf16.xpose.msra.mxu0 0
      %965 = vmatprep.mubr.bf16.mxu0 0
      %966 = vmatmul.mubr.bf16.gmra.mrb[0].mxu0 %v928
      %v967 = vpop.f32.mrb[0].mxu0
      %v968 = vadd.f32 0.0, %v967
      %v969 = vpop.f32.mrb[0].mxu0
      %v970 = vpop.f32.mrb[0].mxu0
      %v971 = vpop.f32.mrb[0].mxu0
      %972 = vdwg.mxu0
      %v973 = vmul.f32 %v968, 0.35355338
      %v974 = vadd.f32 %v973, %v632
      %v975 = vadd.f32 %v974, %v574
      %v976 = vsel %vm580, %v975, -inf
      %977 = vmax.xlane.f32.xlu0 %v976
      %v978 = vpop.xlane.xlu0 %977
      %v979 = vsub.f32 %v975, %v978
      %v980 = vmul.f32 %v979, 1.442695
      %v981 = vpow.pop %v980
      %v982 = vsel %vm580, %v981, 0.0
      %983 = vadd.xlane.f32.xlu0 %v982
      %v984 = vpop.xlane.xlu0 %983
      %v985 = vrcp.pop %v984
      %v986 = vmul.f32 %v981, %v985
      %v987 = vpack.c.bf16 %v986, %v986
      %988 = vrot.lane.b32.xlu0 %v576, 40
      %v989 = vpop.permute.xlu0 %988
      %v991 = vsel %vm580, %v987, 0
      %v994 = vsel %vm653, %v989, 0
      %996 = vmatprep.subr.bf16.mxu0 0
      %997 = vmatpush1.bf16.msra.mxu0 %v994
      %998 = vmatprep.subr.bf16.mxu0 0
      %999 = vmatpush1.bf16.msra.mxu0 0
      %1000 = vmatprep.subr.bf16.mxu0 0
      %1001 = vmatpush1.bf16.msra.mxu0 0
      %1002 = vmatprep.subr.bf16.mxu0 0
      %1003 = vmatpush1.bf16.msra.mxu0 0
      %1004 = vmatprep.subr.bf16.mxu0 0
      %1005 = vmatpush1.bf16.msra.mxu0 0
      %1006 = vmatprep.subr.bf16.mxu0 0
      %1007 = vmatpush1.bf16.msra.mxu0 0
      %1008 = vmatprep.subr.bf16.mxu0 0
      %1009 = vmatpush1.bf16.msra.mxu0 0
      %1010 = vmatprep.subr.bf16.mxu0 0
      %1011 = vmatpush1.bf16.msra.mxu0 0
      %1012 = vmatprep.subr.bf16.mxu0 0
      %1013 = vmatpush1.bf16.msra.mxu0 0
      %1014 = vmatprep.subr.bf16.mxu0 0
      %1015 = vmatpush1.bf16.msra.mxu0 0
      %1016 = vmatprep.subr.bf16.mxu0 0
      %1017 = vmatpush1.bf16.msra.mxu0 0
      %1018 = vmatprep.subr.bf16.mxu0 0
      %1019 = vmatpush1.bf16.msra.mxu0 0
      %1020 = vmatprep.subr.bf16.mxu0 0
      %1021 = vmatpush1.bf16.msra.mxu0 0
      %1022 = vmatprep.subr.bf16.mxu0 0
      %1023 = vmatpush1.bf16.msra.mxu0 0
      %1024 = vmatprep.subr.bf16.mxu0 0
      %1025 = vmatpush1.bf16.msra.mxu0 0
      %1026 = vmatprep.subr.bf16.mxu0 0
      %1027 = vmatpush1.bf16.msra.mxu0 0
      %1028 = vmatprep.mubr.bf16.mxu0 0
      %1029 = vmatmul.mubr.bf16.gmra.mrb[0].mxu0 %v991
      %v1030 = vpop.f32.mrb[0].mxu0
      %v1031 = vadd.f32 0.0, %v1030
      %v1032 = vpop.f32.mrb[0].mxu0
      %v1033 = vpop.f32.mrb[0].mxu0
      %v1034 = vpop.f32.mrb[0].mxu0
      %1035 = vdwg.mxu0
      %1037 = vrot.lane.b32.xlu0 %v805, 8
      %v1038 = vpop.permute.xlu0 %1037
      %1041 = vrot.lane.b32.xlu0 %v918, 16
      %v1042 = vpop.permute.xlu0 %1041
      %1045 = vrot.lane.b32.xlu0 %v1031, 24
      %v1046 = vpop.permute.xlu0 %1045
      %v1048 = vsel %vm580, %v692, %v1038
      %vm1049 = vcmask 130048
      %v1050 = vsel %vm1049, %v1048, %v1042
      %vm1051 = vcmask 195584
      %v1052 = vsel %vm1051, %v1050, %v1046
      %v1053 = vpack.c.bf16 %v1052, %v1052
      %v1054 = vld [vmem:[%s5] sm:$0xf]
      %v1055 = vld [vmem:[%s5 + $0x4] sm:$0xf]
      %v1056 = vld [vmem:[%s5 + $0x8] sm:$0xf]
      %v1057 = vld [vmem:[%s5 + $0xc] sm:$0xf]
      %v1058 = vld [vmem:[%s6] sm:$0x1]
      %v1060 = vlaneseq
      %v1061 = vshrl.u32 %v1060, 7
      %v1062 = vsub.s32 0, %v1061
      %v1063 = vrot.slane %v1058, %v1062
      %v1069 = vunpack.c.l.b16 %v1054
      %v1070 = vunpack.c.l.b16 %v1055
      %v1071 = vunpack.c.l.b16 %v1056
      %v1072 = vunpack.c.l.b16 %v1057
      %v1073 = vpack.c.b16 %v1070, %v1069
      %v1074 = vpack.c.b16 %v1072, %v1071
      %v1078 = vsel %vm530, %v1053, 0
      %1080 = vmatprep.subr.bf16.mxu0 0
      %1081 = vmatpush1.bf16.msra.mxu0 %v1073
      %1082 = vmatprep.subr.bf16.mxu0 0
      %1083 = vmatpush1.bf16.msra.mxu0 %v1074
      %1084 = vmatprep.subr.bf16.mxu0 0
      %1085 = vmatpush1.bf16.msra.mxu0 0
      %1086 = vmatprep.subr.bf16.mxu0 0
      %1087 = vmatpush1.bf16.msra.mxu0 0
      %1088 = vmatprep.subr.bf16.mxu0 0
      %1089 = vmatpush1.bf16.msra.mxu0 0
      %1090 = vmatprep.subr.bf16.mxu0 0
      %1091 = vmatpush1.bf16.msra.mxu0 0
      %1092 = vmatprep.subr.bf16.mxu0 0
      %1093 = vmatpush1.bf16.msra.mxu0 0
      %1094 = vmatprep.subr.bf16.mxu0 0
      %1095 = vmatpush1.bf16.msra.mxu0 0
      %1096 = vmatprep.subr.bf16.mxu0 0
      %1097 = vmatpush1.bf16.msra.mxu0 0
      %1098 = vmatprep.subr.bf16.mxu0 0
      %1099 = vmatpush1.bf16.msra.mxu0 0
      %1100 = vmatprep.subr.bf16.mxu0 0
      %1101 = vmatpush1.bf16.msra.mxu0 0
      %1102 = vmatprep.subr.bf16.mxu0 0
      %1103 = vmatpush1.bf16.msra.mxu0 0
      %1104 = vmatprep.subr.bf16.mxu0 0
      %1105 = vmatpush1.bf16.msra.mxu0 0
      %1106 = vmatprep.subr.bf16.mxu0 0
      %1107 = vmatpush1.bf16.msra.mxu0 0
      %1108 = vmatprep.subr.bf16.mxu0 0
      %1109 = vmatpush1.bf16.msra.mxu0 0
      %1110 = vmatprep.subr.bf16.mxu0 0
      %1111 = vmatpush1.bf16.msra.mxu0 0
      %1112 = vmatprep.mubr.bf16.mxu0 0
      %1113 = vmatmul.mubr.bf16.gmra.mrb[0].mxu0 %v1078
      %v1114 = vpop.f32.mrb[0].mxu0
      %v1115 = vadd.f32 %v1063, %v1114
      %v1116 = vpop.f32.mrb[0].mxu0
      %v1117 = vpop.f32.mrb[0].mxu0
      %v1118 = vpop.f32.mrb[0].mxu0
      %1119 = vdwg.mxu0
      %v1120 = vadd.f32 %v505, %v1115
      %v1121 = vld [vmem:[%s7] sm:$0x1]
      %v1122 = vld [vmem:[%s8] sm:$0x1]
      %v1123 = vsel %vm530, %v1120, 0.0
      %1124 = vadd.xlane.f32.xlu0 %v1123
      %v1125 = vpop.xlane.xlu0 %1124
      %v1126 = vrcp.pop 32.0
      %v1127 = vmul.f32 %v1125, %v1126
      %v1128 = vsub.f32 %v1120, %v1127
      %v1129 = vmul.f32 %v1128, %v1128
      %v1130 = vsel %vm530, %v1129, 0.0
      %1131 = vadd.xlane.f32.xlu0 %v1130
      %v1132 = vpop.xlane.xlu0 %1131
      %v1133 = vmul.f32 %v1132, %v1126
      %v1134 = vadd.f32 %v1133, 1e-05
      %v1135 = vrsqrt.pop %v1134
      %v1136 = vmul.f32 %v1128, %v1135
      %v1138 = vlaneseq
      %v1139 = vshrl.u32 %v1138, 7
      %v1140 = vsub.s32 0, %v1139
      %v1141 = vrot.slane %v1121, %v1140
      %v1143 = vmul.f32 %v1136, %v1141
      %v1145 = vlaneseq
      %v1146 = vshrl.u32 %v1145, 7
      %v1147 = vsub.s32 0, %v1146
      %v1148 = vrot.slane %v1122, %v1147
      %v1150 = vadd.f32 %v1143, %v1148
      %v1151 = vpack.c.bf16 %v1150, %v1150
      %v1152 = vld [vmem:[%s9] sm:$0xf]
      %v1153 = vld [vmem:[%s9 + $0x4] sm:$0xf]
      %v1154 = vld [vmem:[%s9 + $0x8] sm:$0xf]
      %v1155 = vld [vmem:[%s9 + $0xc] sm:$0xf]
      %v1156 = vld [vmem:[%s10] sm:$0x1]
      %v1158 = vlaneseq
      %v1159 = vshrl.u32 %v1158, 7
      %v1160 = vsub.s32 0, %v1159
      %v1161 = vrot.slane %v1156, %v1160
      %v1167 = vunpack.c.l.b16 %v1152
      %v1168 = vunpack.c.l.b16 %v1153
      %v1169 = vunpack.c.l.b16 %v1154
      %v1170 = vunpack.c.l.b16 %v1155
      %v1171 = vpack.c.b16 %v1168, %v1167
      %v1172 = vpack.c.b16 %v1170, %v1169
      %v1176 = vsel %vm530, %v1151, 0
      %1178 = vmatprep.subr.bf16.mxu0 0
      %1179 = vmatpush1.bf16.msra.mxu0 %v1171
      %1180 = vmatprep.subr.bf16.mxu0 0
      %1181 = vmatpush1.bf16.msra.mxu0 %v1172
      %1182 = vmatprep.subr.bf16.mxu0 0
      %1183 = vmatpush1.bf16.msra.mxu0 0
      %1184 = vmatprep.subr.bf16.mxu0 0
      %1185 = vmatpush1.bf16.msra.mxu0 0
      %1186 = vmatprep.subr.bf16.mxu0 0
      %1187 = vmatpush1.bf16.msra.mxu0 0
      %1188 = vmatprep.subr.bf16.mxu0 0
      %1189 = vmatpush1.bf16.msra.mxu0 0
      %1190 = vmatprep.subr.bf16.mxu0 0
      %1191 = vmatpush1.bf16.msra.mxu0 0
      %1192 = vmatprep.subr.bf16.mxu0 0
      %1193 = vmatpush1.bf16.msra.mxu0 0
      %1194 = vmatprep.subr.bf16.mxu0 0
      %1195 = vmatpush1.bf16.msra.mxu0 0
      %1196 = vmatprep.subr.bf16.mxu0 0
      %1197 = vmatpush1.bf16.msra.mxu0 0
      %1198 = vmatprep.subr.bf16.mxu0 0
      %1199 = vmatpush1.bf16.msra.mxu0 0
      %1200 = vmatprep.subr.bf16.mxu0 0
      %1201 = vmatpush1.bf16.msra.mxu0 0
      %1202 = vmatprep.subr.bf16.mxu0 0
      %1203 = vmatpush1.bf16.msra.mxu0 0
      %1204 = vmatprep.subr.bf16.mxu0 0
      %1205 = vmatpush1.bf16.msra.mxu0 0
      %1206 = vmatprep.subr.bf16.mxu0 0
      %1207 = vmatpush1.bf16.msra.mxu0 0
      %1208 = vmatprep.subr.bf16.mxu0 0
      %1209 = vmatpush1.bf16.msra.mxu0 0
      %1210 = vmatprep.mubr.bf16.mxu0 0
      %1211 = vmatmul.mubr.bf16.gmra.mrb[0].mxu0 %v1176
      %v1212 = vpop.f32.mrb[0].mxu0
      %v1213 = vadd.f32 %v1161, %v1212
      %v1214 = vpop.f32.mrb[0].mxu0
      %v1215 = vpop.f32.mrb[0].mxu0
      %v1216 = vpop.f32.mrb[0].mxu0
      %1217 = vdwg.mxu0
      %v1218 = vmax.f32 %v1213, 0.0
      %v1219 = vpack.c.bf16 %v1218, %v1218
      %v1220 = vld [vmem:[%s11] sm:$0xf]
      %v1221 = vld [vmem:[%s11 + $0x4] sm:$0xf]
      %v1222 = vld [vmem:[%s11 + $0x8] sm:$0xf]
      %v1223 = vld [vmem:[%s11 + $0xc] sm:$0xf]
      %v1224 = vld [vmem:[%s11 + $0x10] sm:$0xf]
      %v1225 = vld [vmem:[%s11 + $0x14] sm:$0xf]
      %v1226 = vld [vmem:[%s11 + $0x18] sm:$0xf]
      %v1227 = vld [vmem:[%s11 + $0x1c] sm:$0xf]
      %v1228 = vld [vmem:[%s12] sm:$0x1]
      %v1230 = vlaneseq
      %v1231 = vshrl.u32 %v1230, 7
      %v1232 = vsub.s32 0, %v1231
      %v1233 = vrot.slane %v1228, %v1232
      %v1243 = vunpack.c.l.b16 %v1220
      %v1244 = vunpack.c.l.b16 %v1221
      %v1245 = vunpack.c.l.b16 %v1222
      %v1246 = vunpack.c.l.b16 %v1223
      %v1247 = vunpack.c.l.b16 %v1224
      %v1248 = vunpack.c.l.b16 %v1225
      %v1249 = vunpack.c.l.b16 %v1226
      %v1250 = vunpack.c.l.b16 %v1227
      %v1251 = vpack.c.b16 %v1244, %v1243
      %v1252 = vpack.c.b16 %v1246, %v1245
      %v1253 = vpack.c.b16 %v1248, %v1247
      %v1254 = vpack.c.b16 %v1250, %v1249
      %vm1259 = vcmask 523264
      %v1261 = vsel %vm1259, %v1219, 0
      %1263 = vmatprep.subr.bf16.mxu0 0
      %1264 = vmatpush1.bf16.msra.mxu0 %v1251
      %1265 = vmatprep.subr.bf16.mxu0 0
      %1266 = vmatpush1.bf16.msra.mxu0 %v1252
      %1267 = vmatprep.subr.bf16.mxu0 0
      %1268 = vmatpush1.bf16.msra.mxu0 %v1253
      %1269 = vmatprep.subr.bf16.mxu0 0
      %1270 = vmatpush1.bf16.msra.mxu0 %v1254
      %1271 = vmatprep.subr.bf16.mxu0 0
      %1272 = vmatpush1.bf16.msra.mxu0 0
      %1273 = vmatprep.subr.bf16.mxu0 0
      %1274 = vmatpush1.bf16.msra.mxu0 0
      %1275 = vmatprep.subr.bf16.mxu0 0
      %1276 = vmatpush1.bf16.msra.mxu0 0
      %1277 = vmatprep.subr.bf16.mxu0 0
      %1278 = vmatpush1.bf16.msra.mxu0 0
      %1279 = vmatprep.subr.bf16.mxu0 0
      %1280 = vmatpush1.bf16.msra.mxu0 0
      %1281 = vmatprep.subr.bf16.mxu0 0
      %1282 = vmatpush1.bf16.msra.mxu0 0
      %1283 = vmatprep.subr.bf16.mxu0 0
      %1284 = vmatpush1.bf16.msra.mxu0 0
      %1285 = vmatprep.subr.bf16.mxu0 0
      %1286 = vmatpush1.bf16.msra.mxu0 0
      %1287 = vmatprep.subr.bf16.mxu0 0
      %1288 = vmatpush1.bf16.msra.mxu0 0
      %1289 = vmatprep.subr.bf16.mxu0 0
      %1290 = vmatpush1.bf16.msra.mxu0 0
      %1291 = vmatprep.subr.bf16.mxu0 0
      %1292 = vmatpush1.bf16.msra.mxu0 0
      %1293 = vmatprep.subr.bf16.mxu0 0
      %1294 = vmatpush1.bf16.msra.mxu0 0
      %1295 = vmatprep.mubr.bf16.mxu0 0
      %1296 = vmatmul.mubr.bf16.gmra.mrb[0].mxu0 %v1261
      %v1297 = vpop.f32.mrb[0].mxu0
      %v1298 = vadd.f32 %v1233, %v1297
      %v1299 = vpop.f32.mrb[0].mxu0
      %v1300 = vpop.f32.mrb[0].mxu0
      %v1301 = vpop.f32.mrb[0].mxu0
      %1302 = vdwg.mxu0
      %v1303 = vadd.f32 %v1150, %v1298
      %v1304 = vld [vmem:[%s13] sm:$0x1]
      %v1305 = vld [vmem:[%s14] sm:$0x1]
      %v1306 = vsel %vm530, %v1303, 0.0
      %1307 = vadd.xlane.f32.xlu0 %v1306
      %v1308 = vpop.xlane.xlu0 %1307
      %v1309 = vmul.f32 %v1308, %v1126
      %v1310 = vsub.f32 %v1303, %v1309
      %v1311 = vmul.f32 %v1310, %v1310
      %v1312 = vsel %vm530, %v1311, 0.0
      %1313 = vadd.xlane.f32.xlu0 %v1312
      %v1314 = vpop.xlane.xlu0 %1313
      %v1315 = vmul.f32 %v1314, %v1126
      %v1316 = vadd.f32 %v1315, 1e-05
      %v1317 = vrsqrt.pop %v1316
      %v1318 = vmul.f32 %v1310, %v1317
      %v1320 = vlaneseq
      %v1321 = vshrl.u32 %v1320, 7
      %v1322 = vsub.s32 0, %v1321
      %v1323 = vrot.slane %v1304, %v1322
      %v1325 = vmul.f32 %v1318, %v1323
      %v1327 = vlaneseq
      %v1328 = vshrl.u32 %v1327, 7
      %v1329 = vsub.s32 0, %v1328
      %v1330 = vrot.slane %v1305, %v1329
      %v1332 = vadd.f32 %v1325, %v1330
      %1333 = vst.msk [vmem:[%s503] sm:$0xff] %vm530, %v1332
      %p1334 = scmp.lt.s32.totalorder %s26, 1
      %s1335 = scalar_select %p1334, %s26, 1
      %s1336 = smul.addr %s1335, 8
      %s1337 = scalar_lea.vmem %s15, %s1336
      // Predicated region
      $region81: #{seq2seq_transformer_forward.9} parent=79 // pred_check
        %p1338 = pneg %p369
      $region82: #{seq2seq_transformer_forward.9} parent=79 // pred_check_branch
        %1340 = sbr.rel (%p1338) target = $region84
      $region83: #{seq2seq_transformer_forward.9} parent=79 // pred_region
        _
      $region84: #{seq2seq_transformer_forward.9} parent=79 // pred_fallthru
        _
    $region80: #{seq2seq_transformer_forward.9} parent=5 // pred_fallthru
      _
    %p1341 = scmp.le.s32.totalorder 2, %s21
    // Predicated region
    $region85: #{seq2seq_transformer_forward.9} parent=5 // pred_check
      %p1342 = pneg %p1341
    $region86: #{seq2seq_transformer_forward.9} parent=5 // pred_check_branch
      %1344 = sbr.rel (%p1342) target = $region88
    $region87: #{seq2seq_transformer_forward.9} parent=5 // pred_region
      %s1345 = ssub.s32 %s21, 2
      // Predicated region
      $region89: #{seq2seq_transformer_forward.9} parent=87 // pred_check
        %p1346 = pneg %p375
      $region90: #{seq2seq_transformer_forward.9} parent=87 // pred_check_branch
        %1348 = sbr.rel (%p1346) target = $region92
      $region91: #{seq2seq_transformer_forward.9} parent=87 // pred_region
        %p1349 = scmp.lt.s32.totalorder %s27, 1
        %s1350 = scalar_select %p1349, %s27, 1
        %s1351 = smul.addr %s1350, 8
        %s1352 = scalar_lea.vmem %s15, %s1351
      $region92: #{seq2seq_transformer_forward.9} parent=87 // pred_fallthru
        _
    $region88: #{seq2seq_transformer_forward.9} parent=5 // pred_fallthru
      _
  $region6: #{seq2seq_transformer_forward.9} parent=0 // loop_footer
    %s25 = sadd.s32 1, %s21
  $region7: #{seq2seq_transformer_forward.9} parent=0 // loop_footer_branch
    %20 = sbr.rel target = $region3
  $region8: #{seq2seq_transformer_forward.9} parent=0 // loop_exit
    _

// kernel: seq2seq_transformer_forward.13
$region0: #{seq2seq_transformer_forward.13}
  #allocation0 [shape = 'u32[]', space=smem, size = 0x4, offset = 0x4, fixed_abs, tag = 'smem constant byte address 0x4 - core index']
  #allocation1 [shape = 'u32[144,128]{1,0:T(1,128)}', space=vmem, size = 0x12000, scoped, tag = 'internal scratch']
  %s0 = inlined_call_operand.vmem [shape: f32[16,32], index: 0, kind: input, shape index: {}]
  %s1 = inlined_call_operand.vmem [shape: bf16[32,128], index: 1, kind: input, shape index: {}]
  %s2 = inlined_call_operand.vmem [shape: f32[1,128], index: 2, kind: input, shape index: {}]
  %s3 = inlined_call_operand.hbm [shape: f32[16,128], index: 3, kind: output, shape index: {}]
  %s4 = sld [smem:[#allocation0]]
  $region22: #{seq2seq_transformer_forward.13} parent=0
    _
  %s6 = ssub.s32 1, %s4
  %s7 = scalar_select 0, %s6, %s4
  $region1: #{seq2seq_transformer_forward.13} parent=0
    #allocation2 [shape = 'u8[8192]{0}', space=vmem, size = 0x2000, scoped, tag = 'output window, operand 0, single buffered']
    #allocation3 [shape = 's32[1]{0}', space=sflag, size = 0x4, scoped, tag = 'scoped memory for seq2seq_transformer_forward.13']
    %8 = vsyncpa [#allocation3], 0
    // Predicated region
    $region2: #{seq2seq_transformer_forward.13} parent=1 // pred_check
      _
    $region3: #{seq2seq_transformer_forward.13} parent=1 // pred_check_branch
      %10 = sbr.rel (0) target = $region5
    $region4: #{seq2seq_transformer_forward.13} parent=1 // pred_region
      _
    $region5: #{seq2seq_transformer_forward.13} parent=1 // pred_fallthru
      _
    // Predicated region
    $region6: #{seq2seq_transformer_forward.13} parent=1 // pred_check
      _
    $region7: #{seq2seq_transformer_forward.13} parent=1 // pred_check_branch
      %12 = sbr.rel (0) target = $region9
    $region8: #{seq2seq_transformer_forward.13} parent=1 // pred_region
      _
    $region9: #{seq2seq_transformer_forward.13} parent=1 // pred_fallthru
      _
    // Predicated region
    $region10: #{seq2seq_transformer_forward.13} parent=1 // pred_check
      _
    $region11: #{seq2seq_transformer_forward.13} parent=1 // pred_check_branch
      %14 = sbr.rel (0) target = $region13
    $region12: #{seq2seq_transformer_forward.13} parent=1 // pred_region
      _
    $region13: #{seq2seq_transformer_forward.13} parent=1 // pred_fallthru
      _
    %v16 = vld [vmem:[%s0] sm:$0xff]
    %v17 = vld [vmem:[%s0 + $0x8] sm:$0xff]
    %v18 = vpack.c.bf16 %v17, %v16
    %v19 = vld [vmem:[%s1] sm:$0xf]
    %v20 = vld [vmem:[%s1 + $0x4] sm:$0xf]
    %v21 = vld [vmem:[%s1 + $0x8] sm:$0xf]
    %v22 = vld [vmem:[%s1 + $0xc] sm:$0xf]
    %v23 = vld [vmem:[%s2] sm:$0x1]
    %v25 = vlaneseq
    %v26 = vshrl.u32 %v25, 7
    %v27 = vsub.s32 0, %v26
    %v28 = vrot.slane %v23, %v27
    %v34 = vunpack.c.l.b16 %v19
    %v35 = vunpack.c.l.b16 %v20
    %v36 = vunpack.c.l.b16 %v21
    %v37 = vunpack.c.l.b16 %v22
    %v38 = vpack.c.b16 %v35, %v34
    %v39 = vpack.c.b16 %v37, %v36
    %vm42 = vcmask 261120
    %v44 = vsel %vm42, %v18, 0
    %46 = vmatprep.subr.bf16.mxu0 0
    %47 = vmatpush1.bf16.msra.mxu0 %v38
    %48 = vmatprep.subr.bf16.mxu0 0
    %49 = vmatpush1.bf16.msra.mxu0 %v39
    %50 = vmatprep.subr.bf16.mxu0 0
    %51 = vmatpush1.bf16.msra.mxu0 0
    %52 = vmatprep.subr.bf16.mxu0 0
    %53 = vmatpush1.bf16.msra.mxu0 0
    %54 = vmatprep.subr.bf16.mxu0 0
    %55 = vmatpush1.bf16.msra.mxu0 0
    %56 = vmatprep.subr.bf16.mxu0 0
    %57 = vmatpush1.bf16.msra.mxu0 0
    %58 = vmatprep.subr.bf16.mxu0 0
    %59 = vmatpush1.bf16.msra.mxu0 0
    %60 = vmatprep.subr.bf16.mxu0 0
    %61 = vmatpush1.bf16.msra.mxu0 0
    %62 = vmatprep.subr.bf16.mxu0 0
    %63 = vmatpush1.bf16.msra.mxu0 0
    %64 = vmatprep.subr.bf16.mxu0 0
    %65 = vmatpush1.bf16.msra.mxu0 0
    %66 = vmatprep.subr.bf16.mxu0 0
    %67 = vmatpush1.bf16.msra.mxu0 0
    %68 = vmatprep.subr.bf16.mxu0 0
    %69 = vmatpush1.bf16.msra.mxu0 0
    %70 = vmatprep.subr.bf16.mxu0 0
    %71 = vmatpush1.bf16.msra.mxu0 0
    %72 = vmatprep.subr.bf16.mxu0 0
    %73 = vmatpush1.bf16.msra.mxu0 0
    %74 = vmatprep.subr.bf16.mxu0 0
    %75 = vmatpush1.bf16.msra.mxu0 0
    %76 = vmatprep.subr.bf16.mxu0 0
    %77 = vmatpush1.bf16.msra.mxu0 0
    %78 = vmatprep.mubr.bf16.mxu0 0
    %79 = vmatmul.mubr.bf16.gmra.mrb[0].mxu0 %v44
    %v80 = vpop.f32.mrb[0].mxu0
    %v81 = vadd.f32 %v28, %v80
    %v82 = vpop.f32.mrb[0].mxu0
    %v83 = vpop.f32.mrb[0].mxu0
    %v84 = vadd.f32 %v28, %v83
    %v85 = vpop.f32.mrb[0].mxu0
    %86 = vdwg.mxu0
    %87 = vst [vmem:[#allocation2] sm:$0xff] %v81
    %88 = vst [vmem:[#allocation2 + $0x8] sm:$0xff] %v84
    // Predicated region
    $region14: #{seq2seq_transformer_forward.13} parent=1 // pred_check
      _
    $region15: #{seq2seq_transformer_forward.13} parent=1 // pred_check_branch
      %90 = sbr.rel (0) target = $region17
    $region16: #{seq2seq_transformer_forward.13} parent=1 // pred_region
      %s92 = ssub.s32 256, 256
      %93 = vsyncadd [#allocation3], %s92
      %s94 = sshll.u32 [#allocation2], 4
      %s95 = int_to_ptr.vmem [resolvable:$true] %s94
      %100 = dma.vmem_to_hbm [thread:$0]  %s95, 256, %s3, [#allocation3], 128, 128, 8
    $region17: #{seq2seq_transformer_forward.13} parent=1 // pred_fallthru
      _
    // Predicated region
    $region18: #{seq2seq_transformer_forward.13} parent=1 // pred_check
      _
    $region19: #{seq2seq_transformer_forward.13} parent=1 // pred_check_branch
      %102 = sbr.rel (0) target = $region21
    $region20: #{seq2seq_transformer_forward.13} parent=1 // pred_region
      %103 = dma.done [#allocation3], 256
    $region21: #{seq2seq_transformer_forward.13} parent=1 // pred_fallthru
      _
    %104 = vsyncpa [#allocation3], 1

// kernel: seq2seq_transformer_forward.11
$region0: #{seq2seq_transformer_forward.11}
  #allocation0 [shape = 'u32[]', space=smem, size = 0x4, offset = 0x4, fixed_abs, tag = 'smem constant byte address 0x4 - core index']
  #allocation1 [shape = 'u32[144,128]{1,0:T(1,128)}', space=vmem, size = 0x12000, scoped, tag = 'internal scratch']
  %s0 = inlined_call_operand.vmem [shape: f32[2,8,32], index: 0, kind: input, shape index: {}]
  %s1 = inlined_call_operand.vmem [shape: bf16[2,8,32], index: 1, kind: input, shape index: {}]
  %s2 = inlined_call_operand.vmem [shape: f32[8,8], index: 2, kind: input, shape index: {}]
  %s3 = inlined_call_operand.vmem [shape: f32[2,1,8], index: 3, kind: input, shape index: {}]
  %s4 = inlined_call_operand.vmem [shape: f32[2,1,8], index: 4, kind: input, shape index: {}]
  %s5 = inlined_call_operand.vmem [shape: bf16[32,96], index: 5, kind: input, shape index: {}]
  %s6 = inlined_call_operand.vmem [shape: f32[1,96], index: 6, kind: input, shape index: {}]
  %s7 = inlined_call_operand.vmem [shape: bf16[32,32], index: 7, kind: input, shape index: {}]
  %s8 = inlined_call_operand.vmem [shape: f32[1,32], index: 8, kind: input, shape index: {}]
  %s9 = inlined_call_operand.vmem [shape: f32[1,32], index: 9, kind: input, shape index: {}]
  %s10 = inlined_call_operand.vmem [shape: f32[1,32], index: 10, kind: input, shape index: {}]
  %s11 = inlined_call_operand.vmem [shape: bf16[32,32], index: 11, kind: input, shape index: {}]
  %s12 = inlined_call_operand.vmem [shape: f32[1,32], index: 12, kind: input, shape index: {}]
  %s13 = inlined_call_operand.vmem [shape: bf16[32,64], index: 13, kind: input, shape index: {}]
  %s14 = inlined_call_operand.vmem [shape: f32[1,64], index: 14, kind: input, shape index: {}]
  %s15 = inlined_call_operand.vmem [shape: bf16[32,32], index: 15, kind: input, shape index: {}]
  %s16 = inlined_call_operand.vmem [shape: f32[1,32], index: 16, kind: input, shape index: {}]
  %s17 = inlined_call_operand.vmem [shape: f32[1,32], index: 17, kind: input, shape index: {}]
  %s18 = inlined_call_operand.vmem [shape: f32[1,32], index: 18, kind: input, shape index: {}]
  %s19 = inlined_call_operand.vmem [shape: bf16[32,64], index: 19, kind: input, shape index: {}]
  %s20 = inlined_call_operand.vmem [shape: f32[1,64], index: 20, kind: input, shape index: {}]
  %s21 = inlined_call_operand.vmem [shape: bf16[64,32], index: 21, kind: input, shape index: {}]
  %s22 = inlined_call_operand.vmem [shape: f32[1,32], index: 22, kind: input, shape index: {}]
  %s23 = inlined_call_operand.vmem [shape: f32[1,32], index: 23, kind: input, shape index: {}]
  %s24 = inlined_call_operand.vmem [shape: f32[1,32], index: 24, kind: input, shape index: {}]
  %s25 = inlined_call_operand.vmem [shape: f32[2,8,32], index: 25, kind: output, shape index: {}]
  %s26 = sld [smem:[#allocation0]]
  $region133: #{seq2seq_transformer_forward.11} parent=0
    _
  %s28 = ssub.s32 1, %s26
  %s29 = scalar_select 0, %s28, %s26
  loop: start=0, step=1, limit=4
  $region2: #{seq2seq_transformer_forward.11} parent=0 // loop_pre_header
    _
  $region3: #{seq2seq_transformer_forward.11} parent=0 // loop_header
    %s31 = sphi 0, %s35
    %p32 = scmp.ge.s32.totalorder %s31, 4
    %s41 = sphi 0, %s43
    %s44 = sphi 0, %s41
    %s45 = sphi 0, %s44
    %s61 = sphi 0, %s45
    %s67 = sphi 0, %s69
    %s70 = sphi 0, %s67
    %s71 = sphi 0, %s70
    %s87 = sphi 0, %s71
    %s91 = sphi 0, %s91
    %s93 = sphi 0, %s91
    %s94 = sphi 0, %s93
    %s108 = sphi 0, %s94
    %s114 = sphi 0, %s116
    %s117 = sphi 0, %s114
    %s118 = sphi 0, %s117
    %s134 = sphi 0, %s118
    %s140 = sphi 0, %s142
    %s143 = sphi 0, %s140
    %s144 = sphi 0, %s143
    %s160 = sphi 0, %s144
    %s164 = sphi 0, %s164
    %s166 = sphi 0, %s164
    %s167 = sphi 0, %s166
    %s181 = sphi 0, %s167
    %s185 = sphi 0, %s185
    %s187 = sphi 0, %s185
    %s188 = sphi 0, %s187
    %s202 = sphi 0, %s188
    %s206 = sphi 0, %s206
    %s208 = sphi 0, %s206
    %s209 = sphi 0, %s208
    %s223 = sphi 0, %s209
    %s227 = sphi 0, %s227
    %s229 = sphi 0, %s227
    %s230 = sphi 0, %s229
    %s244 = sphi 0, %s230
    %s248 = sphi 0, %s248
    %s250 = sphi 0, %s248
    %s251 = sphi 0, %s250
    %s265 = sphi 0, %s251
    %s269 = sphi 0, %s269
    %s271 = sphi 0, %s269
    %s272 = sphi 0, %s271
    %s286 = sphi 0, %s272
    %s290 = sphi 0, %s290
    %s292 = sphi 0, %s290
    %s293 = sphi 0, %s292
    %s307 = sphi 0, %s293
    %s311 = sphi 0, %s311
    %s313 = sphi 0, %s311
    %s314 = sphi 0, %s313
    %s328 = sphi 0, %s314
    %s332 = sphi 0, %s332
    %s334 = sphi 0, %s332
    %s335 = sphi 0, %s334
    %s349 = sphi 0, %s335
    %s353 = sphi 0, %s353
    %s355 = sphi 0, %s353
    %s356 = sphi 0, %s355
    %s370 = sphi 0, %s356
    %s374 = sphi 0, %s374
    %s376 = sphi 0, %s374
    %s377 = sphi 0, %s376
    %s391 = sphi 0, %s377
    %s395 = sphi 0, %s395
    %s397 = sphi 0, %s395
    %s398 = sphi 0, %s397
    %s412 = sphi 0, %s398
    %s416 = sphi 0, %s416
    %s418 = sphi 0, %s416
    %s419 = sphi 0, %s418
    %s433 = sphi 0, %s419
    %s437 = sphi 0, %s437
    %s439 = sphi 0, %s437
    %s440 = sphi 0, %s439
    %s454 = sphi 0, %s440
    %s458 = sphi 0, %s458
    %s460 = sphi 0, %s458
    %s461 = sphi 0, %s460
    %s475 = sphi 0, %s461
    %s479 = sphi 0, %s479
    %s481 = sphi 0, %s479
    %s482 = sphi 0, %s481
    %s496 = sphi 0, %s482
    %s500 = sphi 0, %s500
    %s502 = sphi 0, %s500
    %s503 = sphi 0, %s502
    %s517 = sphi 0, %s503
    %s521 = sphi 0, %s521
    %s523 = sphi 0, %s521
    %s524 = sphi 0, %s523
    %s538 = sphi 0, %s524
    %s542 = sphi 0, %s542
    %s544 = sphi 0, %s542
    %s545 = sphi 0, %s544
    %s559 = sphi 0, %s545
    %s563 = sphi 0, %s563
    %s565 = sphi 0, %s563
    %s566 = sphi 0, %s565
    %s580 = sphi 0, %s566
    %s586 = sphi 0, %s588
    %s589 = sphi 0, %s586
    %s590 = sphi 0, %s589
    %s606 = sphi 0, %s590
  $region4: #{seq2seq_transformer_forward.11} parent=0 // loop_header_branch
    %34 = sbr.rel (%p32) target = $region8
  $region5: #{seq2seq_transformer_forward.11} parent=0 // loop_body
    %s36 = ssub.s32 %s31, 1
    %s37 = ssub.s32 %s31, 2
    %s38 = sadd.s32 %s31, 1
    %s39 = ssub.s32 %s31, %s38
    %p40 = scmp.eq.s32.totalorder %s39, 0
    %s42 = sadd.s32 %s41, 1
    %s43 = scalar_select %p40, %s41, %s42
    %p46 = pneg %p40
    %p47 = scmp.eq.s32.totalorder %s31, 1
    %p48 = por %p46, %p47
    %p49 = scmp.ne.s32.totalorder %s41, %s44
    %p50 = scmp.eq.s32.totalorder %s31, 0
    %p51 = por %p49, %p50
    %p52 = scmp.ne.s32.totalorder %s41, %s44
    %p53 = scmp.eq.s32.totalorder %s36, 1
    %p54 = por %p52, %p53
    %p55 = scmp.ne.s32.totalorder %s44, %s45
    %p56 = scmp.eq.s32.totalorder %s36, 0
    %p57 = por %p55, %p56
    %p58 = scmp.ne.s32.totalorder %s44, %s45
    %p59 = scmp.eq.s32.totalorder %s37, 1
    %p60 = por %p58, %p59
    %p62 = scmp.ne.s32.totalorder %s45, %s61
    %p63 = scmp.eq.s32.totalorder %s37, 0
    %p64 = por %p62, %p63
    %s65 = ssub.s32 %s31, %s38
    %p66 = scmp.eq.s32.totalorder %s65, 0
    %s68 = sadd.s32 %s67, 1
    %s69 = scalar_select %p66, %s67, %s68
    %p72 = pneg %p66
    %p73 = scmp.eq.s32.totalorder %s31, 1
    %p74 = por %p72, %p73
    %p75 = scmp.ne.s32.totalorder %s67, %s70
    %p76 = scmp.eq.s32.totalorder %s31, 0
    %p77 = por %p75, %p76
    %p78 = scmp.ne.s32.totalorder %s67, %s70
    %p79 = scmp.eq.s32.totalorder %s36, 1
    %p80 = por %p78, %p79
    %p81 = scmp.ne.s32.totalorder %s70, %s71
    %p82 = scmp.eq.s32.totalorder %s36, 0
    %p83 = por %p81, %p82
    %p84 = scmp.ne.s32.totalorder %s70, %s71
    %p85 = scmp.eq.s32.totalorder %s37, 1
    %p86 = por %p84, %p85
    %p88 = scmp.ne.s32.totalorder %s71, %s87
    %p89 = scmp.eq.s32.totalorder %s37, 0
    %p90 = por %p88, %p89
    %s92 = sadd.s32 %s91, 1
    %p95 = scmp.eq.s32.totalorder %s31, 1
    %p96 = scmp.ne.s32.totalorder %s91, %s93
    %p97 = scmp.eq.s32.totalorder %s31, 0
    %p98 = por %p96, %p97
    %p99 = scmp.ne.s32.totalorder %s91, %s93
    %p100 = scmp.eq.s32.totalorder %s36, 1
    %p101 = por %p99, %p100
    %p102 = scmp.ne.s32.totalorder %s93, %s94
    %p103 = scmp.eq.s32.totalorder %s36, 0
    %p104 = por %p102, %p103
    %p105 = scmp.ne.s32.totalorder %s93, %s94
    %p106 = scmp.eq.s32.totalorder %s37, 1
    %p107 = por %p105, %p106
    %p109 = scmp.ne.s32.totalorder %s94, %s108
    %p110 = scmp.eq.s32.totalorder %s37, 0
    %p111 = por %p109, %p110
    %s112 = ssub.s32 %s31, %s38
    %p113 = scmp.eq.s32.totalorder %s112, 0
    %s115 = sadd.s32 %s114, 1
    %s116 = scalar_select %p113, %s114, %s115
    %p119 = pneg %p113
    %p120 = scmp.eq.s32.totalorder %s31, 1
    %p121 = por %p119, %p120
    %p122 = scmp.ne.s32.totalorder %s114, %s117
    %p123 = scmp.eq.s32.totalorder %s31, 0
    %p124 = por %p122, %p123
    %p125 = scmp.ne.s32.totalorder %s114, %s117
    %p126 = scmp.eq.s32.totalorder %s36, 1
    %p127 = por %p125, %p126
    %p128 = scmp.ne.s32.totalorder %s117, %s118
    %p129 = scmp.eq.s32.totalorder %s36, 0
    %p130 = por %p128, %p129
    %p131 = scmp.ne.s32.totalorder %s117, %s118
    %p132 = scmp.eq.s32.totalorder %s37, 1
    %p133 = por %p131, %p132
    %p135 = scmp.ne.s32.totalorder %s118, %s134
    %p136 = scmp.eq.s32.totalorder %s37, 0
    %p137 = por %p135, %p136
    %s138 = ssub.s32 %s31, %s38
    %p139 = scmp.eq.s32.totalorder %s138, 0
    %s141 = sadd.s32 %s140, 1
    %s142 = scalar_select %p139, %s140, %s141
    %p145 = pneg %p139
    %p146 = scmp.eq.s32.totalorder %s31, 1
    %p147 = por %p145, %p146
    %p148 = scmp.ne.s32.totalorder %s140, %s143
    %p149 = scmp.eq.s32.totalorder %s31, 0
    %p150 = por %p148, %p149
    %p151 = scmp.ne.s32.totalorder %s140, %s143
    %p152 = scmp.eq.s32.totalorder %s36, 1
    %p153 = por %p151, %p152
    %p154 = scmp.ne.s32.totalorder %s143, %s144
    %p155 = scmp.eq.s32.totalorder %s36, 0
    %p156 = por %p154, %p155
    %p157 = scmp.ne.s32.totalorder %s143, %s144
    %p158 = scmp.eq.s32.totalorder %s37, 1
    %p159 = por %p157, %p158
    %p161 = scmp.ne.s32.totalorder %s144, %s160
    %p162 = scmp.eq.s32.totalorder %s37, 0
    %p163 = por %p161, %p162
    %s165 = sadd.s32 %s164, 1
    %p168 = scmp.eq.s32.totalorder %s31, 1
    %p169 = scmp.ne.s32.totalorder %s164, %s166
    %p170 = scmp.eq.s32.totalorder %s31, 0
    %p171 = por %p169, %p170
    %p172 = scmp.ne.s32.totalorder %s164, %s166
    %p173 = scmp.eq.s32.totalorder %s36, 1
    %p174 = por %p172, %p173
    %p175 = scmp.ne.s32.totalorder %s166, %s167
    %p176 = scmp.eq.s32.totalorder %s36, 0
    %p177 = por %p175, %p176
    %p178 = scmp.ne.s32.totalorder %s166, %s167
    %p179 = scmp.eq.s32.totalorder %s37, 1
    %p180 = por %p178, %p179
    %p182 = scmp.ne.s32.totalorder %s167, %s181
    %p183 = scmp.eq.s32.totalorder %s37, 0
    %p184 = por %p182, %p183
    %s186 = sadd.s32 %s185, 1
    %p189 = scmp.eq.s32.totalorder %s31, 1
    %p190 = scmp.ne.s32.totalorder %s185, %s187
    %p191 = scmp.eq.s32.totalorder %s31, 0
    %p192 = por %p190, %p191
    %p193 = scmp.ne.s32.totalorder %s185, %s187
    %p194 = scmp.eq.s32.totalorder %s36, 1
    %p195 = por %p193, %p194
    %p196 = scmp.ne.s32.totalorder %s187, %s188
    %p197 = scmp.eq.s32.totalorder %s36, 0
    %p198 = por %p196, %p197
    %p199 = scmp.ne.s32.totalorder %s187, %s188
    %p200 = scmp.eq.s32.totalorder %s37, 1
    %p201 = por %p199, %p200
    %p203 = scmp.ne.s32.totalorder %s188, %s202
    %p204 = scmp.eq.s32.totalorder %s37, 0
    %p205 = por %p203, %p204
    %s207 = sadd.s32 %s206, 1
    %p210 = scmp.eq.s32.totalorder %s31, 1
    %p211 = scmp.ne.s32.totalorder %s206, %s208
    %p212 = scmp.eq.s32.totalorder %s31, 0
    %p213 = por %p211, %p212
    %p214 = scmp.ne.s32.totalorder %s206, %s208
    %p215 = scmp.eq.s32.totalorder %s36, 1
    %p216 = por %p214, %p215
    %p217 = scmp.ne.s32.totalorder %s208, %s209
    %p218 = scmp.eq.s32.totalorder %s36, 0
    %p219 = por %p217, %p218
    %p220 = scmp.ne.s32.totalorder %s208, %s209
    %p221 = scmp.eq.s32.totalorder %s37, 1
    %p222 = por %p220, %p221
    %p224 = scmp.ne.s32.totalorder %s209, %s223
    %p225 = scmp.eq.s32.totalorder %s37, 0
    %p226 = por %p224, %p225
    %s228 = sadd.s32 %s227, 1
    %p231 = scmp.eq.s32.totalorder %s31, 1
    %p232 = scmp.ne.s32.totalorder %s227, %s229
    %p233 = scmp.eq.s32.totalorder %s31, 0
    %p234 = por %p232, %p233
    %p235 = scmp.ne.s32.totalorder %s227, %s229
    %p236 = scmp.eq.s32.totalorder %s36, 1
    %p237 = por %p235, %p236
    %p238 = scmp.ne.s32.totalorder %s229, %s230
    %p239 = scmp.eq.s32.totalorder %s36, 0
    %p240 = por %p238, %p239
    %p241 = scmp.ne.s32.totalorder %s229, %s230
    %p242 = scmp.eq.s32.totalorder %s37, 1
    %p243 = por %p241, %p242
    %p245 = scmp.ne.s32.totalorder %s230, %s244
    %p246 = scmp.eq.s32.totalorder %s37, 0
    %p247 = por %p245, %p246
    %s249 = sadd.s32 %s248, 1
    %p252 = scmp.eq.s32.totalorder %s31, 1
    %p253 = scmp.ne.s32.totalorder %s248, %s250
    %p254 = scmp.eq.s32.totalorder %s31, 0
    %p255 = por %p253, %p254
    %p256 = scmp.ne.s32.totalorder %s248, %s250
    %p257 = scmp.eq.s32.totalorder %s36, 1
    %p258 = por %p256, %p257
    %p259 = scmp.ne.s32.totalorder %s250, %s251
    %p260 = scmp.eq.s32.totalorder %s36, 0
    %p261 = por %p259, %p260
    %p262 = scmp.ne.s32.totalorder %s250, %s251
    %p263 = scmp.eq.s32.totalorder %s37, 1
    %p264 = por %p262, %p263
    %p266 = scmp.ne.s32.totalorder %s251, %s265
    %p267 = scmp.eq.s32.totalorder %s37, 0
    %p268 = por %p266, %p267
    %s270 = sadd.s32 %s269, 1
    %p273 = scmp.eq.s32.totalorder %s31, 1
    %p274 = scmp.ne.s32.totalorder %s269, %s271
    %p275 = scmp.eq.s32.totalorder %s31, 0
    %p276 = por %p274, %p275
    %p277 = scmp.ne.s32.totalorder %s269, %s271
    %p278 = scmp.eq.s32.totalorder %s36, 1
    %p279 = por %p277, %p278
    %p280 = scmp.ne.s32.totalorder %s271, %s272
    %p281 = scmp.eq.s32.totalorder %s36, 0
    %p282 = por %p280, %p281
    %p283 = scmp.ne.s32.totalorder %s271, %s272
    %p284 = scmp.eq.s32.totalorder %s37, 1
    %p285 = por %p283, %p284
    %p287 = scmp.ne.s32.totalorder %s272, %s286
    %p288 = scmp.eq.s32.totalorder %s37, 0
    %p289 = por %p287, %p288
    %s291 = sadd.s32 %s290, 1
    %p294 = scmp.eq.s32.totalorder %s31, 1
    %p295 = scmp.ne.s32.totalorder %s290, %s292
    %p296 = scmp.eq.s32.totalorder %s31, 0
    %p297 = por %p295, %p296
    %p298 = scmp.ne.s32.totalorder %s290, %s292
    %p299 = scmp.eq.s32.totalorder %s36, 1
    %p300 = por %p298, %p299
    %p301 = scmp.ne.s32.totalorder %s292, %s293
    %p302 = scmp.eq.s32.totalorder %s36, 0
    %p303 = por %p301, %p302
    %p304 = scmp.ne.s32.totalorder %s292, %s293
    %p305 = scmp.eq.s32.totalorder %s37, 1
    %p306 = por %p304, %p305
    %p308 = scmp.ne.s32.totalorder %s293, %s307
    %p309 = scmp.eq.s32.totalorder %s37, 0
    %p310 = por %p308, %p309
    %s312 = sadd.s32 %s311, 1
    %p315 = scmp.eq.s32.totalorder %s31, 1
    %p316 = scmp.ne.s32.totalorder %s311, %s313
    %p317 = scmp.eq.s32.totalorder %s31, 0
    %p318 = por %p316, %p317
    %p319 = scmp.ne.s32.totalorder %s311, %s313
    %p320 = scmp.eq.s32.totalorder %s36, 1
    %p321 = por %p319, %p320
    %p322 = scmp.ne.s32.totalorder %s313, %s314
    %p323 = scmp.eq.s32.totalorder %s36, 0
    %p324 = por %p322, %p323
    %p325 = scmp.ne.s32.totalorder %s313, %s314
    %p326 = scmp.eq.s32.totalorder %s37, 1
    %p327 = por %p325, %p326
    %p329 = scmp.ne.s32.totalorder %s314, %s328
    %p330 = scmp.eq.s32.totalorder %s37, 0
    %p331 = por %p329, %p330
    %s333 = sadd.s32 %s332, 1
    %p336 = scmp.eq.s32.totalorder %s31, 1
    %p337 = scmp.ne.s32.totalorder %s332, %s334
    %p338 = scmp.eq.s32.totalorder %s31, 0
    %p339 = por %p337, %p338
    %p340 = scmp.ne.s32.totalorder %s332, %s334
    %p341 = scmp.eq.s32.totalorder %s36, 1
    %p342 = por %p340, %p341
    %p343 = scmp.ne.s32.totalorder %s334, %s335
    %p344 = scmp.eq.s32.totalorder %s36, 0
    %p345 = por %p343, %p344
    %p346 = scmp.ne.s32.totalorder %s334, %s335
    %p347 = scmp.eq.s32.totalorder %s37, 1
    %p348 = por %p346, %p347
    %p350 = scmp.ne.s32.totalorder %s335, %s349
    %p351 = scmp.eq.s32.totalorder %s37, 0
    %p352 = por %p350, %p351
    %s354 = sadd.s32 %s353, 1
    %p357 = scmp.eq.s32.totalorder %s31, 1
    %p358 = scmp.ne.s32.totalorder %s353, %s355
    %p359 = scmp.eq.s32.totalorder %s31, 0
    %p360 = por %p358, %p359
    %p361 = scmp.ne.s32.totalorder %s353, %s355
    %p362 = scmp.eq.s32.totalorder %s36, 1
    %p363 = por %p361, %p362
    %p364 = scmp.ne.s32.totalorder %s355, %s356
    %p365 = scmp.eq.s32.totalorder %s36, 0
    %p366 = por %p364, %p365
    %p367 = scmp.ne.s32.totalorder %s355, %s356
    %p368 = scmp.eq.s32.totalorder %s37, 1
    %p369 = por %p367, %p368
    %p371 = scmp.ne.s32.totalorder %s356, %s370
    %p372 = scmp.eq.s32.totalorder %s37, 0
    %p373 = por %p371, %p372
    %s375 = sadd.s32 %s374, 1
    %p378 = scmp.eq.s32.totalorder %s31, 1
    %p379 = scmp.ne.s32.totalorder %s374, %s376
    %p380 = scmp.eq.s32.totalorder %s31, 0
    %p381 = por %p379, %p380
    %p382 = scmp.ne.s32.totalorder %s374, %s376
    %p383 = scmp.eq.s32.totalorder %s36, 1
    %p384 = por %p382, %p383
    %p385 = scmp.ne.s32.totalorder %s376, %s377
    %p386 = scmp.eq.s32.totalorder %s36, 0
    %p387 = por %p385, %p386
    %p388 = scmp.ne.s32.totalorder %s376, %s377
    %p389 = scmp.eq.s32.totalorder %s37, 1
    %p390 = por %p388, %p389
    %p392 = scmp.ne.s32.totalorder %s377, %s391
    %p393 = scmp.eq.s32.totalorder %s37, 0
    %p394 = por %p392, %p393
    %s396 = sadd.s32 %s395, 1
    %p399 = scmp.eq.s32.totalorder %s31, 1
    %p400 = scmp.ne.s32.totalorder %s395, %s397
    %p401 = scmp.eq.s32.totalorder %s31, 0
    %p402 = por %p400, %p401
    %p403 = scmp.ne.s32.totalorder %s395, %s397
    %p404 = scmp.eq.s32.totalorder %s36, 1
    %p405 = por %p403, %p404
    %p406 = scmp.ne.s32.totalorder %s397, %s398
    %p407 = scmp.eq.s32.totalorder %s36, 0
    %p408 = por %p406, %p407
    %p409 = scmp.ne.s32.totalorder %s397, %s398
    %p410 = scmp.eq.s32.totalorder %s37, 1
    %p411 = por %p409, %p410
    %p413 = scmp.ne.s32.totalorder %s398, %s412
    %p414 = scmp.eq.s32.totalorder %s37, 0
    %p415 = por %p413, %p414
    %s417 = sadd.s32 %s416, 1
    %p420 = scmp.eq.s32.totalorder %s31, 1
    %p421 = scmp.ne.s32.totalorder %s416, %s418
    %p422 = scmp.eq.s32.totalorder %s31, 0
    %p423 = por %p421, %p422
    %p424 = scmp.ne.s32.totalorder %s416, %s418
    %p425 = scmp.eq.s32.totalorder %s36, 1
    %p426 = por %p424, %p425
    %p427 = scmp.ne.s32.totalorder %s418, %s419
    %p428 = scmp.eq.s32.totalorder %s36, 0
    %p429 = por %p427, %p428
    %p430 = scmp.ne.s32.totalorder %s418, %s419
    %p431 = scmp.eq.s32.totalorder %s37, 1
    %p432 = por %p430, %p431
    %p434 = scmp.ne.s32.totalorder %s419, %s433
    %p435 = scmp.eq.s32.totalorder %s37, 0
    %p436 = por %p434, %p435
    %s438 = sadd.s32 %s437, 1
    %p441 = scmp.eq.s32.totalorder %s31, 1
    %p442 = scmp.ne.s32.totalorder %s437, %s439
    %p443 = scmp.eq.s32.totalorder %s31, 0
    %p444 = por %p442, %p443
    %p445 = scmp.ne.s32.totalorder %s437, %s439
    %p446 = scmp.eq.s32.totalorder %s36, 1
    %p447 = por %p445, %p446
    %p448 = scmp.ne.s32.totalorder %s439, %s440
    %p449 = scmp.eq.s32.totalorder %s36, 0
    %p450 = por %p448, %p449
    %p451 = scmp.ne.s32.totalorder %s439, %s440
    %p452 = scmp.eq.s32.totalorder %s37, 1
    %p453 = por %p451, %p452
    %p455 = scmp.ne.s32.totalorder %s440, %s454
    %p456 = scmp.eq.s32.totalorder %s37, 0
    %p457 = por %p455, %p456
    %s459 = sadd.s32 %s458, 1
    %p462 = scmp.eq.s32.totalorder %s31, 1
    %p463 = scmp.ne.s32.totalorder %s458, %s460
    %p464 = scmp.eq.s32.totalorder %s31, 0
    %p465 = por %p463, %p464
    %p466 = scmp.ne.s32.totalorder %s458, %s460
    %p467 = scmp.eq.s32.totalorder %s36, 1
    %p468 = por %p466, %p467
    %p469 = scmp.ne.s32.totalorder %s460, %s461
    %p470 = scmp.eq.s32.totalorder %s36, 0
    %p471 = por %p469, %p470
    %p472 = scmp.ne.s32.totalorder %s460, %s461
    %p473 = scmp.eq.s32.totalorder %s37, 1
    %p474 = por %p472, %p473
    %p476 = scmp.ne.s32.totalorder %s461, %s475
    %p477 = scmp.eq.s32.totalorder %s37, 0
    %p478 = por %p476, %p477
    %s480 = sadd.s32 %s479, 1
    %p483 = scmp.eq.s32.totalorder %s31, 1
    %p484 = scmp.ne.s32.totalorder %s479, %s481
    %p485 = scmp.eq.s32.totalorder %s31, 0
    %p486 = por %p484, %p485
    %p487 = scmp.ne.s32.totalorder %s479, %s481
    %p488 = scmp.eq.s32.totalorder %s36, 1
    %p489 = por %p487, %p488
    %p490 = scmp.ne.s32.totalorder %s481, %s482
    %p491 = scmp.eq.s32.totalorder %s36, 0
    %p492 = por %p490, %p491
    %p493 = scmp.ne.s32.totalorder %s481, %s482
    %p494 = scmp.eq.s32.totalorder %s37, 1
    %p495 = por %p493, %p494
    %p497 = scmp.ne.s32.totalorder %s482, %s496
    %p498 = scmp.eq.s32.totalorder %s37, 0
    %p499 = por %p497, %p498
    %s501 = sadd.s32 %s500, 1
    %p504 = scmp.eq.s32.totalorder %s31, 1
    %p505 = scmp.ne.s32.totalorder %s500, %s502
    %p506 = scmp.eq.s32.totalorder %s31, 0
    %p507 = por %p505, %p506
    %p508 = scmp.ne.s32.totalorder %s500, %s502
    %p509 = scmp.eq.s32.totalorder %s36, 1
    %p510 = por %p508, %p509
    %p511 = scmp.ne.s32.totalorder %s502, %s503
    %p512 = scmp.eq.s32.totalorder %s36, 0
    %p513 = por %p511, %p512
    %p514 = scmp.ne.s32.totalorder %s502, %s503
    %p515 = scmp.eq.s32.totalorder %s37, 1
    %p516 = por %p514, %p515
    %p518 = scmp.ne.s32.totalorder %s503, %s517
    %p519 = scmp.eq.s32.totalorder %s37, 0
    %p520 = por %p518, %p519
    %s522 = sadd.s32 %s521, 1
    %p525 = scmp.eq.s32.totalorder %s31, 1
    %p526 = scmp.ne.s32.totalorder %s521, %s523
    %p527 = scmp.eq.s32.totalorder %s31, 0
    %p528 = por %p526, %p527
    %p529 = scmp.ne.s32.totalorder %s521, %s523
    %p530 = scmp.eq.s32.totalorder %s36, 1
    %p531 = por %p529, %p530
    %p532 = scmp.ne.s32.totalorder %s523, %s524
    %p533 = scmp.eq.s32.totalorder %s36, 0
    %p534 = por %p532, %p533
    %p535 = scmp.ne.s32.totalorder %s523, %s524
    %p536 = scmp.eq.s32.totalorder %s37, 1
    %p537 = por %p535, %p536
    %p539 = scmp.ne.s32.totalorder %s524, %s538
    %p540 = scmp.eq.s32.totalorder %s37, 0
    %p541 = por %p539, %p540
    %s543 = sadd.s32 %s542, 1
    %p546 = scmp.eq.s32.totalorder %s31, 1
    %p547 = scmp.ne.s32.totalorder %s542, %s544
    %p548 = scmp.eq.s32.totalorder %s31, 0
    %p549 = por %p547, %p548
    %p550 = scmp.ne.s32.totalorder %s542, %s544
    %p551 = scmp.eq.s32.totalorder %s36, 1
    %p552 = por %p550, %p551
    %p553 = scmp.ne.s32.totalorder %s544, %s545
    %p554 = scmp.eq.s32.totalorder %s36, 0
    %p555 = por %p553, %p554
    %p556 = scmp.ne.s32.totalorder %s544, %s545
    %p557 = scmp.eq.s32.totalorder %s37, 1
    %p558 = por %p556, %p557
    %p560 = scmp.ne.s32.totalorder %s545, %s559
    %p561 = scmp.eq.s32.totalorder %s37, 0
    %p562 = por %p560, %p561
    %s564 = sadd.s32 %s563, 1
    %p567 = scmp.eq.s32.totalorder %s31, 1
    %p568 = scmp.ne.s32.totalorder %s563, %s565
    %p569 = scmp.eq.s32.totalorder %s31, 0
    %p570 = por %p568, %p569
    %p571 = scmp.ne.s32.totalorder %s563, %s565
    %p572 = scmp.eq.s32.totalorder %s36, 1
    %p573 = por %p571, %p572
    %p574 = scmp.ne.s32.totalorder %s565, %s566
    %p575 = scmp.eq.s32.totalorder %s36, 0
    %p576 = por %p574, %p575
    %p577 = scmp.ne.s32.totalorder %s565, %s566
    %p578 = scmp.eq.s32.totalorder %s37, 1
    %p579 = por %p577, %p578
    %p581 = scmp.ne.s32.totalorder %s566, %s580
    %p582 = scmp.eq.s32.totalorder %s37, 0
    %p583 = por %p581, %p582
    %s584 = ssub.s32 %s31, %s38
    %p585 = scmp.eq.s32.totalorder %s584, 0
    %s587 = sadd.s32 %s586, 1
    %s588 = scalar_select %p585, %s586, %s587
    %p591 = pneg %p585
    %p592 = scmp.eq.s32.totalorder %s31, 1
    %p593 = por %p591, %p592
    %p594 = scmp.ne.s32.totalorder %s586, %s589
    %p595 = scmp.eq.s32.totalorder %s31, 0
    %p596 = por %p594, %p595
    %p597 = scmp.ne.s32.totalorder %s586, %s589
    %p598 = scmp.eq.s32.totalorder %s36, 1
    %p599 = por %p597, %p598
    %p600 = scmp.ne.s32.totalorder %s589, %s590
    %p601 = scmp.eq.s32.totalorder %s36, 0
    %p602 = por %p600, %p601
    %p603 = scmp.ne.s32.totalorder %s589, %s590
    %p604 = scmp.eq.s32.totalorder %s37, 1
    %p605 = por %p603, %p604
    %p607 = scmp.ne.s32.totalorder %s590, %s606
    %p608 = scmp.eq.s32.totalorder %s37, 0
    %p609 = por %p607, %p608
    %p610 = scmp.le.s32.totalorder 1, %s31
    %p611 = scmp.lt.s32.totalorder %s31, 3
    %p612 = pnand %p610, %p611
    %p613 = pneg %p612
    // Predicated region
    $region9: #{seq2seq_transformer_forward.11} parent=5 // pred_check
      _
    $region10: #{seq2seq_transformer_forward.11} parent=5 // pred_check_branch
      %615 = sbr.rel (%p612) target = $region12
    $region11: #{seq2seq_transformer_forward.11} parent=5 // pred_region
      %s616 = ssub.s32 %s31, 1
      // Predicated region
      $region13: #{seq2seq_transformer_forward.11} parent=11 // pred_check
        %p617 = pneg %p104
      $region14: #{seq2seq_transformer_forward.11} parent=11 // pred_check_branch
        %619 = sbr.rel (%p617) target = $region16
      $region15: #{seq2seq_transformer_forward.11} parent=11 // pred_region
        _
      $region16: #{seq2seq_transformer_forward.11} parent=11 // pred_fallthru
        _
      // Predicated region
      $region17: #{seq2seq_transformer_forward.11} parent=11 // pred_check
        %p620 = pneg %p177
      $region18: #{seq2seq_transformer_forward.11} parent=11 // pred_check_branch
        %622 = sbr.rel (%p620) target = $region20
      $region19: #{seq2seq_transformer_forward.11} parent=11 // pred_region
        _
      $region20: #{seq2seq_transformer_forward.11} parent=11 // pred_fallthru
        _
      // Predicated region
      $region21: #{seq2seq_transformer_forward.11} parent=11 // pred_check
        %p623 = pneg %p198
      $region22: #{seq2seq_transformer_forward.11} parent=11 // pred_check_branch
        %625 = sbr.rel (%p623) target = $region24
      $region23: #{seq2seq_transformer_forward.11} parent=11 // pred_region
        _
      $region24: #{seq2seq_transformer_forward.11} parent=11 // pred_fallthru
        _
      // Predicated region
      $region25: #{seq2seq_transformer_forward.11} parent=11 // pred_check
        %p626 = pneg %p219
      $region26: #{seq2seq_transformer_forward.11} parent=11 // pred_check_branch
        %628 = sbr.rel (%p626) target = $region28
      $region27: #{seq2seq_transformer_forward.11} parent=11 // pred_region
        _
      $region28: #{seq2seq_transformer_forward.11} parent=11 // pred_fallthru
        _
      // Predicated region
      $region29: #{seq2seq_transformer_forward.11} parent=11 // pred_check
        %p629 = pneg %p240
      $region30: #{seq2seq_transformer_forward.11} parent=11 // pred_check_branch
        %631 = sbr.rel (%p629) target = $region32
      $region31: #{seq2seq_transformer_forward.11} parent=11 // pred_region
        _
      $region32: #{seq2seq_transformer_forward.11} parent=11 // pred_fallthru
        _
      // Predicated region
      $region33: #{seq2seq_transformer_forward.11} parent=11 // pred_check
        %p632 = pneg %p261
      $region34: #{seq2seq_transformer_forward.11} parent=11 // pred_check_branch
        %634 = sbr.rel (%p632) target = $region36
      $region35: #{seq2seq_transformer_forward.11} parent=11 // pred_region
        _
      $region36: #{seq2seq_transformer_forward.11} parent=11 // pred_fallthru
        _
      // Predicated region
      $region37: #{seq2seq_transformer_forward.11} parent=11 // pred_check
        %p635 = pneg %p282
      $region38: #{seq2seq_transformer_forward.11} parent=11 // pred_check_branch
        %637 = sbr.rel (%p635) target = $region40
      $region39: #{seq2seq_transformer_forward.11} parent=11 // pred_region
        _
      $region40: #{seq2seq_transformer_forward.11} parent=11 // pred_fallthru
        _
      // Predicated region
      $region41: #{seq2seq_transformer_forward.11} parent=11 // pred_check
        %p638 = pneg %p303
      $region42: #{seq2seq_transformer_forward.11} parent=11 // pred_check_branch
        %640 = sbr.rel (%p638) target = $region44
      $region43: #{seq2seq_transformer_forward.11} parent=11 // pred_region
        _
      $region44: #{seq2seq_transformer_forward.11} parent=11 // pred_fallthru
        _
      // Predicated region
      $region45: #{seq2seq_transformer_forward.11} parent=11 // pred_check
        %p641 = pneg %p324
      $region46: #{seq2seq_transformer_forward.11} parent=11 // pred_check_branch
        %643 = sbr.rel (%p641) target = $region48
      $region47: #{seq2seq_transformer_forward.11} parent=11 // pred_region
        _
      $region48: #{seq2seq_transformer_forward.11} parent=11 // pred_fallthru
        _
      // Predicated region
      $region49: #{seq2seq_transformer_forward.11} parent=11 // pred_check
        %p644 = pneg %p345
      $region50: #{seq2seq_transformer_forward.11} parent=11 // pred_check_branch
        %646 = sbr.rel (%p644) target = $region52
      $region51: #{seq2seq_transformer_forward.11} parent=11 // pred_region
        _
      $region52: #{seq2seq_transformer_forward.11} parent=11 // pred_fallthru
        _
      // Predicated region
      $region53: #{seq2seq_transformer_forward.11} parent=11 // pred_check
        %p647 = pneg %p366
      $region54: #{seq2seq_transformer_forward.11} parent=11 // pred_check_branch
        %649 = sbr.rel (%p647) target = $region56
      $region55: #{seq2seq_transformer_forward.11} parent=11 // pred_region
        _
      $region56: #{seq2seq_transformer_forward.11} parent=11 // pred_fallthru
        _
      // Predicated region
      $region57: #{seq2seq_transformer_forward.11} parent=11 // pred_check
        %p650 = pneg %p387
      $region58: #{seq2seq_transformer_forward.11} parent=11 // pred_check_branch
        %652 = sbr.rel (%p650) target = $region60
      $region59: #{seq2seq_transformer_forward.11} parent=11 // pred_region
        _
      $region60: #{seq2seq_transformer_forward.11} parent=11 // pred_fallthru
        _
      // Predicated region
      $region61: #{seq2seq_transformer_forward.11} parent=11 // pred_check
        %p653 = pneg %p408
      $region62: #{seq2seq_transformer_forward.11} parent=11 // pred_check_branch
        %655 = sbr.rel (%p653) target = $region64
      $region63: #{seq2seq_transformer_forward.11} parent=11 // pred_region
        _
      $region64: #{seq2seq_transformer_forward.11} parent=11 // pred_fallthru
        _
      // Predicated region
      $region65: #{seq2seq_transformer_forward.11} parent=11 // pred_check
        %p656 = pneg %p429
      $region66: #{seq2seq_transformer_forward.11} parent=11 // pred_check_branch
        %658 = sbr.rel (%p656) target = $region68
      $region67: #{seq2seq_transformer_forward.11} parent=11 // pred_region
        _
      $region68: #{seq2seq_transformer_forward.11} parent=11 // pred_fallthru
        _
      // Predicated region
      $region69: #{seq2seq_transformer_forward.11} parent=11 // pred_check
        %p659 = pneg %p450
      $region70: #{seq2seq_transformer_forward.11} parent=11 // pred_check_branch
        %661 = sbr.rel (%p659) target = $region72
      $region71: #{seq2seq_transformer_forward.11} parent=11 // pred_region
        _
      $region72: #{seq2seq_transformer_forward.11} parent=11 // pred_fallthru
        _
      // Predicated region
      $region73: #{seq2seq_transformer_forward.11} parent=11 // pred_check
        %p662 = pneg %p471
      $region74: #{seq2seq_transformer_forward.11} parent=11 // pred_check_branch
        %664 = sbr.rel (%p662) target = $region76
      $region75: #{seq2seq_transformer_forward.11} parent=11 // pred_region
        _
      $region76: #{seq2seq_transformer_forward.11} parent=11 // pred_fallthru
        _
      // Predicated region
      $region77: #{seq2seq_transformer_forward.11} parent=11 // pred_check
        %p665 = pneg %p492
      $region78: #{seq2seq_transformer_forward.11} parent=11 // pred_check_branch
        %667 = sbr.rel (%p665) target = $region80
      $region79: #{seq2seq_transformer_forward.11} parent=11 // pred_region
        _
      $region80: #{seq2seq_transformer_forward.11} parent=11 // pred_fallthru
        _
      // Predicated region
      $region81: #{seq2seq_transformer_forward.11} parent=11 // pred_check
        %p668 = pneg %p513
      $region82: #{seq2seq_transformer_forward.11} parent=11 // pred_check_branch
        %670 = sbr.rel (%p668) target = $region84
      $region83: #{seq2seq_transformer_forward.11} parent=11 // pred_region
        _
      $region84: #{seq2seq_transformer_forward.11} parent=11 // pred_fallthru
        _
      // Predicated region
      $region85: #{seq2seq_transformer_forward.11} parent=11 // pred_check
        %p671 = pneg %p534
      $region86: #{seq2seq_transformer_forward.11} parent=11 // pred_check_branch
        %673 = sbr.rel (%p671) target = $region88
      $region87: #{seq2seq_transformer_forward.11} parent=11 // pred_region
        _
      $region88: #{seq2seq_transformer_forward.11} parent=11 // pred_fallthru
        _
      // Predicated region
      $region89: #{seq2seq_transformer_forward.11} parent=11 // pred_check
        %p674 = pneg %p555
      $region90: #{seq2seq_transformer_forward.11} parent=11 // pred_check_branch
        %676 = sbr.rel (%p674) target = $region92
      $region91: #{seq2seq_transformer_forward.11} parent=11 // pred_region
        _
      $region92: #{seq2seq_transformer_forward.11} parent=11 // pred_fallthru
        _
      // Predicated region
      $region93: #{seq2seq_transformer_forward.11} parent=11 // pred_check
        %p677 = pneg %p576
      $region94: #{seq2seq_transformer_forward.11} parent=11 // pred_check_branch
        %679 = sbr.rel (%p677) target = $region96
      $region95: #{seq2seq_transformer_forward.11} parent=11 // pred_region
        _
      $region96: #{seq2seq_transformer_forward.11} parent=11 // pred_fallthru
        _
    $region12: #{seq2seq_transformer_forward.11} parent=5 // pred_fallthru
      _
    %p680 = scmp.lt.s32.totalorder %s31, 2
    // Predicated region
    $region97: #{seq2seq_transformer_forward.11} parent=5 // pred_check
      %p681 = pneg %p680
    $region98: #{seq2seq_transformer_forward.11} parent=5 // pred_check_branch
      %683 = sbr.rel (%p681) target = $region100
    $region99: #{seq2seq_transformer_forward.11} parent=5 // pred_region
      // Predicated region
      $region101: #{seq2seq_transformer_forward.11} parent=99 // pred_check
        %p684 = pneg %p51
      $region102: #{seq2seq_transformer_forward.11} parent=99 // pred_check_branch
        %686 = sbr.rel (%p684) target = $region104
      $region103: #{seq2seq_transformer_forward.11} parent=99 // pred_region
        %p687 = scmp.lt.s32.totalorder %s31, 1
        %s688 = scalar_select %p687, %s31, 1
        %s689 = smul.addr %s688, 8
        %s690 = scalar_lea.vmem %s0, %s689
      $region104: #{seq2seq_transformer_forward.11} parent=99 // pred_fallthru
        _
      // Predicated region
      $region105: #{seq2seq_transformer_forward.11} parent=99 // pred_check
        %p691 = pneg %p77
      $region106: #{seq2seq_transformer_forward.11} parent=99 // pred_check_branch
        %693 = sbr.rel (%p691) target = $region108
      $region107: #{seq2seq_transformer_forward.11} parent=99 // pred_region
        %p694 = scmp.lt.s32.totalorder %s31, 1
        %s695 = scalar_select %p694, %s31, 1
        %s696 = smul.addr %s695, 4
        %s697 = scalar_lea.vmem %s1, %s696
      $region108: #{seq2seq_transformer_forward.11} parent=99 // pred_fallthru
        _
      // Predicated region
      $region109: #{seq2seq_transformer_forward.11} parent=99 // pred_check
        %p698 = pneg %p124
      $region110: #{seq2seq_transformer_forward.11} parent=99 // pred_check_branch
        %700 = sbr.rel (%p698) target = $region112
      $region111: #{seq2seq_transformer_forward.11} parent=99 // pred_region
        %p701 = scmp.lt.s32.totalorder %s31, 1
        %s702 = scalar_select %p701, %s31, 1
        %s703 = scalar_lea.vmem %s3, %s702
      $region112: #{seq2seq_transformer_forward.11} parent=99 // pred_fallthru
        _
      // Predicated region
      $region113: #{seq2seq_transformer_forward.11} parent=99 // pred_check
        %p704 = pneg %p150
      $region114: #{seq2seq_transformer_forward.11} parent=99 // pred_check_branch
        %706 = sbr.rel (%p704) target = $region116
      $region115: #{seq2seq_transformer_forward.11} parent=99 // pred_region
        %p707 = scmp.lt.s32.totalorder %s31, 1
        %s708 = scalar_select %p707, %s31, 1
        %s709 = scalar_lea.vmem %s4, %s708
      $region116: #{seq2seq_transformer_forward.11} parent=99 // pred_fallthru
        _
    $region100: #{seq2seq_transformer_forward.11} parent=5 // pred_fallthru
      _
    %p710 = scmp.le.s32.totalorder 1, %s31
    %p711 = scmp.lt.s32.totalorder %s31, 3
    %p712 = pnand %p710, %p711
    %p713 = pneg %p712
    // Predicated region
    $region117: #{seq2seq_transformer_forward.11} parent=5 // pred_check
      _
    $region118: #{seq2seq_transformer_forward.11} parent=5 // pred_check_branch
      %715 = sbr.rel (%p712) target = $region120
    $region119: #{seq2seq_transformer_forward.11} parent=5 // pred_region
      %s716 = ssub.s32 %s31, 1
      %p717 = scmp.lt.s32.totalorder %s36, 1
      %s718 = scalar_select %p717, %s36, 1
      %s719 = smul.addr %s718, 8
      %s720 = scalar_lea.vmem %s0, %s719
      %p721 = pneg %p57
      %p722 = pneg %p54
      %p723 = scmp.lt.s32.totalorder %s36, 1
      %s724 = scalar_select %p723, %s36, 1
      %s725 = smul.addr %s724, 4
      %s726 = scalar_lea.vmem %s1, %s725
      %p727 = pneg %p83
      %p728 = pneg %p80
      %p729 = pneg %p104
      %p730 = pneg %p101
      %p731 = scmp.lt.s32.totalorder %s36, 1
      %s732 = scalar_select %p731, %s36, 1
      %s733 = scalar_lea.vmem %s3, %s732
      %p734 = pneg %p130
      %p735 = pneg %p127
      %p736 = scmp.lt.s32.totalorder %s36, 1
      %s737 = scalar_select %p736, %s36, 1
      %s738 = scalar_lea.vmem %s4, %s737
      %p739 = pneg %p156
      %p740 = pneg %p153
      %p741 = pneg %p177
      %p742 = pneg %p174
      %p743 = pneg %p198
      %p744 = pneg %p195
      %p745 = pneg %p219
      %p746 = pneg %p216
      %p747 = pneg %p240
      %p748 = pneg %p237
      %p749 = pneg %p261
      %p750 = pneg %p258
      %p751 = pneg %p282
      %p752 = pneg %p279
      %p753 = pneg %p303
      %p754 = pneg %p300
      %p755 = pneg %p324
      %p756 = pneg %p321
      %p757 = pneg %p345
      %p758 = pneg %p342
      %p759 = pneg %p366
      %p760 = pneg %p363
      %p761 = pneg %p387
      %p762 = pneg %p384
      %p763 = pneg %p408
      %p764 = pneg %p405
      %p765 = pneg %p429
      %p766 = pneg %p426
      %p767 = pneg %p450
      %p768 = pneg %p447
      %p769 = pneg %p471
      %p770 = pneg %p468
      %p771 = pneg %p492
      %p772 = pneg %p489
      %p773 = pneg %p513
      %p774 = pneg %p510
      %p775 = pneg %p534
      %p776 = pneg %p531
      %p777 = pneg %p555
      %p778 = pneg %p552
      %p779 = pneg %p576
      %p780 = pneg %p573
      %p781 = pneg %p602
      %p782 = pneg %p599
      %p783 = scmp.lt.s32.totalorder %s36, 1
      %s784 = scalar_select %p783, %s36, 1
      %s785 = smul.addr %s784, 8
      %s786 = scalar_lea.vmem %s25, %s785
      %p787 = scmp.lt.s32.totalorder %s36, 1
      %s788 = scalar_select %p787, %s36, 1
      %s789 = smul.addr %s788, 8
      %s790 = scalar_lea.vmem %s0, %s789
      %p791 = scmp.lt.s32.totalorder %s36, 1
      %s792 = scalar_select %p791, %s36, 1
      %s793 = smul.addr %s792, 4
      %s794 = scalar_lea.vmem %s1, %s793
      %p795 = scmp.lt.s32.totalorder %s36, 1
      %s796 = scalar_select %p795, %s36, 1
      %s797 = scalar_lea.vmem %s3, %s796
      %p798 = scmp.lt.s32.totalorder %s36, 1
      %s799 = scalar_select %p798, %s36, 1
      %s800 = scalar_lea.vmem %s4, %s799
      %p801 = scmp.lt.s32.totalorder %s36, 1
      %s802 = scalar_select %p801, %s36, 1
      %s803 = smul.addr %s802, 8
      %s804 = scalar_lea.vmem %s25, %s803
      %v806 = vld [vmem:[%s790] sm:$0xff]
      %v807 = vld [vmem:[%s794] sm:$0xf]
      %v808 = vpack.c.bf16 %v806, %v806
      %v809 = vld [vmem:[%s5] sm:$0xf]
      %v810 = vld [vmem:[%s5 + $0x4] sm:$0xf]
      %v811 = vld [vmem:[%s5 + $0x8] sm:$0xf]
      %v812 = vld [vmem:[%s5 + $0xc] sm:$0xf]
      %v813 = vld [vmem:[%s6] sm:$0x1]
      %v815 = vlaneseq
      %v816 = vshrl.u32 %v815, 7
      %v817 = vsub.s32 0, %v816
      %v818 = vrot.slane %v813, %v817
      %v824 = vunpack.c.l.b16 %v809
      %v825 = vunpack.c.l.b16 %v810
      %v826 = vunpack.c.l.b16 %v811
      %v827 = vunpack.c.l.b16 %v812
      %v828 = vpack.c.b16 %v825, %v824
      %v829 = vpack.c.b16 %v827, %v826
      %vm832 = vcmask 261120
      %v834 = vsel %vm832, %v808, 0
      %836 = vmatprep.subr.bf16.mxu0 0
      %837 = vmatpush1.bf16.msra.mxu0 %v828
      %838 = vmatprep.subr.bf16.mxu0 0
      %839 = vmatpush1.bf16.msra.mxu0 %v829
      %840 = vmatprep.subr.bf16.mxu0 0
      %841 = vmatpush1.bf16.msra.mxu0 0
      %842 = vmatprep.subr.bf16.mxu0 0
      %843 = vmatpush1.bf16.msra.mxu0 0
      %844 = vmatprep.subr.bf16.mxu0 0
      %845 = vmatpush1.bf16.msra.mxu0 0
      %846 = vmatprep.subr.bf16.mxu0 0
      %847 = vmatpush1.bf16.msra.mxu0 0
      %848 = vmatprep.subr.bf16.mxu0 0
      %849 = vmatpush1.bf16.msra.mxu0 0
      %850 = vmatprep.subr.bf16.mxu0 0
      %851 = vmatpush1.bf16.msra.mxu0 0
      %852 = vmatprep.subr.bf16.mxu0 0
      %853 = vmatpush1.bf16.msra.mxu0 0
      %854 = vmatprep.subr.bf16.mxu0 0
      %855 = vmatpush1.bf16.msra.mxu0 0
      %856 = vmatprep.subr.bf16.mxu0 0
      %857 = vmatpush1.bf16.msra.mxu0 0
      %858 = vmatprep.subr.bf16.mxu0 0
      %859 = vmatpush1.bf16.msra.mxu0 0
      %860 = vmatprep.subr.bf16.mxu0 0
      %861 = vmatpush1.bf16.msra.mxu0 0
      %862 = vmatprep.subr.bf16.mxu0 0
      %863 = vmatpush1.bf16.msra.mxu0 0
      %864 = vmatprep.subr.bf16.mxu0 0
      %865 = vmatpush1.bf16.msra.mxu0 0
      %866 = vmatprep.subr.bf16.mxu0 0
      %867 = vmatpush1.bf16.msra.mxu0 0
      %868 = vmatprep.mubr.bf16.mxu0 0
      %869 = vmatmul.mubr.bf16.gmra.mrb[0].mxu0 %v834
      %v870 = vpop.f32.mrb[0].mxu0
      %v871 = vadd.f32 %v818, %v870
      %v872 = vpop.f32.mrb[0].mxu0
      %v873 = vpop.f32.mrb[0].mxu0
      %v874 = vpop.f32.mrb[0].mxu0
      %875 = vdwg.mxu0
      %v876 = vld [vmem:[%s2] sm:$0xff]
      %v877 = vld [vmem:[%s797] sm:$0x1]
      %v878 = vpack.c.bf16 %v871, %v871
      %880 = vrot.lane.b32.xlu0 %v878, 96
      %v881 = vpop.permute.xlu0 %880
      %vm882 = vcmask 64512
      %v884 = vsel %vm882, %v878, 0
      %v887 = vsel %vm882, %v881, 0
      %889 = vmatprep.subr.bf16.mxu0 0
      %890 = vmatpush1.bf16.xpose.msra.mxu0 %v887
      %891 = vmatprep.subr.bf16.mxu0 0
      %892 = vmatpush1.bf16.xpose.msra.mxu0 0
      %893 = vmatprep.subr.bf16.mxu0 0
      %894 = vmatpush1.bf16.xpose.msra.mxu0 0
      %895 = vmatprep.subr.bf16.mxu0 0
      %896 = vmatpush1.bf16.xpose.msra.mxu0 0
      %897 = vmatprep.subr.bf16.mxu0 0
      %898 = vmatpush1.bf16.xpose.msra.mxu0 0
      %899 = vmatprep.subr.bf16.mxu0 0
      %900 = vmatpush1.bf16.xpose.msra.mxu0 0
      %901 = vmatprep.subr.bf16.mxu0 0
      %902 = vmatpush1.bf16.xpose.msra.mxu0 0
      %903 = vmatprep.subr.bf16.mxu0 0
      %904 = vmatpush1.bf16.xpose.msra.mxu0 0
      %905 = vmatprep.subr.bf16.mxu0 0
      %906 = vmatpush1.bf16.xpose.msra.mxu0 0
      %907 = vmatprep.subr.bf16.mxu0 0
      %908 = vmatpush1.bf16.xpose.msra.mxu0 0
      %909 = vmatprep.subr.bf16.mxu0 0
      %910 = vmatpush1.bf16.xpose.msra.mxu0 0
      %911 = vmatprep.subr.bf16.mxu0 0
      %912 = vmatpush1.bf16.xpose.msra.mxu0 0
      %913 = vmatprep.subr.bf16.mxu0 0
      %914 = vmatpush1.bf16.xpose.msra.mxu0 0
      %915 = vmatprep.subr.bf16.mxu0 0
      %916 = vmatpush1.bf16.xpose.msra.mxu0 0
      %917 = vmatprep.subr.bf16.mxu0 0
      %918 = vmatpush1.bf16.xpose.msra.mxu0 0
      %919 = vmatprep.subr.bf16.mxu0 0
      %920 = vmatpush1.bf16.xpose.msra.mxu0 0
      %921 = vmatprep.mubr.bf16.mxu0 0
      %922 = vmatmul.mubr.bf16.gmra.mrb[0].mxu0 %v884
      %v923 = vpop.f32.mrb[0].mxu0
      %v924 = vadd.f32 0.0, %v923
      %v925 = vpop.f32.mrb[0].mxu0
      %v926 = vpop.f32.mrb[0].mxu0
      %v927 = vpop.f32.mrb[0].mxu0
      %928 = vdwg.mxu0
      %v929 = vmul.f32 %v924, 0.35355338
      %v931 = vlaneseq
      %v932 = vshrl.u32 %v931, 7
      %v933 = vsub.s32 0, %v932
      %v934 = vrot.slane %v877, %v933
      %v936 = vadd.f32 %v929, %v934
      %v937 = vadd.f32 %v936, %v876
      %v938 = vsel %vm882, %v937, -inf
      %939 = vmax.xlane.f32.xlu0 %v938
      %v940 = vpop.xlane.xlu0 %939
      %v941 = vsub.f32 %v937, %v940
      %v942 = vmul.f32 %v941, 1.442695
      %v943 = vpow.pop %v942
      %v944 = vsel %vm882, %v943, 0.0
      %945 = vadd.xlane.f32.xlu0 %v944
      %v946 = vpop.xlane.xlu0 %945
      %v947 = vrcp.pop %v946
      %v948 = vmul.f32 %v943, %v947
      %v949 = vpack.c.bf16 %v948, %v948
      %950 = vrot.lane.b32.xlu0 %v878, 64
      %v951 = vpop.permute.xlu0 %950
      %v953 = vsel %vm882, %v949, 0
      %vm955 = vcmask 1043456
      %v957 = vsel %vm955, %v951, 0
      %959 = vmatprep.subr.bf16.mxu0 0
      %960 = vmatpush1.bf16.msra.mxu0 %v957
      %961 = vmatprep.subr.bf16.mxu0 0
      %962 = vmatpush1.bf16.msra.mxu0 0
      %963 = vmatprep.subr.bf16.mxu0 0
      %964 = vmatpush1.bf16.msra.mxu0 0
      %965 = vmatprep.subr.bf16.mxu0 0
      %966 = vmatpush1.bf16.msra.mxu0 0
      %967 = vmatprep.subr.bf16.mxu0 0
      %968 = vmatpush1.bf16.msra.mxu0 0
      %969 = vmatprep.subr.bf16.mxu0 0
      %970 = vmatpush1.bf16.msra.mxu0 0
      %971 = vmatprep.subr.bf16.mxu0 0
      %972 = vmatpush1.bf16.msra.mxu0 0
      %973 = vmatprep.subr.bf16.mxu0 0
      %974 = vmatpush1.bf16.msra.mxu0 0
      %975 = vmatprep.subr.bf16.mxu0 0
      %976 = vmatpush1.bf16.msra.mxu0 0
      %977 = vmatprep.subr.bf16.mxu0 0
      %978 = vmatpush1.bf16.msra.mxu0 0
      %979 = vmatprep.subr.bf16.mxu0 0
      %980 = vmatpush1.bf16.msra.mxu0 0
      %981 = vmatprep.subr.bf16.mxu0 0
      %982 = vmatpush1.bf16.msra.mxu0 0
      %983 = vmatprep.subr.bf16.mxu0 0
      %984 = vmatpush1.bf16.msra.mxu0 0
      %985 = vmatprep.subr.bf16.mxu0 0
      %986 = vmatpush1.bf16.msra.mxu0 0
      %987 = vmatprep.subr.bf16.mxu0 0
      %988 = vmatpush1.bf16.msra.mxu0 0
      %989 = vmatprep.subr.bf16.mxu0 0
      %990 = vmatpush1.bf16.msra.mxu0 0
      %991 = vmatprep.mubr.bf16.mxu0 0
      %992 = vmatmul.mubr.bf16.gmra.mrb[0].mxu0 %v953
      %v993 = vpop.f32.mrb[0].mxu0
      %v994 = vadd.f32 0.0, %v993
      %v995 = vpop.f32.mrb[0].mxu0
      %v996 = vpop.f32.mrb[0].mxu0
      %v997 = vpop.f32.mrb[0].mxu0
      %998 = vdwg.mxu0
      %999 = vrot.lane.b32.xlu0 %v878, 120
      %v1000 = vpop.permute.xlu0 %999
      %1001 = vrot.lane.b32.xlu0 %v878, 88
      %v1002 = vpop.permute.xlu0 %1001
      %v1004 = vsel %vm882, %v1000, 0
      %v1007 = vsel %vm882, %v1002, 0
      %1009 = vmatprep.subr.bf16.mxu0 0
      %1010 = vmatpush1.bf16.xpose.msra.mxu0 %v1007
      %1011 = vmatprep.subr.bf16.mxu0 0
      %1012 = vmatpush1.bf16.xpose.msra.mxu0 0
      %1013 = vmatprep.subr.bf16.mxu0 0
      %1014 = vmatpush1.bf16.xpose.msra.mxu0 0
      %1015 = vmatprep.subr.bf16.mxu0 0
      %1016 = vmatpush1.bf16.xpose.msra.mxu0 0
      %1017 = vmatprep.subr.bf16.mxu0 0
      %1018 = vmatpush1.bf16.xpose.msra.mxu0 0
      %1019 = vmatprep.subr.bf16.mxu0 0
      %1020 = vmatpush1.bf16.xpose.msra.mxu0 0
      %1021 = vmatprep.subr.bf16.mxu0 0
      %1022 = vmatpush1.bf16.xpose.msra.mxu0 0
      %1023 = vmatprep.subr.bf16.mxu0 0
      %1024 = vmatpush1.bf16.xpose.msra.mxu0 0
      %1025 = vmatprep.subr.bf16.mxu0 0
      %1026 = vmatpush1.bf16.xpose.msra.mxu0 0
      %1027 = vmatprep.subr.bf16.mxu0 0
      %1028 = vmatpush1.bf16.xpose.msra.mxu0 0
      %1029 = vmatprep.subr.bf16.mxu0 0
      %1030 = vmatpush1.bf16.xpose.msra.mxu0 0
      %1031 = vmatprep.subr.bf16.mxu0 0
      %1032 = vmatpush1.bf16.xpose.msra.mxu0 0
      %1033 = vmatprep.subr.bf16.mxu0 0
      %1034 = vmatpush1.bf16.xpose.msra.mxu0 0
      %1035 = vmatprep.subr.bf16.mxu0 0
      %1036 = vmatpush1.bf16.xpose.msra.mxu0 0
      %1037 = vmatprep.subr.bf16.mxu0 0
      %1038 = vmatpush1.bf16.xpose.msra.mxu0 0
      %1039 = vmatprep.subr.bf16.mxu0 0
      %1040 = vmatpush1.bf16.xpose.msra.mxu0 0
      %1041 = vmatprep.mubr.bf16.mxu0 0
      %1042 = vmatmul.mubr.bf16.gmra.mrb[0].mxu0 %v1004
      %v1043 = vpop.f32.mrb[0].mxu0
      %v1044 = vadd.f32 0.0, %v1043
      %v1045 = vpop.f32.mrb[0].mxu0
      %v1046 = vpop.f32.mrb[0].mxu0
      %v1047 = vpop.f32.mrb[0].mxu0
      %1048 = vdwg.mxu0
      %v1049 = vmul.f32 %v1044, 0.35355338
      %v1050 = vadd.f32 %v1049, %v934
      %v1051 = vadd.f32 %v1050, %v876
      %v1052 = vsel %vm882, %v1051, -inf
      %1053 = vmax.xlane.f32.xlu0 %v1052
      %v1054 = vpop.xlane.xlu0 %1053
      %v1055 = vsub.f32 %v1051, %v1054
      %v1056 = vmul.f32 %v1055, 1.442695
      %v1057 = vpow.pop %v1056
      %v1058 = vsel %vm882, %v1057, 0.0
      %1059 = vadd.xlane.f32.xlu0 %v1058
      %v1060 = vpop.xlane.xlu0 %1059
      %v1061 = vrcp.pop %v1060
      %v1062 = vmul.f32 %v1057, %v1061
      %v1063 = vpack.c.bf16 %v1062, %v1062
      %1064 = vrot.lane.b32.xlu0 %v878, 56
      %v1065 = vpop.permute.xlu0 %1064
      %v1067 = vsel %vm882, %v1063, 0
      %v1070 = vsel %vm955, %v1065, 0
      %1072 = vmatprep.subr.bf16.mxu0 0
      %1073 = vmatpush1.bf16.msra.mxu0 %v1070
      %1074 = vmatprep.subr.bf16.mxu0 0
      %1075 = vmatpush1.bf16.msra.mxu0 0
      %1076 = vmatprep.subr.bf16.mxu0 0
      %1077 = vmatpush1.bf16.msra.mxu0 0
      %1078 = vmatprep.subr.bf16.mxu0 0
      %1079 = vmatpush1.bf16.msra.mxu0 0
      %1080 = vmatprep.subr.bf16.mxu0 0
      %1081 = vmatpush1.bf16.msra.mxu0 0
      %1082 = vmatprep.subr.bf16.mxu0 0
      %1083 = vmatpush1.bf16.msra.mxu0 0
      %1084 = vmatprep.subr.bf16.mxu0 0
      %1085 = vmatpush1.bf16.msra.mxu0 0
      %1086 = vmatprep.subr.bf16.mxu0 0
      %1087 = vmatpush1.bf16.msra.mxu0 0
      %1088 = vmatprep.subr.bf16.mxu0 0
      %1089 = vmatpush1.bf16.msra.mxu0 0
      %1090 = vmatprep.subr.bf16.mxu0 0
      %1091 = vmatpush1.bf16.msra.mxu0 0
      %1092 = vmatprep.subr.bf16.mxu0 0
      %1093 = vmatpush1.bf16.msra.mxu0 0
      %1094 = vmatprep.subr.bf16.mxu0 0
      %1095 = vmatpush1.bf16.msra.mxu0 0
      %1096 = vmatprep.subr.bf16.mxu0 0
      %1097 = vmatpush1.bf16.msra.mxu0 0
      %1098 = vmatprep.subr.bf16.mxu0 0
      %1099 = vmatpush1.bf16.msra.mxu0 0
      %1100 = vmatprep.subr.bf16.mxu0 0
      %1101 = vmatpush1.bf16.msra.mxu0 0
      %1102 = vmatprep.subr.bf16.mxu0 0
      %1103 = vmatpush1.bf16.msra.mxu0 0
      %1104 = vmatprep.mubr.bf16.mxu0 0
      %1105 = vmatmul.mubr.bf16.gmra.mrb[0].mxu0 %v1067
      %v1106 = vpop.f32.mrb[0].mxu0
      %v1107 = vadd.f32 0.0, %v1106
      %v1108 = vpop.f32.mrb[0].mxu0
      %v1109 = vpop.f32.mrb[0].mxu0
      %v1110 = vpop.f32.mrb[0].mxu0
      %1111 = vdwg.mxu0
      %1112 = vrot.lane.b32.xlu0 %v878, 112
      %v1113 = vpop.permute.xlu0 %1112
      %1114 = vrot.lane.b32.xlu0 %v878, 80
      %v1115 = vpop.permute.xlu0 %1114
      %v1117 = vsel %vm882, %v1113, 0
      %v1120 = vsel %vm882, %v1115, 0
      %1122 = vmatprep.subr.bf16.mxu0 0
      %1123 = vmatpush1.bf16.xpose.msra.mxu0 %v1120
      %1124 = vmatprep.subr.bf16.mxu0 0
      %1125 = vmatpush1.bf16.xpose.msra.mxu0 0
      %1126 = vmatprep.subr.bf16.mxu0 0
      %1127 = vmatpush1.bf16.xpose.msra.mxu0 0
      %1128 = vmatprep.subr.bf16.mxu0 0
      %1129 = vmatpush1.bf16.xpose.msra.mxu0 0
      %1130 = vmatprep.subr.bf16.mxu0 0
      %1131 = vmatpush1.bf16.xpose.msra.mxu0 0
      %1132 = vmatprep.subr.bf16.mxu0 0
      %1133 = vmatpush1.bf16.xpose.msra.mxu0 0
      %1134 = vmatprep.subr.bf16.mxu0 0
      %1135 = vmatpush1.bf16.xpose.msra.mxu0 0
      %1136 = vmatprep.subr.bf16.mxu0 0
      %1137 = vmatpush1.bf16.xpose.msra.mxu0 0
      %1138 = vmatprep.subr.bf16.mxu0 0
      %1139 = vmatpush1.bf16.xpose.msra.mxu0 0
      %1140 = vmatprep.subr.bf16.mxu0 0
      %1141 = vmatpush1.bf16.xpose.msra.mxu0 0
      %1142 = vmatprep.subr.bf16.mxu0 0
      %1143 = vmatpush1.bf16.xpose.msra.mxu0 0
      %1144 = vmatprep.subr.bf16.mxu0 0
      %1145 = vmatpush1.bf16.xpose.msra.mxu0 0
      %1146 = vmatprep.subr.bf16.mxu0 0
      %1147 = vmatpush1.bf16.xpose.msra.mxu0 0
      %1148 = vmatprep.subr.bf16.mxu0 0
      %1149 = vmatpush1.bf16.xpose.msra.mxu0 0
      %1150 = vmatprep.subr.bf16.mxu0 0
      %1151 = vmatpush1.bf16.xpose.msra.mxu0 0
      %1152 = vmatprep.subr.bf16.mxu0 0
      %1153 = vmatpush1.bf16.xpose.msra.mxu0 0
      %1154 = vmatprep.mubr.bf16.mxu0 0
      %1155 = vmatmul.mubr.bf16.gmra.mrb[0].mxu0 %v1117
      %v1156 = vpop.f32.mrb[0].mxu0
      %v1157 = vadd.f32 0.0, %v1156
      %v1158 = vpop.f32.mrb[0].mxu0
      %v1159 = vpop.f32.mrb[0].mxu0
      %v1160 = vpop.f32.mrb[0].mxu0
      %1161 = vdwg.mxu0
      %v1162 = vmul.f32 %v1157, 0.35355338
      %v1163 = vadd.f32 %v1162, %v934
      %v1164 = vadd.f32 %v1163, %v876
      %v1165 = vsel %vm882, %v1164, -inf
      %1166 = vmax.xlane.f32.xlu0 %v1165
      %v1167 = vpop.xlane.xlu0 %1166
      %v1168 = vsub.f32 %v1164, %v1167
      %v1169 = vmul.f32 %v1168, 1.442695
      %v1170 = vpow.pop %v1169
      %v1171 = vsel %vm882, %v1170, 0.0
      %1172 = vadd.xlane.f32.xlu0 %v1171
      %v1173 = vpop.xlane.xlu0 %1172
      %v1174 = vrcp.pop %v1173
      %v1175 = vmul.f32 %v1170, %v1174
      %v1176 = vpack.c.bf16 %v1175, %v1175
      %1177 = vrot.lane.b32.xlu0 %v878, 48
      %v1178 = vpop.permute.xlu0 %1177
      %v1180 = vsel %vm882, %v1176, 0
      %v1183 = vsel %vm955, %v1178, 0
      %1185 = vmatprep.subr.bf16.mxu0 0
      %1186 = vmatpush1.bf16.msra.mxu0 %v1183
      %1187 = vmatprep.subr.bf16.mxu0 0
      %1188 = vmatpush1.bf16.msra.mxu0 0
      %1189 = vmatprep.subr.bf16.mxu0 0
      %1190 = vmatpush1.bf16.msra.mxu0 0
      %1191 = vmatprep.subr.bf16.mxu0 0
      %1192 = vmatpush1.bf16.msra.mxu0 0
      %1193 = vmatprep.subr.bf16.mxu0 0
      %1194 = vmatpush1.bf16.msra.mxu0 0
      %1195 = vmatprep.subr.bf16.mxu0 0
      %1196 = vmatpush1.bf16.msra.mxu0 0
      %1197 = vmatprep.subr.bf16.mxu0 0
      %1198 = vmatpush1.bf16.msra.mxu0 0
      %1199 = vmatprep.subr.bf16.mxu0 0
      %1200 = vmatpush1.bf16.msra.mxu0 0
      %1201 = vmatprep.subr.bf16.mxu0 0
      %1202 = vmatpush1.bf16.msra.mxu0 0
      %1203 = vmatprep.subr.bf16.mxu0 0
      %1204 = vmatpush1.bf16.msra.mxu0 0
      %1205 = vmatprep.subr.bf16.mxu0 0
      %1206 = vmatpush1.bf16.msra.mxu0 0
      %1207 = vmatprep.subr.bf16.mxu0 0
      %1208 = vmatpush1.bf16.msra.mxu0 0
      %1209 = vmatprep.subr.bf16.mxu0 0
      %1210 = vmatpush1.bf16.msra.mxu0 0
      %1211 = vmatprep.subr.bf16.mxu0 0
      %1212 = vmatpush1.bf16.msra.mxu0 0
      %1213 = vmatprep.subr.bf16.mxu0 0
      %1214 = vmatpush1.bf16.msra.mxu0 0
      %1215 = vmatprep.subr.bf16.mxu0 0
      %1216 = vmatpush1.bf16.msra.mxu0 0
      %1217 = vmatprep.mubr.bf16.mxu0 0
      %1218 = vmatmul.mubr.bf16.gmra.mrb[0].mxu0 %v1180
      %v1219 = vpop.f32.mrb[0].mxu0
      %v1220 = vadd.f32 0.0, %v1219
      %v1221 = vpop.f32.mrb[0].mxu0
      %v1222 = vpop.f32.mrb[0].mxu0
      %v1223 = vpop.f32.mrb[0].mxu0
      %1224 = vdwg.mxu0
      %1225 = vrot.lane.b32.xlu0 %v878, 104
      %v1226 = vpop.permute.xlu0 %1225
      %1227 = vrot.lane.b32.xlu0 %v878, 72
      %v1228 = vpop.permute.xlu0 %1227
      %v1230 = vsel %vm882, %v1226, 0
      %v1233 = vsel %vm882, %v1228, 0
      %1235 = vmatprep.subr.bf16.mxu0 0
      %1236 = vmatpush1.bf16.xpose.msra.mxu0 %v1233
      %1237 = vmatprep.subr.bf16.mxu0 0
      %1238 = vmatpush1.bf16.xpose.msra.mxu0 0
      %1239 = vmatprep.subr.bf16.mxu0 0
      %1240 = vmatpush1.bf16.xpose.msra.mxu0 0
      %1241 = vmatprep.subr.bf16.mxu0 0
      %1242 = vmatpush1.bf16.xpose.msra.mxu0 0
      %1243 = vmatprep.subr.bf16.mxu0 0
      %1244 = vmatpush1.bf16.xpose.msra.mxu0 0
      %1245 = vmatprep.subr.bf16.mxu0 0
      %1246 = vmatpush1.bf16.xpose.msra.mxu0 0
      %1247 = vmatprep.subr.bf16.mxu0 0
      %1248 = vmatpush1.bf16.xpose.msra.mxu0 0
      %1249 = vmatprep.subr.bf16.mxu0 0
      %1250 = vmatpush1.bf16.xpose.msra.mxu0 0
      %1251 = vmatprep.subr.bf16.mxu0 0
      %1252 = vmatpush1.bf16.xpose.msra.mxu0 0
      %1253 = vmatprep.subr.bf16.mxu0 0
      %1254 = vmatpush1.bf16.xpose.msra.mxu0 0
      %1255 = vmatprep.subr.bf16.mxu0 0
      %1256 = vmatpush1.bf16.xpose.msra.mxu0 0
      %1257 = vmatprep.subr.bf16.mxu0 0
      %1258 = vmatpush1.bf16.xpose.msra.mxu0 0
      %1259 = vmatprep.subr.bf16.mxu0 0
      %1260 = vmatpush1.bf16.xpose.msra.mxu0 0
      %1261 = vmatprep.subr.bf16.mxu0 0
      %1262 = vmatpush1.bf16.xpose.msra.mxu0 0
      %1263 = vmatprep.subr.bf16.mxu0 0
      %1264 = vmatpush1.bf16.xpose.msra.mxu0 0
      %1265 = vmatprep.subr.bf16.mxu0 0
      %1266 = vmatpush1.bf16.xpose.msra.mxu0 0
      %1267 = vmatprep.mubr.bf16.mxu0 0
      %1268 = vmatmul.mubr.bf16.gmra.mrb[0].mxu0 %v1230
      %v1269 = vpop.f32.mrb[0].mxu0
      %v1270 = vadd.f32 0.0, %v1269
      %v1271 = vpop.f32.mrb[0].mxu0
      %v1272 = vpop.f32.mrb[0].mxu0
      %v1273 = vpop.f32.mrb[0].mxu0
      %1274 = vdwg.mxu0
      %v1275 = vmul.f32 %v1270, 0.35355338
      %v1276 = vadd.f32 %v1275, %v934
      %v1277 = vadd.f32 %v1276, %v876
      %v1278 = vsel %vm882, %v1277, -inf
      %1279 = vmax.xlane.f32.xlu0 %v1278
      %v1280 = vpop.xlane.xlu0 %1279
      %v1281 = vsub.f32 %v1277, %v1280
      %v1282 = vmul.f32 %v1281, 1.442695
      %v1283 = vpow.pop %v1282
      %v1284 = vsel %vm882, %v1283, 0.0
      %1285 = vadd.xlane.f32.xlu0 %v1284
      %v1286 = vpop.xlane.xlu0 %1285
      %v1287 = vrcp.pop %v1286
      %v1288 = vmul.f32 %v1283, %v1287
      %v1289 = vpack.c.bf16 %v1288, %v1288
      %1290 = vrot.lane.b32.xlu0 %v878, 40
      %v1291 = vpop.permute.xlu0 %1290
      %v1293 = vsel %vm882, %v1289, 0
      %v1296 = vsel %vm955, %v1291, 0
      %1298 = vmatprep.subr.bf16.mxu0 0
      %1299 = vmatpush1.bf16.msra.mxu0 %v1296
      %1300 = vmatprep.subr.bf16.mxu0 0
      %1301 = vmatpush1.bf16.msra.mxu0 0
      %1302 = vmatprep.subr.bf16.mxu0 0
      %1303 = vmatpush1.bf16.msra.mxu0 0
      %1304 = vmatprep.subr.bf16.mxu0 0
      %1305 = vmatpush1.bf16.msra.mxu0 0
      %1306 = vmatprep.subr.bf16.mxu0 0
      %1307 = vmatpush1.bf16.msra.mxu0 0
      %1308 = vmatprep.subr.bf16.mxu0 0
      %1309 = vmatpush1.bf16.msra.mxu0 0
      %1310 = vmatprep.subr.bf16.mxu0 0
      %1311 = vmatpush1.bf16.msra.mxu0 0
      %1312 = vmatprep.subr.bf16.mxu0 0
      %1313 = vmatpush1.bf16.msra.mxu0 0
      %1314 = vmatprep.subr.bf16.mxu0 0
      %1315 = vmatpush1.bf16.msra.mxu0 0
      %1316 = vmatprep.subr.bf16.mxu0 0
      %1317 = vmatpush1.bf16.msra.mxu0 0
      %1318 = vmatprep.subr.bf16.mxu0 0
      %1319 = vmatpush1.bf16.msra.mxu0 0
      %1320 = vmatprep.subr.bf16.mxu0 0
      %1321 = vmatpush1.bf16.msra.mxu0 0
      %1322 = vmatprep.subr.bf16.mxu0 0
      %1323 = vmatpush1.bf16.msra.mxu0 0
      %1324 = vmatprep.subr.bf16.mxu0 0
      %1325 = vmatpush1.bf16.msra.mxu0 0
      %1326 = vmatprep.subr.bf16.mxu0 0
      %1327 = vmatpush1.bf16.msra.mxu0 0
      %1328 = vmatprep.subr.bf16.mxu0 0
      %1329 = vmatpush1.bf16.msra.mxu0 0
      %1330 = vmatprep.mubr.bf16.mxu0 0
      %1331 = vmatmul.mubr.bf16.gmra.mrb[0].mxu0 %v1293
      %v1332 = vpop.f32.mrb[0].mxu0
      %v1333 = vadd.f32 0.0, %v1332
      %v1334 = vpop.f32.mrb[0].mxu0
      %v1335 = vpop.f32.mrb[0].mxu0
      %v1336 = vpop.f32.mrb[0].mxu0
      %1337 = vdwg.mxu0
      %1339 = vrot.lane.b32.xlu0 %v1107, 8
      %v1340 = vpop.permute.xlu0 %1339
      %1343 = vrot.lane.b32.xlu0 %v1220, 16
      %v1344 = vpop.permute.xlu0 %1343
      %1347 = vrot.lane.b32.xlu0 %v1333, 24
      %v1348 = vpop.permute.xlu0 %1347
      %v1350 = vsel %vm882, %v994, %v1340
      %vm1351 = vcmask 130048
      %v1352 = vsel %vm1351, %v1350, %v1344
      %vm1353 = vcmask 195584
      %v1354 = vsel %vm1353, %v1352, %v1348
      %v1355 = vpack.c.bf16 %v1354, %v1354
      %v1356 = vld [vmem:[%s7] sm:$0xf]
      %v1357 = vld [vmem:[%s7 + $0x4] sm:$0xf]
      %v1358 = vld [vmem:[%s7 + $0x8] sm:$0xf]
      %v1359 = vld [vmem:[%s7 + $0xc] sm:$0xf]
      %v1360 = vld [vmem:[%s8] sm:$0x1]
      %v1362 = vlaneseq
      %v1363 = vshrl.u32 %v1362, 7
      %v1364 = vsub.s32 0, %v1363
      %v1365 = vrot.slane %v1360, %v1364
      %v1371 = vunpack.c.l.b16 %v1356
      %v1372 = vunpack.c.l.b16 %v1357
      %v1373 = vunpack.c.l.b16 %v1358
      %v1374 = vunpack.c.l.b16 %v1359
      %v1375 = vpack.c.b16 %v1372, %v1371
      %v1376 = vpack.c.b16 %v1374, %v1373
      %v1380 = vsel %vm832, %v1355, 0
      %1382 = vmatprep.subr.bf16.mxu0 0
      %1383 = vmatpush1.bf16.msra.mxu0 %v1375
      %1384 = vmatprep.subr.bf16.mxu0 0
      %1385 = vmatpush1.bf16.msra.mxu0 %v1376
      %1386 = vmatprep.subr.bf16.mxu0 0
      %1387 = vmatpush1.bf16.msra.mxu0 0
      %1388 = vmatprep.subr.bf16.mxu0 0
      %1389 = vmatpush1.bf16.msra.mxu0 0
      %1390 = vmatprep.subr.bf16.mxu0 0
      %1391 = vmatpush1.bf16.msra.mxu0 0
      %1392 = vmatprep.subr.bf16.mxu0 0
      %1393 = vmatpush1.bf16.msra.mxu0 0
      %1394 = vmatprep.subr.bf16.mxu0 0
      %1395 = vmatpush1.bf16.msra.mxu0 0
      %1396 = vmatprep.subr.bf16.mxu0 0
      %1397 = vmatpush1.bf16.msra.mxu0 0
      %1398 = vmatprep.subr.bf16.mxu0 0
      %1399 = vmatpush1.bf16.msra.mxu0 0
      %1400 = vmatprep.subr.bf16.mxu0 0
      %1401 = vmatpush1.bf16.msra.mxu0 0
      %1402 = vmatprep.subr.bf16.mxu0 0
      %1403 = vmatpush1.bf16.msra.mxu0 0
      %1404 = vmatprep.subr.bf16.mxu0 0
      %1405 = vmatpush1.bf16.msra.mxu0 0
      %1406 = vmatprep.subr.bf16.mxu0 0
      %1407 = vmatpush1.bf16.msra.mxu0 0
      %1408 = vmatprep.subr.bf16.mxu0 0
      %1409 = vmatpush1.bf16.msra.mxu0 0
      %1410 = vmatprep.subr.bf16.mxu0 0
      %1411 = vmatpush1.bf16.msra.mxu0 0
      %1412 = vmatprep.subr.bf16.mxu0 0
      %1413 = vmatpush1.bf16.msra.mxu0 0
      %1414 = vmatprep.mubr.bf16.mxu0 0
      %1415 = vmatmul.mubr.bf16.gmra.mrb[0].mxu0 %v1380
      %v1416 = vpop.f32.mrb[0].mxu0
      %v1417 = vadd.f32 %v1365, %v1416
      %v1418 = vpop.f32.mrb[0].mxu0
      %v1419 = vpop.f32.mrb[0].mxu0
      %v1420 = vpop.f32.mrb[0].mxu0
      %1421 = vdwg.mxu0
      %v1422 = vadd.f32 %v806, %v1417
      %v1423 = vld [vmem:[%s9] sm:$0x1]
      %v1424 = vld [vmem:[%s10] sm:$0x1]
      %v1425 = vsel %vm832, %v1422, 0.0
      %1426 = vadd.xlane.f32.xlu0 %v1425
      %v1427 = vpop.xlane.xlu0 %1426
      %v1428 = vrcp.pop 32.0
      %v1429 = vmul.f32 %v1427, %v1428
      %v1430 = vsub.f32 %v1422, %v1429
      %v1431 = vmul.f32 %v1430, %v1430
      %v1432 = vsel %vm832, %v1431, 0.0
      %1433 = vadd.xlane.f32.xlu0 %v1432
      %v1434 = vpop.xlane.xlu0 %1433
      %v1435 = vmul.f32 %v1434, %v1428
      %v1436 = vadd.f32 %v1435, 1e-05
      %v1437 = vrsqrt.pop %v1436
      %v1438 = vmul.f32 %v1430, %v1437
      %v1440 = vlaneseq
      %v1441 = vshrl.u32 %v1440, 7
      %v1442 = vsub.s32 0, %v1441
      %v1443 = vrot.slane %v1423, %v1442
      %v1445 = vmul.f32 %v1438, %v1443
      %v1447 = vlaneseq
      %v1448 = vshrl.u32 %v1447, 7
      %v1449 = vsub.s32 0, %v1448
      %v1450 = vrot.slane %v1424, %v1449
      %v1452 = vadd.f32 %v1445, %v1450
      %v1453 = vpack.c.bf16 %v1452, %v1452
      %v1454 = vld [vmem:[%s11] sm:$0xf]
      %v1455 = vld [vmem:[%s11 + $0x4] sm:$0xf]
      %v1456 = vld [vmem:[%s11 + $0x8] sm:$0xf]
      %v1457 = vld [vmem:[%s11 + $0xc] sm:$0xf]
      %v1458 = vld [vmem:[%s12] sm:$0x1]
      %v1460 = vlaneseq
      %v1461 = vshrl.u32 %v1460, 7
      %v1462 = vsub.s32 0, %v1461
      %v1463 = vrot.slane %v1458, %v1462
      %v1469 = vunpack.c.l.b16 %v1454
      %v1470 = vunpack.c.l.b16 %v1455
      %v1471 = vunpack.c.l.b16 %v1456
      %v1472 = vunpack.c.l.b16 %v1457
      %v1473 = vpack.c.b16 %v1470, %v1469
      %v1474 = vpack.c.b16 %v1472, %v1471
      %v1478 = vsel %vm832, %v1453, 0
      %1480 = vmatprep.subr.bf16.mxu0 0
      %1481 = vmatpush1.bf16.msra.mxu0 %v1473
      %1482 = vmatprep.subr.bf16.mxu0 0
      %1483 = vmatpush1.bf16.msra.mxu0 %v1474
      %1484 = vmatprep.subr.bf16.mxu0 0
      %1485 = vmatpush1.bf16.msra.mxu0 0
      %1486 = vmatprep.subr.bf16.mxu0 0
      %1487 = vmatpush1.bf16.msra.mxu0 0
      %1488 = vmatprep.subr.bf16.mxu0 0
      %1489 = vmatpush1.bf16.msra.mxu0 0
      %1490 = vmatprep.subr.bf16.mxu0 0
      %1491 = vmatpush1.bf16.msra.mxu0 0
      %1492 = vmatprep.subr.bf16.mxu0 0
      %1493 = vmatpush1.bf16.msra.mxu0 0
      %1494 = vmatprep.subr.bf16.mxu0 0
      %1495 = vmatpush1.bf16.msra.mxu0 0
      %1496 = vmatprep.subr.bf16.mxu0 0
      %1497 = vmatpush1.bf16.msra.mxu0 0
      %1498 = vmatprep.subr.bf16.mxu0 0
      %1499 = vmatpush1.bf16.msra.mxu0 0
      %1500 = vmatprep.subr.bf16.mxu0 0
      %1501 = vmatpush1.bf16.msra.mxu0 0
      %1502 = vmatprep.subr.bf16.mxu0 0
      %1503 = vmatpush1.bf16.msra.mxu0 0
      %1504 = vmatprep.subr.bf16.mxu0 0
      %1505 = vmatpush1.bf16.msra.mxu0 0
      %1506 = vmatprep.subr.bf16.mxu0 0
      %1507 = vmatpush1.bf16.msra.mxu0 0
      %1508 = vmatprep.subr.bf16.mxu0 0
      %1509 = vmatpush1.bf16.msra.mxu0 0
      %1510 = vmatprep.subr.bf16.mxu0 0
      %1511 = vmatpush1.bf16.msra.mxu0 0
      %1512 = vmatprep.mubr.bf16.mxu0 0
      %1513 = vmatmul.mubr.bf16.gmra.mrb[0].mxu0 %v1478
      %v1514 = vpop.f32.mrb[0].mxu0
      %v1515 = vadd.f32 %v1463, %v1514
      %v1516 = vpop.f32.mrb[0].mxu0
      %v1517 = vpop.f32.mrb[0].mxu0
      %v1518 = vpop.f32.mrb[0].mxu0
      %1519 = vdwg.mxu0
      %v1520 = vld [vmem:[%s13] sm:$0xf]
      %v1521 = vld [vmem:[%s13 + $0x4] sm:$0xf]
      %v1522 = vld [vmem:[%s13 + $0x8] sm:$0xf]
      %v1523 = vld [vmem:[%s13 + $0xc] sm:$0xf]
      %v1524 = vld [vmem:[%s14] sm:$0x1]
      %v1526 = vlaneseq
      %v1527 = vshrl.u32 %v1526, 7
      %v1528 = vsub.s32 0, %v1527
      %v1529 = vrot.slane %v1524, %v1528
      %v1535 = vunpack.c.l.b16 %v1520
      %v1536 = vunpack.c.l.b16 %v1521
      %v1537 = vunpack.c.l.b16 %v1522
      %v1538 = vunpack.c.l.b16 %v1523
      %v1539 = vpack.c.b16 %v1536, %v1535
      %v1540 = vpack.c.b16 %v1538, %v1537
      %v1544 = vsel %vm832, %v807, 0
      %1546 = vmatprep.subr.bf16.mxu0 0
      %1547 = vmatpush1.bf16.msra.mxu0 %v1539
      %1548 = vmatprep.subr.bf16.mxu0 0
      %1549 = vmatpush1.bf16.msra.mxu0 %v1540
      %1550 = vmatprep.subr.bf16.mxu0 0
      %1551 = vmatpush1.bf16.msra.mxu0 0
      %1552 = vmatprep.subr.bf16.mxu0 0
      %1553 = vmatpush1.bf16.msra.mxu0 0
      %1554 = vmatprep.subr.bf16.mxu0 0
      %1555 = vmatpush1.bf16.msra.mxu0 0
      %1556 = vmatprep.subr.bf16.mxu0 0
      %1557 = vmatpush1.bf16.msra.mxu0 0
      %1558 = vmatprep.subr.bf16.mxu0 0
      %1559 = vmatpush1.bf16.msra.mxu0 0
      %1560 = vmatprep.subr.bf16.mxu0 0
      %1561 = vmatpush1.bf16.msra.mxu0 0
      %1562 = vmatprep.subr.bf16.mxu0 0
      %1563 = vmatpush1.bf16.msra.mxu0 0
      %1564 = vmatprep.subr.bf16.mxu0 0
      %1565 = vmatpush1.bf16.msra.mxu0 0
      %1566 = vmatprep.subr.bf16.mxu0 0
      %1567 = vmatpush1.bf16.msra.mxu0 0
      %1568 = vmatprep.subr.bf16.mxu0 0
      %1569 = vmatpush1.bf16.msra.mxu0 0
      %1570 = vmatprep.subr.bf16.mxu0 0
      %1571 = vmatpush1.bf16.msra.mxu0 0
      %1572 = vmatprep.subr.bf16.mxu0 0
      %1573 = vmatpush1.bf16.msra.mxu0 0
      %1574 = vmatprep.subr.bf16.mxu0 0
      %1575 = vmatpush1.bf16.msra.mxu0 0
      %1576 = vmatprep.subr.bf16.mxu0 0
      %1577 = vmatpush1.bf16.msra.mxu0 0
      %1578 = vmatprep.mubr.bf16.mxu0 0
      %1579 = vmatmul.mubr.bf16.gmra.mrb[0].mxu0 %v1544
      %v1580 = vpop.f32.mrb[0].mxu0
      %v1581 = vadd.f32 %v1529, %v1580
      %v1582 = vpop.f32.mrb[0].mxu0
      %v1583 = vpop.f32.mrb[0].mxu0
      %v1584 = vpop.f32.mrb[0].mxu0
      %1585 = vdwg.mxu0
      %v1586 = vld [vmem:[%s800] sm:$0x1]
      %v1587 = vpack.c.bf16 %v1515, %v1515
      %v1588 = vpack.c.bf16 %v1581, %v1581
      %v1590 = vsel %vm882, %v1587, 0
      %v1593 = vsel %vm882, %v1588, 0
      %1595 = vmatprep.subr.bf16.mxu0 0
      %1596 = vmatpush1.bf16.xpose.msra.mxu0 %v1593
      %1597 = vmatprep.subr.bf16.mxu0 0
      %1598 = vmatpush1.bf16.xpose.msra.mxu0 0
      %1599 = vmatprep.subr.bf16.mxu0 0
      %1600 = vmatpush1.bf16.xpose.msra.mxu0 0
      %1601 = vmatprep.subr.bf16.mxu0 0
      %1602 = vmatpush1.bf16.xpose.msra.mxu0 0
      %1603 = vmatprep.subr.bf16.mxu0 0
      %1604 = vmatpush1.bf16.xpose.msra.mxu0 0
      %1605 = vmatprep.subr.bf16.mxu0 0
      %1606 = vmatpush1.bf16.xpose.msra.mxu0 0
      %1607 = vmatprep.subr.bf16.mxu0 0
      %1608 = vmatpush1.bf16.xpose.msra.mxu0 0
      %1609 = vmatprep.subr.bf16.mxu0 0
      %1610 = vmatpush1.bf16.xpose.msra.mxu0 0
      %1611 = vmatprep.subr.bf16.mxu0 0
      %1612 = vmatpush1.bf16.xpose.msra.mxu0 0
      %1613 = vmatprep.subr.bf16.mxu0 0
      %1614 = vmatpush1.bf16.xpose.msra.mxu0 0
      %1615 = vmatprep.subr.bf16.mxu0 0
      %1616 = vmatpush1.bf16.xpose.msra.mxu0 0
      %1617 = vmatprep.subr.bf16.mxu0 0
      %1618 = vmatpush1.bf16.xpose.msra.mxu0 0
      %1619 = vmatprep.subr.bf16.mxu0 0
      %1620 = vmatpush1.bf16.xpose.msra.mxu0 0
      %1621 = vmatprep.subr.bf16.mxu0 0
      %1622 = vmatpush1.bf16.xpose.msra.mxu0 0
      %1623 = vmatprep.subr.bf16.mxu0 0
      %1624 = vmatpush1.bf16.xpose.msra.mxu0 0
      %1625 = vmatprep.subr.bf16.mxu0 0
      %1626 = vmatpush1.bf16.xpose.msra.mxu0 0
      %1627 = vmatprep.mubr.bf16.mxu0 0
      %1628 = vmatmul.mubr.bf16.gmra.mrb[0].mxu0 %v1590
      %v1629 = vpop.f32.mrb[0].mxu0
      %v1630 = vadd.f32 0.0, %v1629
      %v1631 = vpop.f32.mrb[0].mxu0
      %v1632 = vpop.f32.mrb[0].mxu0
      %v1633 = vpop.f32.mrb[0].mxu0
      %1634 = vdwg.mxu0
      %v1635 = vmul.f32 %v1630, 0.35355338
      %v1637 = vlaneseq
      %v1638 = vshrl.u32 %v1637, 7
      %v1639 = vsub.s32 0, %v1638
      %v1640 = vrot.slane %v1586, %v1639
      %v1642 = vadd.f32 %v1635, %v1640
      %v1643 = vsel %vm882, %v1642, -inf
      %1644 = vmax.xlane.f32.xlu0 %v1643
      %v1645 = vpop.xlane.xlu0 %1644
      %v1646 = vsub.f32 %v1642, %v1645
      %v1647 = vmul.f32 %v1646, 1.442695
      %v1648 = vpow.pop %v1647
      %v1649 = vsel %vm882, %v1648, 0.0
      %1650 = vadd.xlane.f32.xlu0 %v1649
      %v1651 = vpop.xlane.xlu0 %1650
      %v1652 = vrcp.pop %v1651
      %v1653 = vmul.f32 %v1648, %v1652
      %v1654 = vpack.c.bf16 %v1653, %v1653
      %1656 = vrot.lane.b32.xlu0 %v1588, 96
      %v1657 = vpop.permute.xlu0 %1656
      %v1659 = vsel %vm882, %v1654, 0
      %v1662 = vsel %vm955, %v1657, 0
      %1664 = vmatprep.subr.bf16.mxu0 0
      %1665 = vmatpush1.bf16.msra.mxu0 %v1662
      %1666 = vmatprep.subr.bf16.mxu0 0
      %1667 = vmatpush1.bf16.msra.mxu0 0
      %1668 = vmatprep.subr.bf16.mxu0 0
      %1669 = vmatpush1.bf16.msra.mxu0 0
      %1670 = vmatprep.subr.bf16.mxu0 0
      %1671 = vmatpush1.bf16.msra.mxu0 0
      %1672 = vmatprep.subr.bf16.mxu0 0
      %1673 = vmatpush1.bf16.msra.mxu0 0
      %1674 = vmatprep.subr.bf16.mxu0 0
      %1675 = vmatpush1.bf16.msra.mxu0 0
      %1676 = vmatprep.subr.bf16.mxu0 0
      %1677 = vmatpush1.bf16.msra.mxu0 0
      %1678 = vmatprep.subr.bf16.mxu0 0
      %1679 = vmatpush1.bf16.msra.mxu0 0
      %1680 = vmatprep.subr.bf16.mxu0 0
      %1681 = vmatpush1.bf16.msra.mxu0 0
      %1682 = vmatprep.subr.bf16.mxu0 0
      %1683 = vmatpush1.bf16.msra.mxu0 0
      %1684 = vmatprep.subr.bf16.mxu0 0
      %1685 = vmatpush1.bf16.msra.mxu0 0
      %1686 = vmatprep.subr.bf16.mxu0 0
      %1687 = vmatpush1.bf16.msra.mxu0 0
      %1688 = vmatprep.subr.bf16.mxu0 0
      %1689 = vmatpush1.bf16.msra.mxu0 0
      %1690 = vmatprep.subr.bf16.mxu0 0
      %1691 = vmatpush1.bf16.msra.mxu0 0
      %1692 = vmatprep.subr.bf16.mxu0 0
      %1693 = vmatpush1.bf16.msra.mxu0 0
      %1694 = vmatprep.subr.bf16.mxu0 0
      %1695 = vmatpush1.bf16.msra.mxu0 0
      %1696 = vmatprep.mubr.bf16.mxu0 0
      %1697 = vmatmul.mubr.bf16.gmra.mrb[0].mxu0 %v1659
      %v1698 = vpop.f32.mrb[0].mxu0
      %v1699 = vadd.f32 0.0, %v1698
      %v1700 = vpop.f32.mrb[0].mxu0
      %v1701 = vpop.f32.mrb[0].mxu0
      %v1702 = vpop.f32.mrb[0].mxu0
      %1703 = vdwg.mxu0
      %1705 = vrot.lane.b32.xlu0 %v1587, 120
      %v1706 = vpop.permute.xlu0 %1705
      %1707 = vrot.lane.b32.xlu0 %v1588, 120
      %v1708 = vpop.permute.xlu0 %1707
      %v1710 = vsel %vm882, %v1706, 0
      %v1713 = vsel %vm882, %v1708, 0
      %1715 = vmatprep.subr.bf16.mxu0 0
      %1716 = vmatpush1.bf16.xpose.msra.mxu0 %v1713
      %1717 = vmatprep.subr.bf16.mxu0 0
      %1718 = vmatpush1.bf16.xpose.msra.mxu0 0
      %1719 = vmatprep.subr.bf16.mxu0 0
      %1720 = vmatpush1.bf16.xpose.msra.mxu0 0
      %1721 = vmatprep.subr.bf16.mxu0 0
      %1722 = vmatpush1.bf16.xpose.msra.mxu0 0
      %1723 = vmatprep.subr.bf16.mxu0 0
      %1724 = vmatpush1.bf16.xpose.msra.mxu0 0
      %1725 = vmatprep.subr.bf16.mxu0 0
      %1726 = vmatpush1.bf16.xpose.msra.mxu0 0
      %1727 = vmatprep.subr.bf16.mxu0 0
      %1728 = vmatpush1.bf16.xpose.msra.mxu0 0
      %1729 = vmatprep.subr.bf16.mxu0 0
      %1730 = vmatpush1.bf16.xpose.msra.mxu0 0
      %1731 = vmatprep.subr.bf16.mxu0 0
      %1732 = vmatpush1.bf16.xpose.msra.mxu0 0
      %1733 = vmatprep.subr.bf16.mxu0 0
      %1734 = vmatpush1.bf16.xpose.msra.mxu0 0
      %1735 = vmatprep.subr.bf16.mxu0 0
      %1736 = vmatpush1.bf16.xpose.msra.mxu0 0
      %1737 = vmatprep.subr.bf16.mxu0 0
      %1738 = vmatpush1.bf16.xpose.msra.mxu0 0
      %1739 = vmatprep.subr.bf16.mxu0 0
      %1740 = vmatpush1.bf16.xpose.msra.mxu0 0
      %1741 = vmatprep.subr.bf16.mxu0 0
      %1742 = vmatpush1.bf16.xpose.msra.mxu0 0
      %1743 = vmatprep.subr.bf16.mxu0 0
      %1744 = vmatpush1.bf16.xpose.msra.mxu0 0
      %1745 = vmatprep.subr.bf16.mxu0 0
      %1746 = vmatpush1.bf16.xpose.msra.mxu0 0
      %1747 = vmatprep.mubr.bf16.mxu0 0
      %1748 = vmatmul.mubr.bf16.gmra.mrb[0].mxu0 %v1710
      %v1749 = vpop.f32.mrb[0].mxu0
      %v1750 = vadd.f32 0.0, %v1749
      %v1751 = vpop.f32.mrb[0].mxu0
      %v1752 = vpop.f32.mrb[0].mxu0
      %v1753 = vpop.f32.mrb[0].mxu0
      %1754 = vdwg.mxu0
      %v1755 = vmul.f32 %v1750, 0.35355338
      %v1756 = vadd.f32 %v1755, %v1640
      %v1757 = vsel %vm882, %v1756, -inf
      %1758 = vmax.xlane.f32.xlu0 %v1757
      %v1759 = vpop.xlane.xlu0 %1758
      %v1760 = vsub.f32 %v1756, %v1759
      %v1761 = vmul.f32 %v1760, 1.442695
      %v1762 = vpow.pop %v1761
      %v1763 = vsel %vm882, %v1762, 0.0
      %1764 = vadd.xlane.f32.xlu0 %v1763
      %v1765 = vpop.xlane.xlu0 %1764
      %v1766 = vrcp.pop %v1765
      %v1767 = vmul.f32 %v1762, %v1766
      %v1768 = vpack.c.bf16 %v1767, %v1767
      %1769 = vrot.lane.b32.xlu0 %v1588, 88
      %v1770 = vpop.permute.xlu0 %1769
      %v1772 = vsel %vm882, %v1768, 0
      %v1775 = vsel %vm955, %v1770, 0
      %1777 = vmatprep.subr.bf16.mxu0 0
      %1778 = vmatpush1.bf16.msra.mxu0 %v1775
      %1779 = vmatprep.subr.bf16.mxu0 0
      %1780 = vmatpush1.bf16.msra.mxu0 0
      %1781 = vmatprep.subr.bf16.mxu0 0
      %1782 = vmatpush1.bf16.msra.mxu0 0
      %1783 = vmatprep.subr.bf16.mxu0 0
      %1784 = vmatpush1.bf16.msra.mxu0 0
      %1785 = vmatprep.subr.bf16.mxu0 0
      %1786 = vmatpush1.bf16.msra.mxu0 0
      %1787 = vmatprep.subr.bf16.mxu0 0
      %1788 = vmatpush1.bf16.msra.mxu0 0
      %1789 = vmatprep.subr.bf16.mxu0 0
      %1790 = vmatpush1.bf16.msra.mxu0 0
      %1791 = vmatprep.subr.bf16.mxu0 0
      %1792 = vmatpush1.bf16.msra.mxu0 0
      %1793 = vmatprep.subr.bf16.mxu0 0
      %1794 = vmatpush1.bf16.msra.mxu0 0
      %1795 = vmatprep.subr.bf16.mxu0 0
      %1796 = vmatpush1.bf16.msra.mxu0 0
      %1797 = vmatprep.subr.bf16.mxu0 0
      %1798 = vmatpush1.bf16.msra.mxu0 0
      %1799 = vmatprep.subr.bf16.mxu0 0
      %1800 = vmatpush1.bf16.msra.mxu0 0
      %1801 = vmatprep.subr.bf16.mxu0 0
      %1802 = vmatpush1.bf16.msra.mxu0 0
      %1803 = vmatprep.subr.bf16.mxu0 0
      %1804 = vmatpush1.bf16.msra.mxu0 0
      %1805 = vmatprep.subr.bf16.mxu0 0
      %1806 = vmatpush1.bf16.msra.mxu0 0
      %1807 = vmatprep.subr.bf16.mxu0 0
      %1808 = vmatpush1.bf16.msra.mxu0 0
      %1809 = vmatprep.mubr.bf16.mxu0 0
      %1810 = vmatmul.mubr.bf16.gmra.mrb[0].mxu0 %v1772
      %v1811 = vpop.f32.mrb[0].mxu0
      %v1812 = vadd.f32 0.0, %v1811
      %v1813 = vpop.f32.mrb[0].mxu0
      %v1814 = vpop.f32.mrb[0].mxu0
      %v1815 = vpop.f32.mrb[0].mxu0
      %1816 = vdwg.mxu0
      %1817 = vrot.lane.b32.xlu0 %v1587, 112
      %v1818 = vpop.permute.xlu0 %1817
      %1819 = vrot.lane.b32.xlu0 %v1588, 112
      %v1820 = vpop.permute.xlu0 %1819
      %v1822 = vsel %vm882, %v1818, 0
      %v1825 = vsel %vm882, %v1820, 0
      %1827 = vmatprep.subr.bf16.mxu0 0
      %1828 = vmatpush1.bf16.xpose.msra.mxu0 %v1825
      %1829 = vmatprep.subr.bf16.mxu0 0
      %1830 = vmatpush1.bf16.xpose.msra.mxu0 0
      %1831 = vmatprep.subr.bf16.mxu0 0
      %1832 = vmatpush1.bf16.xpose.msra.mxu0 0
      %1833 = vmatprep.subr.bf16.mxu0 0
      %1834 = vmatpush1.bf16.xpose.msra.mxu0 0
      %1835 = vmatprep.subr.bf16.mxu0 0
      %1836 = vmatpush1.bf16.xpose.msra.mxu0 0
      %1837 = vmatprep.subr.bf16.mxu0 0
      %1838 = vmatpush1.bf16.xpose.msra.mxu0 0
      %1839 = vmatprep.subr.bf16.mxu0 0
      %1840 = vmatpush1.bf16.xpose.msra.mxu0 0
      %1841 = vmatprep.subr.bf16.mxu0 0
      %1842 = vmatpush1.bf16.xpose.msra.mxu0 0
      %1843 = vmatprep.subr.bf16.mxu0 0
      %1844 = vmatpush1.bf16.xpose.msra.mxu0 0
      %1845 = vmatprep.subr.bf16.mxu0 0
      %1846 = vmatpush1.bf16.xpose.msra.mxu0 0
      %1847 = vmatprep.subr.bf16.mxu0 0
      %1848 = vmatpush1.bf16.xpose.msra.mxu0 0
      %1849 = vmatprep.subr.bf16.mxu0 0
      %1850 = vmatpush1.bf16.xpose.msra.mxu0 0
      %1851 = vmatprep.subr.bf16.mxu0 0
      %1852 = vmatpush1.bf16.xpose.msra.mxu0 0
      %1853 = vmatprep.subr.bf16.mxu0 0
      %1854 = vmatpush1.bf16.xpose.msra.mxu0 0
      %1855 = vmatprep.subr.bf16.mxu0 0
      %1856 = vmatpush1.bf16.xpose.msra.mxu0 0
      %1857 = vmatprep.subr.bf16.mxu0 0
      %1858 = vmatpush1.bf16.xpose.msra.mxu0 0
      %1859 = vmatprep.mubr.bf16.mxu0 0
      %1860 = vmatmul.mubr.bf16.gmra.mrb[0].mxu0 %v1822
      %v1861 = vpop.f32.mrb[0].mxu0
      %v1862 = vadd.f32 0.0, %v1861
      %v1863 = vpop.f32.mrb[0].mxu0
      %v1864 = vpop.f32.mrb[0].mxu0
      %v1865 = vpop.f32.mrb[0].mxu0
      %1866 = vdwg.mxu0
      %v1867 = vmul.f32 %v1862, 0.35355338
      %v1868 = vadd.f32 %v1867, %v1640
      %v1869 = vsel %vm882, %v1868, -inf
      %1870 = vmax.xlane.f32.xlu0 %v1869
      %v1871 = vpop.xlane.xlu0 %1870
      %v1872 = vsub.f32 %v1868, %v1871
      %v1873 = vmul.f32 %v1872, 1.442695
      %v1874 = vpow.pop %v1873
      %v1875 = vsel %vm882, %v1874, 0.0
      %1876 = vadd.xlane.f32.xlu0 %v1875
      %v1877 = vpop.xlane.xlu0 %1876
      %v1878 = vrcp.pop %v1877
      %v1879 = vmul.f32 %v1874, %v1878
      %v1880 = vpack.c.bf16 %v1879, %v1879
      %1881 = vrot.lane.b32.xlu0 %v1588, 80
      %v1882 = vpop.permute.xlu0 %1881
      %v1884 = vsel %vm882, %v1880, 0
      %v1887 = vsel %vm955, %v1882, 0
      %1889 = vmatprep.subr.bf16.mxu0 0
      %1890 = vmatpush1.bf16.msra.mxu0 %v1887
      %1891 = vmatprep.subr.bf16.mxu0 0
      %1892 = vmatpush1.bf16.msra.mxu0 0
      %1893 = vmatprep.subr.bf16.mxu0 0
      %1894 = vmatpush1.bf16.msra.mxu0 0
      %1895 = vmatprep.subr.bf16.mxu0 0
      %1896 = vmatpush1.bf16.msra.mxu0 0
      %1897 = vmatprep.subr.bf16.mxu0 0
      %1898 = vmatpush1.bf16.msra.mxu0 0
      %1899 = vmatprep.subr.bf16.mxu0 0
      %1900 = vmatpush1.bf16.msra.mxu0 0
      %1901 = vmatprep.subr.bf16.mxu0 0
      %1902 = vmatpush1.bf16.msra.mxu0 0
      %1903 = vmatprep.subr.bf16.mxu0 0
      %1904 = vmatpush1.bf16.msra.mxu0 0
      %1905 = vmatprep.subr.bf16.mxu0 0
      %1906 = vmatpush1.bf16.msra.mxu0 0
      %1907 = vmatprep.subr.bf16.mxu0 0
      %1908 = vmatpush1.bf16.msra.mxu0 0
      %1909 = vmatprep.subr.bf16.mxu0 0
      %1910 = vmatpush1.bf16.msra.mxu0 0
      %1911 = vmatprep.subr.bf16.mxu0 0
      %1912 = vmatpush1.bf16.msra.mxu0 0
      %1913 = vmatprep.subr.bf16.mxu0 0
      %1914 = vmatpush1.bf16.msra.mxu0 0
      %1915 = vmatprep.subr.bf16.mxu0 0
      %1916 = vmatpush1.bf16.msra.mxu0 0
      %1917 = vmatprep.subr.bf16.mxu0 0
      %1918 = vmatpush1.bf16.msra.mxu0 0
      %1919 = vmatprep.subr.bf16.mxu0 0
      %1920 = vmatpush1.bf16.msra.mxu0 0
      %1921 = vmatprep.mubr.bf16.mxu0 0
      %1922 = vmatmul.mubr.bf16.gmra.mrb[0].mxu0 %v1884
      %v1923 = vpop.f32.mrb[0].mxu0
      %v1924 = vadd.f32 0.0, %v1923
      %v1925 = vpop.f32.mrb[0].mxu0
      %v1926 = vpop.f32.mrb[0].mxu0
      %v1927 = vpop.f32.mrb[0].mxu0
      %1928 = vdwg.mxu0
      %1929 = vrot.lane.b32.xlu0 %v1587, 104
      %v1930 = vpop.permute.xlu0 %1929
      %1931 = vrot.lane.b32.xlu0 %v1588, 104
      %v1932 = vpop.permute.xlu0 %1931
      %v1934 = vsel %vm882, %v1930, 0
      %v1937 = vsel %vm882, %v1932, 0
      %1939 = vmatprep.subr.bf16.mxu0 0
      %1940 = vmatpush1.bf16.xpose.msra.mxu0 %v1937
      %1941 = vmatprep.subr.bf16.mxu0 0
      %1942 = vmatpush1.bf16.xpose.msra.mxu0 0
      %1943 = vmatprep.subr.bf16.mxu0 0
      %1944 = vmatpush1.bf16.xpose.msra.mxu0 0
      %1945 = vmatprep.subr.bf16.mxu0 0
      %1946 = vmatpush1.bf16.xpose.msra.mxu0 0
      %1947 = vmatprep.subr.bf16.mxu0 0
      %1948 = vmatpush1.bf16.xpose.msra.mxu0 0
      %1949 = vmatprep.subr.bf16.mxu0 0
      %1950 = vmatpush1.bf16.xpose.msra.mxu0 0
      %1951 = vmatprep.subr.bf16.mxu0 0
      %1952 = vmatpush1.bf16.xpose.msra.mxu0 0
      %1953 = vmatprep.subr.bf16.mxu0 0
      %1954 = vmatpush1.bf16.xpose.msra.mxu0 0
      %1955 = vmatprep.subr.bf16.mxu0 0
      %1956 = vmatpush1.bf16.xpose.msra.mxu0 0
      %1957 = vmatprep.subr.bf16.mxu0 0
      %1958 = vmatpush1.bf16.xpose.msra.mxu0 0
      %1959 = vmatprep.subr.bf16.mxu0 0
      %1960 = vmatpush1.bf16.xpose.msra.mxu0 0
      %1961 = vmatprep.subr.bf16.mxu0 0
      %1962 = vmatpush1.bf16.xpose.msra.mxu0 0
      %1963 = vmatprep.subr.bf16.mxu0 0
      %1964 = vmatpush1.bf16.xpose.msra.mxu0 0
      %1965 = vmatprep.subr.bf16.mxu0 0
      %1966 = vmatpush1.bf16.xpose.msra.mxu0 0
      %1967 = vmatprep.subr.bf16.mxu0 0
      %1968 = vmatpush1.bf16.xpose.msra.mxu0 0
      %1969 = vmatprep.subr.bf16.mxu0 0
      %1970 = vmatpush1.bf16.xpose.msra.mxu0 0
      %1971 = vmatprep.mubr.bf16.mxu0 0
      %1972 = vmatmul.mubr.bf16.gmra.mrb[0].mxu0 %v1934
      %v1973 = vpop.f32.mrb[0].mxu0
      %v1974 = vadd.f32 0.0, %v1973
      %v1975 = vpop.f32.mrb[0].mxu0
      %v1976 = vpop.f32.mrb[0].mxu0
      %v1977 = vpop.f32.mrb[0].mxu0
      %1978 = vdwg.mxu0
      %v1979 = vmul.f32 %v1974, 0.35355338
      %v1980 = vadd.f32 %v1979, %v1640
      %v1981 = vsel %vm882, %v1980, -inf
      %1982 = vmax.xlane.f32.xlu0 %v1981
      %v1983 = vpop.xlane.xlu0 %1982
      %v1984 = vsub.f32 %v1980, %v1983
      %v1985 = vmul.f32 %v1984, 1.442695
      %v1986 = vpow.pop %v1985
      %v1987 = vsel %vm882, %v1986, 0.0
      %1988 = vadd.xlane.f32.xlu0 %v1987
      %v1989 = vpop.xlane.xlu0 %1988
      %v1990 = vrcp.pop %v1989
      %v1991 = vmul.f32 %v1986, %v1990
      %v1992 = vpack.c.bf16 %v1991, %v1991
      %1993 = vrot.lane.b32.xlu0 %v1588, 72
      %v1994 = vpop.permute.xlu0 %1993
      %v1996 = vsel %vm882, %v1992, 0
      %v1999 = vsel %vm955, %v1994, 0
      %2001 = vmatprep.subr.bf16.mxu0 0
      %2002 = vmatpush1.bf16.msra.mxu0 %v1999
      %2003 = vmatprep.subr.bf16.mxu0 0
      %2004 = vmatpush1.bf16.msra.mxu0 0
      %2005 = vmatprep.subr.bf16.mxu0 0
      %2006 = vmatpush1.bf16.msra.mxu0 0
      %2007 = vmatprep.subr.bf16.mxu0 0
      %2008 = vmatpush1.bf16.msra.mxu0 0
      %2009 = vmatprep.subr.bf16.mxu0 0
      %2010 = vmatpush1.bf16.msra.mxu0 0
      %2011 = vmatprep.subr.bf16.mxu0 0
      %2012 = vmatpush1.bf16.msra.mxu0 0
      %2013 = vmatprep.subr.bf16.mxu0 0
      %2014 = vmatpush1.bf16.msra.mxu0 0
      %2015 = vmatprep.subr.bf16.mxu0 0
      %2016 = vmatpush1.bf16.msra.mxu0 0
      %2017 = vmatprep.subr.bf16.mxu0 0
      %2018 = vmatpush1.bf16.msra.mxu0 0
      %2019 = vmatprep.subr.bf16.mxu0 0
      %2020 = vmatpush1.bf16.msra.mxu0 0
      %2021 = vmatprep.subr.bf16.mxu0 0
      %2022 = vmatpush1.bf16.msra.mxu0 0
      %2023 = vmatprep.subr.bf16.mxu0 0
      %2024 = vmatpush1.bf16.msra.mxu0 0
      %2025 = vmatprep.subr.bf16.mxu0 0
      %2026 = vmatpush1.bf16.msra.mxu0 0
      %2027 = vmatprep.subr.bf16.mxu0 0
      %2028 = vmatpush1.bf16.msra.mxu0 0
      %2029 = vmatprep.subr.bf16.mxu0 0
      %2030 = vmatpush1.bf16.msra.mxu0 0
      %2031 = vmatprep.subr.bf16.mxu0 0
      %2032 = vmatpush1.bf16.msra.mxu0 0
      %2033 = vmatprep.mubr.bf16.mxu0 0
      %2034 = vmatmul.mubr.bf16.gmra.mrb[0].mxu0 %v1996
      %v2035 = vpop.f32.mrb[0].mxu0
      %v2036 = vadd.f32 0.0, %v2035
      %v2037 = vpop.f32.mrb[0].mxu0
      %v2038 = vpop.f32.mrb[0].mxu0
      %v2039 = vpop.f32.mrb[0].mxu0
      %2040 = vdwg.mxu0
      %2042 = vrot.lane.b32.xlu0 %v1812, 8
      %v2043 = vpop.permute.xlu0 %2042
      %2046 = vrot.lane.b32.xlu0 %v1924, 16
      %v2047 = vpop.permute.xlu0 %2046
      %2050 = vrot.lane.b32.xlu0 %v2036, 24
      %v2051 = vpop.permute.xlu0 %2050
      %v2053 = vsel %vm882, %v1699, %v2043
      %v2054 = vsel %vm1351, %v2053, %v2047
      %v2055 = vsel %vm1353, %v2054, %v2051
      %v2056 = vpack.c.bf16 %v2055, %v2055
      %v2057 = vld [vmem:[%s15] sm:$0xf]
      %v2058 = vld [vmem:[%s15 + $0x4] sm:$0xf]
      %v2059 = vld [vmem:[%s15 + $0x8] sm:$0xf]
      %v2060 = vld [vmem:[%s15 + $0xc] sm:$0xf]
      %v2061 = vld [vmem:[%s16] sm:$0x1]
      %v2063 = vlaneseq
      %v2064 = vshrl.u32 %v2063, 7
      %v2065 = vsub.s32 0, %v2064
      %v2066 = vrot.slane %v2061, %v2065
      %v2072 = vunpack.c.l.b16 %v2057
      %v2073 = vunpack.c.l.b16 %v2058
      %v2074 = vunpack.c.l.b16 %v2059
      %v2075 = vunpack.c.l.b16 %v2060
      %v2076 = vpack.c.b16 %v2073, %v2072
      %v2077 = vpack.c.b16 %v2075, %v2074
      %v2081 = vsel %vm832, %v2056, 0
      %2083 = vmatprep.subr.bf16.mxu0 0
      %2084 = vmatpush1.bf16.msra.mxu0 %v2076
      %2085 = vmatprep.subr.bf16.mxu0 0
      %2086 = vmatpush1.bf16.msra.mxu0 %v2077
      %2087 = vmatprep.subr.bf16.mxu0 0
      %2088 = vmatpush1.bf16.msra.mxu0 0
      %2089 = vmatprep.subr.bf16.mxu0 0
      %2090 = vmatpush1.bf16.msra.mxu0 0
      %2091 = vmatprep.subr.bf16.mxu0 0
      %2092 = vmatpush1.bf16.msra.mxu0 0
      %2093 = vmatprep.subr.bf16.mxu0 0
      %2094 = vmatpush1.bf16.msra.mxu0 0
      %2095 = vmatprep.subr.bf16.mxu0 0
      %2096 = vmatpush1.bf16.msra.mxu0 0
      %2097 = vmatprep.subr.bf16.mxu0 0
      %2098 = vmatpush1.bf16.msra.mxu0 0
      %2099 = vmatprep.subr.bf16.mxu0 0
      %2100 = vmatpush1.bf16.msra.mxu0 0
      %2101 = vmatprep.subr.bf16.mxu0 0
      %2102 = vmatpush1.bf16.msra.mxu0 0
      %2103 = vmatprep.subr.bf16.mxu0 0
      %2104 = vmatpush1.bf16.msra.mxu0 0
      %2105 = vmatprep.subr.bf16.mxu0 0
      %2106 = vmatpush1.bf16.msra.mxu0 0
      %2107 = vmatprep.subr.bf16.mxu0 0
      %2108 = vmatpush1.bf16.msra.mxu0 0
      %2109 = vmatprep.subr.bf16.mxu0 0
      %2110 = vmatpush1.bf16.msra.mxu0 0
      %2111 = vmatprep.subr.bf16.mxu0 0
      %2112 = vmatpush1.bf16.msra.mxu0 0
      %2113 = vmatprep.subr.bf16.mxu0 0
      %2114 = vmatpush1.bf16.msra.mxu0 0
      %2115 = vmatprep.mubr.bf16.mxu0 0
      %2116 = vmatmul.mubr.bf16.gmra.mrb[0].mxu0 %v2081
      %v2117 = vpop.f32.mrb[0].mxu0
      %v2118 = vadd.f32 %v2066, %v2117
      %v2119 = vpop.f32.mrb[0].mxu0
      %v2120 = vpop.f32.mrb[0].mxu0
      %v2121 = vpop.f32.mrb[0].mxu0
      %2122 = vdwg.mxu0
      %v2123 = vadd.f32 %v1452, %v2118
      %v2124 = vld [vmem:[%s17] sm:$0x1]
      %v2125 = vld [vmem:[%s18] sm:$0x1]
      %v2126 = vsel %vm832, %v2123, 0.0
      %2127 = vadd.xlane.f32.xlu0 %v2126
      %v2128 = vpop.xlane.xlu0 %2127
      %v2129 = vmul.f32 %v2128, %v1428
      %v2130 = vsub.f32 %v2123, %v2129
      %v2131 = vmul.f32 %v2130, %v2130
      %v2132 = vsel %vm832, %v2131, 0.0
      %2133 = vadd.xlane.f32.xlu0 %v2132
      %v2134 = vpop.xlane.xlu0 %2133
      %v2135 = vmul.f32 %v2134, %v1428
      %v2136 = vadd.f32 %v2135, 1e-05
      %v2137 = vrsqrt.pop %v2136
      %v2138 = vmul.f32 %v2130, %v2137
      %v2140 = vlaneseq
      %v2141 = vshrl.u32 %v2140, 7
      %v2142 = vsub.s32 0, %v2141
      %v2143 = vrot.slane %v2124, %v2142
      %v2145 = vmul.f32 %v2138, %v2143
      %v2147 = vlaneseq
      %v2148 = vshrl.u32 %v2147, 7
      %v2149 = vsub.s32 0, %v2148
      %v2150 = vrot.slane %v2125, %v2149
      %v2152 = vadd.f32 %v2145, %v2150
      %v2153 = vpack.c.bf16 %v2152, %v2152
      %v2154 = vld [vmem:[%s19] sm:$0xf]
      %v2155 = vld [vmem:[%s19 + $0x4] sm:$0xf]
      %v2156 = vld [vmem:[%s19 + $0x8] sm:$0xf]
      %v2157 = vld [vmem:[%s19 + $0xc] sm:$0xf]
      %v2158 = vld [vmem:[%s20] sm:$0x1]
      %v2160 = vlaneseq
      %v2161 = vshrl.u32 %v2160, 7
      %v2162 = vsub.s32 0, %v2161
      %v2163 = vrot.slane %v2158, %v2162
      %v2169 = vunpack.c.l.b16 %v2154
      %v2170 = vunpack.c.l.b16 %v2155
      %v2171 = vunpack.c.l.b16 %v2156
      %v2172 = vunpack.c.l.b16 %v2157
      %v2173 = vpack.c.b16 %v2170, %v2169
      %v2174 = vpack.c.b16 %v2172, %v2171
      %v2178 = vsel %vm832, %v2153, 0
      %2180 = vmatprep.subr.bf16.mxu0 0
      %2181 = vmatpush1.bf16.msra.mxu0 %v2173
      %2182 = vmatprep.subr.bf16.mxu0 0
      %2183 = vmatpush1.bf16.msra.mxu0 %v2174
      %2184 = vmatprep.subr.bf16.mxu0 0
      %2185 = vmatpush1.bf16.msra.mxu0 0
      %2186 = vmatprep.subr.bf16.mxu0 0
      %2187 = vmatpush1.bf16.msra.mxu0 0
      %2188 = vmatprep.subr.bf16.mxu0 0
      %2189 = vmatpush1.bf16.msra.mxu0 0
      %2190 = vmatprep.subr.bf16.mxu0 0
      %2191 = vmatpush1.bf16.msra.mxu0 0
      %2192 = vmatprep.subr.bf16.mxu0 0
      %2193 = vmatpush1.bf16.msra.mxu0 0
      %2194 = vmatprep.subr.bf16.mxu0 0
      %2195 = vmatpush1.bf16.msra.mxu0 0
      %2196 = vmatprep.subr.bf16.mxu0 0
      %2197 = vmatpush1.bf16.msra.mxu0 0
      %2198 = vmatprep.subr.bf16.mxu0 0
      %2199 = vmatpush1.bf16.msra.mxu0 0
      %2200 = vmatprep.subr.bf16.mxu0 0
      %2201 = vmatpush1.bf16.msra.mxu0 0
      %2202 = vmatprep.subr.bf16.mxu0 0
      %2203 = vmatpush1.bf16.msra.mxu0 0
      %2204 = vmatprep.subr.bf16.mxu0 0
      %2205 = vmatpush1.bf16.msra.mxu0 0
      %2206 = vmatprep.subr.bf16.mxu0 0
      %2207 = vmatpush1.bf16.msra.mxu0 0
      %2208 = vmatprep.subr.bf16.mxu0 0
      %2209 = vmatpush1.bf16.msra.mxu0 0
      %2210 = vmatprep.subr.bf16.mxu0 0
      %2211 = vmatpush1.bf16.msra.mxu0 0
      %2212 = vmatprep.mubr.bf16.mxu0 0
      %2213 = vmatmul.mubr.bf16.gmra.mrb[0].mxu0 %v2178
      %v2214 = vpop.f32.mrb[0].mxu0
      %v2215 = vadd.f32 %v2163, %v2214
      %v2216 = vpop.f32.mrb[0].mxu0
      %v2217 = vpop.f32.mrb[0].mxu0
      %v2218 = vpop.f32.mrb[0].mxu0
      %2219 = vdwg.mxu0
      %v2220 = vmax.f32 %v2215, 0.0
      %v2221 = vpack.c.bf16 %v2220, %v2220
      %v2222 = vld [vmem:[%s21] sm:$0xf]
      %v2223 = vld [vmem:[%s21 + $0x4] sm:$0xf]
      %v2224 = vld [vmem:[%s21 + $0x8] sm:$0xf]
      %v2225 = vld [vmem:[%s21 + $0xc] sm:$0xf]
      %v2226 = vld [vmem:[%s21 + $0x10] sm:$0xf]
      %v2227 = vld [vmem:[%s21 + $0x14] sm:$0xf]
      %v2228 = vld [vmem:[%s21 + $0x18] sm:$0xf]
      %v2229 = vld [vmem:[%s21 + $0x1c] sm:$0xf]
      %v2230 = vld [vmem:[%s22] sm:$0x1]
      %v2232 = vlaneseq
      %v2233 = vshrl.u32 %v2232, 7
      %v2234 = vsub.s32 0, %v2233
      %v2235 = vrot.slane %v2230, %v2234
      %v2245 = vunpack.c.l.b16 %v2222
      %v2246 = vunpack.c.l.b16 %v2223
      %v2247 = vunpack.c.l.b16 %v2224
      %v2248 = vunpack.c.l.b16 %v2225
      %v2249 = vunpack.c.l.b16 %v2226
      %v2250 = vunpack.c.l.b16 %v2227
      %v2251 = vunpack.c.l.b16 %v2228
      %v2252 = vunpack.c.l.b16 %v2229
      %v2253 = vpack.c.b16 %v2246, %v2245
      %v2254 = vpack.c.b16 %v2248, %v2247
      %v2255 = vpack.c.b16 %v2250, %v2249
      %v2256 = vpack.c.b16 %v2252, %v2251
      %vm2261 = vcmask 523264
      %v2263 = vsel %vm2261, %v2221, 0
      %2265 = vmatprep.subr.bf16.mxu0 0
      %2266 = vmatpush1.bf16.msra.mxu0 %v2253
      %2267 = vmatprep.subr.bf16.mxu0 0
      %2268 = vmatpush1.bf16.msra.mxu0 %v2254
      %2269 = vmatprep.subr.bf16.mxu0 0
      %2270 = vmatpush1.bf16.msra.mxu0 %v2255
      %2271 = vmatprep.subr.bf16.mxu0 0
      %2272 = vmatpush1.bf16.msra.mxu0 %v2256
      %2273 = vmatprep.subr.bf16.mxu0 0
      %2274 = vmatpush1.bf16.msra.mxu0 0
      %2275 = vmatprep.subr.bf16.mxu0 0
      %2276 = vmatpush1.bf16.msra.mxu0 0
      %2277 = vmatprep.subr.bf16.mxu0 0
      %2278 = vmatpush1.bf16.msra.mxu0 0
      %2279 = vmatprep.subr.bf16.mxu0 0
      %2280 = vmatpush1.bf16.msra.mxu0 0
      %2281 = vmatprep.subr.bf16.mxu0 0
      %2282 = vmatpush1.bf16.msra.mxu0 0
      %2283 = vmatprep.subr.bf16.mxu0 0
      %2284 = vmatpush1.bf16.msra.mxu0 0
      %2285 = vmatprep.subr.bf16.mxu0 0
      %2286 = vmatpush1.bf16.msra.mxu0 0
      %2287 = vmatprep.subr.bf16.mxu0 0
      %2288 = vmatpush1.bf16.msra.mxu0 0
      %2289 = vmatprep.subr.bf16.mxu0 0
      %2290 = vmatpush1.bf16.msra.mxu0 0
      %2291 = vmatprep.subr.bf16.mxu0 0
      %2292 = vmatpush1.bf16.msra.mxu0 0
      %2293 = vmatprep.subr.bf16.mxu0 0
      %2294 = vmatpush1.bf16.msra.mxu0 0
      %2295 = vmatprep.subr.bf16.mxu0 0
      %2296 = vmatpush1.bf16.msra.mxu0 0
      %2297 = vmatprep.mubr.bf16.mxu0 0
      %2298 = vmatmul.mubr.bf16.gmra.mrb[0].mxu0 %v2263
      %v2299 = vpop.f32.mrb[0].mxu0
      %v2300 = vadd.f32 %v2235, %v2299
      %v2301 = vpop.f32.mrb[0].mxu0
      %v2302 = vpop.f32.mrb[0].mxu0
      %v2303 = vpop.f32.mrb[0].mxu0
      %2304 = vdwg.mxu0
      %v2305 = vadd.f32 %v2152, %v2300
      %v2306 = vld [vmem:[%s23] sm:$0x1]
      %v2307 = vld [vmem:[%s24] sm:$0x1]
      %v2308 = vsel %vm832, %v2305, 0.0
      %2309 = vadd.xlane.f32.xlu0 %v2308
      %v2310 = vpop.xlane.xlu0 %2309
      %v2311 = vmul.f32 %v2310, %v1428
      %v2312 = vsub.f32 %v2305, %v2311
      %v2313 = vmul.f32 %v2312, %v2312
      %v2314 = vsel %vm832, %v2313, 0.0
      %2315 = vadd.xlane.f32.xlu0 %v2314
      %v2316 = vpop.xlane.xlu0 %2315
      %v2317 = vmul.f32 %v2316, %v1428
      %v2318 = vadd.f32 %v2317, 1e-05
      %v2319 = vrsqrt.pop %v2318
      %v2320 = vmul.f32 %v2312, %v2319
      %v2322 = vlaneseq
      %v2323 = vshrl.u32 %v2322, 7
      %v2324 = vsub.s32 0, %v2323
      %v2325 = vrot.slane %v2306, %v2324
      %v2327 = vmul.f32 %v2320, %v2325
      %v2329 = vlaneseq
      %v2330 = vshrl.u32 %v2329, 7
      %v2331 = vsub.s32 0, %v2330
      %v2332 = vrot.slane %v2307, %v2331
      %v2334 = vadd.f32 %v2327, %v2332
      %2335 = vst.msk [vmem:[%s804] sm:$0xff] %vm832, %v2334
      %p2336 = scmp.lt.s32.totalorder %s36, 1
      %s2337 = scalar_select %p2336, %s36, 1
      %s2338 = smul.addr %s2337, 8
      %s2339 = scalar_lea.vmem %s25, %s2338
      // Predicated region
      $region121: #{seq2seq_transformer_forward.11} parent=119 // pred_check
        %p2340 = pneg %p599
      $region122: #{seq2seq_transformer_forward.11} parent=119 // pred_check_branch
        %2342 = sbr.rel (%p2340) target = $region124
      $region123: #{seq2seq_transformer_forward.11} parent=119 // pred_region
        _
      $region124: #{seq2seq_transformer_forward.11} parent=119 // pred_fallthru
        _
    $region120: #{seq2seq_transformer_forward.11} parent=5 // pred_fallthru
      _
    %p2343 = scmp.le.s32.totalorder 2, %s31
    // Predicated region
    $region125: #{seq2seq_transformer_forward.11} parent=5 // pred_check
      %p2344 = pneg %p2343
    $region126: #{seq2seq_transformer_forward.11} parent=5 // pred_check_branch
      %2346 = sbr.rel (%p2344) target = $region128
    $region127: #{seq2seq_transformer_forward.11} parent=5 // pred_region
      %s2347 = ssub.s32 %s31, 2
      // Predicated region
      $region129: #{seq2seq_transformer_forward.11} parent=127 // pred_check
        %p2348 = pneg %p605
      $region130: #{seq2seq_transformer_forward.11} parent=127 // pred_check_branch
        %2350 = sbr.rel (%p2348) target = $region132
      $region131: #{seq2seq_transformer_forward.11} parent=127 // pred_region
        %p2351 = scmp.lt.s32.totalorder %s37, 1
        %s2352 = scalar_select %p2351, %s37, 1
        %s2353 = smul.addr %s2352, 8
        %s2354 = scalar_lea.vmem %s25, %s2353
      $region132: #{seq2seq_transformer_forward.11} parent=127 // pred_fallthru
        _
    $region128: #{seq2seq_transformer_forward.11} parent=5 // pred_fallthru
      _
  $region6: #{seq2seq_transformer_forward.11} parent=0 // loop_footer
    %s35 = sadd.s32 1, %s31
  $region7: #{seq2seq_transformer_forward.11} parent=0 // loop_footer_branch
    %30 = sbr.rel target = $region3
  $region8: #{seq2seq_transformer_forward.11} parent=0 // loop_exit
    _

// kernel: seq2seq_transformer_forward.12
$region0: #{seq2seq_transformer_forward.12}
  #allocation0 [shape = 'u32[]', space=smem, size = 0x4, offset = 0x4, fixed_abs, tag = 'smem constant byte address 0x4 - core index']
  #allocation1 [shape = 'u32[144,128]{1,0:T(1,128)}', space=vmem, size = 0x12000, scoped, tag = 'internal scratch']
  %s0 = inlined_call_operand.vmem [shape: f32[2,8,32], index: 0, kind: input, shape index: {}]
  %s1 = inlined_call_operand.vmem [shape: bf16[2,8,32], index: 1, kind: input, shape index: {}]
  %s2 = inlined_call_operand.vmem [shape: f32[8,8], index: 2, kind: input, shape index: {}]
  %s3 = inlined_call_operand.vmem [shape: f32[2,1,8], index: 3, kind: input, shape index: {}]
  %s4 = inlined_call_operand.vmem [shape: f32[2,1,8], index: 4, kind: input, shape index: {}]
  %s5 = inlined_call_operand.vmem [shape: bf16[32,96], index: 5, kind: input, shape index: {}]
  %s6 = inlined_call_operand.vmem [shape: f32[1,96], index: 6, kind: input, shape index: {}]
  %s7 = inlined_call_operand.vmem [shape: bf16[32,32], index: 7, kind: input, shape index: {}]
  %s8 = inlined_call_operand.vmem [shape: f32[1,32], index: 8, kind: input, shape index: {}]
  %s9 = inlined_call_operand.vmem [shape: f32[1,32], index: 9, kind: input, shape index: {}]
  %s10 = inlined_call_operand.vmem [shape: f32[1,32], index: 10, kind: input, shape index: {}]
  %s11 = inlined_call_operand.vmem [shape: bf16[32,32], index: 11, kind: input, shape index: {}]
  %s12 = inlined_call_operand.vmem [shape: f32[1,32], index: 12, kind: input, shape index: {}]
  %s13 = inlined_call_operand.vmem [shape: bf16[32,64], index: 13, kind: input, shape index: {}]
  %s14 = inlined_call_operand.vmem [shape: f32[1,64], index: 14, kind: input, shape index: {}]
  %s15 = inlined_call_operand.vmem [shape: bf16[32,32], index: 15, kind: input, shape index: {}]
  %s16 = inlined_call_operand.vmem [shape: f32[1,32], index: 16, kind: input, shape index: {}]
  %s17 = inlined_call_operand.vmem [shape: f32[1,32], index: 17, kind: input, shape index: {}]
  %s18 = inlined_call_operand.vmem [shape: f32[1,32], index: 18, kind: input, shape index: {}]
  %s19 = inlined_call_operand.vmem [shape: bf16[32,64], index: 19, kind: input, shape index: {}]
  %s20 = inlined_call_operand.vmem [shape: f32[1,64], index: 20, kind: input, shape index: {}]
  %s21 = inlined_call_operand.vmem [shape: bf16[64,32], index: 21, kind: input, shape index: {}]
  %s22 = inlined_call_operand.vmem [shape: f32[1,32], index: 22, kind: input, shape index: {}]
  %s23 = inlined_call_operand.vmem [shape: f32[1,32], index: 23, kind: input, shape index: {}]
  %s24 = inlined_call_operand.hbm [shape: f32[1,32], index: 24, kind: input, shape index: {}]
  %s25 = inlined_call_operand.vmem [shape: f32[2,8,32], index: 25, kind: output, shape index: {}]
  %s26 = sld [smem:[#allocation0]]
  $region137: #{seq2seq_transformer_forward.12} parent=0
    _
  %s28 = ssub.s32 1, %s26
  %s29 = scalar_select 0, %s28, %s26
  $region1: #{seq2seq_transformer_forward.12} parent=0
    #allocation2 [shape = 'u8[512]{0}', space=vmem, size = 0x400, scoped, tag = 'input window, operand 24, single buffered']
    #allocation3 [shape = 's32[2]{0}', space=sflag, size = 0x8, scoped, tag = 'scoped memory for seq2seq_transformer_forward.12']
    %30 = vsyncpa [#allocation3], 0
    loop: start=0, step=1, limit=4
    $region2: #{seq2seq_transformer_forward.12} parent=1 // loop_pre_header
      _
    $region3: #{seq2seq_transformer_forward.12} parent=1 // loop_header
      %s32 = sphi 0, %s36
      %p33 = scmp.ge.s32.totalorder %s32, 4
      %s42 = sphi 0, %s44
      %s45 = sphi 0, %s42
      %s46 = sphi 0, %s45
      %s62 = sphi 0, %s46
      %s68 = sphi 0, %s70
      %s71 = sphi 0, %s68
      %s72 = sphi 0, %s71
      %s88 = sphi 0, %s72
      %s92 = sphi 0, %s92
      %s94 = sphi 0, %s92
      %s95 = sphi 0, %s94
      %s109 = sphi 0, %s95
      %s115 = sphi 0, %s117
      %s118 = sphi 0, %s115
      %s119 = sphi 0, %s118
      %s135 = sphi 0, %s119
      %s141 = sphi 0, %s143
      %s144 = sphi 0, %s141
      %s145 = sphi 0, %s144
      %s161 = sphi 0, %s145
      %s165 = sphi 0, %s165
      %s167 = sphi 0, %s165
      %s168 = sphi 0, %s167
      %s182 = sphi 0, %s168
      %s186 = sphi 0, %s186
      %s188 = sphi 0, %s186
      %s189 = sphi 0, %s188
      %s203 = sphi 0, %s189
      %s207 = sphi 0, %s207
      %s209 = sphi 0, %s207
      %s210 = sphi 0, %s209
      %s224 = sphi 0, %s210
      %s228 = sphi 0, %s228
      %s230 = sphi 0, %s228
      %s231 = sphi 0, %s230
      %s245 = sphi 0, %s231
      %s249 = sphi 0, %s249
      %s251 = sphi 0, %s249
      %s252 = sphi 0, %s251
      %s266 = sphi 0, %s252
      %s270 = sphi 0, %s270
      %s272 = sphi 0, %s270
      %s273 = sphi 0, %s272
      %s287 = sphi 0, %s273
      %s291 = sphi 0, %s291
      %s293 = sphi 0, %s291
      %s294 = sphi 0, %s293
      %s308 = sphi 0, %s294
      %s312 = sphi 0, %s312
      %s314 = sphi 0, %s312
      %s315 = sphi 0, %s314
      %s329 = sphi 0, %s315
      %s333 = sphi 0, %s333
      %s335 = sphi 0, %s333
      %s336 = sphi 0, %s335
      %s350 = sphi 0, %s336
      %s354 = sphi 0, %s354
      %s356 = sphi 0, %s354
      %s357 = sphi 0, %s356
      %s371 = sphi 0, %s357
      %s375 = sphi 0, %s375
      %s377 = sphi 0, %s375
      %s378 = sphi 0, %s377
      %s392 = sphi 0, %s378
      %s396 = sphi 0, %s396
      %s398 = sphi 0, %s396
      %s399 = sphi 0, %s398
      %s413 = sphi 0, %s399
      %s417 = sphi 0, %s417
      %s419 = sphi 0, %s417
      %s420 = sphi 0, %s419
      %s434 = sphi 0, %s420
      %s438 = sphi 0, %s438
      %s440 = sphi 0, %s438
      %s441 = sphi 0, %s440
      %s455 = sphi 0, %s441
      %s459 = sphi 0, %s459
      %s461 = sphi 0, %s459
      %s462 = sphi 0, %s461
      %s476 = sphi 0, %s462
      %s480 = sphi 0, %s480
      %s482 = sphi 0, %s480
      %s483 = sphi 0, %s482
      %s497 = sphi 0, %s483
      %s501 = sphi 0, %s501
      %s503 = sphi 0, %s501
      %s504 = sphi 0, %s503
      %s518 = sphi 0, %s504
      %s522 = sphi 0, %s522
      %s524 = sphi 0, %s522
      %s525 = sphi 0, %s524
      %s539 = sphi 0, %s525
      %s543 = sphi 0, %s543
      %s545 = sphi 0, %s543
      %s546 = sphi 0, %s545
      %s560 = sphi 0, %s546
      %s564 = sphi 0, %s564
      %s566 = sphi 0, %s564
      %s567 = sphi 0, %s566
      %s581 = sphi 0, %s567
      %s587 = sphi 0, %s589
      %s590 = sphi 0, %s587
      %s591 = sphi 0, %s590
      %s607 = sphi 0, %s591
    $region4: #{seq2seq_transformer_forward.12} parent=1 // loop_header_branch
      %35 = sbr.rel (%p33) target = $region8
    $region5: #{seq2seq_transformer_forward.12} parent=1 // loop_body
      %s37 = ssub.s32 %s32, 1
      %s38 = ssub.s32 %s32, 2
      %s39 = sadd.s32 %s32, 1
      %s40 = ssub.s32 %s32, %s39
      %p41 = scmp.eq.s32.totalorder %s40, 0
      %s43 = sadd.s32 %s42, 1
      %s44 = scalar_select %p41, %s42, %s43
      %p47 = pneg %p41
      %p48 = scmp.eq.s32.totalorder %s32, 1
      %p49 = por %p47, %p48
      %p50 = scmp.ne.s32.totalorder %s42, %s45
      %p51 = scmp.eq.s32.totalorder %s32, 0
      %p52 = por %p50, %p51
      %p53 = scmp.ne.s32.totalorder %s42, %s45
      %p54 = scmp.eq.s32.totalorder %s37, 1
      %p55 = por %p53, %p54
      %p56 = scmp.ne.s32.totalorder %s45, %s46
      %p57 = scmp.eq.s32.totalorder %s37, 0
      %p58 = por %p56, %p57
      %p59 = scmp.ne.s32.totalorder %s45, %s46
      %p60 = scmp.eq.s32.totalorder %s38, 1
      %p61 = por %p59, %p60
      %p63 = scmp.ne.s32.totalorder %s46, %s62
      %p64 = scmp.eq.s32.totalorder %s38, 0
      %p65 = por %p63, %p64
      %s66 = ssub.s32 %s32, %s39
      %p67 = scmp.eq.s32.totalorder %s66, 0
      %s69 = sadd.s32 %s68, 1
      %s70 = scalar_select %p67, %s68, %s69
      %p73 = pneg %p67
      %p74 = scmp.eq.s32.totalorder %s32, 1
      %p75 = por %p73, %p74
      %p76 = scmp.ne.s32.totalorder %s68, %s71
      %p77 = scmp.eq.s32.totalorder %s32, 0
      %p78 = por %p76, %p77
      %p79 = scmp.ne.s32.totalorder %s68, %s71
      %p80 = scmp.eq.s32.totalorder %s37, 1
      %p81 = por %p79, %p80
      %p82 = scmp.ne.s32.totalorder %s71, %s72
      %p83 = scmp.eq.s32.totalorder %s37, 0
      %p84 = por %p82, %p83
      %p85 = scmp.ne.s32.totalorder %s71, %s72
      %p86 = scmp.eq.s32.totalorder %s38, 1
      %p87 = por %p85, %p86
      %p89 = scmp.ne.s32.totalorder %s72, %s88
      %p90 = scmp.eq.s32.totalorder %s38, 0
      %p91 = por %p89, %p90
      %s93 = sadd.s32 %s92, 1
      %p96 = scmp.eq.s32.totalorder %s32, 1
      %p97 = scmp.ne.s32.totalorder %s92, %s94
      %p98 = scmp.eq.s32.totalorder %s32, 0
      %p99 = por %p97, %p98
      %p100 = scmp.ne.s32.totalorder %s92, %s94
      %p101 = scmp.eq.s32.totalorder %s37, 1
      %p102 = por %p100, %p101
      %p103 = scmp.ne.s32.totalorder %s94, %s95
      %p104 = scmp.eq.s32.totalorder %s37, 0
      %p105 = por %p103, %p104
      %p106 = scmp.ne.s32.totalorder %s94, %s95
      %p107 = scmp.eq.s32.totalorder %s38, 1
      %p108 = por %p106, %p107
      %p110 = scmp.ne.s32.totalorder %s95, %s109
      %p111 = scmp.eq.s32.totalorder %s38, 0
      %p112 = por %p110, %p111
      %s113 = ssub.s32 %s32, %s39
      %p114 = scmp.eq.s32.totalorder %s113, 0
      %s116 = sadd.s32 %s115, 1
      %s117 = scalar_select %p114, %s115, %s116
      %p120 = pneg %p114
      %p121 = scmp.eq.s32.totalorder %s32, 1
      %p122 = por %p120, %p121
      %p123 = scmp.ne.s32.totalorder %s115, %s118
      %p124 = scmp.eq.s32.totalorder %s32, 0
      %p125 = por %p123, %p124
      %p126 = scmp.ne.s32.totalorder %s115, %s118
      %p127 = scmp.eq.s32.totalorder %s37, 1
      %p128 = por %p126, %p127
      %p129 = scmp.ne.s32.totalorder %s118, %s119
      %p130 = scmp.eq.s32.totalorder %s37, 0
      %p131 = por %p129, %p130
      %p132 = scmp.ne.s32.totalorder %s118, %s119
      %p133 = scmp.eq.s32.totalorder %s38, 1
      %p134 = por %p132, %p133
      %p136 = scmp.ne.s32.totalorder %s119, %s135
      %p137 = scmp.eq.s32.totalorder %s38, 0
      %p138 = por %p136, %p137
      %s139 = ssub.s32 %s32, %s39
      %p140 = scmp.eq.s32.totalorder %s139, 0
      %s142 = sadd.s32 %s141, 1
      %s143 = scalar_select %p140, %s141, %s142
      %p146 = pneg %p140
      %p147 = scmp.eq.s32.totalorder %s32, 1
      %p148 = por %p146, %p147
      %p149 = scmp.ne.s32.totalorder %s141, %s144
      %p150 = scmp.eq.s32.totalorder %s32, 0
      %p151 = por %p149, %p150
      %p152 = scmp.ne.s32.totalorder %s141, %s144
      %p153 = scmp.eq.s32.totalorder %s37, 1
      %p154 = por %p152, %p153
      %p155 = scmp.ne.s32.totalorder %s144, %s145
      %p156 = scmp.eq.s32.totalorder %s37, 0
      %p157 = por %p155, %p156
      %p158 = scmp.ne.s32.totalorder %s144, %s145
      %p159 = scmp.eq.s32.totalorder %s38, 1
      %p160 = por %p158, %p159
      %p162 = scmp.ne.s32.totalorder %s145, %s161
      %p163 = scmp.eq.s32.totalorder %s38, 0
      %p164 = por %p162, %p163
      %s166 = sadd.s32 %s165, 1
      %p169 = scmp.eq.s32.totalorder %s32, 1
      %p170 = scmp.ne.s32.totalorder %s165, %s167
      %p171 = scmp.eq.s32.totalorder %s32, 0
      %p172 = por %p170, %p171
      %p173 = scmp.ne.s32.totalorder %s165, %s167
      %p174 = scmp.eq.s32.totalorder %s37, 1
      %p175 = por %p173, %p174
      %p176 = scmp.ne.s32.totalorder %s167, %s168
      %p177 = scmp.eq.s32.totalorder %s37, 0
      %p178 = por %p176, %p177
      %p179 = scmp.ne.s32.totalorder %s167, %s168
      %p180 = scmp.eq.s32.totalorder %s38, 1
      %p181 = por %p179, %p180
      %p183 = scmp.ne.s32.totalorder %s168, %s182
      %p184 = scmp.eq.s32.totalorder %s38, 0
      %p185 = por %p183, %p184
      %s187 = sadd.s32 %s186, 1
      %p190 = scmp.eq.s32.totalorder %s32, 1
      %p191 = scmp.ne.s32.totalorder %s186, %s188
      %p192 = scmp.eq.s32.totalorder %s32, 0
      %p193 = por %p191, %p192
      %p194 = scmp.ne.s32.totalorder %s186, %s188
      %p195 = scmp.eq.s32.totalorder %s37, 1
      %p196 = por %p194, %p195
      %p197 = scmp.ne.s32.totalorder %s188, %s189
      %p198 = scmp.eq.s32.totalorder %s37, 0
      %p199 = por %p197, %p198
      %p200 = scmp.ne.s32.totalorder %s188, %s189
      %p201 = scmp.eq.s32.totalorder %s38, 1
      %p202 = por %p200, %p201
      %p204 = scmp.ne.s32.totalorder %s189, %s203
      %p205 = scmp.eq.s32.totalorder %s38, 0
      %p206 = por %p204, %p205
      %s208 = sadd.s32 %s207, 1
      %p211 = scmp.eq.s32.totalorder %s32, 1
      %p212 = scmp.ne.s32.totalorder %s207, %s209
      %p213 = scmp.eq.s32.totalorder %s32, 0
      %p214 = por %p212, %p213
      %p215 = scmp.ne.s32.totalorder %s207, %s209
      %p216 = scmp.eq.s32.totalorder %s37, 1
      %p217 = por %p215, %p216
      %p218 = scmp.ne.s32.totalorder %s209, %s210
      %p219 = scmp.eq.s32.totalorder %s37, 0
      %p220 = por %p218, %p219
      %p221 = scmp.ne.s32.totalorder %s209, %s210
      %p222 = scmp.eq.s32.totalorder %s38, 1
      %p223 = por %p221, %p222
      %p225 = scmp.ne.s32.totalorder %s210, %s224
      %p226 = scmp.eq.s32.totalorder %s38, 0
      %p227 = por %p225, %p226
      %s229 = sadd.s32 %s228, 1
      %p232 = scmp.eq.s32.totalorder %s32, 1
      %p233 = scmp.ne.s32.totalorder %s228, %s230
      %p234 = scmp.eq.s32.totalorder %s32, 0
      %p235 = por %p233, %p234
      %p236 = scmp.ne.s32.totalorder %s228, %s230
      %p237 = scmp.eq.s32.totalorder %s37, 1
      %p238 = por %p236, %p237
      %p239 = scmp.ne.s32.totalorder %s230, %s231
      %p240 = scmp.eq.s32.totalorder %s37, 0
      %p241 = por %p239, %p240
      %p242 = scmp.ne.s32.totalorder %s230, %s231
      %p243 = scmp.eq.s32.totalorder %s38, 1
      %p244 = por %p242, %p243
      %p246 = scmp.ne.s32.totalorder %s231, %s245
      %p247 = scmp.eq.s32.totalorder %s38, 0
      %p248 = por %p246, %p247
      %s250 = sadd.s32 %s249, 1
      %p253 = scmp.eq.s32.totalorder %s32, 1
      %p254 = scmp.ne.s32.totalorder %s249, %s251
      %p255 = scmp.eq.s32.totalorder %s32, 0
      %p256 = por %p254, %p255
      %p257 = scmp.ne.s32.totalorder %s249, %s251
      %p258 = scmp.eq.s32.totalorder %s37, 1
      %p259 = por %p257, %p258
      %p260 = scmp.ne.s32.totalorder %s251, %s252
      %p261 = scmp.eq.s32.totalorder %s37, 0
      %p262 = por %p260, %p261
      %p263 = scmp.ne.s32.totalorder %s251, %s252
      %p264 = scmp.eq.s32.totalorder %s38, 1
      %p265 = por %p263, %p264
      %p267 = scmp.ne.s32.totalorder %s252, %s266
      %p268 = scmp.eq.s32.totalorder %s38, 0
      %p269 = por %p267, %p268
      %s271 = sadd.s32 %s270, 1
      %p274 = scmp.eq.s32.totalorder %s32, 1
      %p275 = scmp.ne.s32.totalorder %s270, %s272
      %p276 = scmp.eq.s32.totalorder %s32, 0
      %p277 = por %p275, %p276
      %p278 = scmp.ne.s32.totalorder %s270, %s272
      %p279 = scmp.eq.s32.totalorder %s37, 1
      %p280 = por %p278, %p279
      %p281 = scmp.ne.s32.totalorder %s272, %s273
      %p282 = scmp.eq.s32.totalorder %s37, 0
      %p283 = por %p281, %p282
      %p284 = scmp.ne.s32.totalorder %s272, %s273
      %p285 = scmp.eq.s32.totalorder %s38, 1
      %p286 = por %p284, %p285
      %p288 = scmp.ne.s32.totalorder %s273, %s287
      %p289 = scmp.eq.s32.totalorder %s38, 0
      %p290 = por %p288, %p289
      %s292 = sadd.s32 %s291, 1
      %p295 = scmp.eq.s32.totalorder %s32, 1
      %p296 = scmp.ne.s32.totalorder %s291, %s293
      %p297 = scmp.eq.s32.totalorder %s32, 0
      %p298 = por %p296, %p297
      %p299 = scmp.ne.s32.totalorder %s291, %s293
      %p300 = scmp.eq.s32.totalorder %s37, 1
      %p301 = por %p299, %p300
      %p302 = scmp.ne.s32.totalorder %s293, %s294
      %p303 = scmp.eq.s32.totalorder %s37, 0
      %p304 = por %p302, %p303
      %p305 = scmp.ne.s32.totalorder %s293, %s294
      %p306 = scmp.eq.s32.totalorder %s38, 1
      %p307 = por %p305, %p306
      %p309 = scmp.ne.s32.totalorder %s294, %s308
      %p310 = scmp.eq.s32.totalorder %s38, 0
      %p311 = por %p309, %p310
      %s313 = sadd.s32 %s312, 1
      %p316 = scmp.eq.s32.totalorder %s32, 1
      %p317 = scmp.ne.s32.totalorder %s312, %s314
      %p318 = scmp.eq.s32.totalorder %s32, 0
      %p319 = por %p317, %p318
      %p320 = scmp.ne.s32.totalorder %s312, %s314
      %p321 = scmp.eq.s32.totalorder %s37, 1
      %p322 = por %p320, %p321
      %p323 = scmp.ne.s32.totalorder %s314, %s315
      %p324 = scmp.eq.s32.totalorder %s37, 0
      %p325 = por %p323, %p324
      %p326 = scmp.ne.s32.totalorder %s314, %s315
      %p327 = scmp.eq.s32.totalorder %s38, 1
      %p328 = por %p326, %p327
      %p330 = scmp.ne.s32.totalorder %s315, %s329
      %p331 = scmp.eq.s32.totalorder %s38, 0
      %p332 = por %p330, %p331
      %s334 = sadd.s32 %s333, 1
      %p337 = scmp.eq.s32.totalorder %s32, 1
      %p338 = scmp.ne.s32.totalorder %s333, %s335
      %p339 = scmp.eq.s32.totalorder %s32, 0
      %p340 = por %p338, %p339
      %p341 = scmp.ne.s32.totalorder %s333, %s335
      %p342 = scmp.eq.s32.totalorder %s37, 1
      %p343 = por %p341, %p342
      %p344 = scmp.ne.s32.totalorder %s335, %s336
      %p345 = scmp.eq.s32.totalorder %s37, 0
      %p346 = por %p344, %p345
      %p347 = scmp.ne.s32.totalorder %s335, %s336
      %p348 = scmp.eq.s32.totalorder %s38, 1
      %p349 = por %p347, %p348
      %p351 = scmp.ne.s32.totalorder %s336, %s350
      %p352 = scmp.eq.s32.totalorder %s38, 0
      %p353 = por %p351, %p352
      %s355 = sadd.s32 %s354, 1
      %p358 = scmp.eq.s32.totalorder %s32, 1
      %p359 = scmp.ne.s32.totalorder %s354, %s356
      %p360 = scmp.eq.s32.totalorder %s32, 0
      %p361 = por %p359, %p360
      %p362 = scmp.ne.s32.totalorder %s354, %s356
      %p363 = scmp.eq.s32.totalorder %s37, 1
      %p364 = por %p362, %p363
      %p365 = scmp.ne.s32.totalorder %s356, %s357
      %p366 = scmp.eq.s32.totalorder %s37, 0
      %p367 = por %p365, %p366
      %p368 = scmp.ne.s32.totalorder %s356, %s357
      %p369 = scmp.eq.s32.totalorder %s38, 1
      %p370 = por %p368, %p369
      %p372 = scmp.ne.s32.totalorder %s357, %s371
      %p373 = scmp.eq.s32.totalorder %s38, 0
      %p374 = por %p372, %p373
      %s376 = sadd.s32 %s375, 1
      %p379 = scmp.eq.s32.totalorder %s32, 1
      %p380 = scmp.ne.s32.totalorder %s375, %s377
      %p381 = scmp.eq.s32.totalorder %s32, 0
      %p382 = por %p380, %p381
      %p383 = scmp.ne.s32.totalorder %s375, %s377
      %p384 = scmp.eq.s32.totalorder %s37, 1
      %p385 = por %p383, %p384
      %p386 = scmp.ne.s32.totalorder %s377, %s378
      %p387 = scmp.eq.s32.totalorder %s37, 0
      %p388 = por %p386, %p387
      %p389 = scmp.ne.s32.totalorder %s377, %s378
      %p390 = scmp.eq.s32.totalorder %s38, 1
      %p391 = por %p389, %p390
      %p393 = scmp.ne.s32.totalorder %s378, %s392
      %p394 = scmp.eq.s32.totalorder %s38, 0
      %p395 = por %p393, %p394
      %s397 = sadd.s32 %s396, 1
      %p400 = scmp.eq.s32.totalorder %s32, 1
      %p401 = scmp.ne.s32.totalorder %s396, %s398
      %p402 = scmp.eq.s32.totalorder %s32, 0
      %p403 = por %p401, %p402
      %p404 = scmp.ne.s32.totalorder %s396, %s398
      %p405 = scmp.eq.s32.totalorder %s37, 1
      %p406 = por %p404, %p405
      %p407 = scmp.ne.s32.totalorder %s398, %s399
      %p408 = scmp.eq.s32.totalorder %s37, 0
      %p409 = por %p407, %p408
      %p410 = scmp.ne.s32.totalorder %s398, %s399
      %p411 = scmp.eq.s32.totalorder %s38, 1
      %p412 = por %p410, %p411
      %p414 = scmp.ne.s32.totalorder %s399, %s413
      %p415 = scmp.eq.s32.totalorder %s38, 0
      %p416 = por %p414, %p415
      %s418 = sadd.s32 %s417, 1
      %p421 = scmp.eq.s32.totalorder %s32, 1
      %p422 = scmp.ne.s32.totalorder %s417, %s419
      %p423 = scmp.eq.s32.totalorder %s32, 0
      %p424 = por %p422, %p423
      %p425 = scmp.ne.s32.totalorder %s417, %s419
      %p426 = scmp.eq.s32.totalorder %s37, 1
      %p427 = por %p425, %p426
      %p428 = scmp.ne.s32.totalorder %s419, %s420
      %p429 = scmp.eq.s32.totalorder %s37, 0
      %p430 = por %p428, %p429
      %p431 = scmp.ne.s32.totalorder %s419, %s420
      %p432 = scmp.eq.s32.totalorder %s38, 1
      %p433 = por %p431, %p432
      %p435 = scmp.ne.s32.totalorder %s420, %s434
      %p436 = scmp.eq.s32.totalorder %s38, 0
      %p437 = por %p435, %p436
      %s439 = sadd.s32 %s438, 1
      %p442 = scmp.eq.s32.totalorder %s32, 1
      %p443 = scmp.ne.s32.totalorder %s438, %s440
      %p444 = scmp.eq.s32.totalorder %s32, 0
      %p445 = por %p443, %p444
      %p446 = scmp.ne.s32.totalorder %s438, %s440
      %p447 = scmp.eq.s32.totalorder %s37, 1
      %p448 = por %p446, %p447
      %p449 = scmp.ne.s32.totalorder %s440, %s441
      %p450 = scmp.eq.s32.totalorder %s37, 0
      %p451 = por %p449, %p450
      %p452 = scmp.ne.s32.totalorder %s440, %s441
      %p453 = scmp.eq.s32.totalorder %s38, 1
      %p454 = por %p452, %p453
      %p456 = scmp.ne.s32.totalorder %s441, %s455
      %p457 = scmp.eq.s32.totalorder %s38, 0
      %p458 = por %p456, %p457
      %s460 = sadd.s32 %s459, 1
      %p463 = scmp.eq.s32.totalorder %s32, 1
      %p464 = scmp.ne.s32.totalorder %s459, %s461
      %p465 = scmp.eq.s32.totalorder %s32, 0
      %p466 = por %p464, %p465
      %p467 = scmp.ne.s32.totalorder %s459, %s461
      %p468 = scmp.eq.s32.totalorder %s37, 1
      %p469 = por %p467, %p468
      %p470 = scmp.ne.s32.totalorder %s461, %s462
      %p471 = scmp.eq.s32.totalorder %s37, 0
      %p472 = por %p470, %p471
      %p473 = scmp.ne.s32.totalorder %s461, %s462
      %p474 = scmp.eq.s32.totalorder %s38, 1
      %p475 = por %p473, %p474
      %p477 = scmp.ne.s32.totalorder %s462, %s476
      %p478 = scmp.eq.s32.totalorder %s38, 0
      %p479 = por %p477, %p478
      %s481 = sadd.s32 %s480, 1
      %p484 = scmp.eq.s32.totalorder %s32, 1
      %p485 = scmp.ne.s32.totalorder %s480, %s482
      %p486 = scmp.eq.s32.totalorder %s32, 0
      %p487 = por %p485, %p486
      %p488 = scmp.ne.s32.totalorder %s480, %s482
      %p489 = scmp.eq.s32.totalorder %s37, 1
      %p490 = por %p488, %p489
      %p491 = scmp.ne.s32.totalorder %s482, %s483
      %p492 = scmp.eq.s32.totalorder %s37, 0
      %p493 = por %p491, %p492
      %p494 = scmp.ne.s32.totalorder %s482, %s483
      %p495 = scmp.eq.s32.totalorder %s38, 1
      %p496 = por %p494, %p495
      %p498 = scmp.ne.s32.totalorder %s483, %s497
      %p499 = scmp.eq.s32.totalorder %s38, 0
      %p500 = por %p498, %p499
      %s502 = sadd.s32 %s501, 1
      %p505 = scmp.eq.s32.totalorder %s32, 1
      %p506 = scmp.ne.s32.totalorder %s501, %s503
      %p507 = scmp.eq.s32.totalorder %s32, 0
      %p508 = por %p506, %p507
      %p509 = scmp.ne.s32.totalorder %s501, %s503
      %p510 = scmp.eq.s32.totalorder %s37, 1
      %p511 = por %p509, %p510
      %p512 = scmp.ne.s32.totalorder %s503, %s504
      %p513 = scmp.eq.s32.totalorder %s37, 0
      %p514 = por %p512, %p513
      %p515 = scmp.ne.s32.totalorder %s503, %s504
      %p516 = scmp.eq.s32.totalorder %s38, 1
      %p517 = por %p515, %p516
      %p519 = scmp.ne.s32.totalorder %s504, %s518
      %p520 = scmp.eq.s32.totalorder %s38, 0
      %p521 = por %p519, %p520
      %s523 = sadd.s32 %s522, 1
      %p526 = scmp.eq.s32.totalorder %s32, 1
      %p527 = scmp.ne.s32.totalorder %s522, %s524
      %p528 = scmp.eq.s32.totalorder %s32, 0
      %p529 = por %p527, %p528
      %p530 = scmp.ne.s32.totalorder %s522, %s524
      %p531 = scmp.eq.s32.totalorder %s37, 1
      %p532 = por %p530, %p531
      %p533 = scmp.ne.s32.totalorder %s524, %s525
      %p534 = scmp.eq.s32.totalorder %s37, 0
      %p535 = por %p533, %p534
      %p536 = scmp.ne.s32.totalorder %s524, %s525
      %p537 = scmp.eq.s32.totalorder %s38, 1
      %p538 = por %p536, %p537
      %p540 = scmp.ne.s32.totalorder %s525, %s539
      %p541 = scmp.eq.s32.totalorder %s38, 0
      %p542 = por %p540, %p541
      %s544 = sadd.s32 %s543, 1
      %p547 = scmp.eq.s32.totalorder %s32, 1
      %p548 = scmp.ne.s32.totalorder %s543, %s545
      %p549 = scmp.eq.s32.totalorder %s32, 0
      %p550 = por %p548, %p549
      %p551 = scmp.ne.s32.totalorder %s543, %s545
      %p552 = scmp.eq.s32.totalorder %s37, 1
      %p553 = por %p551, %p552
      %p554 = scmp.ne.s32.totalorder %s545, %s546
      %p555 = scmp.eq.s32.totalorder %s37, 0
      %p556 = por %p554, %p555
      %p557 = scmp.ne.s32.totalorder %s545, %s546
      %p558 = scmp.eq.s32.totalorder %s38, 1
      %p559 = por %p557, %p558
      %p561 = scmp.ne.s32.totalorder %s546, %s560
      %p562 = scmp.eq.s32.totalorder %s38, 0
      %p563 = por %p561, %p562
      %s565 = sadd.s32 %s564, 1
      %p568 = scmp.eq.s32.totalorder %s32, 1
      %p569 = scmp.ne.s32.totalorder %s564, %s566
      %p570 = scmp.eq.s32.totalorder %s32, 0
      %p571 = por %p569, %p570
      %p572 = scmp.ne.s32.totalorder %s564, %s566
      %p573 = scmp.eq.s32.totalorder %s37, 1
      %p574 = por %p572, %p573
      %p575 = scmp.ne.s32.totalorder %s566, %s567
      %p576 = scmp.eq.s32.totalorder %s37, 0
      %p577 = por %p575, %p576
      %p578 = scmp.ne.s32.totalorder %s566, %s567
      %p579 = scmp.eq.s32.totalorder %s38, 1
      %p580 = por %p578, %p579
      %p582 = scmp.ne.s32.totalorder %s567, %s581
      %p583 = scmp.eq.s32.totalorder %s38, 0
      %p584 = por %p582, %p583
      %s585 = ssub.s32 %s32, %s39
      %p586 = scmp.eq.s32.totalorder %s585, 0
      %s588 = sadd.s32 %s587, 1
      %s589 = scalar_select %p586, %s587, %s588
      %p592 = pneg %p586
      %p593 = scmp.eq.s32.totalorder %s32, 1
      %p594 = por %p592, %p593
      %p595 = scmp.ne.s32.totalorder %s587, %s590
      %p596 = scmp.eq.s32.totalorder %s32, 0
      %p597 = por %p595, %p596
      %p598 = scmp.ne.s32.totalorder %s587, %s590
      %p599 = scmp.eq.s32.totalorder %s37, 1
      %p600 = por %p598, %p599
      %p601 = scmp.ne.s32.totalorder %s590, %s591
      %p602 = scmp.eq.s32.totalorder %s37, 0
      %p603 = por %p601, %p602
      %p604 = scmp.ne.s32.totalorder %s590, %s591
      %p605 = scmp.eq.s32.totalorder %s38, 1
      %p606 = por %p604, %p605
      %p608 = scmp.ne.s32.totalorder %s591, %s607
      %p609 = scmp.eq.s32.totalorder %s38, 0
      %p610 = por %p608, %p609
      %p611 = scmp.le.s32.totalorder 1, %s32
      %p612 = scmp.lt.s32.totalorder %s32, 3
      %p613 = pnand %p611, %p612
      %p614 = pneg %p613
      // Predicated region
      $region9: #{seq2seq_transformer_forward.12} parent=5 // pred_check
        _
      $region10: #{seq2seq_transformer_forward.12} parent=5 // pred_check_branch
        %616 = sbr.rel (%p613) target = $region12
      $region11: #{seq2seq_transformer_forward.12} parent=5 // pred_region
        %s617 = ssub.s32 %s32, 1
        // Predicated region
        $region13: #{seq2seq_transformer_forward.12} parent=11 // pred_check
          %p618 = pneg %p105
        $region14: #{seq2seq_transformer_forward.12} parent=11 // pred_check_branch
          %620 = sbr.rel (%p618) target = $region16
        $region15: #{seq2seq_transformer_forward.12} parent=11 // pred_region
          _
        $region16: #{seq2seq_transformer_forward.12} parent=11 // pred_fallthru
          _
        // Predicated region
        $region17: #{seq2seq_transformer_forward.12} parent=11 // pred_check
          %p621 = pneg %p178
        $region18: #{seq2seq_transformer_forward.12} parent=11 // pred_check_branch
          %623 = sbr.rel (%p621) target = $region20
        $region19: #{seq2seq_transformer_forward.12} parent=11 // pred_region
          _
        $region20: #{seq2seq_transformer_forward.12} parent=11 // pred_fallthru
          _
        // Predicated region
        $region21: #{seq2seq_transformer_forward.12} parent=11 // pred_check
          %p624 = pneg %p199
        $region22: #{seq2seq_transformer_forward.12} parent=11 // pred_check_branch
          %626 = sbr.rel (%p624) target = $region24
        $region23: #{seq2seq_transformer_forward.12} parent=11 // pred_region
          _
        $region24: #{seq2seq_transformer_forward.12} parent=11 // pred_fallthru
          _
        // Predicated region
        $region25: #{seq2seq_transformer_forward.12} parent=11 // pred_check
          %p627 = pneg %p220
        $region26: #{seq2seq_transformer_forward.12} parent=11 // pred_check_branch
          %629 = sbr.rel (%p627) target = $region28
        $region27: #{seq2seq_transformer_forward.12} parent=11 // pred_region
          _
        $region28: #{seq2seq_transformer_forward.12} parent=11 // pred_fallthru
          _
        // Predicated region
        $region29: #{seq2seq_transformer_forward.12} parent=11 // pred_check
          %p630 = pneg %p241
        $region30: #{seq2seq_transformer_forward.12} parent=11 // pred_check_branch
          %632 = sbr.rel (%p630) target = $region32
        $region31: #{seq2seq_transformer_forward.12} parent=11 // pred_region
          _
        $region32: #{seq2seq_transformer_forward.12} parent=11 // pred_fallthru
          _
        // Predicated region
        $region33: #{seq2seq_transformer_forward.12} parent=11 // pred_check
          %p633 = pneg %p262
        $region34: #{seq2seq_transformer_forward.12} parent=11 // pred_check_branch
          %635 = sbr.rel (%p633) target = $region36
        $region35: #{seq2seq_transformer_forward.12} parent=11 // pred_region
          _
        $region36: #{seq2seq_transformer_forward.12} parent=11 // pred_fallthru
          _
        // Predicated region
        $region37: #{seq2seq_transformer_forward.12} parent=11 // pred_check
          %p636 = pneg %p283
        $region38: #{seq2seq_transformer_forward.12} parent=11 // pred_check_branch
          %638 = sbr.rel (%p636) target = $region40
        $region39: #{seq2seq_transformer_forward.12} parent=11 // pred_region
          _
        $region40: #{seq2seq_transformer_forward.12} parent=11 // pred_fallthru
          _
        // Predicated region
        $region41: #{seq2seq_transformer_forward.12} parent=11 // pred_check
          %p639 = pneg %p304
        $region42: #{seq2seq_transformer_forward.12} parent=11 // pred_check_branch
          %641 = sbr.rel (%p639) target = $region44
        $region43: #{seq2seq_transformer_forward.12} parent=11 // pred_region
          _
        $region44: #{seq2seq_transformer_forward.12} parent=11 // pred_fallthru
          _
        // Predicated region
        $region45: #{seq2seq_transformer_forward.12} parent=11 // pred_check
          %p642 = pneg %p325
        $region46: #{seq2seq_transformer_forward.12} parent=11 // pred_check_branch
          %644 = sbr.rel (%p642) target = $region48
        $region47: #{seq2seq_transformer_forward.12} parent=11 // pred_region
          _
        $region48: #{seq2seq_transformer_forward.12} parent=11 // pred_fallthru
          _
        // Predicated region
        $region49: #{seq2seq_transformer_forward.12} parent=11 // pred_check
          %p645 = pneg %p346
        $region50: #{seq2seq_transformer_forward.12} parent=11 // pred_check_branch
          %647 = sbr.rel (%p645) target = $region52
        $region51: #{seq2seq_transformer_forward.12} parent=11 // pred_region
          _
        $region52: #{seq2seq_transformer_forward.12} parent=11 // pred_fallthru
          _
        // Predicated region
        $region53: #{seq2seq_transformer_forward.12} parent=11 // pred_check
          %p648 = pneg %p367
        $region54: #{seq2seq_transformer_forward.12} parent=11 // pred_check_branch
          %650 = sbr.rel (%p648) target = $region56
        $region55: #{seq2seq_transformer_forward.12} parent=11 // pred_region
          _
        $region56: #{seq2seq_transformer_forward.12} parent=11 // pred_fallthru
          _
        // Predicated region
        $region57: #{seq2seq_transformer_forward.12} parent=11 // pred_check
          %p651 = pneg %p388
        $region58: #{seq2seq_transformer_forward.12} parent=11 // pred_check_branch
          %653 = sbr.rel (%p651) target = $region60
        $region59: #{seq2seq_transformer_forward.12} parent=11 // pred_region
          _
        $region60: #{seq2seq_transformer_forward.12} parent=11 // pred_fallthru
          _
        // Predicated region
        $region61: #{seq2seq_transformer_forward.12} parent=11 // pred_check
          %p654 = pneg %p409
        $region62: #{seq2seq_transformer_forward.12} parent=11 // pred_check_branch
          %656 = sbr.rel (%p654) target = $region64
        $region63: #{seq2seq_transformer_forward.12} parent=11 // pred_region
          _
        $region64: #{seq2seq_transformer_forward.12} parent=11 // pred_fallthru
          _
        // Predicated region
        $region65: #{seq2seq_transformer_forward.12} parent=11 // pred_check
          %p657 = pneg %p430
        $region66: #{seq2seq_transformer_forward.12} parent=11 // pred_check_branch
          %659 = sbr.rel (%p657) target = $region68
        $region67: #{seq2seq_transformer_forward.12} parent=11 // pred_region
          _
        $region68: #{seq2seq_transformer_forward.12} parent=11 // pred_fallthru
          _
        // Predicated region
        $region69: #{seq2seq_transformer_forward.12} parent=11 // pred_check
          %p660 = pneg %p451
        $region70: #{seq2seq_transformer_forward.12} parent=11 // pred_check_branch
          %662 = sbr.rel (%p660) target = $region72
        $region71: #{seq2seq_transformer_forward.12} parent=11 // pred_region
          _
        $region72: #{seq2seq_transformer_forward.12} parent=11 // pred_fallthru
          _
        // Predicated region
        $region73: #{seq2seq_transformer_forward.12} parent=11 // pred_check
          %p663 = pneg %p472
        $region74: #{seq2seq_transformer_forward.12} parent=11 // pred_check_branch
          %665 = sbr.rel (%p663) target = $region76
        $region75: #{seq2seq_transformer_forward.12} parent=11 // pred_region
          _
        $region76: #{seq2seq_transformer_forward.12} parent=11 // pred_fallthru
          _
        // Predicated region
        $region77: #{seq2seq_transformer_forward.12} parent=11 // pred_check
          %p666 = pneg %p493
        $region78: #{seq2seq_transformer_forward.12} parent=11 // pred_check_branch
          %668 = sbr.rel (%p666) target = $region80
        $region79: #{seq2seq_transformer_forward.12} parent=11 // pred_region
          _
        $region80: #{seq2seq_transformer_forward.12} parent=11 // pred_fallthru
          _
        // Predicated region
        $region81: #{seq2seq_transformer_forward.12} parent=11 // pred_check
          %p669 = pneg %p514
        $region82: #{seq2seq_transformer_forward.12} parent=11 // pred_check_branch
          %671 = sbr.rel (%p669) target = $region84
        $region83: #{seq2seq_transformer_forward.12} parent=11 // pred_region
          _
        $region84: #{seq2seq_transformer_forward.12} parent=11 // pred_fallthru
          _
        // Predicated region
        $region85: #{seq2seq_transformer_forward.12} parent=11 // pred_check
          %p672 = pneg %p535
        $region86: #{seq2seq_transformer_forward.12} parent=11 // pred_check_branch
          %674 = sbr.rel (%p672) target = $region88
        $region87: #{seq2seq_transformer_forward.12} parent=11 // pred_region
          _
        $region88: #{seq2seq_transformer_forward.12} parent=11 // pred_fallthru
          _
        // Predicated region
        $region89: #{seq2seq_transformer_forward.12} parent=11 // pred_check
          %p675 = pneg %p556
        $region90: #{seq2seq_transformer_forward.12} parent=11 // pred_check_branch
          %677 = sbr.rel (%p675) target = $region92
        $region91: #{seq2seq_transformer_forward.12} parent=11 // pred_region
          _
        $region92: #{seq2seq_transformer_forward.12} parent=11 // pred_fallthru
          _
        // Predicated region
        $region93: #{seq2seq_transformer_forward.12} parent=11 // pred_check
          %p678 = pneg %p577
        $region94: #{seq2seq_transformer_forward.12} parent=11 // pred_check_branch
          %680 = sbr.rel (%p678) target = $region96
        $region95: #{seq2seq_transformer_forward.12} parent=11 // pred_region
          %s682 = ssub.s32 16, 16
          %683 = vsyncadd [#allocation3], %s682
          %s685 = sshll.u32 [#allocation2], 4
          %s686 = int_to_ptr.vmem [resolvable:$true] %s685
          %688 = dma.hbm_to_vmem [thread:$0]  %s24, 16, %s686, [#allocation3]
        $region96: #{seq2seq_transformer_forward.12} parent=11 // pred_fallthru
          _
      $region12: #{seq2seq_transformer_forward.12} parent=5 // pred_fallthru
        _
      %p689 = scmp.lt.s32.totalorder %s32, 2
      // Predicated region
      $region97: #{seq2seq_transformer_forward.12} parent=5 // pred_check
        %p690 = pneg %p689
      $region98: #{seq2seq_transformer_forward.12} parent=5 // pred_check_branch
        %692 = sbr.rel (%p690) target = $region100
      $region99: #{seq2seq_transformer_forward.12} parent=5 // pred_region
        // Predicated region
        $region101: #{seq2seq_transformer_forward.12} parent=99 // pred_check
          %p693 = pneg %p52
        $region102: #{seq2seq_transformer_forward.12} parent=99 // pred_check_branch
          %695 = sbr.rel (%p693) target = $region104
        $region103: #{seq2seq_transformer_forward.12} parent=99 // pred_region
          %p696 = scmp.lt.s32.totalorder %s32, 1
          %s697 = scalar_select %p696, %s32, 1
          %s698 = smul.addr %s697, 8
          %s699 = scalar_lea.vmem %s0, %s698
        $region104: #{seq2seq_transformer_forward.12} parent=99 // pred_fallthru
          _
        // Predicated region
        $region105: #{seq2seq_transformer_forward.12} parent=99 // pred_check
          %p700 = pneg %p78
        $region106: #{seq2seq_transformer_forward.12} parent=99 // pred_check_branch
          %702 = sbr.rel (%p700) target = $region108
        $region107: #{seq2seq_transformer_forward.12} parent=99 // pred_region
          %p703 = scmp.lt.s32.totalorder %s32, 1
          %s704 = scalar_select %p703, %s32, 1
          %s705 = smul.addr %s704, 4
          %s706 = scalar_lea.vmem %s1, %s705
        $region108: #{seq2seq_transformer_forward.12} parent=99 // pred_fallthru
          _
        // Predicated region
        $region109: #{seq2seq_transformer_forward.12} parent=99 // pred_check
          %p707 = pneg %p125
        $region110: #{seq2seq_transformer_forward.12} parent=99 // pred_check_branch
          %709 = sbr.rel (%p707) target = $region112
        $region111: #{seq2seq_transformer_forward.12} parent=99 // pred_region
          %p710 = scmp.lt.s32.totalorder %s32, 1
          %s711 = scalar_select %p710, %s32, 1
          %s712 = scalar_lea.vmem %s3, %s711
        $region112: #{seq2seq_transformer_forward.12} parent=99 // pred_fallthru
          _
        // Predicated region
        $region113: #{seq2seq_transformer_forward.12} parent=99 // pred_check
          %p713 = pneg %p151
        $region114: #{seq2seq_transformer_forward.12} parent=99 // pred_check_branch
          %715 = sbr.rel (%p713) target = $region116
        $region115: #{seq2seq_transformer_forward.12} parent=99 // pred_region
          %p716 = scmp.lt.s32.totalorder %s32, 1
          %s717 = scalar_select %p716, %s32, 1
          %s718 = scalar_lea.vmem %s4, %s717
        $region116: #{seq2seq_transformer_forward.12} parent=99 // pred_fallthru
          _
      $region100: #{seq2seq_transformer_forward.12} parent=5 // pred_fallthru
        _
      %p719 = scmp.le.s32.totalorder 1, %s32
      %p720 = scmp.lt.s32.totalorder %s32, 3
      %p721 = pnand %p719, %p720
      %p722 = pneg %p721
      // Predicated region
      $region117: #{seq2seq_transformer_forward.12} parent=5 // pred_check
        _
      $region118: #{seq2seq_transformer_forward.12} parent=5 // pred_check_branch
        %724 = sbr.rel (%p721) target = $region120
      $region119: #{seq2seq_transformer_forward.12} parent=5 // pred_region
        %s725 = ssub.s32 %s32, 1
        // Predicated region
        $region121: #{seq2seq_transformer_forward.12} parent=119 // pred_check
          %p726 = pneg %p577
        $region122: #{seq2seq_transformer_forward.12} parent=119 // pred_check_branch
          %728 = sbr.rel (%p726) target = $region124
        $region123: #{seq2seq_transformer_forward.12} parent=119 // pred_region
          %729 = dma.done [#allocation3], 16
        $region124: #{seq2seq_transformer_forward.12} parent=119 // pred_fallthru
          _
        %p730 = scmp.lt.s32.totalorder %s37, 1
        %s731 = scalar_select %p730, %s37, 1
        %s732 = smul.addr %s731, 8
        %s733 = scalar_lea.vmem %s0, %s732
        %p734 = pneg %p58
        %p735 = pneg %p55
        %p736 = scmp.lt.s32.totalorder %s37, 1
        %s737 = scalar_select %p736, %s37, 1
        %s738 = smul.addr %s737, 4
        %s739 = scalar_lea.vmem %s1, %s738
        %p740 = pneg %p84
        %p741 = pneg %p81
        %p742 = pneg %p105
        %p743 = pneg %p102
        %p744 = scmp.lt.s32.totalorder %s37, 1
        %s745 = scalar_select %p744, %s37, 1
        %s746 = scalar_lea.vmem %s3, %s745
        %p747 = pneg %p131
        %p748 = pneg %p128
        %p749 = scmp.lt.s32.totalorder %s37, 1
        %s750 = scalar_select %p749, %s37, 1
        %s751 = scalar_lea.vmem %s4, %s750
        %p752 = pneg %p157
        %p753 = pneg %p154
        %p754 = pneg %p178
        %p755 = pneg %p175
        %p756 = pneg %p199
        %p757 = pneg %p196
        %p758 = pneg %p220
        %p759 = pneg %p217
        %p760 = pneg %p241
        %p761 = pneg %p238
        %p762 = pneg %p262
        %p763 = pneg %p259
        %p764 = pneg %p283
        %p765 = pneg %p280
        %p766 = pneg %p304
        %p767 = pneg %p301
        %p768 = pneg %p325
        %p769 = pneg %p322
        %p770 = pneg %p346
        %p771 = pneg %p343
        %p772 = pneg %p367
        %p773 = pneg %p364
        %p774 = pneg %p388
        %p775 = pneg %p385
        %p776 = pneg %p409
        %p777 = pneg %p406
        %p778 = pneg %p430
        %p779 = pneg %p427
        %p780 = pneg %p451
        %p781 = pneg %p448
        %p782 = pneg %p472
        %p783 = pneg %p469
        %p784 = pneg %p493
        %p785 = pneg %p490
        %p786 = pneg %p514
        %p787 = pneg %p511
        %p788 = pneg %p535
        %p789 = pneg %p532
        %p790 = pneg %p556
        %p791 = pneg %p553
        %p792 = pneg %p577
        %p793 = pneg %p574
        %p794 = pneg %p603
        %p795 = pneg %p600
        %p796 = scmp.lt.s32.totalorder %s37, 1
        %s797 = scalar_select %p796, %s37, 1
        %s798 = smul.addr %s797, 8
        %s799 = scalar_lea.vmem %s25, %s798
        %p800 = scmp.lt.s32.totalorder %s37, 1
        %s801 = scalar_select %p800, %s37, 1
        %s802 = smul.addr %s801, 8
        %s803 = scalar_lea.vmem %s0, %s802
        %p804 = scmp.lt.s32.totalorder %s37, 1
        %s805 = scalar_select %p804, %s37, 1
        %s806 = smul.addr %s805, 4
        %s807 = scalar_lea.vmem %s1, %s806
        %p808 = scmp.lt.s32.totalorder %s37, 1
        %s809 = scalar_select %p808, %s37, 1
        %s810 = scalar_lea.vmem %s3, %s809
        %p811 = scmp.lt.s32.totalorder %s37, 1
        %s812 = scalar_select %p811, %s37, 1
        %s813 = scalar_lea.vmem %s4, %s812
        %p814 = scmp.lt.s32.totalorder %s37, 1
        %s815 = scalar_select %p814, %s37, 1
        %s816 = smul.addr %s815, 8
        %s817 = scalar_lea.vmem %s25, %s816
        %v819 = vld [vmem:[%s803] sm:$0xff]
        %v820 = vld [vmem:[%s807] sm:$0xf]
        %v821 = vpack.c.bf16 %v819, %v819
        %v822 = vld [vmem:[%s5] sm:$0xf]
        %v823 = vld [vmem:[%s5 + $0x4] sm:$0xf]
        %v824 = vld [vmem:[%s5 + $0x8] sm:$0xf]
        %v825 = vld [vmem:[%s5 + $0xc] sm:$0xf]
        %v826 = vld [vmem:[%s6] sm:$0x1]
        %v828 = vlaneseq
        %v829 = vshrl.u32 %v828, 7
        %v830 = vsub.s32 0, %v829
        %v831 = vrot.slane %v826, %v830
        %v837 = vunpack.c.l.b16 %v822
        %v838 = vunpack.c.l.b16 %v823
        %v839 = vunpack.c.l.b16 %v824
        %v840 = vunpack.c.l.b16 %v825
        %v841 = vpack.c.b16 %v838, %v837
        %v842 = vpack.c.b16 %v840, %v839
        %vm845 = vcmask 261120
        %v847 = vsel %vm845, %v821, 0
        %849 = vmatprep.subr.bf16.mxu0 0
        %850 = vmatpush1.bf16.msra.mxu0 %v841
        %851 = vmatprep.subr.bf16.mxu0 0
        %852 = vmatpush1.bf16.msra.mxu0 %v842
        %853 = vmatprep.subr.bf16.mxu0 0
        %854 = vmatpush1.bf16.msra.mxu0 0
        %855 = vmatprep.subr.bf16.mxu0 0
        %856 = vmatpush1.bf16.msra.mxu0 0
        %857 = vmatprep.subr.bf16.mxu0 0
        %858 = vmatpush1.bf16.msra.mxu0 0
        %859 = vmatprep.subr.bf16.mxu0 0
        %860 = vmatpush1.bf16.msra.mxu0 0
        %861 = vmatprep.subr.bf16.mxu0 0
        %862 = vmatpush1.bf16.msra.mxu0 0
        %863 = vmatprep.subr.bf16.mxu0 0
        %864 = vmatpush1.bf16.msra.mxu0 0
        %865 = vmatprep.subr.bf16.mxu0 0
        %866 = vmatpush1.bf16.msra.mxu0 0
        %867 = vmatprep.subr.bf16.mxu0 0
        %868 = vmatpush1.bf16.msra.mxu0 0
        %869 = vmatprep.subr.bf16.mxu0 0
        %870 = vmatpush1.bf16.msra.mxu0 0
        %871 = vmatprep.subr.bf16.mxu0 0
        %872 = vmatpush1.bf16.msra.mxu0 0
        %873 = vmatprep.subr.bf16.mxu0 0
        %874 = vmatpush1.bf16.msra.mxu0 0
        %875 = vmatprep.subr.bf16.mxu0 0
        %876 = vmatpush1.bf16.msra.mxu0 0
        %877 = vmatprep.subr.bf16.mxu0 0
        %878 = vmatpush1.bf16.msra.mxu0 0
        %879 = vmatprep.subr.bf16.mxu0 0
        %880 = vmatpush1.bf16.msra.mxu0 0
        %881 = vmatprep.mubr.bf16.mxu0 0
        %882 = vmatmul.mubr.bf16.gmra.mrb[0].mxu0 %v847
        %v883 = vpop.f32.mrb[0].mxu0
        %v884 = vadd.f32 %v831, %v883
        %v885 = vpop.f32.mrb[0].mxu0
        %v886 = vpop.f32.mrb[0].mxu0
        %v887 = vpop.f32.mrb[0].mxu0
        %888 = vdwg.mxu0
        %v889 = vld [vmem:[%s2] sm:$0xff]
        %v890 = vld [vmem:[%s810] sm:$0x1]
        %v891 = vpack.c.bf16 %v884, %v884
        %893 = vrot.lane.b32.xlu0 %v891, 96
        %v894 = vpop.permute.xlu0 %893
        %vm895 = vcmask 64512
        %v897 = vsel %vm895, %v891, 0
        %v900 = vsel %vm895, %v894, 0
        %902 = vmatprep.subr.bf16.mxu0 0
        %903 = vmatpush1.bf16.xpose.msra.mxu0 %v900
        %904 = vmatprep.subr.bf16.mxu0 0
        %905 = vmatpush1.bf16.xpose.msra.mxu0 0
        %906 = vmatprep.subr.bf16.mxu0 0
        %907 = vmatpush1.bf16.xpose.msra.mxu0 0
        %908 = vmatprep.subr.bf16.mxu0 0
        %909 = vmatpush1.bf16.xpose.msra.mxu0 0
        %910 = vmatprep.subr.bf16.mxu0 0
        %911 = vmatpush1.bf16.xpose.msra.mxu0 0
        %912 = vmatprep.subr.bf16.mxu0 0
        %913 = vmatpush1.bf16.xpose.msra.mxu0 0
        %914 = vmatprep.subr.bf16.mxu0 0
        %915 = vmatpush1.bf16.xpose.msra.mxu0 0
        %916 = vmatprep.subr.bf16.mxu0 0
        %917 = vmatpush1.bf16.xpose.msra.mxu0 0
        %918 = vmatprep.subr.bf16.mxu0 0
        %919 = vmatpush1.bf16.xpose.msra.mxu0 0
        %920 = vmatprep.subr.bf16.mxu0 0
        %921 = vmatpush1.bf16.xpose.msra.mxu0 0
        %922 = vmatprep.subr.bf16.mxu0 0
        %923 = vmatpush1.bf16.xpose.msra.mxu0 0
        %924 = vmatprep.subr.bf16.mxu0 0
        %925 = vmatpush1.bf16.xpose.msra.mxu0 0
        %926 = vmatprep.subr.bf16.mxu0 0
        %927 = vmatpush1.bf16.xpose.msra.mxu0 0
        %928 = vmatprep.subr.bf16.mxu0 0
        %929 = vmatpush1.bf16.xpose.msra.mxu0 0
        %930 = vmatprep.subr.bf16.mxu0 0
        %931 = vmatpush1.bf16.xpose.msra.mxu0 0
        %932 = vmatprep.subr.bf16.mxu0 0
        %933 = vmatpush1.bf16.xpose.msra.mxu0 0
        %934 = vmatprep.mubr.bf16.mxu0 0
        %935 = vmatmul.mubr.bf16.gmra.mrb[0].mxu0 %v897
        %v936 = vpop.f32.mrb[0].mxu0
        %v937 = vadd.f32 0.0, %v936
        %v938 = vpop.f32.mrb[0].mxu0
        %v939 = vpop.f32.mrb[0].mxu0
        %v940 = vpop.f32.mrb[0].mxu0
        %941 = vdwg.mxu0
        %v942 = vmul.f32 %v937, 0.35355338
        %v944 = vlaneseq
        %v945 = vshrl.u32 %v944, 7
        %v946 = vsub.s32 0, %v945
        %v947 = vrot.slane %v890, %v946
        %v949 = vadd.f32 %v942, %v947
        %v950 = vadd.f32 %v949, %v889
        %v951 = vsel %vm895, %v950, -inf
        %952 = vmax.xlane.f32.xlu0 %v951
        %v953 = vpop.xlane.xlu0 %952
        %v954 = vsub.f32 %v950, %v953
        %v955 = vmul.f32 %v954, 1.442695
        %v956 = vpow.pop %v955
        %v957 = vsel %vm895, %v956, 0.0
        %958 = vadd.xlane.f32.xlu0 %v957
        %v959 = vpop.xlane.xlu0 %958
        %v960 = vrcp.pop %v959
        %v961 = vmul.f32 %v956, %v960
        %v962 = vpack.c.bf16 %v961, %v961
        %963 = vrot.lane.b32.xlu0 %v891, 64
        %v964 = vpop.permute.xlu0 %963
        %v966 = vsel %vm895, %v962, 0
        %vm968 = vcmask 1043456
        %v970 = vsel %vm968, %v964, 0
        %972 = vmatprep.subr.bf16.mxu0 0
        %973 = vmatpush1.bf16.msra.mxu0 %v970
        %974 = vmatprep.subr.bf16.mxu0 0
        %975 = vmatpush1.bf16.msra.mxu0 0
        %976 = vmatprep.subr.bf16.mxu0 0
        %977 = vmatpush1.bf16.msra.mxu0 0
        %978 = vmatprep.subr.bf16.mxu0 0
        %979 = vmatpush1.bf16.msra.mxu0 0
        %980 = vmatprep.subr.bf16.mxu0 0
        %981 = vmatpush1.bf16.msra.mxu0 0
        %982 = vmatprep.subr.bf16.mxu0 0
        %983 = vmatpush1.bf16.msra.mxu0 0
        %984 = vmatprep.subr.bf16.mxu0 0
        %985 = vmatpush1.bf16.msra.mxu0 0
        %986 = vmatprep.subr.bf16.mxu0 0
        %987 = vmatpush1.bf16.msra.mxu0 0
        %988 = vmatprep.subr.bf16.mxu0 0
        %989 = vmatpush1.bf16.msra.mxu0 0
        %990 = vmatprep.subr.bf16.mxu0 0
        %991 = vmatpush1.bf16.msra.mxu0 0
        %992 = vmatprep.subr.bf16.mxu0 0
        %993 = vmatpush1.bf16.msra.mxu0 0
        %994 = vmatprep.subr.bf16.mxu0 0
        %995 = vmatpush1.bf16.msra.mxu0 0
        %996 = vmatprep.subr.bf16.mxu0 0
        %997 = vmatpush1.bf16.msra.mxu0 0
        %998 = vmatprep.subr.bf16.mxu0 0
        %999 = vmatpush1.bf16.msra.mxu0 0
        %1000 = vmatprep.subr.bf16.mxu0 0
        %1001 = vmatpush1.bf16.msra.mxu0 0
        %1002 = vmatprep.subr.bf16.mxu0 0
        %1003 = vmatpush1.bf16.msra.mxu0 0
        %1004 = vmatprep.mubr.bf16.mxu0 0
        %1005 = vmatmul.mubr.bf16.gmra.mrb[0].mxu0 %v966
        %v1006 = vpop.f32.mrb[0].mxu0
        %v1007 = vadd.f32 0.0, %v1006
        %v1008 = vpop.f32.mrb[0].mxu0
        %v1009 = vpop.f32.mrb[0].mxu0
        %v1010 = vpop.f32.mrb[0].mxu0
        %1011 = vdwg.mxu0
        %1012 = vrot.lane.b32.xlu0 %v891, 120
        %v1013 = vpop.permute.xlu0 %1012
        %1014 = vrot.lane.b32.xlu0 %v891, 88
        %v1015 = vpop.permute.xlu0 %1014
        %v1017 = vsel %vm895, %v1013, 0
        %v1020 = vsel %vm895, %v1015, 0
        %1022 = vmatprep.subr.bf16.mxu0 0
        %1023 = vmatpush1.bf16.xpose.msra.mxu0 %v1020
        %1024 = vmatprep.subr.bf16.mxu0 0
        %1025 = vmatpush1.bf16.xpose.msra.mxu0 0
        %1026 = vmatprep.subr.bf16.mxu0 0
        %1027 = vmatpush1.bf16.xpose.msra.mxu0 0
        %1028 = vmatprep.subr.bf16.mxu0 0
        %1029 = vmatpush1.bf16.xpose.msra.mxu0 0
        %1030 = vmatprep.subr.bf16.mxu0 0
        %1031 = vmatpush1.bf16.xpose.msra.mxu0 0
        %1032 = vmatprep.subr.bf16.mxu0 0
        %1033 = vmatpush1.bf16.xpose.msra.mxu0 0
        %1034 = vmatprep.subr.bf16.mxu0 0
        %1035 = vmatpush1.bf16.xpose.msra.mxu0 0
        %1036 = vmatprep.subr.bf16.mxu0 0
        %1037 = vmatpush1.bf16.xpose.msra.mxu0 0
        %1038 = vmatprep.subr.bf16.mxu0 0
        %1039 = vmatpush1.bf16.xpose.msra.mxu0 0
        %1040 = vmatprep.subr.bf16.mxu0 0
        %1041 = vmatpush1.bf16.xpose.msra.mxu0 0
        %1042 = vmatprep.subr.bf16.mxu0 0
        %1043 = vmatpush1.bf16.xpose.msra.mxu0 0
        %1044 = vmatprep.subr.bf16.mxu0 0
        %1045 = vmatpush1.bf16.xpose.msra.mxu0 0
        %1046 = vmatprep.subr.bf16.mxu0 0
        %1047 = vmatpush1.bf16.xpose.msra.mxu0 0
        %1048 = vmatprep.subr.bf16.mxu0 0
        %1049 = vmatpush1.bf16.xpose.msra.mxu0 0
        %1050 = vmatprep.subr.bf16.mxu0 0
        %1051 = vmatpush1.bf16.xpose.msra.mxu0 0
        %1052 = vmatprep.subr.bf16.mxu0 0
        %1053 = vmatpush1.bf16.xpose.msra.mxu0 0
        %1054 = vmatprep.mubr.bf16.mxu0 0
        %1055 = vmatmul.mubr.bf16.gmra.mrb[0].mxu0 %v1017
        %v1056 = vpop.f32.mrb[0].mxu0
        %v1057 = vadd.f32 0.0, %v1056
        %v1058 = vpop.f32.mrb[0].mxu0
        %v1059 = vpop.f32.mrb[0].mxu0
        %v1060 = vpop.f32.mrb[0].mxu0
        %1061 = vdwg.mxu0
        %v1062 = vmul.f32 %v1057, 0.35355338
        %v1063 = vadd.f32 %v1062, %v947
        %v1064 = vadd.f32 %v1063, %v889
        %v1065 = vsel %vm895, %v1064, -inf
        %1066 = vmax.xlane.f32.xlu0 %v1065
        %v1067 = vpop.xlane.xlu0 %1066
        %v1068 = vsub.f32 %v1064, %v1067
        %v1069 = vmul.f32 %v1068, 1.442695
        %v1070 = vpow.pop %v1069
        %v1071 = vsel %vm895, %v1070, 0.0
        %1072 = vadd.xlane.f32.xlu0 %v1071
        %v1073 = vpop.xlane.xlu0 %1072
        %v1074 = vrcp.pop %v1073
        %v1075 = vmul.f32 %v1070, %v1074
        %v1076 = vpack.c.bf16 %v1075, %v1075
        %1077 = vrot.lane.b32.xlu0 %v891, 56
        %v1078 = vpop.permute.xlu0 %1077
        %v1080 = vsel %vm895, %v1076, 0
        %v1083 = vsel %vm968, %v1078, 0
        %1085 = vmatprep.subr.bf16.mxu0 0
        %1086 = vmatpush1.bf16.msra.mxu0 %v1083
        %1087 = vmatprep.subr.bf16.mxu0 0
        %1088 = vmatpush1.bf16.msra.mxu0 0
        %1089 = vmatprep.subr.bf16.mxu0 0
        %1090 = vmatpush1.bf16.msra.mxu0 0
        %1091 = vmatprep.subr.bf16.mxu0 0
        %1092 = vmatpush1.bf16.msra.mxu0 0
        %1093 = vmatprep.subr.bf16.mxu0 0
        %1094 = vmatpush1.bf16.msra.mxu0 0
        %1095 = vmatprep.subr.bf16.mxu0 0
        %1096 = vmatpush1.bf16.msra.mxu0 0
        %1097 = vmatprep.subr.bf16.mxu0 0
        %1098 = vmatpush1.bf16.msra.mxu0 0
        %1099 = vmatprep.subr.bf16.mxu0 0
        %1100 = vmatpush1.bf16.msra.mxu0 0
        %1101 = vmatprep.subr.bf16.mxu0 0
        %1102 = vmatpush1.bf16.msra.mxu0 0
        %1103 = vmatprep.subr.bf16.mxu0 0
        %1104 = vmatpush1.bf16.msra.mxu0 0
        %1105 = vmatprep.subr.bf16.mxu0 0
        %1106 = vmatpush1.bf16.msra.mxu0 0
        %1107 = vmatprep.subr.bf16.mxu0 0
        %1108 = vmatpush1.bf16.msra.mxu0 0
        %1109 = vmatprep.subr.bf16.mxu0 0
        %1110 = vmatpush1.bf16.msra.mxu0 0
        %1111 = vmatprep.subr.bf16.mxu0 0
        %1112 = vmatpush1.bf16.msra.mxu0 0
        %1113 = vmatprep.subr.bf16.mxu0 0
        %1114 = vmatpush1.bf16.msra.mxu0 0
        %1115 = vmatprep.subr.bf16.mxu0 0
        %1116 = vmatpush1.bf16.msra.mxu0 0
        %1117 = vmatprep.mubr.bf16.mxu0 0
        %1118 = vmatmul.mubr.bf16.gmra.mrb[0].mxu0 %v1080
        %v1119 = vpop.f32.mrb[0].mxu0
        %v1120 = vadd.f32 0.0, %v1119
        %v1121 = vpop.f32.mrb[0].mxu0
        %v1122 = vpop.f32.mrb[0].mxu0
        %v1123 = vpop.f32.mrb[0].mxu0
        %1124 = vdwg.mxu0
        %1125 = vrot.lane.b32.xlu0 %v891, 112
        %v1126 = vpop.permute.xlu0 %1125
        %1127 = vrot.lane.b32.xlu0 %v891, 80
        %v1128 = vpop.permute.xlu0 %1127
        %v1130 = vsel %vm895, %v1126, 0
        %v1133 = vsel %vm895, %v1128, 0
        %1135 = vmatprep.subr.bf16.mxu0 0
        %1136 = vmatpush1.bf16.xpose.msra.mxu0 %v1133
        %1137 = vmatprep.subr.bf16.mxu0 0
        %1138 = vmatpush1.bf16.xpose.msra.mxu0 0
        %1139 = vmatprep.subr.bf16.mxu0 0
        %1140 = vmatpush1.bf16.xpose.msra.mxu0 0
        %1141 = vmatprep.subr.bf16.mxu0 0
        %1142 = vmatpush1.bf16.xpose.msra.mxu0 0
        %1143 = vmatprep.subr.bf16.mxu0 0
        %1144 = vmatpush1.bf16.xpose.msra.mxu0 0
        %1145 = vmatprep.subr.bf16.mxu0 0
        %1146 = vmatpush1.bf16.xpose.msra.mxu0 0
        %1147 = vmatprep.subr.bf16.mxu0 0
        %1148 = vmatpush1.bf16.xpose.msra.mxu0 0
        %1149 = vmatprep.subr.bf16.mxu0 0
        %1150 = vmatpush1.bf16.xpose.msra.mxu0 0
        %1151 = vmatprep.subr.bf16.mxu0 0
        %1152 = vmatpush1.bf16.xpose.msra.mxu0 0
        %1153 = vmatprep.subr.bf16.mxu0 0
        %1154 = vmatpush1.bf16.xpose.msra.mxu0 0
        %1155 = vmatprep.subr.bf16.mxu0 0
        %1156 = vmatpush1.bf16.xpose.msra.mxu0 0
        %1157 = vmatprep.subr.bf16.mxu0 0
        %1158 = vmatpush1.bf16.xpose.msra.mxu0 0
        %1159 = vmatprep.subr.bf16.mxu0 0
        %1160 = vmatpush1.bf16.xpose.msra.mxu0 0
        %1161 = vmatprep.subr.bf16.mxu0 0
        %1162 = vmatpush1.bf16.xpose.msra.mxu0 0
        %1163 = vmatprep.subr.bf16.mxu0 0
        %1164 = vmatpush1.bf16.xpose.msra.mxu0 0
        %1165 = vmatprep.subr.bf16.mxu0 0
        %1166 = vmatpush1.bf16.xpose.msra.mxu0 0
        %1167 = vmatprep.mubr.bf16.mxu0 0
        %1168 = vmatmul.mubr.bf16.gmra.mrb[0].mxu0 %v1130
        %v1169 = vpop.f32.mrb[0].mxu0
        %v1170 = vadd.f32 0.0, %v1169
        %v1171 = vpop.f32.mrb[0].mxu0
        %v1172 = vpop.f32.mrb[0].mxu0
        %v1173 = vpop.f32.mrb[0].mxu0
        %1174 = vdwg.mxu0
        %v1175 = vmul.f32 %v1170, 0.35355338
        %v1176 = vadd.f32 %v1175, %v947
        %v1177 = vadd.f32 %v1176, %v889
        %v1178 = vsel %vm895, %v1177, -inf
        %1179 = vmax.xlane.f32.xlu0 %v1178
        %v1180 = vpop.xlane.xlu0 %1179
        %v1181 = vsub.f32 %v1177, %v1180
        %v1182 = vmul.f32 %v1181, 1.442695
        %v1183 = vpow.pop %v1182
        %v1184 = vsel %vm895, %v1183, 0.0
        %1185 = vadd.xlane.f32.xlu0 %v1184
        %v1186 = vpop.xlane.xlu0 %1185
        %v1187 = vrcp.pop %v1186
        %v1188 = vmul.f32 %v1183, %v1187
        %v1189 = vpack.c.bf16 %v1188, %v1188
        %1190 = vrot.lane.b32.xlu0 %v891, 48
        %v1191 = vpop.permute.xlu0 %1190
        %v1193 = vsel %vm895, %v1189, 0
        %v1196 = vsel %vm968, %v1191, 0
        %1198 = vmatprep.subr.bf16.mxu0 0
        %1199 = vmatpush1.bf16.msra.mxu0 %v1196
        %1200 = vmatprep.subr.bf16.mxu0 0
        %1201 = vmatpush1.bf16.msra.mxu0 0
        %1202 = vmatprep.subr.bf16.mxu0 0
        %1203 = vmatpush1.bf16.msra.mxu0 0
        %1204 = vmatprep.subr.bf16.mxu0 0
        %1205 = vmatpush1.bf16.msra.mxu0 0
        %1206 = vmatprep.subr.bf16.mxu0 0
        %1207 = vmatpush1.bf16.msra.mxu0 0
        %1208 = vmatprep.subr.bf16.mxu0 0
        %1209 = vmatpush1.bf16.msra.mxu0 0
        %1210 = vmatprep.subr.bf16.mxu0 0
        %1211 = vmatpush1.bf16.msra.mxu0 0
        %1212 = vmatprep.subr.bf16.mxu0 0
        %1213 = vmatpush1.bf16.msra.mxu0 0
        %1214 = vmatprep.subr.bf16.mxu0 0
        %1215 = vmatpush1.bf16.msra.mxu0 0
        %1216 = vmatprep.subr.bf16.mxu0 0
        %1217 = vmatpush1.bf16.msra.mxu0 0
        %1218 = vmatprep.subr.bf16.mxu0 0
        %1219 = vmatpush1.bf16.msra.mxu0 0
        %1220 = vmatprep.subr.bf16.mxu0 0
        %1221 = vmatpush1.bf16.msra.mxu0 0
        %1222 = vmatprep.subr.bf16.mxu0 0
        %1223 = vmatpush1.bf16.msra.mxu0 0
        %1224 = vmatprep.subr.bf16.mxu0 0
        %1225 = vmatpush1.bf16.msra.mxu0 0
        %1226 = vmatprep.subr.bf16.mxu0 0
        %1227 = vmatpush1.bf16.msra.mxu0 0
        %1228 = vmatprep.subr.bf16.mxu0 0
        %1229 = vmatpush1.bf16.msra.mxu0 0
        %1230 = vmatprep.mubr.bf16.mxu0 0
        %1231 = vmatmul.mubr.bf16.gmra.mrb[0].mxu0 %v1193
        %v1232 = vpop.f32.mrb[0].mxu0
        %v1233 = vadd.f32 0.0, %v1232
        %v1234 = vpop.f32.mrb[0].mxu0
        %v1235 = vpop.f32.mrb[0].mxu0
        %v1236 = vpop.f32.mrb[0].mxu0
        %1237 = vdwg.mxu0
        %1238 = vrot.lane.b32.xlu0 %v891, 104
        %v1239 = vpop.permute.xlu0 %1238
        %1240 = vrot.lane.b32.xlu0 %v891, 72
        %v1241 = vpop.permute.xlu0 %1240
        %v1243 = vsel %vm895, %v1239, 0
        %v1246 = vsel %vm895, %v1241, 0
        %1248 = vmatprep.subr.bf16.mxu0 0
        %1249 = vmatpush1.bf16.xpose.msra.mxu0 %v1246
        %1250 = vmatprep.subr.bf16.mxu0 0
        %1251 = vmatpush1.bf16.xpose.msra.mxu0 0
        %1252 = vmatprep.subr.bf16.mxu0 0
        %1253 = vmatpush1.bf16.xpose.msra.mxu0 0
        %1254 = vmatprep.subr.bf16.mxu0 0
        %1255 = vmatpush1.bf16.xpose.msra.mxu0 0
        %1256 = vmatprep.subr.bf16.mxu0 0
        %1257 = vmatpush1.bf16.xpose.msra.mxu0 0
        %1258 = vmatprep.subr.bf16.mxu0 0
        %1259 = vmatpush1.bf16.xpose.msra.mxu0 0
        %1260 = vmatprep.subr.bf16.mxu0 0
        %1261 = vmatpush1.bf16.xpose.msra.mxu0 0
        %1262 = vmatprep.subr.bf16.mxu0 0
        %1263 = vmatpush1.bf16.xpose.msra.mxu0 0
        %1264 = vmatprep.subr.bf16.mxu0 0
        %1265 = vmatpush1.bf16.xpose.msra.mxu0 0
        %1266 = vmatprep.subr.bf16.mxu0 0
        %1267 = vmatpush1.bf16.xpose.msra.mxu0 0
        %1268 = vmatprep.subr.bf16.mxu0 0
        %1269 = vmatpush1.bf16.xpose.msra.mxu0 0
        %1270 = vmatprep.subr.bf16.mxu0 0
        %1271 = vmatpush1.bf16.xpose.msra.mxu0 0
        %1272 = vmatprep.subr.bf16.mxu0 0
        %1273 = vmatpush1.bf16.xpose.msra.mxu0 0
        %1274 = vmatprep.subr.bf16.mxu0 0
        %1275 = vmatpush1.bf16.xpose.msra.mxu0 0
        %1276 = vmatprep.subr.bf16.mxu0 0
        %1277 = vmatpush1.bf16.xpose.msra.mxu0 0
        %1278 = vmatprep.subr.bf16.mxu0 0
        %1279 = vmatpush1.bf16.xpose.msra.mxu0 0
        %1280 = vmatprep.mubr.bf16.mxu0 0
        %1281 = vmatmul.mubr.bf16.gmra.mrb[0].mxu0 %v1243
        %v1282 = vpop.f32.mrb[0].mxu0
        %v1283 = vadd.f32 0.0, %v1282
        %v1284 = vpop.f32.mrb[0].mxu0
        %v1285 = vpop.f32.mrb[0].mxu0
        %v1286 = vpop.f32.mrb[0].mxu0
        %1287 = vdwg.mxu0
        %v1288 = vmul.f32 %v1283, 0.35355338
        %v1289 = vadd.f32 %v1288, %v947
        %v1290 = vadd.f32 %v1289, %v889
        %v1291 = vsel %vm895, %v1290, -inf
        %1292 = vmax.xlane.f32.xlu0 %v1291
        %v1293 = vpop.xlane.xlu0 %1292
        %v1294 = vsub.f32 %v1290, %v1293
        %v1295 = vmul.f32 %v1294, 1.442695
        %v1296 = vpow.pop %v1295
        %v1297 = vsel %vm895, %v1296, 0.0
        %1298 = vadd.xlane.f32.xlu0 %v1297
        %v1299 = vpop.xlane.xlu0 %1298
        %v1300 = vrcp.pop %v1299
        %v1301 = vmul.f32 %v1296, %v1300
        %v1302 = vpack.c.bf16 %v1301, %v1301
        %1303 = vrot.lane.b32.xlu0 %v891, 40
        %v1304 = vpop.permute.xlu0 %1303
        %v1306 = vsel %vm895, %v1302, 0
        %v1309 = vsel %vm968, %v1304, 0
        %1311 = vmatprep.subr.bf16.mxu0 0
        %1312 = vmatpush1.bf16.msra.mxu0 %v1309
        %1313 = vmatprep.subr.bf16.mxu0 0
        %1314 = vmatpush1.bf16.msra.mxu0 0
        %1315 = vmatprep.subr.bf16.mxu0 0
        %1316 = vmatpush1.bf16.msra.mxu0 0
        %1317 = vmatprep.subr.bf16.mxu0 0
        %1318 = vmatpush1.bf16.msra.mxu0 0
        %1319 = vmatprep.subr.bf16.mxu0 0
        %1320 = vmatpush1.bf16.msra.mxu0 0
        %1321 = vmatprep.subr.bf16.mxu0 0
        %1322 = vmatpush1.bf16.msra.mxu0 0
        %1323 = vmatprep.subr.bf16.mxu0 0
        %1324 = vmatpush1.bf16.msra.mxu0 0
        %1325 = vmatprep.subr.bf16.mxu0 0
        %1326 = vmatpush1.bf16.msra.mxu0 0
        %1327 = vmatprep.subr.bf16.mxu0 0
        %1328 = vmatpush1.bf16.msra.mxu0 0
        %1329 = vmatprep.subr.bf16.mxu0 0
        %1330 = vmatpush1.bf16.msra.mxu0 0
        %1331 = vmatprep.subr.bf16.mxu0 0
        %1332 = vmatpush1.bf16.msra.mxu0 0
        %1333 = vmatprep.subr.bf16.mxu0 0
        %1334 = vmatpush1.bf16.msra.mxu0 0
        %1335 = vmatprep.subr.bf16.mxu0 0
        %1336 = vmatpush1.bf16.msra.mxu0 0
        %1337 = vmatprep.subr.bf16.mxu0 0
        %1338 = vmatpush1.bf16.msra.mxu0 0
        %1339 = vmatprep.subr.bf16.mxu0 0
        %1340 = vmatpush1.bf16.msra.mxu0 0
        %1341 = vmatprep.subr.bf16.mxu0 0
        %1342 = vmatpush1.bf16.msra.mxu0 0
        %1343 = vmatprep.mubr.bf16.mxu0 0
        %1344 = vmatmul.mubr.bf16.gmra.mrb[0].mxu0 %v1306
        %v1345 = vpop.f32.mrb[0].mxu0
        %v1346 = vadd.f32 0.0, %v1345
        %v1347 = vpop.f32.mrb[0].mxu0
        %v1348 = vpop.f32.mrb[0].mxu0
        %v1349 = vpop.f32.mrb[0].mxu0
        %1350 = vdwg.mxu0
        %1352 = vrot.lane.b32.xlu0 %v1120, 8
        %v1353 = vpop.permute.xlu0 %1352
        %1356 = vrot.lane.b32.xlu0 %v1233, 16
        %v1357 = vpop.permute.xlu0 %1356
        %1360 = vrot.lane.b32.xlu0 %v1346, 24
        %v1361 = vpop.permute.xlu0 %1360
        %v1363 = vsel %vm895, %v1007, %v1353
        %vm1364 = vcmask 130048
        %v1365 = vsel %vm1364, %v1363, %v1357
        %vm1366 = vcmask 195584
        %v1367 = vsel %vm1366, %v1365, %v1361
        %v1368 = vpack.c.bf16 %v1367, %v1367
        %v1369 = vld [vmem:[%s7] sm:$0xf]
        %v1370 = vld [vmem:[%s7 + $0x4] sm:$0xf]
        %v1371 = vld [vmem:[%s7 + $0x8] sm:$0xf]
        %v1372 = vld [vmem:[%s7 + $0xc] sm:$0xf]
        %v1373 = vld [vmem:[%s8] sm:$0x1]
        %v1375 = vlaneseq
        %v1376 = vshrl.u32 %v1375, 7
        %v1377 = vsub.s32 0, %v1376
        %v1378 = vrot.slane %v1373, %v1377
        %v1384 = vunpack.c.l.b16 %v1369
        %v1385 = vunpack.c.l.b16 %v1370
        %v1386 = vunpack.c.l.b16 %v1371
        %v1387 = vunpack.c.l.b16 %v1372
        %v1388 = vpack.c.b16 %v1385, %v1384
        %v1389 = vpack.c.b16 %v1387, %v1386
        %v1393 = vsel %vm845, %v1368, 0
        %1395 = vmatprep.subr.bf16.mxu0 0
        %1396 = vmatpush1.bf16.msra.mxu0 %v1388
        %1397 = vmatprep.subr.bf16.mxu0 0
        %1398 = vmatpush1.bf16.msra.mxu0 %v1389
        %1399 = vmatprep.subr.bf16.mxu0 0
        %1400 = vmatpush1.bf16.msra.mxu0 0
        %1401 = vmatprep.subr.bf16.mxu0 0
        %1402 = vmatpush1.bf16.msra.mxu0 0
        %1403 = vmatprep.subr.bf16.mxu0 0
        %1404 = vmatpush1.bf16.msra.mxu0 0
        %1405 = vmatprep.subr.bf16.mxu0 0
        %1406 = vmatpush1.bf16.msra.mxu0 0
        %1407 = vmatprep.subr.bf16.mxu0 0
        %1408 = vmatpush1.bf16.msra.mxu0 0
        %1409 = vmatprep.subr.bf16.mxu0 0
        %1410 = vmatpush1.bf16.msra.mxu0 0
        %1411 = vmatprep.subr.bf16.mxu0 0
        %1412 = vmatpush1.bf16.msra.mxu0 0
        %1413 = vmatprep.subr.bf16.mxu0 0
        %1414 = vmatpush1.bf16.msra.mxu0 0
        %1415 = vmatprep.subr.bf16.mxu0 0
        %1416 = vmatpush1.bf16.msra.mxu0 0
        %1417 = vmatprep.subr.bf16.mxu0 0
        %1418 = vmatpush1.bf16.msra.mxu0 0
        %1419 = vmatprep.subr.bf16.mxu0 0
        %1420 = vmatpush1.bf16.msra.mxu0 0
        %1421 = vmatprep.subr.bf16.mxu0 0
        %1422 = vmatpush1.bf16.msra.mxu0 0
        %1423 = vmatprep.subr.bf16.mxu0 0
        %1424 = vmatpush1.bf16.msra.mxu0 0
        %1425 = vmatprep.subr.bf16.mxu0 0
        %1426 = vmatpush1.bf16.msra.mxu0 0
        %1427 = vmatprep.mubr.bf16.mxu0 0
        %1428 = vmatmul.mubr.bf16.gmra.mrb[0].mxu0 %v1393
        %v1429 = vpop.f32.mrb[0].mxu0
        %v1430 = vadd.f32 %v1378, %v1429
        %v1431 = vpop.f32.mrb[0].mxu0
        %v1432 = vpop.f32.mrb[0].mxu0
        %v1433 = vpop.f32.mrb[0].mxu0
        %1434 = vdwg.mxu0
        %v1435 = vadd.f32 %v819, %v1430
        %v1436 = vld [vmem:[%s9] sm:$0x1]
        %v1437 = vld [vmem:[%s10] sm:$0x1]
        %v1438 = vsel %vm845, %v1435, 0.0
        %1439 = vadd.xlane.f32.xlu0 %v1438
        %v1440 = vpop.xlane.xlu0 %1439
        %v1441 = vrcp.pop 32.0
        %v1442 = vmul.f32 %v1440, %v1441
        %v1443 = vsub.f32 %v1435, %v1442
        %v1444 = vmul.f32 %v1443, %v1443
        %v1445 = vsel %vm845, %v1444, 0.0
        %1446 = vadd.xlane.f32.xlu0 %v1445
        %v1447 = vpop.xlane.xlu0 %1446
        %v1448 = vmul.f32 %v1447, %v1441
        %v1449 = vadd.f32 %v1448, 1e-05
        %v1450 = vrsqrt.pop %v1449
        %v1451 = vmul.f32 %v1443, %v1450
        %v1453 = vlaneseq
        %v1454 = vshrl.u32 %v1453, 7
        %v1455 = vsub.s32 0, %v1454
        %v1456 = vrot.slane %v1436, %v1455
        %v1458 = vmul.f32 %v1451, %v1456
        %v1460 = vlaneseq
        %v1461 = vshrl.u32 %v1460, 7
        %v1462 = vsub.s32 0, %v1461
        %v1463 = vrot.slane %v1437, %v1462
        %v1465 = vadd.f32 %v1458, %v1463
        %v1466 = vpack.c.bf16 %v1465, %v1465
        %v1467 = vld [vmem:[%s11] sm:$0xf]
        %v1468 = vld [vmem:[%s11 + $0x4] sm:$0xf]
        %v1469 = vld [vmem:[%s11 + $0x8] sm:$0xf]
        %v1470 = vld [vmem:[%s11 + $0xc] sm:$0xf]
        %v1471 = vld [vmem:[%s12] sm:$0x1]
        %v1473 = vlaneseq
        %v1474 = vshrl.u32 %v1473, 7
        %v1475 = vsub.s32 0, %v1474
        %v1476 = vrot.slane %v1471, %v1475
        %v1482 = vunpack.c.l.b16 %v1467
        %v1483 = vunpack.c.l.b16 %v1468
        %v1484 = vunpack.c.l.b16 %v1469
        %v1485 = vunpack.c.l.b16 %v1470
        %v1486 = vpack.c.b16 %v1483, %v1482
        %v1487 = vpack.c.b16 %v1485, %v1484
        %v1491 = vsel %vm845, %v1466, 0
        %1493 = vmatprep.subr.bf16.mxu0 0
        %1494 = vmatpush1.bf16.msra.mxu0 %v1486
        %1495 = vmatprep.subr.bf16.mxu0 0
        %1496 = vmatpush1.bf16.msra.mxu0 %v1487
        %1497 = vmatprep.subr.bf16.mxu0 0
        %1498 = vmatpush1.bf16.msra.mxu0 0
        %1499 = vmatprep.subr.bf16.mxu0 0
        %1500 = vmatpush1.bf16.msra.mxu0 0
        %1501 = vmatprep.subr.bf16.mxu0 0
        %1502 = vmatpush1.bf16.msra.mxu0 0
        %1503 = vmatprep.subr.bf16.mxu0 0
        %1504 = vmatpush1.bf16.msra.mxu0 0
        %1505 = vmatprep.subr.bf16.mxu0 0
        %1506 = vmatpush1.bf16.msra.mxu0 0
        %1507 = vmatprep.subr.bf16.mxu0 0
        %1508 = vmatpush1.bf16.msra.mxu0 0
        %1509 = vmatprep.subr.bf16.mxu0 0
        %1510 = vmatpush1.bf16.msra.mxu0 0
        %1511 = vmatprep.subr.bf16.mxu0 0
        %1512 = vmatpush1.bf16.msra.mxu0 0
        %1513 = vmatprep.subr.bf16.mxu0 0
        %1514 = vmatpush1.bf16.msra.mxu0 0
        %1515 = vmatprep.subr.bf16.mxu0 0
        %1516 = vmatpush1.bf16.msra.mxu0 0
        %1517 = vmatprep.subr.bf16.mxu0 0
        %1518 = vmatpush1.bf16.msra.mxu0 0
        %1519 = vmatprep.subr.bf16.mxu0 0
        %1520 = vmatpush1.bf16.msra.mxu0 0
        %1521 = vmatprep.subr.bf16.mxu0 0
        %1522 = vmatpush1.bf16.msra.mxu0 0
        %1523 = vmatprep.subr.bf16.mxu0 0
        %1524 = vmatpush1.bf16.msra.mxu0 0
        %1525 = vmatprep.mubr.bf16.mxu0 0
        %1526 = vmatmul.mubr.bf16.gmra.mrb[0].mxu0 %v1491
        %v1527 = vpop.f32.mrb[0].mxu0
        %v1528 = vadd.f32 %v1476, %v1527
        %v1529 = vpop.f32.mrb[0].mxu0
        %v1530 = vpop.f32.mrb[0].mxu0
        %v1531 = vpop.f32.mrb[0].mxu0
        %1532 = vdwg.mxu0
        %v1533 = vld [vmem:[%s13] sm:$0xf]
        %v1534 = vld [vmem:[%s13 + $0x4] sm:$0xf]
        %v1535 = vld [vmem:[%s13 + $0x8] sm:$0xf]
        %v1536 = vld [vmem:[%s13 + $0xc] sm:$0xf]
        %v1537 = vld [vmem:[%s14] sm:$0x1]
        %v1539 = vlaneseq
        %v1540 = vshrl.u32 %v1539, 7
        %v1541 = vsub.s32 0, %v1540
        %v1542 = vrot.slane %v1537, %v1541
        %v1548 = vunpack.c.l.b16 %v1533
        %v1549 = vunpack.c.l.b16 %v1534
        %v1550 = vunpack.c.l.b16 %v1535
        %v1551 = vunpack.c.l.b16 %v1536
        %v1552 = vpack.c.b16 %v1549, %v1548
        %v1553 = vpack.c.b16 %v1551, %v1550
        %v1557 = vsel %vm845, %v820, 0
        %1559 = vmatprep.subr.bf16.mxu0 0
        %1560 = vmatpush1.bf16.msra.mxu0 %v1552
        %1561 = vmatprep.subr.bf16.mxu0 0
        %1562 = vmatpush1.bf16.msra.mxu0 %v1553
        %1563 = vmatprep.subr.bf16.mxu0 0
        %1564 = vmatpush1.bf16.msra.mxu0 0
        %1565 = vmatprep.subr.bf16.mxu0 0
        %1566 = vmatpush1.bf16.msra.mxu0 0
        %1567 = vmatprep.subr.bf16.mxu0 0
        %1568 = vmatpush1.bf16.msra.mxu0 0
        %1569 = vmatprep.subr.bf16.mxu0 0
        %1570 = vmatpush1.bf16.msra.mxu0 0
        %1571 = vmatprep.subr.bf16.mxu0 0
        %1572 = vmatpush1.bf16.msra.mxu0 0
        %1573 = vmatprep.subr.bf16.mxu0 0
        %1574 = vmatpush1.bf16.msra.mxu0 0
        %1575 = vmatprep.subr.bf16.mxu0 0
        %1576 = vmatpush1.bf16.msra.mxu0 0
        %1577 = vmatprep.subr.bf16.mxu0 0
        %1578 = vmatpush1.bf16.msra.mxu0 0
        %1579 = vmatprep.subr.bf16.mxu0 0
        %1580 = vmatpush1.bf16.msra.mxu0 0
        %1581 = vmatprep.subr.bf16.mxu0 0
        %1582 = vmatpush1.bf16.msra.mxu0 0
        %1583 = vmatprep.subr.bf16.mxu0 0
        %1584 = vmatpush1.bf16.msra.mxu0 0
        %1585 = vmatprep.subr.bf16.mxu0 0
        %1586 = vmatpush1.bf16.msra.mxu0 0
        %1587 = vmatprep.subr.bf16.mxu0 0
        %1588 = vmatpush1.bf16.msra.mxu0 0
        %1589 = vmatprep.subr.bf16.mxu0 0
        %1590 = vmatpush1.bf16.msra.mxu0 0
        %1591 = vmatprep.mubr.bf16.mxu0 0
        %1592 = vmatmul.mubr.bf16.gmra.mrb[0].mxu0 %v1557
        %v1593 = vpop.f32.mrb[0].mxu0
        %v1594 = vadd.f32 %v1542, %v1593
        %v1595 = vpop.f32.mrb[0].mxu0
        %v1596 = vpop.f32.mrb[0].mxu0
        %v1597 = vpop.f32.mrb[0].mxu0
        %1598 = vdwg.mxu0
        %v1599 = vld [vmem:[%s813] sm:$0x1]
        %v1600 = vpack.c.bf16 %v1528, %v1528
        %v1601 = vpack.c.bf16 %v1594, %v1594
        %v1603 = vsel %vm895, %v1600, 0
        %v1606 = vsel %vm895, %v1601, 0
        %1608 = vmatprep.subr.bf16.mxu0 0
        %1609 = vmatpush1.bf16.xpose.msra.mxu0 %v1606
        %1610 = vmatprep.subr.bf16.mxu0 0
        %1611 = vmatpush1.bf16.xpose.msra.mxu0 0
        %1612 = vmatprep.subr.bf16.mxu0 0
        %1613 = vmatpush1.bf16.xpose.msra.mxu0 0
        %1614 = vmatprep.subr.bf16.mxu0 0
        %1615 = vmatpush1.bf16.xpose.msra.mxu0 0
        %1616 = vmatprep.subr.bf16.mxu0 0
        %1617 = vmatpush1.bf16.xpose.msra.mxu0 0
        %1618 = vmatprep.subr.bf16.mxu0 0
        %1619 = vmatpush1.bf16.xpose.msra.mxu0 0
        %1620 = vmatprep.subr.bf16.mxu0 0
        %1621 = vmatpush1.bf16.xpose.msra.mxu0 0
        %1622 = vmatprep.subr.bf16.mxu0 0
        %1623 = vmatpush1.bf16.xpose.msra.mxu0 0
        %1624 = vmatprep.subr.bf16.mxu0 0
        %1625 = vmatpush1.bf16.xpose.msra.mxu0 0
        %1626 = vmatprep.subr.bf16.mxu0 0
        %1627 = vmatpush1.bf16.xpose.msra.mxu0 0
        %1628 = vmatprep.subr.bf16.mxu0 0
        %1629 = vmatpush1.bf16.xpose.msra.mxu0 0
        %1630 = vmatprep.subr.bf16.mxu0 0
        %1631 = vmatpush1.bf16.xpose.msra.mxu0 0
        %1632 = vmatprep.subr.bf16.mxu0 0
        %1633 = vmatpush1.bf16.xpose.msra.mxu0 0
        %1634 = vmatprep.subr.bf16.mxu0 0
        %1635 = vmatpush1.bf16.xpose.msra.mxu0 0
        %1636 = vmatprep.subr.bf16.mxu0 0
        %1637 = vmatpush1.bf16.xpose.msra.mxu0 0
        %1638 = vmatprep.subr.bf16.mxu0 0
        %1639 = vmatpush1.bf16.xpose.msra.mxu0 0
        %1640 = vmatprep.mubr.bf16.mxu0 0
        %1641 = vmatmul.mubr.bf16.gmra.mrb[0].mxu0 %v1603
        %v1642 = vpop.f32.mrb[0].mxu0
        %v1643 = vadd.f32 0.0, %v1642
        %v1644 = vpop.f32.mrb[0].mxu0
        %v1645 = vpop.f32.mrb[0].mxu0
        %v1646 = vpop.f32.mrb[0].mxu0
        %1647 = vdwg.mxu0
        %v1648 = vmul.f32 %v1643, 0.35355338
        %v1650 = vlaneseq
        %v1651 = vshrl.u32 %v1650, 7
        %v1652 = vsub.s32 0, %v1651
        %v1653 = vrot.slane %v1599, %v1652
        %v1655 = vadd.f32 %v1648, %v1653
        %v1656 = vsel %vm895, %v1655, -inf
        %1657 = vmax.xlane.f32.xlu0 %v1656
        %v1658 = vpop.xlane.xlu0 %1657
        %v1659 = vsub.f32 %v1655, %v1658
        %v1660 = vmul.f32 %v1659, 1.442695
        %v1661 = vpow.pop %v1660
        %v1662 = vsel %vm895, %v1661, 0.0
        %1663 = vadd.xlane.f32.xlu0 %v1662
        %v1664 = vpop.xlane.xlu0 %1663
        %v1665 = vrcp.pop %v1664
        %v1666 = vmul.f32 %v1661, %v1665
        %v1667 = vpack.c.bf16 %v1666, %v1666
        %1669 = vrot.lane.b32.xlu0 %v1601, 96
        %v1670 = vpop.permute.xlu0 %1669
        %v1672 = vsel %vm895, %v1667, 0
        %v1675 = vsel %vm968, %v1670, 0
        %1677 = vmatprep.subr.bf16.mxu0 0
        %1678 = vmatpush1.bf16.msra.mxu0 %v1675
        %1679 = vmatprep.subr.bf16.mxu0 0
        %1680 = vmatpush1.bf16.msra.mxu0 0
        %1681 = vmatprep.subr.bf16.mxu0 0
        %1682 = vmatpush1.bf16.msra.mxu0 0
        %1683 = vmatprep.subr.bf16.mxu0 0
        %1684 = vmatpush1.bf16.msra.mxu0 0
        %1685 = vmatprep.subr.bf16.mxu0 0
        %1686 = vmatpush1.bf16.msra.mxu0 0
        %1687 = vmatprep.subr.bf16.mxu0 0
        %1688 = vmatpush1.bf16.msra.mxu0 0
        %1689 = vmatprep.subr.bf16.mxu0 0
        %1690 = vmatpush1.bf16.msra.mxu0 0
        %1691 = vmatprep.subr.bf16.mxu0 0
        %1692 = vmatpush1.bf16.msra.mxu0 0
        %1693 = vmatprep.subr.bf16.mxu0 0
        %1694 = vmatpush1.bf16.msra.mxu0 0
        %1695 = vmatprep.subr.bf16.mxu0 0
        %1696 = vmatpush1.bf16.msra.mxu0 0
        %1697 = vmatprep.subr.bf16.mxu0 0
        %1698 = vmatpush1.bf16.msra.mxu0 0
        %1699 = vmatprep.subr.bf16.mxu0 0
        %1700 = vmatpush1.bf16.msra.mxu0 0
        %1701 = vmatprep.subr.bf16.mxu0 0
        %1702 = vmatpush1.bf16.msra.mxu0 0
        %1703 = vmatprep.subr.bf16.mxu0 0
        %1704 = vmatpush1.bf16.msra.mxu0 0
        %1705 = vmatprep.subr.bf16.mxu0 0
        %1706 = vmatpush1.bf16.msra.mxu0 0
        %1707 = vmatprep.subr.bf16.mxu0 0
        %1708 = vmatpush1.bf16.msra.mxu0 0
        %1709 = vmatprep.mubr.bf16.mxu0 0
        %1710 = vmatmul.mubr.bf16.gmra.mrb[0].mxu0 %v1672
        %v1711 = vpop.f32.mrb[0].mxu0
        %v1712 = vadd.f32 0.0, %v1711
        %v1713 = vpop.f32.mrb[0].mxu0
        %v1714 = vpop.f32.mrb[0].mxu0
        %v1715 = vpop.f32.mrb[0].mxu0
        %1716 = vdwg.mxu0
        %1718 = vrot.lane.b32.xlu0 %v1600, 120
        %v1719 = vpop.permute.xlu0 %1718
        %1720 = vrot.lane.b32.xlu0 %v1601, 120
        %v1721 = vpop.permute.xlu0 %1720
        %v1723 = vsel %vm895, %v1719, 0
        %v1726 = vsel %vm895, %v1721, 0
        %1728 = vmatprep.subr.bf16.mxu0 0
        %1729 = vmatpush1.bf16.xpose.msra.mxu0 %v1726
        %1730 = vmatprep.subr.bf16.mxu0 0
        %1731 = vmatpush1.bf16.xpose.msra.mxu0 0
        %1732 = vmatprep.subr.bf16.mxu0 0
        %1733 = vmatpush1.bf16.xpose.msra.mxu0 0
        %1734 = vmatprep.subr.bf16.mxu0 0
        %1735 = vmatpush1.bf16.xpose.msra.mxu0 0
        %1736 = vmatprep.subr.bf16.mxu0 0
        %1737 = vmatpush1.bf16.xpose.msra.mxu0 0
        %1738 = vmatprep.subr.bf16.mxu0 0
        %1739 = vmatpush1.bf16.xpose.msra.mxu0 0
        %1740 = vmatprep.subr.bf16.mxu0 0
        %1741 = vmatpush1.bf16.xpose.msra.mxu0 0
        %1742 = vmatprep.subr.bf16.mxu0 0
        %1743 = vmatpush1.bf16.xpose.msra.mxu0 0
        %1744 = vmatprep.subr.bf16.mxu0 0
        %1745 = vmatpush1.bf16.xpose.msra.mxu0 0
        %1746 = vmatprep.subr.bf16.mxu0 0
        %1747 = vmatpush1.bf16.xpose.msra.mxu0 0
        %1748 = vmatprep.subr.bf16.mxu0 0
        %1749 = vmatpush1.bf16.xpose.msra.mxu0 0
        %1750 = vmatprep.subr.bf16.mxu0 0
        %1751 = vmatpush1.bf16.xpose.msra.mxu0 0
        %1752 = vmatprep.subr.bf16.mxu0 0
        %1753 = vmatpush1.bf16.xpose.msra.mxu0 0
        %1754 = vmatprep.subr.bf16.mxu0 0
        %1755 = vmatpush1.bf16.xpose.msra.mxu0 0
        %1756 = vmatprep.subr.bf16.mxu0 0
        %1757 = vmatpush1.bf16.xpose.msra.mxu0 0
        %1758 = vmatprep.subr.bf16.mxu0 0
        %1759 = vmatpush1.bf16.xpose.msra.mxu0 0
        %1760 = vmatprep.mubr.bf16.mxu0 0
        %1761 = vmatmul.mubr.bf16.gmra.mrb[0].mxu0 %v1723
        %v1762 = vpop.f32.mrb[0].mxu0
        %v1763 = vadd.f32 0.0, %v1762
        %v1764 = vpop.f32.mrb[0].mxu0
        %v1765 = vpop.f32.mrb[0].mxu0
        %v1766 = vpop.f32.mrb[0].mxu0
        %1767 = vdwg.mxu0
        %v1768 = vmul.f32 %v1763, 0.35355338
        %v1769 = vadd.f32 %v1768, %v1653
        %v1770 = vsel %vm895, %v1769, -inf
        %1771 = vmax.xlane.f32.xlu0 %v1770
        %v1772 = vpop.xlane.xlu0 %1771
        %v1773 = vsub.f32 %v1769, %v1772
        %v1774 = vmul.f32 %v1773, 1.442695
        %v1775 = vpow.pop %v1774
        %v1776 = vsel %vm895, %v1775, 0.0
        %1777 = vadd.xlane.f32.xlu0 %v1776
        %v1778 = vpop.xlane.xlu0 %1777
        %v1779 = vrcp.pop %v1778
        %v1780 = vmul.f32 %v1775, %v1779
        %v1781 = vpack.c.bf16 %v1780, %v1780
        %1782 = vrot.lane.b32.xlu0 %v1601, 88
        %v1783 = vpop.permute.xlu0 %1782
        %v1785 = vsel %vm895, %v1781, 0
        %v1788 = vsel %vm968, %v1783, 0
        %1790 = vmatprep.subr.bf16.mxu0 0
        %1791 = vmatpush1.bf16.msra.mxu0 %v1788
        %1792 = vmatprep.subr.bf16.mxu0 0
        %1793 = vmatpush1.bf16.msra.mxu0 0
        %1794 = vmatprep.subr.bf16.mxu0 0
        %1795 = vmatpush1.bf16.msra.mxu0 0
        %1796 = vmatprep.subr.bf16.mxu0 0
        %1797 = vmatpush1.bf16.msra.mxu0 0
        %1798 = vmatprep.subr.bf16.mxu0 0
        %1799 = vmatpush1.bf16.msra.mxu0 0
        %1800 = vmatprep.subr.bf16.mxu0 0
        %1801 = vmatpush1.bf16.msra.mxu0 0
        %1802 = vmatprep.subr.bf16.mxu0 0
        %1803 = vmatpush1.bf16.msra.mxu0 0
        %1804 = vmatprep.subr.bf16.mxu0 0
        %1805 = vmatpush1.bf16.msra.mxu0 0
        %1806 = vmatprep.subr.bf16.mxu0 0
        %1807 = vmatpush1.bf16.msra.mxu0 0
        %1808 = vmatprep.subr.bf16.mxu0 0
        %1809 = vmatpush1.bf16.msra.mxu0 0
        %1810 = vmatprep.subr.bf16.mxu0 0
        %1811 = vmatpush1.bf16.msra.mxu0 0
        %1812 = vmatprep.subr.bf16.mxu0 0
        %1813 = vmatpush1.bf16.msra.mxu0 0
        %1814 = vmatprep.subr.bf16.mxu0 0
        %1815 = vmatpush1.bf16.msra.mxu0 0
        %1816 = vmatprep.subr.bf16.mxu0 0
        %1817 = vmatpush1.bf16.msra.mxu0 0
        %1818 = vmatprep.subr.bf16.mxu0 0
        %1819 = vmatpush1.bf16.msra.mxu0 0
        %1820 = vmatprep.subr.bf16.mxu0 0
        %1821 = vmatpush1.bf16.msra.mxu0 0
        %1822 = vmatprep.mubr.bf16.mxu0 0
        %1823 = vmatmul.mubr.bf16.gmra.mrb[0].mxu0 %v1785
        %v1824 = vpop.f32.mrb[0].mxu0
        %v1825 = vadd.f32 0.0, %v1824
        %v1826 = vpop.f32.mrb[0].mxu0
        %v1827 = vpop.f32.mrb[0].mxu0
        %v1828 = vpop.f32.mrb[0].mxu0
        %1829 = vdwg.mxu0
        %1830 = vrot.lane.b32.xlu0 %v1600, 112
        %v1831 = vpop.permute.xlu0 %1830
        %1832 = vrot.lane.b32.xlu0 %v1601, 112
        %v1833 = vpop.permute.xlu0 %1832
        %v1835 = vsel %vm895, %v1831, 0
        %v1838 = vsel %vm895, %v1833, 0
        %1840 = vmatprep.subr.bf16.mxu0 0
        %1841 = vmatpush1.bf16.xpose.msra.mxu0 %v1838
        %1842 = vmatprep.subr.bf16.mxu0 0
        %1843 = vmatpush1.bf16.xpose.msra.mxu0 0
        %1844 = vmatprep.subr.bf16.mxu0 0
        %1845 = vmatpush1.bf16.xpose.msra.mxu0 0
        %1846 = vmatprep.subr.bf16.mxu0 0
        %1847 = vmatpush1.bf16.xpose.msra.mxu0 0
        %1848 = vmatprep.subr.bf16.mxu0 0
        %1849 = vmatpush1.bf16.xpose.msra.mxu0 0
        %1850 = vmatprep.subr.bf16.mxu0 0
        %1851 = vmatpush1.bf16.xpose.msra.mxu0 0
        %1852 = vmatprep.subr.bf16.mxu0 0
        %1853 = vmatpush1.bf16.xpose.msra.mxu0 0
        %1854 = vmatprep.subr.bf16.mxu0 0
        %1855 = vmatpush1.bf16.xpose.msra.mxu0 0
        %1856 = vmatprep.subr.bf16.mxu0 0
        %1857 = vmatpush1.bf16.xpose.msra.mxu0 0
        %1858 = vmatprep.subr.bf16.mxu0 0
        %1859 = vmatpush1.bf16.xpose.msra.mxu0 0
        %1860 = vmatprep.subr.bf16.mxu0 0
        %1861 = vmatpush1.bf16.xpose.msra.mxu0 0
        %1862 = vmatprep.subr.bf16.mxu0 0
        %1863 = vmatpush1.bf16.xpose.msra.mxu0 0
        %1864 = vmatprep.subr.bf16.mxu0 0
        %1865 = vmatpush1.bf16.xpose.msra.mxu0 0
        %1866 = vmatprep.subr.bf16.mxu0 0
        %1867 = vmatpush1.bf16.xpose.msra.mxu0 0
        %1868 = vmatprep.subr.bf16.mxu0 0
        %1869 = vmatpush1.bf16.xpose.msra.mxu0 0
        %1870 = vmatprep.subr.bf16.mxu0 0
        %1871 = vmatpush1.bf16.xpose.msra.mxu0 0
        %1872 = vmatprep.mubr.bf16.mxu0 0
        %1873 = vmatmul.mubr.bf16.gmra.mrb[0].mxu0 %v1835
        %v1874 = vpop.f32.mrb[0].mxu0
        %v1875 = vadd.f32 0.0, %v1874
        %v1876 = vpop.f32.mrb[0].mxu0
        %v1877 = vpop.f32.mrb[0].mxu0
        %v1878 = vpop.f32.mrb[0].mxu0
        %1879 = vdwg.mxu0
        %v1880 = vmul.f32 %v1875, 0.35355338
        %v1881 = vadd.f32 %v1880, %v1653
        %v1882 = vsel %vm895, %v1881, -inf
        %1883 = vmax.xlane.f32.xlu0 %v1882
        %v1884 = vpop.xlane.xlu0 %1883
        %v1885 = vsub.f32 %v1881, %v1884
        %v1886 = vmul.f32 %v1885, 1.442695
        %v1887 = vpow.pop %v1886
        %v1888 = vsel %vm895, %v1887, 0.0
        %1889 = vadd.xlane.f32.xlu0 %v1888
        %v1890 = vpop.xlane.xlu0 %1889
        %v1891 = vrcp.pop %v1890
        %v1892 = vmul.f32 %v1887, %v1891
        %v1893 = vpack.c.bf16 %v1892, %v1892
        %1894 = vrot.lane.b32.xlu0 %v1601, 80
        %v1895 = vpop.permute.xlu0 %1894
        %v1897 = vsel %vm895, %v1893, 0
        %v1900 = vsel %vm968, %v1895, 0
        %1902 = vmatprep.subr.bf16.mxu0 0
        %1903 = vmatpush1.bf16.msra.mxu0 %v1900
        %1904 = vmatprep.subr.bf16.mxu0 0
        %1905 = vmatpush1.bf16.msra.mxu0 0
        %1906 = vmatprep.subr.bf16.mxu0 0
        %1907 = vmatpush1.bf16.msra.mxu0 0
        %1908 = vmatprep.subr.bf16.mxu0 0
        %1909 = vmatpush1.bf16.msra.mxu0 0
        %1910 = vmatprep.subr.bf16.mxu0 0
        %1911 = vmatpush1.bf16.msra.mxu0 0
        %1912 = vmatprep.subr.bf16.mxu0 0
        %1913 = vmatpush1.bf16.msra.mxu0 0
        %1914 = vmatprep.subr.bf16.mxu0 0
        %1915 = vmatpush1.bf16.msra.mxu0 0
        %1916 = vmatprep.subr.bf16.mxu0 0
        %1917 = vmatpush1.bf16.msra.mxu0 0
        %1918 = vmatprep.subr.bf16.mxu0 0
        %1919 = vmatpush1.bf16.msra.mxu0 0
        %1920 = vmatprep.subr.bf16.mxu0 0
        %1921 = vmatpush1.bf16.msra.mxu0 0
        %1922 = vmatprep.subr.bf16.mxu0 0
        %1923 = vmatpush1.bf16.msra.mxu0 0
        %1924 = vmatprep.subr.bf16.mxu0 0
        %1925 = vmatpush1.bf16.msra.mxu0 0
        %1926 = vmatprep.subr.bf16.mxu0 0
        %1927 = vmatpush1.bf16.msra.mxu0 0
        %1928 = vmatprep.subr.bf16.mxu0 0
        %1929 = vmatpush1.bf16.msra.mxu0 0
        %1930 = vmatprep.subr.bf16.mxu0 0
        %1931 = vmatpush1.bf16.msra.mxu0 0
        %1932 = vmatprep.subr.bf16.mxu0 0
        %1933 = vmatpush1.bf16.msra.mxu0 0
        %1934 = vmatprep.mubr.bf16.mxu0 0
        %1935 = vmatmul.mubr.bf16.gmra.mrb[0].mxu0 %v1897
        %v1936 = vpop.f32.mrb[0].mxu0
        %v1937 = vadd.f32 0.0, %v1936
        %v1938 = vpop.f32.mrb[0].mxu0
        %v1939 = vpop.f32.mrb[0].mxu0
        %v1940 = vpop.f32.mrb[0].mxu0
        %1941 = vdwg.mxu0
        %1942 = vrot.lane.b32.xlu0 %v1600, 104
        %v1943 = vpop.permute.xlu0 %1942
        %1944 = vrot.lane.b32.xlu0 %v1601, 104
        %v1945 = vpop.permute.xlu0 %1944
        %v1947 = vsel %vm895, %v1943, 0
        %v1950 = vsel %vm895, %v1945, 0
        %1952 = vmatprep.subr.bf16.mxu0 0
        %1953 = vmatpush1.bf16.xpose.msra.mxu0 %v1950
        %1954 = vmatprep.subr.bf16.mxu0 0
        %1955 = vmatpush1.bf16.xpose.msra.mxu0 0
        %1956 = vmatprep.subr.bf16.mxu0 0
        %1957 = vmatpush1.bf16.xpose.msra.mxu0 0
        %1958 = vmatprep.subr.bf16.mxu0 0
        %1959 = vmatpush1.bf16.xpose.msra.mxu0 0
        %1960 = vmatprep.subr.bf16.mxu0 0
        %1961 = vmatpush1.bf16.xpose.msra.mxu0 0
        %1962 = vmatprep.subr.bf16.mxu0 0
        %1963 = vmatpush1.bf16.xpose.msra.mxu0 0
        %1964 = vmatprep.subr.bf16.mxu0 0
        %1965 = vmatpush1.bf16.xpose.msra.mxu0 0
        %1966 = vmatprep.subr.bf16.mxu0 0
        %1967 = vmatpush1.bf16.xpose.msra.mxu0 0
        %1968 = vmatprep.subr.bf16.mxu0 0
        %1969 = vmatpush1.bf16.xpose.msra.mxu0 0
        %1970 = vmatprep.subr.bf16.mxu0 0
        %1971 = vmatpush1.bf16.xpose.msra.mxu0 0
        %1972 = vmatprep.subr.bf16.mxu0 0
        %1973 = vmatpush1.bf16.xpose.msra.mxu0 0
        %1974 = vmatprep.subr.bf16.mxu0 0
        %1975 = vmatpush1.bf16.xpose.msra.mxu0 0
        %1976 = vmatprep.subr.bf16.mxu0 0
        %1977 = vmatpush1.bf16.xpose.msra.mxu0 0
        %1978 = vmatprep.subr.bf16.mxu0 0
        %1979 = vmatpush1.bf16.xpose.msra.mxu0 0
        %1980 = vmatprep.subr.bf16.mxu0 0
        %1981 = vmatpush1.bf16.xpose.msra.mxu0 0
        %1982 = vmatprep.subr.bf16.mxu0 0
        %1983 = vmatpush1.bf16.xpose.msra.mxu0 0
        %1984 = vmatprep.mubr.bf16.mxu0 0
        %1985 = vmatmul.mubr.bf16.gmra.mrb[0].mxu0 %v1947
        %v1986 = vpop.f32.mrb[0].mxu0
        %v1987 = vadd.f32 0.0, %v1986
        %v1988 = vpop.f32.mrb[0].mxu0
        %v1989 = vpop.f32.mrb[0].mxu0
        %v1990 = vpop.f32.mrb[0].mxu0
        %1991 = vdwg.mxu0
        %v1992 = vmul.f32 %v1987, 0.35355338
        %v1993 = vadd.f32 %v1992, %v1653
        %v1994 = vsel %vm895, %v1993, -inf
        %1995 = vmax.xlane.f32.xlu0 %v1994
        %v1996 = vpop.xlane.xlu0 %1995
        %v1997 = vsub.f32 %v1993, %v1996
        %v1998 = vmul.f32 %v1997, 1.442695
        %v1999 = vpow.pop %v1998
        %v2000 = vsel %vm895, %v1999, 0.0
        %2001 = vadd.xlane.f32.xlu0 %v2000
        %v2002 = vpop.xlane.xlu0 %2001
        %v2003 = vrcp.pop %v2002
        %v2004 = vmul.f32 %v1999, %v2003
        %v2005 = vpack.c.bf16 %v2004, %v2004
        %2006 = vrot.lane.b32.xlu0 %v1601, 72
        %v2007 = vpop.permute.xlu0 %2006
        %v2009 = vsel %vm895, %v2005, 0
        %v2012 = vsel %vm968, %v2007, 0
        %2014 = vmatprep.subr.bf16.mxu0 0
        %2015 = vmatpush1.bf16.msra.mxu0 %v2012
        %2016 = vmatprep.subr.bf16.mxu0 0
        %2017 = vmatpush1.bf16.msra.mxu0 0
        %2018 = vmatprep.subr.bf16.mxu0 0
        %2019 = vmatpush1.bf16.msra.mxu0 0
        %2020 = vmatprep.subr.bf16.mxu0 0
        %2021 = vmatpush1.bf16.msra.mxu0 0
        %2022 = vmatprep.subr.bf16.mxu0 0
        %2023 = vmatpush1.bf16.msra.mxu0 0
        %2024 = vmatprep.subr.bf16.mxu0 0
        %2025 = vmatpush1.bf16.msra.mxu0 0
        %2026 = vmatprep.subr.bf16.mxu0 0
        %2027 = vmatpush1.bf16.msra.mxu0 0
        %2028 = vmatprep.subr.bf16.mxu0 0
        %2029 = vmatpush1.bf16.msra.mxu0 0
        %2030 = vmatprep.subr.bf16.mxu0 0
        %2031 = vmatpush1.bf16.msra.mxu0 0
        %2032 = vmatprep.subr.bf16.mxu0 0
        %2033 = vmatpush1.bf16.msra.mxu0 0
        %2034 = vmatprep.subr.bf16.mxu0 0
        %2035 = vmatpush1.bf16.msra.mxu0 0
        %2036 = vmatprep.subr.bf16.mxu0 0
        %2037 = vmatpush1.bf16.msra.mxu0 0
        %2038 = vmatprep.subr.bf16.mxu0 0
        %2039 = vmatpush1.bf16.msra.mxu0 0
        %2040 = vmatprep.subr.bf16.mxu0 0
        %2041 = vmatpush1.bf16.msra.mxu0 0
        %2042 = vmatprep.subr.bf16.mxu0 0
        %2043 = vmatpush1.bf16.msra.mxu0 0
        %2044 = vmatprep.subr.bf16.mxu0 0
        %2045 = vmatpush1.bf16.msra.mxu0 0
        %2046 = vmatprep.mubr.bf16.mxu0 0
        %2047 = vmatmul.mubr.bf16.gmra.mrb[0].mxu0 %v2009
        %v2048 = vpop.f32.mrb[0].mxu0
        %v2049 = vadd.f32 0.0, %v2048
        %v2050 = vpop.f32.mrb[0].mxu0
        %v2051 = vpop.f32.mrb[0].mxu0
        %v2052 = vpop.f32.mrb[0].mxu0
        %2053 = vdwg.mxu0
        %2055 = vrot.lane.b32.xlu0 %v1825, 8
        %v2056 = vpop.permute.xlu0 %2055
        %2059 = vrot.lane.b32.xlu0 %v1937, 16
        %v2060 = vpop.permute.xlu0 %2059
        %2063 = vrot.lane.b32.xlu0 %v2049, 24
        %v2064 = vpop.permute.xlu0 %2063
        %v2066 = vsel %vm895, %v1712, %v2056
        %v2067 = vsel %vm1364, %v2066, %v2060
        %v2068 = vsel %vm1366, %v2067, %v2064
        %v2069 = vpack.c.bf16 %v2068, %v2068
        %v2070 = vld [vmem:[%s15] sm:$0xf]
        %v2071 = vld [vmem:[%s15 + $0x4] sm:$0xf]
        %v2072 = vld [vmem:[%s15 + $0x8] sm:$0xf]
        %v2073 = vld [vmem:[%s15 + $0xc] sm:$0xf]
        %v2074 = vld [vmem:[%s16] sm:$0x1]
        %v2076 = vlaneseq
        %v2077 = vshrl.u32 %v2076, 7
        %v2078 = vsub.s32 0, %v2077
        %v2079 = vrot.slane %v2074, %v2078
        %v2085 = vunpack.c.l.b16 %v2070
        %v2086 = vunpack.c.l.b16 %v2071
        %v2087 = vunpack.c.l.b16 %v2072
        %v2088 = vunpack.c.l.b16 %v2073
        %v2089 = vpack.c.b16 %v2086, %v2085
        %v2090 = vpack.c.b16 %v2088, %v2087
        %v2094 = vsel %vm845, %v2069, 0
        %2096 = vmatprep.subr.bf16.mxu0 0
        %2097 = vmatpush1.bf16.msra.mxu0 %v2089
        %2098 = vmatprep.subr.bf16.mxu0 0
        %2099 = vmatpush1.bf16.msra.mxu0 %v2090
        %2100 = vmatprep.subr.bf16.mxu0 0
        %2101 = vmatpush1.bf16.msra.mxu0 0
        %2102 = vmatprep.subr.bf16.mxu0 0
        %2103 = vmatpush1.bf16.msra.mxu0 0
        %2104 = vmatprep.subr.bf16.mxu0 0
        %2105 = vmatpush1.bf16.msra.mxu0 0
        %2106 = vmatprep.subr.bf16.mxu0 0
        %2107 = vmatpush1.bf16.msra.mxu0 0
        %2108 = vmatprep.subr.bf16.mxu0 0
        %2109 = vmatpush1.bf16.msra.mxu0 0
        %2110 = vmatprep.subr.bf16.mxu0 0
        %2111 = vmatpush1.bf16.msra.mxu0 0
        %2112 = vmatprep.subr.bf16.mxu0 0
        %2113 = vmatpush1.bf16.msra.mxu0 0
        %2114 = vmatprep.subr.bf16.mxu0 0
        %2115 = vmatpush1.bf16.msra.mxu0 0
        %2116 = vmatprep.subr.bf16.mxu0 0
        %2117 = vmatpush1.bf16.msra.mxu0 0
        %2118 = vmatprep.subr.bf16.mxu0 0
        %2119 = vmatpush1.bf16.msra.mxu0 0
        %2120 = vmatprep.subr.bf16.mxu0 0
        %2121 = vmatpush1.bf16.msra.mxu0 0
        %2122 = vmatprep.subr.bf16.mxu0 0
        %2123 = vmatpush1.bf16.msra.mxu0 0
        %2124 = vmatprep.subr.bf16.mxu0 0
        %2125 = vmatpush1.bf16.msra.mxu0 0
        %2126 = vmatprep.subr.bf16.mxu0 0
        %2127 = vmatpush1.bf16.msra.mxu0 0
        %2128 = vmatprep.mubr.bf16.mxu0 0
        %2129 = vmatmul.mubr.bf16.gmra.mrb[0].mxu0 %v2094
        %v2130 = vpop.f32.mrb[0].mxu0
        %v2131 = vadd.f32 %v2079, %v2130
        %v2132 = vpop.f32.mrb[0].mxu0
        %v2133 = vpop.f32.mrb[0].mxu0
        %v2134 = vpop.f32.mrb[0].mxu0
        %2135 = vdwg.mxu0
        %v2136 = vadd.f32 %v1465, %v2131
        %v2137 = vld [vmem:[%s17] sm:$0x1]
        %v2138 = vld [vmem:[%s18] sm:$0x1]
        %v2139 = vsel %vm845, %v2136, 0.0
        %2140 = vadd.xlane.f32.xlu0 %v2139
        %v2141 = vpop.xlane.xlu0 %2140
        %v2142 = vmul.f32 %v2141, %v1441
        %v2143 = vsub.f32 %v2136, %v2142
        %v2144 = vmul.f32 %v2143, %v2143
        %v2145 = vsel %vm845, %v2144, 0.0
        %2146 = vadd.xlane.f32.xlu0 %v2145
        %v2147 = vpop.xlane.xlu0 %2146
        %v2148 = vmul.f32 %v2147, %v1441
        %v2149 = vadd.f32 %v2148, 1e-05
        %v2150 = vrsqrt.pop %v2149
        %v2151 = vmul.f32 %v2143, %v2150
        %v2153 = vlaneseq
        %v2154 = vshrl.u32 %v2153, 7
        %v2155 = vsub.s32 0, %v2154
        %v2156 = vrot.slane %v2137, %v2155
        %v2158 = vmul.f32 %v2151, %v2156
        %v2160 = vlaneseq
        %v2161 = vshrl.u32 %v2160, 7
        %v2162 = vsub.s32 0, %v2161
        %v2163 = vrot.slane %v2138, %v2162
        %v2165 = vadd.f32 %v2158, %v2163
        %v2166 = vpack.c.bf16 %v2165, %v2165
        %v2167 = vld [vmem:[%s19] sm:$0xf]
        %v2168 = vld [vmem:[%s19 + $0x4] sm:$0xf]
        %v2169 = vld [vmem:[%s19 + $0x8] sm:$0xf]
        %v2170 = vld [vmem:[%s19 + $0xc] sm:$0xf]
        %v2171 = vld [vmem:[%s20] sm:$0x1]
        %v2173 = vlaneseq
        %v2174 = vshrl.u32 %v2173, 7
        %v2175 = vsub.s32 0, %v2174
        %v2176 = vrot.slane %v2171, %v2175
        %v2182 = vunpack.c.l.b16 %v2167
        %v2183 = vunpack.c.l.b16 %v2168
        %v2184 = vunpack.c.l.b16 %v2169
        %v2185 = vunpack.c.l.b16 %v2170
        %v2186 = vpack.c.b16 %v2183, %v2182
        %v2187 = vpack.c.b16 %v2185, %v2184
        %v2191 = vsel %vm845, %v2166, 0
        %2193 = vmatprep.subr.bf16.mxu0 0
        %2194 = vmatpush1.bf16.msra.mxu0 %v2186
        %2195 = vmatprep.subr.bf16.mxu0 0
        %2196 = vmatpush1.bf16.msra.mxu0 %v2187
        %2197 = vmatprep.subr.bf16.mxu0 0
        %2198 = vmatpush1.bf16.msra.mxu0 0
        %2199 = vmatprep.subr.bf16.mxu0 0
        %2200 = vmatpush1.bf16.msra.mxu0 0
        %2201 = vmatprep.subr.bf16.mxu0 0
        %2202 = vmatpush1.bf16.msra.mxu0 0
        %2203 = vmatprep.subr.bf16.mxu0 0
        %2204 = vmatpush1.bf16.msra.mxu0 0
        %2205 = vmatprep.subr.bf16.mxu0 0
        %2206 = vmatpush1.bf16.msra.mxu0 0
        %2207 = vmatprep.subr.bf16.mxu0 0
        %2208 = vmatpush1.bf16.msra.mxu0 0
        %2209 = vmatprep.subr.bf16.mxu0 0
        %2210 = vmatpush1.bf16.msra.mxu0 0
        %2211 = vmatprep.subr.bf16.mxu0 0
        %2212 = vmatpush1.bf16.msra.mxu0 0
        %2213 = vmatprep.subr.bf16.mxu0 0
        %2214 = vmatpush1.bf16.msra.mxu0 0
        %2215 = vmatprep.subr.bf16.mxu0 0
        %2216 = vmatpush1.bf16.msra.mxu0 0
        %2217 = vmatprep.subr.bf16.mxu0 0
        %2218 = vmatpush1.bf16.msra.mxu0 0
        %2219 = vmatprep.subr.bf16.mxu0 0
        %2220 = vmatpush1.bf16.msra.mxu0 0
        %2221 = vmatprep.subr.bf16.mxu0 0
        %2222 = vmatpush1.bf16.msra.mxu0 0
        %2223 = vmatprep.subr.bf16.mxu0 0
        %2224 = vmatpush1.bf16.msra.mxu0 0
        %2225 = vmatprep.mubr.bf16.mxu0 0
        %2226 = vmatmul.mubr.bf16.gmra.mrb[0].mxu0 %v2191
        %v2227 = vpop.f32.mrb[0].mxu0
        %v2228 = vadd.f32 %v2176, %v2227
        %v2229 = vpop.f32.mrb[0].mxu0
        %v2230 = vpop.f32.mrb[0].mxu0
        %v2231 = vpop.f32.mrb[0].mxu0
        %2232 = vdwg.mxu0
        %v2233 = vmax.f32 %v2228, 0.0
        %v2234 = vpack.c.bf16 %v2233, %v2233
        %v2235 = vld [vmem:[%s21] sm:$0xf]
        %v2236 = vld [vmem:[%s21 + $0x4] sm:$0xf]
        %v2237 = vld [vmem:[%s21 + $0x8] sm:$0xf]
        %v2238 = vld [vmem:[%s21 + $0xc] sm:$0xf]
        %v2239 = vld [vmem:[%s21 + $0x10] sm:$0xf]
        %v2240 = vld [vmem:[%s21 + $0x14] sm:$0xf]
        %v2241 = vld [vmem:[%s21 + $0x18] sm:$0xf]
        %v2242 = vld [vmem:[%s21 + $0x1c] sm:$0xf]
        %v2243 = vld [vmem:[%s22] sm:$0x1]
        %v2245 = vlaneseq
        %v2246 = vshrl.u32 %v2245, 7
        %v2247 = vsub.s32 0, %v2246
        %v2248 = vrot.slane %v2243, %v2247
        %v2258 = vunpack.c.l.b16 %v2235
        %v2259 = vunpack.c.l.b16 %v2236
        %v2260 = vunpack.c.l.b16 %v2237
        %v2261 = vunpack.c.l.b16 %v2238
        %v2262 = vunpack.c.l.b16 %v2239
        %v2263 = vunpack.c.l.b16 %v2240
        %v2264 = vunpack.c.l.b16 %v2241
        %v2265 = vunpack.c.l.b16 %v2242
        %v2266 = vpack.c.b16 %v2259, %v2258
        %v2267 = vpack.c.b16 %v2261, %v2260
        %v2268 = vpack.c.b16 %v2263, %v2262
        %v2269 = vpack.c.b16 %v2265, %v2264
        %vm2274 = vcmask 523264
        %v2276 = vsel %vm2274, %v2234, 0
        %2278 = vmatprep.subr.bf16.mxu0 0
        %2279 = vmatpush1.bf16.msra.mxu0 %v2266
        %2280 = vmatprep.subr.bf16.mxu0 0
        %2281 = vmatpush1.bf16.msra.mxu0 %v2267
        %2282 = vmatprep.subr.bf16.mxu0 0
        %2283 = vmatpush1.bf16.msra.mxu0 %v2268
        %2284 = vmatprep.subr.bf16.mxu0 0
        %2285 = vmatpush1.bf16.msra.mxu0 %v2269
        %2286 = vmatprep.subr.bf16.mxu0 0
        %2287 = vmatpush1.bf16.msra.mxu0 0
        %2288 = vmatprep.subr.bf16.mxu0 0
        %2289 = vmatpush1.bf16.msra.mxu0 0
        %2290 = vmatprep.subr.bf16.mxu0 0
        %2291 = vmatpush1.bf16.msra.mxu0 0
        %2292 = vmatprep.subr.bf16.mxu0 0
        %2293 = vmatpush1.bf16.msra.mxu0 0
        %2294 = vmatprep.subr.bf16.mxu0 0
        %2295 = vmatpush1.bf16.msra.mxu0 0
        %2296 = vmatprep.subr.bf16.mxu0 0
        %2297 = vmatpush1.bf16.msra.mxu0 0
        %2298 = vmatprep.subr.bf16.mxu0 0
        %2299 = vmatpush1.bf16.msra.mxu0 0
        %2300 = vmatprep.subr.bf16.mxu0 0
        %2301 = vmatpush1.bf16.msra.mxu0 0
        %2302 = vmatprep.subr.bf16.mxu0 0
        %2303 = vmatpush1.bf16.msra.mxu0 0
        %2304 = vmatprep.subr.bf16.mxu0 0
        %2305 = vmatpush1.bf16.msra.mxu0 0
        %2306 = vmatprep.subr.bf16.mxu0 0
        %2307 = vmatpush1.bf16.msra.mxu0 0
        %2308 = vmatprep.subr.bf16.mxu0 0
        %2309 = vmatpush1.bf16.msra.mxu0 0
        %2310 = vmatprep.mubr.bf16.mxu0 0
        %2311 = vmatmul.mubr.bf16.gmra.mrb[0].mxu0 %v2276
        %v2312 = vpop.f32.mrb[0].mxu0
        %v2313 = vadd.f32 %v2248, %v2312
        %v2314 = vpop.f32.mrb[0].mxu0
        %v2315 = vpop.f32.mrb[0].mxu0
        %v2316 = vpop.f32.mrb[0].mxu0
        %2317 = vdwg.mxu0
        %v2318 = vadd.f32 %v2165, %v2313
        %v2319 = vld [vmem:[%s23] sm:$0x1]
        %v2320 = vld [vmem:[#allocation2] sm:$0x1]
        %v2321 = vsel %vm845, %v2318, 0.0
        %2322 = vadd.xlane.f32.xlu0 %v2321
        %v2323 = vpop.xlane.xlu0 %2322
        %v2324 = vmul.f32 %v2323, %v1441
        %v2325 = vsub.f32 %v2318, %v2324
        %v2326 = vmul.f32 %v2325, %v2325
        %v2327 = vsel %vm845, %v2326, 0.0
        %2328 = vadd.xlane.f32.xlu0 %v2327
        %v2329 = vpop.xlane.xlu0 %2328
        %v2330 = vmul.f32 %v2329, %v1441
        %v2331 = vadd.f32 %v2330, 1e-05
        %v2332 = vrsqrt.pop %v2331
        %v2333 = vmul.f32 %v2325, %v2332
        %v2335 = vlaneseq
        %v2336 = vshrl.u32 %v2335, 7
        %v2337 = vsub.s32 0, %v2336
        %v2338 = vrot.slane %v2319, %v2337
        %v2340 = vmul.f32 %v2333, %v2338
        %v2342 = vlaneseq
        %v2343 = vshrl.u32 %v2342, 7
        %v2344 = vsub.s32 0, %v2343
        %v2345 = vrot.slane %v2320, %v2344
        %v2347 = vadd.f32 %v2340, %v2345
        %2348 = vst.msk [vmem:[%s817] sm:$0xff] %vm845, %v2347
        %p2349 = scmp.lt.s32.totalorder %s37, 1
        %s2350 = scalar_select %p2349, %s37, 1
        %s2351 = smul.addr %s2350, 8
        %s2352 = scalar_lea.vmem %s25, %s2351
        // Predicated region
        $region125: #{seq2seq_transformer_forward.12} parent=119 // pred_check
          %p2353 = pneg %p600
        $region126: #{seq2seq_transformer_forward.12} parent=119 // pred_check_branch
          %2355 = sbr.rel (%p2353) target = $region128
        $region127: #{seq2seq_transformer_forward.12} parent=119 // pred_region
          _
        $region128: #{seq2seq_transformer_forward.12} parent=119 // pred_fallthru
          _
      $region120: #{seq2seq_transformer_forward.12} parent=5 // pred_fallthru
        _
      %p2356 = scmp.le.s32.totalorder 2, %s32
      // Predicated region
      $region129: #{seq2seq_transformer_forward.12} parent=5 // pred_check
        %p2357 = pneg %p2356
      $region130: #{seq2seq_transformer_forward.12} parent=5 // pred_check_branch
        %2359 = sbr.rel (%p2357) target = $region132
      $region131: #{seq2seq_transformer_forward.12} parent=5 // pred_region
        %s2360 = ssub.s32 %s32, 2
        // Predicated region
        $region133: #{seq2seq_transformer_forward.12} parent=131 // pred_check
          %p2361 = pneg %p606
        $region134: #{seq2seq_transformer_forward.12} parent=131 // pred_check_branch
          %2363 = sbr.rel (%p2361) target = $region136
        $region135: #{seq2seq_transformer_forward.12} parent=131 // pred_region
          %p2364 = scmp.lt.s32.totalorder %s38, 1
          %s2365 = scalar_select %p2364, %s38, 1
          %s2366 = smul.addr %s2365, 8
          %s2367 = scalar_lea.vmem %s25, %s2366
        $region136: #{seq2seq_transformer_forward.12} parent=131 // pred_fallthru
          _
      $region132: #{seq2seq_transformer_forward.12} parent=5 // pred_fallthru
        _
    $region6: #{seq2seq_transformer_forward.12} parent=1 // loop_footer
      %s36 = sadd.s32 1, %s32
    $region7: #{seq2seq_transformer_forward.12} parent=1 // loop_footer_branch
      %31 = sbr.rel target = $region3
    $region8: #{seq2seq_transformer_forward.12} parent=1 // loop_exit
      _
    %2368 = vsyncpa [#allocation3], 1
    %s2369 = scalar_lea.sflag [#allocation3], 1
    %2370 = vsyncpa %s2369, 1

</llo_original>
